<compile_context>
chip_gen: v7x
topology: tpu7x:2x2x1
jax: 0.10.0
libtpu: 0.0.40
codegen_flags: <defaults>
</compile_context>

<pallas_src>
import functools
import math

import jax
import jax.numpy as jnp
import numpy as np
from jax.experimental import pallas as pl
from jax.experimental.pallas import tpu as pltpu


# ----------------------------- kernel helpers -----------------------------

def _layernorm(x, w, b, eps=1e-5):
    # PyTorch LayerNorm: biased variance, eps inside sqrt.
    mu = jnp.mean(x, axis=-1, keepdims=True)
    var = jnp.mean((x - mu) ** 2, axis=-1, keepdims=True)
    return (x - mu) * jax.lax.rsqrt(var + eps) * w + b


def _gelu_exact(x):
    # PyTorch activation='gelu' default is the exact erf formulation.
    return 0.5 * x * (1.0 + jax.lax.erf(x * (1.0 / math.sqrt(2.0))))


# ----------------------------- fused CCT kernel -----------------------------

def cct_kernel(x_ref,
               wqkv_ref, bqkv_ref, wo_ref, bo_ref,
               ln1w_ref, ln1b_ref,
               w1_ref, b1_ref, w2_ref, b2_ref,
               ln2w_ref, ln2b_ref,
               normw_ref, normb_ref, wc_ref, bc_ref,
               out_ref, head_out_ref,
               *, num_layers, num_heads, valid_len):
    BB, S, D = x_ref.shape
    H = num_heads
    Dh = D // H
    N = BB * S
    scale = 1.0 / math.sqrt(Dh)

    # Static key-padding mask (only materialized when S was padded on the host).
    if valid_len < S:
        key_ok = jax.lax.broadcasted_iota(jnp.int32, (1, 1, S), 2) < valid_len
        key_bias = jnp.where(key_ok, 0.0, -1e30).astype(jnp.float32)  # (1,1,S)
    else:
        key_bias = None

    # Activation stays f32-resident; flatten batch*tokens so every projection /
    # MLP matmul has a tall LHS.
    x = x_ref[...].astype(jnp.float32).reshape(N, D)

    for li in range(num_layers):                       # static unroll over layers
        # ---- fused QKV projection: bf16 MXU operands, f32 accumulation ----
        qkv = (jnp.dot(x.astype(jnp.bfloat16), wqkv_ref[li],
                       preferred_element_type=jnp.float32) + bqkv_ref[li])

        # ---- per-head attention; head outputs assembled in a bf16 scratch ----
        for h in range(H):                             # static head loop
            qh = qkv[:, h * Dh:(h + 1) * Dh].reshape(BB, S, Dh).astype(jnp.bfloat16)
            kh = qkv[:, D + h * Dh:D + (h + 1) * Dh].reshape(BB, S, Dh).astype(jnp.bfloat16)
            vh = qkv[:, 2 * D + h * Dh:2 * D + (h + 1) * Dh].reshape(BB, S, Dh).astype(jnp.bfloat16)
            sc = jnp.einsum('bqd,bkd->bqk', qh, kh,
                            preferred_element_type=jnp.float32) * scale
            if key_bias is not None:
                sc = sc + key_bias                     # mask padded key columns
            sc = sc - jnp.max(sc, axis=-1, keepdims=True)
            p = jnp.exp(sc)
            p = p * pl.reciprocal(jnp.sum(p, axis=-1, keepdims=True),
                                  approx=True)         # EUP slot
            oh = jnp.einsum('bqk,bkd->bqd', p.astype(jnp.bfloat16), vh,
                            preferred_element_type=jnp.float32)
            head_out_ref[:, h * Dh:(h + 1) * Dh] = oh.reshape(N, Dh).astype(jnp.bfloat16)

        # ---- single full-K output projection (instead of H K=Dh matmuls) ----
        attn = (jnp.dot(head_out_ref[...], wo_ref[li],
                        preferred_element_type=jnp.float32) + bo_ref[li])

        # ---- residual + LayerNorm 1 (post-norm), all f32 elementwise ----
        x1 = _layernorm(x + attn, ln1w_ref[li], ln1b_ref[li])

        # ---- feed-forward: Linear -> exact-erf GELU -> Linear ----
        h1 = _gelu_exact(jnp.dot(x1.astype(jnp.bfloat16), w1_ref[li],
                                 preferred_element_type=jnp.float32) + b1_ref[li])
        h2 = jnp.dot(h1.astype(jnp.bfloat16), w2_ref[li],
                     preferred_element_type=jnp.float32) + b2_ref[li]

        # ---- residual + LayerNorm 2 ----
        x = _layernorm(x1 + h2, ln2w_ref[li], ln2b_ref[li])

    # ---- final LayerNorm + classifier on the CLS token (row 0 per batch) ----
    x_cls = x.reshape(BB, S, D)[:, 0, :]               # (BB, D)
    xn = _layernorm(x_cls, normw_ref[...], normb_ref[...])
    logits = (jnp.dot(xn.astype(jnp.bfloat16), wc_ref[...],
                      preferred_element_type=jnp.float32) + bc_ref[...])
    out_ref[:, 0, :] = logits.astype(out_ref.dtype)    # lane-dense padded slab


# ------------------------------ wrapper plumbing ----------------------------

WEIGHT_ORDER = ('wqkv_t', 'bqkv', 'wo_t', 'bo', 'ln1w', 'ln1b',
                'w1_t', 'b1', 'w2_t', 'b2', 'ln2w', 'ln2b',
                'norm_w', 'norm_b', 'wc_t', 'bc')


def _round_up(n, m):
    return ((n + m - 1) // m) * m


def _const_spec(a, single_buffer):
    nd = a.ndim
    idx = lambda i, _nd=nd: (0,) * _nd
    if single_buffer:
        # Constant index map -> no prefetch buffer needed; single-buffer to
        # halve weight VMEM (matters most on v7x's 64 MiB).
        return pl.BlockSpec(a.shape, idx, pipeline_mode=pl.Buffered(1))
    return pl.BlockSpec(a.shape, idx)


def _vmem_bytes_estimate(bb, s, d, f, weight_bytes):
    """Rough per-grid-step live-set estimate (bytes)."""
    n = bb * s
    act = 4 * n * (6 * d + f)          # x, qkv (3x), attn, x1 in f32 + h1
    scores = 4 * bb * s * s            # per-head f32 scores
    head_scratch = 2 * n * d           # bf16 head-output scratch
    io = 2 * 2 * 4 * bb * s * d        # double-buffered token in + logits out
    return act + scores + head_scratch + io + 2 * weight_bytes


def _choose_batch_block(batch, seq, d_model, d_ff, weight_bytes,
                        vmem_budget=40 * 1024 * 1024, target_rows=512):
    """Largest batch block giving >=4 grid shards (pipelining / megacore) while
    keeping BB*S <= target_rows and the VMEM live-set under budget."""
    min_shards = min(4, batch)
    best = 1
    for bb in range(1, batch + 1):
        if batch % bb:
            continue
        if batch // bb < min_shards:
            continue
        if bb * seq > target_rows:
            continue
        if _vmem_bytes_estimate(bb, seq, d_model, d_ff, weight_bytes) > vmem_budget:
            continue
        best = bb
    return best


def _cost_estimate(B, S, D, F, Cpad, L, H, weight_bytes):
    N = B * S
    per_layer = (2 * N * D * 3 * D        # QKV projection
                 + 4 * B * S * S * D      # scores + probs@V
                 + 2 * N * D * D          # output projection
                 + 4 * N * D * F)         # MLP (two matmuls)
    flops = L * per_layer + 2 * B * D * Cpad
    transcendentals = L * (B * H * S * S + N * F) + N   # exp + erf (+ rsqrt)
    bytes_accessed = 4 * B * S * D + weight_bytes + 4 * B * Cpad
    return int(flops), int(transcendentals), int(bytes_accessed)


def pack_cct_params(params):
    """Host-side packing, done ONCE: stack per-layer weights on a leading layer
    axis, pre-transpose so the kernel computes x @ W, and cast matmul weights to
    bf16 (biases / LayerNorm params stay f32 for the elementwise path)."""
    layers = params['layers']

    def stack(key):
        return jnp.stack([p[key] for p in layers], axis=0)

    def stack_t(key):
        return jnp.stack([p[key].T for p in layers], axis=0).astype(jnp.bfloat16)

    D = params['cls_token'].shape[-1]
    C = params['cls_w'].shape[0]
    Cpad = _round_up(max(C, 128), 128)          # lane-dense classifier output

    wc_t = jnp.zeros((D, Cpad), jnp.float32).at[:, :C].set(params['cls_w'].T)
    bc = jnp.zeros((1, Cpad), jnp.float32).at[:, :C].set(params['cls_b'])

    weights = {
        'wqkv_t': jnp.concatenate([stack_t('wq'), stack_t('wk'), stack_t('wv')],
                                  axis=-1),                       # (L, D, 3D) bf16
        'bqkv': jnp.concatenate([stack('bq'), stack('bk'), stack('bv')],
                                axis=-1),                         # (L, 1, 3D) f32
        'wo_t': stack_t('wo'),                                    # (L, D, D) bf16
        'bo': stack('bo'),                                        # (L, 1, D)
        'ln1w': stack('ln1w'), 'ln1b': stack('ln1b'),             # (L, 1, D)
        'w1_t': stack_t('w1'), 'b1': stack('b1'),                 # (L, D, F) bf16, (L, 1, F)
        'w2_t': stack_t('w2'), 'b2': stack('b2'),                 # (L, F, D) bf16, (L, 1, D)
        'ln2w': stack('ln2w'), 'ln2b': stack('ln2b'),             # (L, 1, D)
        'norm_w': params['norm_w'], 'norm_b': params['norm_b'],   # (1, D)
        'wc_t': wc_t.astype(jnp.bfloat16),                        # (D, Cpad) bf16
        'bc': bc,                                                 # (1, Cpad)
    }
    return {
        'weights': weights,
        'cls_token': params['cls_token'],
        'num_classes': C,
        'num_layers': len(layers),
    }


def _cct_pallas(tokens, weights_dict, *, num_heads, num_layers, num_classes,
                valid_len):
    B, S, D = tokens.shape
    F = weights_dict['w1_t'].shape[-1]
    Cpad = weights_dict['wc_t'].shape[-1]
    weights = [weights_dict[k] for k in WEIGHT_ORDER]
    weight_bytes = sum(int(w.size) * w.dtype.itemsize for w in weights)

    BB = _choose_batch_block(B, S, D, F, weight_bytes)
    grid = (B // BB,)
    flops, transc, bytes_acc = _cost_estimate(B, S, D, F, Cpad,
                                              num_layers, num_heads, weight_bytes)

    kern = functools.partial(cct_kernel, num_layers=num_layers,
                             num_heads=num_heads, valid_len=valid_len)

    def build(single_buffer_weights):
        in_specs = ([pl.BlockSpec((BB, S, D), lambda i: (i, 0, 0))]
                    + [_const_spec(w, single_buffer_weights) for w in weights])
        return pl.pallas_call(
            kern,
            out_shape=jax.ShapeDtypeStruct((B, 1, Cpad), jnp.float32),
            grid=grid,
            in_specs=in_specs,
            out_specs=pl.BlockSpec((BB, 1, Cpad), lambda i: (i, 0, 0)),
            scratch_shapes=[pltpu.VMEM((BB * S, D), jnp.bfloat16)],
            compiler_params=pltpu.CompilerParams(
                dimension_semantics=("parallel",),
                vmem_limit_bytes=48 * 1024 * 1024),   # > v5e default, < v7x physical
            cost_estimate=pl.CostEstimate(flops=flops,
                                          transcendentals=transc,
                                          bytes_accessed=bytes_acc),
        )

    try:
        out = build(True)(tokens, *weights)
    except Exception:
        # Fallback if this jax version rejects single-buffered (Buffered(1)) specs.
        out = build(False)(tokens, *weights)
    return out[:, 0, :num_classes]


def cct_forward(x, packed, num_heads):
    # x: (B, S, D) or (B, D)  (dropout is eval-mode identity)
    if x.ndim == 2:
        x = x[:, None, :]
    B, S_in, D = x.shape
    cls = jnp.broadcast_to(packed['cls_token'], (B, 1, D)).astype(x.dtype)
    tokens = jnp.concatenate([cls, x], axis=1)                    # (B, S_in+1, D)
    S_valid = S_in + 1
    S_pad = _round_up(S_valid, 8)                                 # sublane-aligned
    if S_pad != S_valid:
        tokens = jnp.pad(tokens, ((0, 0), (0, S_pad - S_valid), (0, 0)))
    return _cct_pallas(tokens, packed['weights'],
                       num_heads=num_heads,
                       num_layers=packed['num_layers'],
                       num_classes=packed['num_classes'],
                       valid_len=S_valid)


# ------------------------------- parameters -------------------------------

def _xavier_uniform(key, shape):
    fan_out, fan_in = shape
    bound = math.sqrt(6.0 / (fan_in + fan_out))
    return jax.random.uniform(key, shape, jnp.float32, -bound, bound)


def init_cct_params(key, embedding_dim, num_layers, num_heads, mlp_ratio, num_classes):
    D = embedding_dim
    F = int(D * mlp_ratio)
    keys = jax.random.split(key, 2 + num_layers)
    params = {
        'cls_token': jax.random.normal(keys[0], (1, 1, D), jnp.float32),
        'norm_w': jnp.ones((1, D), jnp.float32),
        'norm_b': jnp.zeros((1, D), jnp.float32),
        'cls_w': _xavier_uniform(keys[1], (num_classes, D)),
        'cls_b': jnp.zeros((1, num_classes), jnp.float32),
        'layers': [],
    }
    for li in range(num_layers):
        ks = jax.random.split(keys[2 + li], 6)
        params['layers'].append({
            'wq': _xavier_uniform(ks[0], (D, D)),
            'wk': _xavier_uniform(ks[1], (D, D)),
            'wv': _xavier_uniform(ks[2], (D, D)),
            'bq': jnp.zeros((1, D), jnp.float32),
            'bk': jnp.zeros((1, D), jnp.float32),
            'bv': jnp.zeros((1, D), jnp.float32),
            'wo': _xavier_uniform(ks[3], (D, D)),
            'bo': jnp.zeros((1, D), jnp.float32),
            'ln1w': jnp.ones((1, D), jnp.float32),
            'ln1b': jnp.zeros((1, D), jnp.float32),
            'w1': _xavier_uniform(ks[4], (F, D)),
            'b1': jnp.zeros((1, F), jnp.float32),
            'w2': _xavier_uniform(ks[5], (D, F)),
            'b2': jnp.zeros((1, D), jnp.float32),
            'ln2w': jnp.ones((1, D), jnp.float32),
            'ln2b': jnp.zeros((1, D), jnp.float32),
        })
    return params


# ---------------------------- pure-JAX reference ---------------------------

def _ref_forward(x, params, num_heads):
    if x.ndim == 2:
        x = x[:, None, :]
    B, _, D = x.shape
    Dh = D // num_heads
    cls = jnp.broadcast_to(params['cls_token'], (B, 1, D))
    x = jnp.concatenate([cls, x], axis=1)
    for p in params['layers']:
        q = x @ p['wq'].T + p['bq']
        k = x @ p['wk'].T + p['bk']
        v = x @ p['wv'].T + p['bv']
        S = x.shape[1]
        qh = q.reshape(B, S, num_heads, Dh).transpose(0, 2, 1, 3)
        kh = k.reshape(B, S, num_heads, Dh).transpose(0, 2, 1, 3)
        vh = v.reshape(B, S, num_heads, Dh).transpose(0, 2, 1, 3)
        s = jnp.einsum('bhqd,bhkd->bhqk', qh, kh) / math.sqrt(Dh)
        a = jax.nn.softmax(s, axis=-1)
        o = jnp.einsum('bhqk,bhkd->bhqd', a, vh).transpose(0, 2, 1, 3).reshape(B, S, D)
        o = o @ p['wo'].T + p['bo']
        x1 = _layernorm(x + o, p['ln1w'], p['ln1b'])
        h = _gelu_exact(x1 @ p['w1'].T + p['b1']) @ p['w2'].T + p['b2']
        x = _layernorm(x1 + h, p['ln2w'], p['ln2b'])
    xc = _layernorm(x[:, 0], params['norm_w'], params['norm_b'])
    return xc @ params['cls_w'].T + params['cls_b']


# --------------------------------- main ------------------------------------

if __name__ == "__main__":
    # Small, forward-consistent shapes.
    B, S = 2, 8
    embedding_dim = 32
    num_layers = 2
    num_heads = 4
    mlp_ratio = 2.0
    num_classes = 8

    key = jax.random.PRNGKey(0)
    kp, kx = jax.random.split(key)
    params = init_cct_params(kp, embedding_dim, num_layers, num_heads,
                             mlp_ratio, num_classes)
    x = jax.random.normal(kx, (B, S, embedding_dim), jnp.float32)

    packed = pack_cct_params(params)        # host-side packing, done once
    out = cct_forward(x, packed, num_heads)
    out = jax.block_until_ready(out)

    ref = _ref_forward(x, params, num_heads)
    # Tolerance relaxed vs the exact f32 reference because matmuls feed the MXU
    # bf16 operands (f32 accumulation) and softmax uses approx reciprocal.
    np.testing.assert_allclose(np.asarray(out), np.asarray(ref),
                               rtol=5e-2, atol=5e-2)

    assert out.shape == (B, num_classes)
    print("KERNEL_OK")
</pallas_src>

<mosaic_0001>
module attributes {stable_mosaic.version = 11 : i64} {
  func.func @cct_kernel(%arg0: i32, %arg1: memref<1x16x32xf32, #tpu.memory_space<vmem>>, %arg2: memref<2x32x96xbf16, #tpu.memory_space<vmem>>, %arg3: memref<2x1x96xf32, #tpu.memory_space<vmem>>, %arg4: memref<2x32x32xbf16, #tpu.memory_space<vmem>>, %arg5: memref<2x1x32xf32, #tpu.memory_space<vmem>>, %arg6: memref<2x1x32xf32, #tpu.memory_space<vmem>>, %arg7: memref<2x1x32xf32, #tpu.memory_space<vmem>>, %arg8: memref<2x32x64xbf16, #tpu.memory_space<vmem>>, %arg9: memref<2x1x64xf32, #tpu.memory_space<vmem>>, %arg10: memref<2x64x32xbf16, #tpu.memory_space<vmem>>, %arg11: memref<2x1x32xf32, #tpu.memory_space<vmem>>, %arg12: memref<2x1x32xf32, #tpu.memory_space<vmem>>, %arg13: memref<2x1x32xf32, #tpu.memory_space<vmem>>, %arg14: memref<1x32xf32, #tpu.memory_space<vmem>>, %arg15: memref<1x32xf32, #tpu.memory_space<vmem>>, %arg16: memref<32x128xbf16, #tpu.memory_space<vmem>>, %arg17: memref<1x128xf32, #tpu.memory_space<vmem>>, %arg18: memref<1x1x128xf32, #tpu.memory_space<vmem>>, %arg19: memref<16x32xbf16, #tpu.memory_space<vmem>>) attributes {dimension_semantics = [#tpu.dimension_semantics<parallel>], iteration_bounds = array<i64: 2>, scalar_prefetch = 0 : i64, scratch_operands = 1 : i64, tpu.core_type = #tpu.core_type<tc>, window_params = [{transform_indices = @transform_0, window_bounds = array<i64: 1, 16, 32>}, {pipeline_mode = #tpu.pipeline_mode<synchronous>, transform_indices = @transform_1, window_bounds = array<i64: 2, 32, 96>}, {pipeline_mode = #tpu.pipeline_mode<synchronous>, transform_indices = @transform_2, window_bounds = array<i64: 2, 1, 96>}, {pipeline_mode = #tpu.pipeline_mode<synchronous>, transform_indices = @transform_3, window_bounds = array<i64: 2, 32, 32>}, {pipeline_mode = #tpu.pipeline_mode<synchronous>, transform_indices = @transform_4, window_bounds = array<i64: 2, 1, 32>}, {pipeline_mode = #tpu.pipeline_mode<synchronous>, transform_indices = @transform_5, window_bounds = array<i64: 2, 1, 32>}, {pipeline_mode = #tpu.pipeline_mode<synchronous>, transform_indices = @transform_6, window_bounds = array<i64: 2, 1, 32>}, {pipeline_mode = #tpu.pipeline_mode<synchronous>, transform_indices = @transform_7, window_bounds = array<i64: 2, 32, 64>}, {pipeline_mode = #tpu.pipeline_mode<synchronous>, transform_indices = @transform_8, window_bounds = array<i64: 2, 1, 64>}, {pipeline_mode = #tpu.pipeline_mode<synchronous>, transform_indices = @transform_9, window_bounds = array<i64: 2, 64, 32>}, {pipeline_mode = #tpu.pipeline_mode<synchronous>, transform_indices = @transform_10, window_bounds = array<i64: 2, 1, 32>}, {pipeline_mode = #tpu.pipeline_mode<synchronous>, transform_indices = @transform_11, window_bounds = array<i64: 2, 1, 32>}, {pipeline_mode = #tpu.pipeline_mode<synchronous>, transform_indices = @transform_12, window_bounds = array<i64: 2, 1, 32>}, {pipeline_mode = #tpu.pipeline_mode<synchronous>, transform_indices = @transform_13, window_bounds = array<i64: 1, 32>}, {pipeline_mode = #tpu.pipeline_mode<synchronous>, transform_indices = @transform_14, window_bounds = array<i64: 1, 32>}, {pipeline_mode = #tpu.pipeline_mode<synchronous>, transform_indices = @transform_15, window_bounds = array<i64: 32, 128>}, {pipeline_mode = #tpu.pipeline_mode<synchronous>, transform_indices = @transform_16, window_bounds = array<i64: 1, 128>}, {transform_indices = @transform_17, window_bounds = array<i64: 1, 1, 128>}]} {
    %0 = tpu.iota {dimensions = array<i32: 2>} : vector<1x1x16xi32>
    %c9_i32 = arith.constant 9 : i32
    %1 = vector.broadcast %c9_i32 : i32 to vector<1x1x16xi32>
    %2 = arith.cmpi slt, %0, %1 : vector<1x1x16xi32>
    %cst = arith.constant 0.000000e+00 : f32
    %cst_0 = arith.constant -1.000000e+30 : f32
    %3 = vector.broadcast %cst : f32 to vector<1x1x16xf32>
    %4 = vector.broadcast %cst_0 : f32 to vector<1x1x16xf32>
    %5 = arith.select %2, %3, %4 : vector<1x1x16xi1>, vector<1x1x16xf32>
    %c0 = arith.constant 0 : index
    %c0_1 = arith.constant 0 : index
    %c0_2 = arith.constant 0 : index
    %6 = vector.load %arg1[%c0, %c0_1, %c0_2] : memref<1x16x32xf32, #tpu.memory_space<vmem>>, vector<1x16x32xf32>
    %7 = vector.shape_cast %6 : vector<1x16x32xf32> to vector<16x32xf32>
    %8 = arith.truncf %7 : vector<16x32xf32> to vector<16x32xbf16>
    %c0_3 = arith.constant 0 : index
    %c0_4 = arith.constant 0 : index
    %c0_5 = arith.constant 0 : index
    %9 = vector.load %arg2[%c0_3, %c0_4, %c0_5] : memref<2x32x96xbf16, #tpu.memory_space<vmem>>, vector<1x32x96xbf16>
    %10 = vector.shape_cast %9 : vector<1x32x96xbf16> to vector<32x96xbf16>
    %cst_6 = arith.constant dense<0.000000e+00> : vector<16x96xf32>
    %11 = tpu.matmul %8, %10, %cst_6 {dimension_numbers = #tpu.dot_dimension_numbers<[1], [0], [0], [1], [0, 0, 1, 1], [], []>} : vector<16x32xbf16>, vector<32x96xbf16>, vector<16x96xf32> -> vector<16x96xf32>
    %c0_7 = arith.constant 0 : index
    %c0_8 = arith.constant 0 : index
    %c0_9 = arith.constant 0 : index
    %12 = vector.load %arg3[%c0_7, %c0_8, %c0_9] : memref<2x1x96xf32, #tpu.memory_space<vmem>>, vector<1x1x96xf32>
    %13 = vector.shape_cast %12 : vector<1x1x96xf32> to vector<1x96xf32>
    %14 = vector.broadcast %13 : vector<1x96xf32> to vector<16x96xf32>
    %15 = arith.addf %11, %14 : vector<16x96xf32>
    %16 = vector.extract_strided_slice %15 {offsets = [0, 0], sizes = [16, 8], strides = [1, 1]} : vector<16x96xf32> to vector<16x8xf32>
    %17 = vector.shape_cast %16 : vector<16x8xf32> to vector<1x16x8xf32>
    %18 = arith.truncf %17 : vector<1x16x8xf32> to vector<1x16x8xbf16>
    %19 = vector.extract_strided_slice %15 {offsets = [0, 32], sizes = [16, 8], strides = [1, 1]} : vector<16x96xf32> to vector<16x8xf32>
    %20 = vector.shape_cast %19 : vector<16x8xf32> to vector<1x16x8xf32>
    %21 = arith.truncf %20 : vector<1x16x8xf32> to vector<1x16x8xbf16>
    %22 = vector.extract_strided_slice %15 {offsets = [0, 64], sizes = [16, 8], strides = [1, 1]} : vector<16x96xf32> to vector<16x8xf32>
    %23 = vector.shape_cast %22 : vector<16x8xf32> to vector<1x16x8xf32>
    %24 = arith.truncf %23 : vector<1x16x8xf32> to vector<1x16x8xbf16>
    "tpu.trace_start"() <{level = 10 : i32, message = "bqd,bkd->bqk"}> : () -> ()
    %cst_10 = arith.constant dense<0.000000e+00> : vector<1x16x16xf32>
    %25 = tpu.matmul %18, %21, %cst_10 {dimension_numbers = #tpu.dot_dimension_numbers<[2], [2], [1], [1], [0, 0, 0, 1, 1, 1], [0], [0]>} : vector<1x16x8xbf16>, vector<1x16x8xbf16>, vector<1x16x16xf32> -> vector<1x16x16xf32>
    "tpu.trace_stop"() : () -> ()
    %cst_11 = arith.constant 0.353553385 : f32
    %26 = vector.broadcast %cst_11 : f32 to vector<1x16x16xf32>
    %27 = arith.mulf %25, %26 : vector<1x16x16xf32>
    %28 = vector.broadcast %5 : vector<1x1x16xf32> to vector<1x16x16xf32>
    %29 = arith.addf %27, %28 : vector<1x16x16xf32>
    %cst_12 = arith.constant dense<0xFF800000> : vector<1x16xf32>
    %30 = vector.multi_reduction <maximumf>, %29, %cst_12 [2] : vector<1x16x16xf32> to vector<1x16xf32>
    %31 = vector.shape_cast %30 : vector<1x16xf32> to vector<1x16x1xf32>
    %32 = vector.broadcast %31 : vector<1x16x1xf32> to vector<1x16x16xf32>
    %33 = arith.subf %29, %32 : vector<1x16x16xf32>
    %34 = math.exp %33 : vector<1x16x16xf32>
    %cst_13 = arith.constant dense<0.000000e+00> : vector<1x16xf32>
    %35 = vector.multi_reduction <add>, %34, %cst_13 [2] : vector<1x16x16xf32> to vector<1x16xf32>
    %36 = vector.shape_cast %35 : vector<1x16xf32> to vector<1x16x1xf32>
    %37 = tpu.reciprocal %36 {approx = true} : vector<1x16x1xf32> -> vector<1x16x1xf32>
    %38 = vector.broadcast %37 : vector<1x16x1xf32> to vector<1x16x16xf32>
    %39 = arith.mulf %34, %38 : vector<1x16x16xf32>
    %40 = arith.truncf %39 : vector<1x16x16xf32> to vector<1x16x16xbf16>
    "tpu.trace_start"() <{level = 10 : i32, message = "bqk,bkd->bqd"}> : () -> ()
    %cst_14 = arith.constant dense<0.000000e+00> : vector<1x16x8xf32>
    %41 = tpu.matmul %40, %24, %cst_14 {dimension_numbers = #tpu.dot_dimension_numbers<[2], [1], [1], [2], [0, 0, 0, 1, 1, 2], [0], [0]>} : vector<1x16x16xbf16>, vector<1x16x8xbf16>, vector<1x16x8xf32> -> vector<1x16x8xf32>
    "tpu.trace_stop"() : () -> ()
    %42 = vector.shape_cast %41 : vector<1x16x8xf32> to vector<16x8xf32>
    %43 = arith.truncf %42 : vector<16x8xf32> to vector<16x8xbf16>
    %c0_15 = arith.constant 0 : index
    %c0_16 = arith.constant 0 : index
    %44 = vector.load %arg19[%c0_15, %c0_16] : memref<16x32xbf16, #tpu.memory_space<vmem>>, vector<16x8xbf16>
    tpu.vector_store %arg19[%c0_15, %c0_16], %43 {strides = array<i32>} : memref<16x32xbf16, #tpu.memory_space<vmem>>, vector<16x8xbf16>,
    %45 = vector.extract_strided_slice %15 {offsets = [0, 8], sizes = [16, 8], strides = [1, 1]} : vector<16x96xf32> to vector<16x8xf32>
    %46 = vector.shape_cast %45 : vector<16x8xf32> to vector<1x16x8xf32>
    %47 = arith.truncf %46 : vector<1x16x8xf32> to vector<1x16x8xbf16>
    %48 = vector.extract_strided_slice %15 {offsets = [0, 40], sizes = [16, 8], strides = [1, 1]} : vector<16x96xf32> to vector<16x8xf32>
    %49 = vector.shape_cast %48 : vector<16x8xf32> to vector<1x16x8xf32>
    %50 = arith.truncf %49 : vector<1x16x8xf32> to vector<1x16x8xbf16>
    %51 = vector.extract_strided_slice %15 {offsets = [0, 72], sizes = [16, 8], strides = [1, 1]} : vector<16x96xf32> to vector<16x8xf32>
    %52 = vector.shape_cast %51 : vector<16x8xf32> to vector<1x16x8xf32>
    %53 = arith.truncf %52 : vector<1x16x8xf32> to vector<1x16x8xbf16>
    "tpu.trace_start"() <{level = 10 : i32, message = "bqd,bkd->bqk"}> : () -> ()
    %cst_17 = arith.constant dense<0.000000e+00> : vector<1x16x16xf32>
    %54 = tpu.matmul %47, %50, %cst_17 {dimension_numbers = #tpu.dot_dimension_numbers<[2], [2], [1], [1], [0, 0, 0, 1, 1, 1], [0], [0]>} : vector<1x16x8xbf16>, vector<1x16x8xbf16>, vector<1x16x16xf32> -> vector<1x16x16xf32>
    "tpu.trace_stop"() : () -> ()
    %cst_18 = arith.constant 0.353553385 : f32
    %55 = vector.broadcast %cst_18 : f32 to vector<1x16x16xf32>
    %56 = arith.mulf %54, %55 : vector<1x16x16xf32>
    %57 = vector.broadcast %5 : vector<1x1x16xf32> to vector<1x16x16xf32>
    %58 = arith.addf %56, %57 : vector<1x16x16xf32>
    %cst_19 = arith.constant dense<0xFF800000> : vector<1x16xf32>
    %59 = vector.multi_reduction <maximumf>, %58, %cst_19 [2] : vector<1x16x16xf32> to vector<1x16xf32>
    %60 = vector.shape_cast %59 : vector<1x16xf32> to vector<1x16x1xf32>
    %61 = vector.broadcast %60 : vector<1x16x1xf32> to vector<1x16x16xf32>
    %62 = arith.subf %58, %61 : vector<1x16x16xf32>
    %63 = math.exp %62 : vector<1x16x16xf32>
    %cst_20 = arith.constant dense<0.000000e+00> : vector<1x16xf32>
    %64 = vector.multi_reduction <add>, %63, %cst_20 [2] : vector<1x16x16xf32> to vector<1x16xf32>
    %65 = vector.shape_cast %64 : vector<1x16xf32> to vector<1x16x1xf32>
    %66 = tpu.reciprocal %65 {approx = true} : vector<1x16x1xf32> -> vector<1x16x1xf32>
    %67 = vector.broadcast %66 : vector<1x16x1xf32> to vector<1x16x16xf32>
    %68 = arith.mulf %63, %67 : vector<1x16x16xf32>
    %69 = arith.truncf %68 : vector<1x16x16xf32> to vector<1x16x16xbf16>
    "tpu.trace_start"() <{level = 10 : i32, message = "bqk,bkd->bqd"}> : () -> ()
    %cst_21 = arith.constant dense<0.000000e+00> : vector<1x16x8xf32>
    %70 = tpu.matmul %69, %53, %cst_21 {dimension_numbers = #tpu.dot_dimension_numbers<[2], [1], [1], [2], [0, 0, 0, 1, 1, 2], [0], [0]>} : vector<1x16x16xbf16>, vector<1x16x8xbf16>, vector<1x16x8xf32> -> vector<1x16x8xf32>
    "tpu.trace_stop"() : () -> ()
    %71 = vector.shape_cast %70 : vector<1x16x8xf32> to vector<16x8xf32>
    %72 = arith.truncf %71 : vector<16x8xf32> to vector<16x8xbf16>
    %c0_22 = arith.constant 0 : index
    %c8 = arith.constant 8 : index
    %73 = vector.load %arg19[%c0_22, %c8] : memref<16x32xbf16, #tpu.memory_space<vmem>>, vector<16x8xbf16>
    tpu.vector_store %arg19[%c0_22, %c8], %72 {strides = array<i32>} : memref<16x32xbf16, #tpu.memory_space<vmem>>, vector<16x8xbf16>,
    %74 = vector.extract_strided_slice %15 {offsets = [0, 16], sizes = [16, 8], strides = [1, 1]} : vector<16x96xf32> to vector<16x8xf32>
    %75 = vector.shape_cast %74 : vector<16x8xf32> to vector<1x16x8xf32>
    %76 = arith.truncf %75 : vector<1x16x8xf32> to vector<1x16x8xbf16>
    %77 = vector.extract_strided_slice %15 {offsets = [0, 48], sizes = [16, 8], strides = [1, 1]} : vector<16x96xf32> to vector<16x8xf32>
    %78 = vector.shape_cast %77 : vector<16x8xf32> to vector<1x16x8xf32>
    %79 = arith.truncf %78 : vector<1x16x8xf32> to vector<1x16x8xbf16>
    %80 = vector.extract_strided_slice %15 {offsets = [0, 80], sizes = [16, 8], strides = [1, 1]} : vector<16x96xf32> to vector<16x8xf32>
    %81 = vector.shape_cast %80 : vector<16x8xf32> to vector<1x16x8xf32>
    %82 = arith.truncf %81 : vector<1x16x8xf32> to vector<1x16x8xbf16>
    "tpu.trace_start"() <{level = 10 : i32, message = "bqd,bkd->bqk"}> : () -> ()
    %cst_23 = arith.constant dense<0.000000e+00> : vector<1x16x16xf32>
    %83 = tpu.matmul %76, %79, %cst_23 {dimension_numbers = #tpu.dot_dimension_numbers<[2], [2], [1], [1], [0, 0, 0, 1, 1, 1], [0], [0]>} : vector<1x16x8xbf16>, vector<1x16x8xbf16>, vector<1x16x16xf32> -> vector<1x16x16xf32>
    "tpu.trace_stop"() : () -> ()
    %cst_24 = arith.constant 0.353553385 : f32
    %84 = vector.broadcast %cst_24 : f32 to vector<1x16x16xf32>
    %85 = arith.mulf %83, %84 : vector<1x16x16xf32>
    %86 = vector.broadcast %5 : vector<1x1x16xf32> to vector<1x16x16xf32>
    %87 = arith.addf %85, %86 : vector<1x16x16xf32>
    %cst_25 = arith.constant dense<0xFF800000> : vector<1x16xf32>
    %88 = vector.multi_reduction <maximumf>, %87, %cst_25 [2] : vector<1x16x16xf32> to vector<1x16xf32>
    %89 = vector.shape_cast %88 : vector<1x16xf32> to vector<1x16x1xf32>
    %90 = vector.broadcast %89 : vector<1x16x1xf32> to vector<1x16x16xf32>
    %91 = arith.subf %87, %90 : vector<1x16x16xf32>
    %92 = math.exp %91 : vector<1x16x16xf32>
    %cst_26 = arith.constant dense<0.000000e+00> : vector<1x16xf32>
    %93 = vector.multi_reduction <add>, %92, %cst_26 [2] : vector<1x16x16xf32> to vector<1x16xf32>
    %94 = vector.shape_cast %93 : vector<1x16xf32> to vector<1x16x1xf32>
    %95 = tpu.reciprocal %94 {approx = true} : vector<1x16x1xf32> -> vector<1x16x1xf32>
    %96 = vector.broadcast %95 : vector<1x16x1xf32> to vector<1x16x16xf32>
    %97 = arith.mulf %92, %96 : vector<1x16x16xf32>
    %98 = arith.truncf %97 : vector<1x16x16xf32> to vector<1x16x16xbf16>
    "tpu.trace_start"() <{level = 10 : i32, message = "bqk,bkd->bqd"}> : () -> ()
    %cst_27 = arith.constant dense<0.000000e+00> : vector<1x16x8xf32>
    %99 = tpu.matmul %98, %82, %cst_27 {dimension_numbers = #tpu.dot_dimension_numbers<[2], [1], [1], [2], [0, 0, 0, 1, 1, 2], [0], [0]>} : vector<1x16x16xbf16>, vector<1x16x8xbf16>, vector<1x16x8xf32> -> vector<1x16x8xf32>
    "tpu.trace_stop"() : () -> ()
    %100 = vector.shape_cast %99 : vector<1x16x8xf32> to vector<16x8xf32>
    %101 = arith.truncf %100 : vector<16x8xf32> to vector<16x8xbf16>
    %c0_28 = arith.constant 0 : index
    %c16 = arith.constant 16 : index
    %102 = vector.load %arg19[%c0_28, %c16] : memref<16x32xbf16, #tpu.memory_space<vmem>>, vector<16x8xbf16>
    tpu.vector_store %arg19[%c0_28, %c16], %101 {strides = array<i32>} : memref<16x32xbf16, #tpu.memory_space<vmem>>, vector<16x8xbf16>,
    %103 = vector.extract_strided_slice %15 {offsets = [0, 24], sizes = [16, 8], strides = [1, 1]} : vector<16x96xf32> to vector<16x8xf32>
    %104 = vector.shape_cast %103 : vector<16x8xf32> to vector<1x16x8xf32>
    %105 = arith.truncf %104 : vector<1x16x8xf32> to vector<1x16x8xbf16>
    %106 = vector.extract_strided_slice %15 {offsets = [0, 56], sizes = [16, 8], strides = [1, 1]} : vector<16x96xf32> to vector<16x8xf32>
    %107 = vector.shape_cast %106 : vector<16x8xf32> to vector<1x16x8xf32>
    %108 = arith.truncf %107 : vector<1x16x8xf32> to vector<1x16x8xbf16>
    %109 = vector.extract_strided_slice %15 {offsets = [0, 88], sizes = [16, 8], strides = [1, 1]} : vector<16x96xf32> to vector<16x8xf32>
    %110 = vector.shape_cast %109 : vector<16x8xf32> to vector<1x16x8xf32>
    %111 = arith.truncf %110 : vector<1x16x8xf32> to vector<1x16x8xbf16>
    "tpu.trace_start"() <{level = 10 : i32, message = "bqd,bkd->bqk"}> : () -> ()
    %cst_29 = arith.constant dense<0.000000e+00> : vector<1x16x16xf32>
    %112 = tpu.matmul %105, %108, %cst_29 {dimension_numbers = #tpu.dot_dimension_numbers<[2], [2], [1], [1], [0, 0, 0, 1, 1, 1], [0], [0]>} : vector<1x16x8xbf16>, vector<1x16x8xbf16>, vector<1x16x16xf32> -> vector<1x16x16xf32>
    "tpu.trace_stop"() : () -> ()
    %cst_30 = arith.constant 0.353553385 : f32
    %113 = vector.broadcast %cst_30 : f32 to vector<1x16x16xf32>
    %114 = arith.mulf %112, %113 : vector<1x16x16xf32>
    %115 = vector.broadcast %5 : vector<1x1x16xf32> to vector<1x16x16xf32>
    %116 = arith.addf %114, %115 : vector<1x16x16xf32>
    %cst_31 = arith.constant dense<0xFF800000> : vector<1x16xf32>
    %117 = vector.multi_reduction <maximumf>, %116, %cst_31 [2] : vector<1x16x16xf32> to vector<1x16xf32>
    %118 = vector.shape_cast %117 : vector<1x16xf32> to vector<1x16x1xf32>
    %119 = vector.broadcast %118 : vector<1x16x1xf32> to vector<1x16x16xf32>
    %120 = arith.subf %116, %119 : vector<1x16x16xf32>
    %121 = math.exp %120 : vector<1x16x16xf32>
    %cst_32 = arith.constant dense<0.000000e+00> : vector<1x16xf32>
    %122 = vector.multi_reduction <add>, %121, %cst_32 [2] : vector<1x16x16xf32> to vector<1x16xf32>
    %123 = vector.shape_cast %122 : vector<1x16xf32> to vector<1x16x1xf32>
    %124 = tpu.reciprocal %123 {approx = true} : vector<1x16x1xf32> -> vector<1x16x1xf32>
    %125 = vector.broadcast %124 : vector<1x16x1xf32> to vector<1x16x16xf32>
    %126 = arith.mulf %121, %125 : vector<1x16x16xf32>
    %127 = arith.truncf %126 : vector<1x16x16xf32> to vector<1x16x16xbf16>
    "tpu.trace_start"() <{level = 10 : i32, message = "bqk,bkd->bqd"}> : () -> ()
    %cst_33 = arith.constant dense<0.000000e+00> : vector<1x16x8xf32>
    %128 = tpu.matmul %127, %111, %cst_33 {dimension_numbers = #tpu.dot_dimension_numbers<[2], [1], [1], [2], [0, 0, 0, 1, 1, 2], [0], [0]>} : vector<1x16x16xbf16>, vector<1x16x8xbf16>, vector<1x16x8xf32> -> vector<1x16x8xf32>
    "tpu.trace_stop"() : () -> ()
    %129 = vector.shape_cast %128 : vector<1x16x8xf32> to vector<16x8xf32>
    %130 = arith.truncf %129 : vector<16x8xf32> to vector<16x8xbf16>
    %c0_34 = arith.constant 0 : index
    %c24 = arith.constant 24 : index
    %131 = vector.load %arg19[%c0_34, %c24] : memref<16x32xbf16, #tpu.memory_space<vmem>>, vector<16x8xbf16>
    tpu.vector_store %arg19[%c0_34, %c24], %130 {strides = array<i32>} : memref<16x32xbf16, #tpu.memory_space<vmem>>, vector<16x8xbf16>,
    %c0_35 = arith.constant 0 : index
    %c0_36 = arith.constant 0 : index
    %132 = vector.load %arg19[%c0_35, %c0_36] : memref<16x32xbf16, #tpu.memory_space<vmem>>, vector<16x32xbf16>
    %c0_37 = arith.constant 0 : index
    %c0_38 = arith.constant 0 : index
    %c0_39 = arith.constant 0 : index
    %133 = vector.load %arg4[%c0_37, %c0_38, %c0_39] : memref<2x32x32xbf16, #tpu.memory_space<vmem>>, vector<1x32x32xbf16>
    %134 = vector.shape_cast %133 : vector<1x32x32xbf16> to vector<32x32xbf16>
    %cst_40 = arith.constant dense<0.000000e+00> : vector<16x32xf32>
    %135 = tpu.matmul %132, %134, %cst_40 {dimension_numbers = #tpu.dot_dimension_numbers<[1], [0], [0], [1], [0, 0, 1, 1], [], []>} : vector<16x32xbf16>, vector<32x32xbf16>, vector<16x32xf32> -> vector<16x32xf32>
    %c0_41 = arith.constant 0 : index
    %c0_42 = arith.constant 0 : index
    %c0_43 = arith.constant 0 : index
    %136 = vector.load %arg5[%c0_41, %c0_42, %c0_43] : memref<2x1x32xf32, #tpu.memory_space<vmem>>, vector<1x1x32xf32>
    %137 = vector.shape_cast %136 : vector<1x1x32xf32> to vector<1x32xf32>
    %138 = vector.broadcast %137 : vector<1x32xf32> to vector<16x32xf32>
    %139 = arith.addf %135, %138 : vector<16x32xf32>
    %140 = arith.addf %7, %139 : vector<16x32xf32>
    %c0_44 = arith.constant 0 : index
    %c0_45 = arith.constant 0 : index
    %c0_46 = arith.constant 0 : index
    %141 = vector.load %arg6[%c0_44, %c0_45, %c0_46] : memref<2x1x32xf32, #tpu.memory_space<vmem>>, vector<1x1x32xf32>
    %142 = vector.shape_cast %141 : vector<1x1x32xf32> to vector<1x32xf32>
    %c0_47 = arith.constant 0 : index
    %c0_48 = arith.constant 0 : index
    %c0_49 = arith.constant 0 : index
    %143 = vector.load %arg7[%c0_47, %c0_48, %c0_49] : memref<2x1x32xf32, #tpu.memory_space<vmem>>, vector<1x1x32xf32>
    %144 = vector.shape_cast %143 : vector<1x1x32xf32> to vector<1x32xf32>
    %cst_50 = arith.constant dense<0.000000e+00> : vector<16xf32>
    %145 = vector.multi_reduction <add>, %140, %cst_50 [1] : vector<16x32xf32> to vector<16xf32>
    %146 = vector.shape_cast %145 : vector<16xf32> to vector<16x1xf32>
    %cst_51 = arith.constant 3.200000e+01 : f32
    %147 = vector.broadcast %cst_51 : f32 to vector<16x1xf32>
    %148 = arith.divf %146, %147 : vector<16x1xf32>
    %149 = vector.broadcast %148 : vector<16x1xf32> to vector<16x32xf32>
    %150 = arith.subf %140, %149 : vector<16x32xf32>
    %151 = arith.mulf %150, %150 : vector<16x32xf32>
    %cst_52 = arith.constant dense<0.000000e+00> : vector<16xf32>
    %152 = vector.multi_reduction <add>, %151, %cst_52 [1] : vector<16x32xf32> to vector<16xf32>
    %153 = vector.shape_cast %152 : vector<16xf32> to vector<16x1xf32>
    %cst_53 = arith.constant 3.200000e+01 : f32
    %154 = vector.broadcast %cst_53 : f32 to vector<16x1xf32>
    %155 = arith.divf %153, %154 : vector<16x1xf32>
    %156 = vector.broadcast %148 : vector<16x1xf32> to vector<16x32xf32>
    %157 = arith.subf %140, %156 : vector<16x32xf32>
    %cst_54 = arith.constant 9.99999974E-6 : f32
    %158 = vector.broadcast %cst_54 : f32 to vector<16x1xf32>
    %159 = arith.addf %155, %158 : vector<16x1xf32>
    %160 = math.rsqrt %159 : vector<16x1xf32>
    %161 = vector.broadcast %160 : vector<16x1xf32> to vector<16x32xf32>
    %162 = arith.mulf %157, %161 : vector<16x32xf32>
    %163 = vector.broadcast %142 : vector<1x32xf32> to vector<16x32xf32>
    %164 = arith.mulf %162, %163 : vector<16x32xf32>
    %165 = vector.broadcast %144 : vector<1x32xf32> to vector<16x32xf32>
    %166 = arith.addf %164, %165 : vector<16x32xf32>
    %167 = arith.truncf %166 : vector<16x32xf32> to vector<16x32xbf16>
    %c0_55 = arith.constant 0 : index
    %c0_56 = arith.constant 0 : index
    %c0_57 = arith.constant 0 : index
    %168 = vector.load %arg8[%c0_55, %c0_56, %c0_57] : memref<2x32x64xbf16, #tpu.memory_space<vmem>>, vector<1x32x64xbf16>
    %169 = vector.shape_cast %168 : vector<1x32x64xbf16> to vector<32x64xbf16>
    %cst_58 = arith.constant dense<0.000000e+00> : vector<16x64xf32>
    %170 = tpu.matmul %167, %169, %cst_58 {dimension_numbers = #tpu.dot_dimension_numbers<[1], [0], [0], [1], [0, 0, 1, 1], [], []>} : vector<16x32xbf16>, vector<32x64xbf16>, vector<16x64xf32> -> vector<16x64xf32>
    %c0_59 = arith.constant 0 : index
    %c0_60 = arith.constant 0 : index
    %c0_61 = arith.constant 0 : index
    %171 = vector.load %arg9[%c0_59, %c0_60, %c0_61] : memref<2x1x64xf32, #tpu.memory_space<vmem>>, vector<1x1x64xf32>
    %172 = vector.shape_cast %171 : vector<1x1x64xf32> to vector<1x64xf32>
    %173 = vector.broadcast %172 : vector<1x64xf32> to vector<16x64xf32>
    %174 = arith.addf %170, %173 : vector<16x64xf32>
    %cst_62 = arith.constant 5.000000e-01 : f32
    %175 = vector.broadcast %cst_62 : f32 to vector<16x64xf32>
    %176 = arith.mulf %175, %174 : vector<16x64xf32>
    %cst_63 = arith.constant 0.707106769 : f32
    %177 = vector.broadcast %cst_63 : f32 to vector<16x64xf32>
    %178 = arith.mulf %174, %177 : vector<16x64xf32>
    %179 = math.erf %178 : vector<16x64xf32>
    %cst_64 = arith.constant 1.000000e+00 : f32
    %180 = vector.broadcast %cst_64 : f32 to vector<16x64xf32>
    %181 = arith.addf %180, %179 : vector<16x64xf32>
    %182 = arith.mulf %176, %181 : vector<16x64xf32>
    %183 = arith.truncf %182 : vector<16x64xf32> to vector<16x64xbf16>
    %c0_65 = arith.constant 0 : index
    %c0_66 = arith.constant 0 : index
    %c0_67 = arith.constant 0 : index
    %184 = vector.load %arg10[%c0_65, %c0_66, %c0_67] : memref<2x64x32xbf16, #tpu.memory_space<vmem>>, vector<1x64x32xbf16>
    %185 = vector.shape_cast %184 : vector<1x64x32xbf16> to vector<64x32xbf16>
    %cst_68 = arith.constant dense<0.000000e+00> : vector<16x32xf32>
    %186 = tpu.matmul %183, %185, %cst_68 {dimension_numbers = #tpu.dot_dimension_numbers<[1], [0], [0], [1], [0, 0, 1, 1], [], []>} : vector<16x64xbf16>, vector<64x32xbf16>, vector<16x32xf32> -> vector<16x32xf32>
    %c0_69 = arith.constant 0 : index
    %c0_70 = arith.constant 0 : index
    %c0_71 = arith.constant 0 : index
    %187 = vector.load %arg11[%c0_69, %c0_70, %c0_71] : memref<2x1x32xf32, #tpu.memory_space<vmem>>, vector<1x1x32xf32>
    %188 = vector.shape_cast %187 : vector<1x1x32xf32> to vector<1x32xf32>
    %189 = vector.broadcast %188 : vector<1x32xf32> to vector<16x32xf32>
    %190 = arith.addf %186, %189 : vector<16x32xf32>
    %191 = arith.addf %166, %190 : vector<16x32xf32>
    %c0_72 = arith.constant 0 : index
    %c0_73 = arith.constant 0 : index
    %c0_74 = arith.constant 0 : index
    %192 = vector.load %arg12[%c0_72, %c0_73, %c0_74] : memref<2x1x32xf32, #tpu.memory_space<vmem>>, vector<1x1x32xf32>
    %193 = vector.shape_cast %192 : vector<1x1x32xf32> to vector<1x32xf32>
    %c0_75 = arith.constant 0 : index
    %c0_76 = arith.constant 0 : index
    %c0_77 = arith.constant 0 : index
    %194 = vector.load %arg13[%c0_75, %c0_76, %c0_77] : memref<2x1x32xf32, #tpu.memory_space<vmem>>, vector<1x1x32xf32>
    %195 = vector.shape_cast %194 : vector<1x1x32xf32> to vector<1x32xf32>
    %cst_78 = arith.constant dense<0.000000e+00> : vector<16xf32>
    %196 = vector.multi_reduction <add>, %191, %cst_78 [1] : vector<16x32xf32> to vector<16xf32>
    %197 = vector.shape_cast %196 : vector<16xf32> to vector<16x1xf32>
    %cst_79 = arith.constant 3.200000e+01 : f32
    %198 = vector.broadcast %cst_79 : f32 to vector<16x1xf32>
    %199 = arith.divf %197, %198 : vector<16x1xf32>
    %200 = vector.broadcast %199 : vector<16x1xf32> to vector<16x32xf32>
    %201 = arith.subf %191, %200 : vector<16x32xf32>
    %202 = arith.mulf %201, %201 : vector<16x32xf32>
    %cst_80 = arith.constant dense<0.000000e+00> : vector<16xf32>
    %203 = vector.multi_reduction <add>, %202, %cst_80 [1] : vector<16x32xf32> to vector<16xf32>
    %204 = vector.shape_cast %203 : vector<16xf32> to vector<16x1xf32>
    %cst_81 = arith.constant 3.200000e+01 : f32
    %205 = vector.broadcast %cst_81 : f32 to vector<16x1xf32>
    %206 = arith.divf %204, %205 : vector<16x1xf32>
    %207 = vector.broadcast %199 : vector<16x1xf32> to vector<16x32xf32>
    %208 = arith.subf %191, %207 : vector<16x32xf32>
    %cst_82 = arith.constant 9.99999974E-6 : f32
    %209 = vector.broadcast %cst_82 : f32 to vector<16x1xf32>
    %210 = arith.addf %206, %209 : vector<16x1xf32>
    %211 = math.rsqrt %210 : vector<16x1xf32>
    %212 = vector.broadcast %211 : vector<16x1xf32> to vector<16x32xf32>
    %213 = arith.mulf %208, %212 : vector<16x32xf32>
    %214 = vector.broadcast %193 : vector<1x32xf32> to vector<16x32xf32>
    %215 = arith.mulf %213, %214 : vector<16x32xf32>
    %216 = vector.broadcast %195 : vector<1x32xf32> to vector<16x32xf32>
    %217 = arith.addf %215, %216 : vector<16x32xf32>
    %218 = arith.truncf %217 : vector<16x32xf32> to vector<16x32xbf16>
    %c1 = arith.constant 1 : index
    %c0_83 = arith.constant 0 : index
    %c0_84 = arith.constant 0 : index
    %219 = vector.load %arg2[%c1, %c0_83, %c0_84] : memref<2x32x96xbf16, #tpu.memory_space<vmem>>, vector<1x32x96xbf16>
    %220 = vector.shape_cast %219 : vector<1x32x96xbf16> to vector<32x96xbf16>
    %cst_85 = arith.constant dense<0.000000e+00> : vector<16x96xf32>
    %221 = tpu.matmul %218, %220, %cst_85 {dimension_numbers = #tpu.dot_dimension_numbers<[1], [0], [0], [1], [0, 0, 1, 1], [], []>} : vector<16x32xbf16>, vector<32x96xbf16>, vector<16x96xf32> -> vector<16x96xf32>
    %c1_86 = arith.constant 1 : index
    %c0_87 = arith.constant 0 : index
    %c0_88 = arith.constant 0 : index
    %222 = vector.load %arg3[%c1_86, %c0_87, %c0_88] : memref<2x1x96xf32, #tpu.memory_space<vmem>>, vector<1x1x96xf32>
    %223 = vector.shape_cast %222 : vector<1x1x96xf32> to vector<1x96xf32>
    %224 = vector.broadcast %223 : vector<1x96xf32> to vector<16x96xf32>
    %225 = arith.addf %221, %224 : vector<16x96xf32>
    %226 = vector.extract_strided_slice %225 {offsets = [0, 0], sizes = [16, 8], strides = [1, 1]} : vector<16x96xf32> to vector<16x8xf32>
    %227 = vector.shape_cast %226 : vector<16x8xf32> to vector<1x16x8xf32>
    %228 = arith.truncf %227 : vector<1x16x8xf32> to vector<1x16x8xbf16>
    %229 = vector.extract_strided_slice %225 {offsets = [0, 32], sizes = [16, 8], strides = [1, 1]} : vector<16x96xf32> to vector<16x8xf32>
    %230 = vector.shape_cast %229 : vector<16x8xf32> to vector<1x16x8xf32>
    %231 = arith.truncf %230 : vector<1x16x8xf32> to vector<1x16x8xbf16>
    %232 = vector.extract_strided_slice %225 {offsets = [0, 64], sizes = [16, 8], strides = [1, 1]} : vector<16x96xf32> to vector<16x8xf32>
    %233 = vector.shape_cast %232 : vector<16x8xf32> to vector<1x16x8xf32>
    %234 = arith.truncf %233 : vector<1x16x8xf32> to vector<1x16x8xbf16>
    "tpu.trace_start"() <{level = 10 : i32, message = "bqd,bkd->bqk"}> : () -> ()
    %cst_89 = arith.constant dense<0.000000e+00> : vector<1x16x16xf32>
    %235 = tpu.matmul %228, %231, %cst_89 {dimension_numbers = #tpu.dot_dimension_numbers<[2], [2], [1], [1], [0, 0, 0, 1, 1, 1], [0], [0]>} : vector<1x16x8xbf16>, vector<1x16x8xbf16>, vector<1x16x16xf32> -> vector<1x16x16xf32>
    "tpu.trace_stop"() : () -> ()
    %cst_90 = arith.constant 0.353553385 : f32
    %236 = vector.broadcast %cst_90 : f32 to vector<1x16x16xf32>
    %237 = arith.mulf %235, %236 : vector<1x16x16xf32>
    %238 = vector.broadcast %5 : vector<1x1x16xf32> to vector<1x16x16xf32>
    %239 = arith.addf %237, %238 : vector<1x16x16xf32>
    %cst_91 = arith.constant dense<0xFF800000> : vector<1x16xf32>
    %240 = vector.multi_reduction <maximumf>, %239, %cst_91 [2] : vector<1x16x16xf32> to vector<1x16xf32>
    %241 = vector.shape_cast %240 : vector<1x16xf32> to vector<1x16x1xf32>
    %242 = vector.broadcast %241 : vector<1x16x1xf32> to vector<1x16x16xf32>
    %243 = arith.subf %239, %242 : vector<1x16x16xf32>
    %244 = math.exp %243 : vector<1x16x16xf32>
    %cst_92 = arith.constant dense<0.000000e+00> : vector<1x16xf32>
    %245 = vector.multi_reduction <add>, %244, %cst_92 [2] : vector<1x16x16xf32> to vector<1x16xf32>
    %246 = vector.shape_cast %245 : vector<1x16xf32> to vector<1x16x1xf32>
    %247 = tpu.reciprocal %246 {approx = true} : vector<1x16x1xf32> -> vector<1x16x1xf32>
    %248 = vector.broadcast %247 : vector<1x16x1xf32> to vector<1x16x16xf32>
    %249 = arith.mulf %244, %248 : vector<1x16x16xf32>
    %250 = arith.truncf %249 : vector<1x16x16xf32> to vector<1x16x16xbf16>
    "tpu.trace_start"() <{level = 10 : i32, message = "bqk,bkd->bqd"}> : () -> ()
    %cst_93 = arith.constant dense<0.000000e+00> : vector<1x16x8xf32>
    %251 = tpu.matmul %250, %234, %cst_93 {dimension_numbers = #tpu.dot_dimension_numbers<[2], [1], [1], [2], [0, 0, 0, 1, 1, 2], [0], [0]>} : vector<1x16x16xbf16>, vector<1x16x8xbf16>, vector<1x16x8xf32> -> vector<1x16x8xf32>
    "tpu.trace_stop"() : () -> ()
    %252 = vector.shape_cast %251 : vector<1x16x8xf32> to vector<16x8xf32>
    %253 = arith.truncf %252 : vector<16x8xf32> to vector<16x8xbf16>
    %c0_94 = arith.constant 0 : index
    %c0_95 = arith.constant 0 : index
    %254 = vector.load %arg19[%c0_94, %c0_95] : memref<16x32xbf16, #tpu.memory_space<vmem>>, vector<16x8xbf16>
    tpu.vector_store %arg19[%c0_94, %c0_95], %253 {strides = array<i32>} : memref<16x32xbf16, #tpu.memory_space<vmem>>, vector<16x8xbf16>,
    %255 = vector.extract_strided_slice %225 {offsets = [0, 8], sizes = [16, 8], strides = [1, 1]} : vector<16x96xf32> to vector<16x8xf32>
    %256 = vector.shape_cast %255 : vector<16x8xf32> to vector<1x16x8xf32>
    %257 = arith.truncf %256 : vector<1x16x8xf32> to vector<1x16x8xbf16>
    %258 = vector.extract_strided_slice %225 {offsets = [0, 40], sizes = [16, 8], strides = [1, 1]} : vector<16x96xf32> to vector<16x8xf32>
    %259 = vector.shape_cast %258 : vector<16x8xf32> to vector<1x16x8xf32>
    %260 = arith.truncf %259 : vector<1x16x8xf32> to vector<1x16x8xbf16>
    %261 = vector.extract_strided_slice %225 {offsets = [0, 72], sizes = [16, 8], strides = [1, 1]} : vector<16x96xf32> to vector<16x8xf32>
    %262 = vector.shape_cast %261 : vector<16x8xf32> to vector<1x16x8xf32>
    %263 = arith.truncf %262 : vector<1x16x8xf32> to vector<1x16x8xbf16>
    "tpu.trace_start"() <{level = 10 : i32, message = "bqd,bkd->bqk"}> : () -> ()
    %cst_96 = arith.constant dense<0.000000e+00> : vector<1x16x16xf32>
    %264 = tpu.matmul %257, %260, %cst_96 {dimension_numbers = #tpu.dot_dimension_numbers<[2], [2], [1], [1], [0, 0, 0, 1, 1, 1], [0], [0]>} : vector<1x16x8xbf16>, vector<1x16x8xbf16>, vector<1x16x16xf32> -> vector<1x16x16xf32>
    "tpu.trace_stop"() : () -> ()
    %cst_97 = arith.constant 0.353553385 : f32
    %265 = vector.broadcast %cst_97 : f32 to vector<1x16x16xf32>
    %266 = arith.mulf %264, %265 : vector<1x16x16xf32>
    %267 = vector.broadcast %5 : vector<1x1x16xf32> to vector<1x16x16xf32>
    %268 = arith.addf %266, %267 : vector<1x16x16xf32>
    %cst_98 = arith.constant dense<0xFF800000> : vector<1x16xf32>
    %269 = vector.multi_reduction <maximumf>, %268, %cst_98 [2] : vector<1x16x16xf32> to vector<1x16xf32>
    %270 = vector.shape_cast %269 : vector<1x16xf32> to vector<1x16x1xf32>
    %271 = vector.broadcast %270 : vector<1x16x1xf32> to vector<1x16x16xf32>
    %272 = arith.subf %268, %271 : vector<1x16x16xf32>
    %273 = math.exp %272 : vector<1x16x16xf32>
    %cst_99 = arith.constant dense<0.000000e+00> : vector<1x16xf32>
    %274 = vector.multi_reduction <add>, %273, %cst_99 [2] : vector<1x16x16xf32> to vector<1x16xf32>
    %275 = vector.shape_cast %274 : vector<1x16xf32> to vector<1x16x1xf32>
    %276 = tpu.reciprocal %275 {approx = true} : vector<1x16x1xf32> -> vector<1x16x1xf32>
    %277 = vector.broadcast %276 : vector<1x16x1xf32> to vector<1x16x16xf32>
    %278 = arith.mulf %273, %277 : vector<1x16x16xf32>
    %279 = arith.truncf %278 : vector<1x16x16xf32> to vector<1x16x16xbf16>
    "tpu.trace_start"() <{level = 10 : i32, message = "bqk,bkd->bqd"}> : () -> ()
    %cst_100 = arith.constant dense<0.000000e+00> : vector<1x16x8xf32>
    %280 = tpu.matmul %279, %263, %cst_100 {dimension_numbers = #tpu.dot_dimension_numbers<[2], [1], [1], [2], [0, 0, 0, 1, 1, 2], [0], [0]>} : vector<1x16x16xbf16>, vector<1x16x8xbf16>, vector<1x16x8xf32> -> vector<1x16x8xf32>
    "tpu.trace_stop"() : () -> ()
    %281 = vector.shape_cast %280 : vector<1x16x8xf32> to vector<16x8xf32>
    %282 = arith.truncf %281 : vector<16x8xf32> to vector<16x8xbf16>
    %c0_101 = arith.constant 0 : index
    %c8_102 = arith.constant 8 : index
    %283 = vector.load %arg19[%c0_101, %c8_102] : memref<16x32xbf16, #tpu.memory_space<vmem>>, vector<16x8xbf16>
    tpu.vector_store %arg19[%c0_101, %c8_102], %282 {strides = array<i32>} : memref<16x32xbf16, #tpu.memory_space<vmem>>, vector<16x8xbf16>,
    %284 = vector.extract_strided_slice %225 {offsets = [0, 16], sizes = [16, 8], strides = [1, 1]} : vector<16x96xf32> to vector<16x8xf32>
    %285 = vector.shape_cast %284 : vector<16x8xf32> to vector<1x16x8xf32>
    %286 = arith.truncf %285 : vector<1x16x8xf32> to vector<1x16x8xbf16>
    %287 = vector.extract_strided_slice %225 {offsets = [0, 48], sizes = [16, 8], strides = [1, 1]} : vector<16x96xf32> to vector<16x8xf32>
    %288 = vector.shape_cast %287 : vector<16x8xf32> to vector<1x16x8xf32>
    %289 = arith.truncf %288 : vector<1x16x8xf32> to vector<1x16x8xbf16>
    %290 = vector.extract_strided_slice %225 {offsets = [0, 80], sizes = [16, 8], strides = [1, 1]} : vector<16x96xf32> to vector<16x8xf32>
    %291 = vector.shape_cast %290 : vector<16x8xf32> to vector<1x16x8xf32>
    %292 = arith.truncf %291 : vector<1x16x8xf32> to vector<1x16x8xbf16>
    "tpu.trace_start"() <{level = 10 : i32, message = "bqd,bkd->bqk"}> : () -> ()
    %cst_103 = arith.constant dense<0.000000e+00> : vector<1x16x16xf32>
    %293 = tpu.matmul %286, %289, %cst_103 {dimension_numbers = #tpu.dot_dimension_numbers<[2], [2], [1], [1], [0, 0, 0, 1, 1, 1], [0], [0]>} : vector<1x16x8xbf16>, vector<1x16x8xbf16>, vector<1x16x16xf32> -> vector<1x16x16xf32>
    "tpu.trace_stop"() : () -> ()
    %cst_104 = arith.constant 0.353553385 : f32
    %294 = vector.broadcast %cst_104 : f32 to vector<1x16x16xf32>
    %295 = arith.mulf %293, %294 : vector<1x16x16xf32>
    %296 = vector.broadcast %5 : vector<1x1x16xf32> to vector<1x16x16xf32>
    %297 = arith.addf %295, %296 : vector<1x16x16xf32>
    %cst_105 = arith.constant dense<0xFF800000> : vector<1x16xf32>
    %298 = vector.multi_reduction <maximumf>, %297, %cst_105 [2] : vector<1x16x16xf32> to vector<1x16xf32>
    %299 = vector.shape_cast %298 : vector<1x16xf32> to vector<1x16x1xf32>
    %300 = vector.broadcast %299 : vector<1x16x1xf32> to vector<1x16x16xf32>
    %301 = arith.subf %297, %300 : vector<1x16x16xf32>
    %302 = math.exp %301 : vector<1x16x16xf32>
    %cst_106 = arith.constant dense<0.000000e+00> : vector<1x16xf32>
    %303 = vector.multi_reduction <add>, %302, %cst_106 [2] : vector<1x16x16xf32> to vector<1x16xf32>
    %304 = vector.shape_cast %303 : vector<1x16xf32> to vector<1x16x1xf32>
    %305 = tpu.reciprocal %304 {approx = true} : vector<1x16x1xf32> -> vector<1x16x1xf32>
    %306 = vector.broadcast %305 : vector<1x16x1xf32> to vector<1x16x16xf32>
    %307 = arith.mulf %302, %306 : vector<1x16x16xf32>
    %308 = arith.truncf %307 : vector<1x16x16xf32> to vector<1x16x16xbf16>
    "tpu.trace_start"() <{level = 10 : i32, message = "bqk,bkd->bqd"}> : () -> ()
    %cst_107 = arith.constant dense<0.000000e+00> : vector<1x16x8xf32>
    %309 = tpu.matmul %308, %292, %cst_107 {dimension_numbers = #tpu.dot_dimension_numbers<[2], [1], [1], [2], [0, 0, 0, 1, 1, 2], [0], [0]>} : vector<1x16x16xbf16>, vector<1x16x8xbf16>, vector<1x16x8xf32> -> vector<1x16x8xf32>
    "tpu.trace_stop"() : () -> ()
    %310 = vector.shape_cast %309 : vector<1x16x8xf32> to vector<16x8xf32>
    %311 = arith.truncf %310 : vector<16x8xf32> to vector<16x8xbf16>
    %c0_108 = arith.constant 0 : index
    %c16_109 = arith.constant 16 : index
    %312 = vector.load %arg19[%c0_108, %c16_109] : memref<16x32xbf16, #tpu.memory_space<vmem>>, vector<16x8xbf16>
    tpu.vector_store %arg19[%c0_108, %c16_109], %311 {strides = array<i32>} : memref<16x32xbf16, #tpu.memory_space<vmem>>, vector<16x8xbf16>,
    %313 = vector.extract_strided_slice %225 {offsets = [0, 24], sizes = [16, 8], strides = [1, 1]} : vector<16x96xf32> to vector<16x8xf32>
    %314 = vector.shape_cast %313 : vector<16x8xf32> to vector<1x16x8xf32>
    %315 = arith.truncf %314 : vector<1x16x8xf32> to vector<1x16x8xbf16>
    %316 = vector.extract_strided_slice %225 {offsets = [0, 56], sizes = [16, 8], strides = [1, 1]} : vector<16x96xf32> to vector<16x8xf32>
    %317 = vector.shape_cast %316 : vector<16x8xf32> to vector<1x16x8xf32>
    %318 = arith.truncf %317 : vector<1x16x8xf32> to vector<1x16x8xbf16>
    %319 = vector.extract_strided_slice %225 {offsets = [0, 88], sizes = [16, 8], strides = [1, 1]} : vector<16x96xf32> to vector<16x8xf32>
    %320 = vector.shape_cast %319 : vector<16x8xf32> to vector<1x16x8xf32>
    %321 = arith.truncf %320 : vector<1x16x8xf32> to vector<1x16x8xbf16>
    "tpu.trace_start"() <{level = 10 : i32, message = "bqd,bkd->bqk"}> : () -> ()
    %cst_110 = arith.constant dense<0.000000e+00> : vector<1x16x16xf32>
    %322 = tpu.matmul %315, %318, %cst_110 {dimension_numbers = #tpu.dot_dimension_numbers<[2], [2], [1], [1], [0, 0, 0, 1, 1, 1], [0], [0]>} : vector<1x16x8xbf16>, vector<1x16x8xbf16>, vector<1x16x16xf32> -> vector<1x16x16xf32>
    "tpu.trace_stop"() : () -> ()
    %cst_111 = arith.constant 0.353553385 : f32
    %323 = vector.broadcast %cst_111 : f32 to vector<1x16x16xf32>
    %324 = arith.mulf %322, %323 : vector<1x16x16xf32>
    %325 = vector.broadcast %5 : vector<1x1x16xf32> to vector<1x16x16xf32>
    %326 = arith.addf %324, %325 : vector<1x16x16xf32>
    %cst_112 = arith.constant dense<0xFF800000> : vector<1x16xf32>
    %327 = vector.multi_reduction <maximumf>, %326, %cst_112 [2] : vector<1x16x16xf32> to vector<1x16xf32>
    %328 = vector.shape_cast %327 : vector<1x16xf32> to vector<1x16x1xf32>
    %329 = vector.broadcast %328 : vector<1x16x1xf32> to vector<1x16x16xf32>
    %330 = arith.subf %326, %329 : vector<1x16x16xf32>
    %331 = math.exp %330 : vector<1x16x16xf32>
    %cst_113 = arith.constant dense<0.000000e+00> : vector<1x16xf32>
    %332 = vector.multi_reduction <add>, %331, %cst_113 [2] : vector<1x16x16xf32> to vector<1x16xf32>
    %333 = vector.shape_cast %332 : vector<1x16xf32> to vector<1x16x1xf32>
    %334 = tpu.reciprocal %333 {approx = true} : vector<1x16x1xf32> -> vector<1x16x1xf32>
    %335 = vector.broadcast %334 : vector<1x16x1xf32> to vector<1x16x16xf32>
    %336 = arith.mulf %331, %335 : vector<1x16x16xf32>
    %337 = arith.truncf %336 : vector<1x16x16xf32> to vector<1x16x16xbf16>
    "tpu.trace_start"() <{level = 10 : i32, message = "bqk,bkd->bqd"}> : () -> ()
    %cst_114 = arith.constant dense<0.000000e+00> : vector<1x16x8xf32>
    %338 = tpu.matmul %337, %321, %cst_114 {dimension_numbers = #tpu.dot_dimension_numbers<[2], [1], [1], [2], [0, 0, 0, 1, 1, 2], [0], [0]>} : vector<1x16x16xbf16>, vector<1x16x8xbf16>, vector<1x16x8xf32> -> vector<1x16x8xf32>
    "tpu.trace_stop"() : () -> ()
    %339 = vector.shape_cast %338 : vector<1x16x8xf32> to vector<16x8xf32>
    %340 = arith.truncf %339 : vector<16x8xf32> to vector<16x8xbf16>
    %c0_115 = arith.constant 0 : index
    %c24_116 = arith.constant 24 : index
    %341 = vector.load %arg19[%c0_115, %c24_116] : memref<16x32xbf16, #tpu.memory_space<vmem>>, vector<16x8xbf16>
    tpu.vector_store %arg19[%c0_115, %c24_116], %340 {strides = array<i32>} : memref<16x32xbf16, #tpu.memory_space<vmem>>, vector<16x8xbf16>,
    %c0_117 = arith.constant 0 : index
    %c0_118 = arith.constant 0 : index
    %342 = vector.load %arg19[%c0_117, %c0_118] : memref<16x32xbf16, #tpu.memory_space<vmem>>, vector<16x32xbf16>
    %c1_119 = arith.constant 1 : index
    %c0_120 = arith.constant 0 : index
    %c0_121 = arith.constant 0 : index
    %343 = vector.load %arg4[%c1_119, %c0_120, %c0_121] : memref<2x32x32xbf16, #tpu.memory_space<vmem>>, vector<1x32x32xbf16>
    %344 = vector.shape_cast %343 : vector<1x32x32xbf16> to vector<32x32xbf16>
    %cst_122 = arith.constant dense<0.000000e+00> : vector<16x32xf32>
    %345 = tpu.matmul %342, %344, %cst_122 {dimension_numbers = #tpu.dot_dimension_numbers<[1], [0], [0], [1], [0, 0, 1, 1], [], []>} : vector<16x32xbf16>, vector<32x32xbf16>, vector<16x32xf32> -> vector<16x32xf32>
    %c1_123 = arith.constant 1 : index
    %c0_124 = arith.constant 0 : index
    %c0_125 = arith.constant 0 : index
    %346 = vector.load %arg5[%c1_123, %c0_124, %c0_125] : memref<2x1x32xf32, #tpu.memory_space<vmem>>, vector<1x1x32xf32>
    %347 = vector.shape_cast %346 : vector<1x1x32xf32> to vector<1x32xf32>
    %348 = vector.broadcast %347 : vector<1x32xf32> to vector<16x32xf32>
    %349 = arith.addf %345, %348 : vector<16x32xf32>
    %350 = arith.addf %217, %349 : vector<16x32xf32>
    %c1_126 = arith.constant 1 : index
    %c0_127 = arith.constant 0 : index
    %c0_128 = arith.constant 0 : index
    %351 = vector.load %arg6[%c1_126, %c0_127, %c0_128] : memref<2x1x32xf32, #tpu.memory_space<vmem>>, vector<1x1x32xf32>
    %352 = vector.shape_cast %351 : vector<1x1x32xf32> to vector<1x32xf32>
    %c1_129 = arith.constant 1 : index
    %c0_130 = arith.constant 0 : index
    %c0_131 = arith.constant 0 : index
    %353 = vector.load %arg7[%c1_129, %c0_130, %c0_131] : memref<2x1x32xf32, #tpu.memory_space<vmem>>, vector<1x1x32xf32>
    %354 = vector.shape_cast %353 : vector<1x1x32xf32> to vector<1x32xf32>
    %cst_132 = arith.constant dense<0.000000e+00> : vector<16xf32>
    %355 = vector.multi_reduction <add>, %350, %cst_132 [1] : vector<16x32xf32> to vector<16xf32>
    %356 = vector.shape_cast %355 : vector<16xf32> to vector<16x1xf32>
    %cst_133 = arith.constant 3.200000e+01 : f32
    %357 = vector.broadcast %cst_133 : f32 to vector<16x1xf32>
    %358 = arith.divf %356, %357 : vector<16x1xf32>
    %359 = vector.broadcast %358 : vector<16x1xf32> to vector<16x32xf32>
    %360 = arith.subf %350, %359 : vector<16x32xf32>
    %361 = arith.mulf %360, %360 : vector<16x32xf32>
    %cst_134 = arith.constant dense<0.000000e+00> : vector<16xf32>
    %362 = vector.multi_reduction <add>, %361, %cst_134 [1] : vector<16x32xf32> to vector<16xf32>
    %363 = vector.shape_cast %362 : vector<16xf32> to vector<16x1xf32>
    %cst_135 = arith.constant 3.200000e+01 : f32
    %364 = vector.broadcast %cst_135 : f32 to vector<16x1xf32>
    %365 = arith.divf %363, %364 : vector<16x1xf32>
    %366 = vector.broadcast %358 : vector<16x1xf32> to vector<16x32xf32>
    %367 = arith.subf %350, %366 : vector<16x32xf32>
    %cst_136 = arith.constant 9.99999974E-6 : f32
    %368 = vector.broadcast %cst_136 : f32 to vector<16x1xf32>
    %369 = arith.addf %365, %368 : vector<16x1xf32>
    %370 = math.rsqrt %369 : vector<16x1xf32>
    %371 = vector.broadcast %370 : vector<16x1xf32> to vector<16x32xf32>
    %372 = arith.mulf %367, %371 : vector<16x32xf32>
    %373 = vector.broadcast %352 : vector<1x32xf32> to vector<16x32xf32>
    %374 = arith.mulf %372, %373 : vector<16x32xf32>
    %375 = vector.broadcast %354 : vector<1x32xf32> to vector<16x32xf32>
    %376 = arith.addf %374, %375 : vector<16x32xf32>
    %377 = arith.truncf %376 : vector<16x32xf32> to vector<16x32xbf16>
    %c1_137 = arith.constant 1 : index
    %c0_138 = arith.constant 0 : index
    %c0_139 = arith.constant 0 : index
    %378 = vector.load %arg8[%c1_137, %c0_138, %c0_139] : memref<2x32x64xbf16, #tpu.memory_space<vmem>>, vector<1x32x64xbf16>
    %379 = vector.shape_cast %378 : vector<1x32x64xbf16> to vector<32x64xbf16>
    %cst_140 = arith.constant dense<0.000000e+00> : vector<16x64xf32>
    %380 = tpu.matmul %377, %379, %cst_140 {dimension_numbers = #tpu.dot_dimension_numbers<[1], [0], [0], [1], [0, 0, 1, 1], [], []>} : vector<16x32xbf16>, vector<32x64xbf16>, vector<16x64xf32> -> vector<16x64xf32>
    %c1_141 = arith.constant 1 : index
    %c0_142 = arith.constant 0 : index
    %c0_143 = arith.constant 0 : index
    %381 = vector.load %arg9[%c1_141, %c0_142, %c0_143] : memref<2x1x64xf32, #tpu.memory_space<vmem>>, vector<1x1x64xf32>
    %382 = vector.shape_cast %381 : vector<1x1x64xf32> to vector<1x64xf32>
    %383 = vector.broadcast %382 : vector<1x64xf32> to vector<16x64xf32>
    %384 = arith.addf %380, %383 : vector<16x64xf32>
    %cst_144 = arith.constant 5.000000e-01 : f32
    %385 = vector.broadcast %cst_144 : f32 to vector<16x64xf32>
    %386 = arith.mulf %385, %384 : vector<16x64xf32>
    %cst_145 = arith.constant 0.707106769 : f32
    %387 = vector.broadcast %cst_145 : f32 to vector<16x64xf32>
    %388 = arith.mulf %384, %387 : vector<16x64xf32>
    %389 = math.erf %388 : vector<16x64xf32>
    %cst_146 = arith.constant 1.000000e+00 : f32
    %390 = vector.broadcast %cst_146 : f32 to vector<16x64xf32>
    %391 = arith.addf %390, %389 : vector<16x64xf32>
    %392 = arith.mulf %386, %391 : vector<16x64xf32>
    %393 = arith.truncf %392 : vector<16x64xf32> to vector<16x64xbf16>
    %c1_147 = arith.constant 1 : index
    %c0_148 = arith.constant 0 : index
    %c0_149 = arith.constant 0 : index
    %394 = vector.load %arg10[%c1_147, %c0_148, %c0_149] : memref<2x64x32xbf16, #tpu.memory_space<vmem>>, vector<1x64x32xbf16>
    %395 = vector.shape_cast %394 : vector<1x64x32xbf16> to vector<64x32xbf16>
    %cst_150 = arith.constant dense<0.000000e+00> : vector<16x32xf32>
    %396 = tpu.matmul %393, %395, %cst_150 {dimension_numbers = #tpu.dot_dimension_numbers<[1], [0], [0], [1], [0, 0, 1, 1], [], []>} : vector<16x64xbf16>, vector<64x32xbf16>, vector<16x32xf32> -> vector<16x32xf32>
    %c1_151 = arith.constant 1 : index
    %c0_152 = arith.constant 0 : index
    %c0_153 = arith.constant 0 : index
    %397 = vector.load %arg11[%c1_151, %c0_152, %c0_153] : memref<2x1x32xf32, #tpu.memory_space<vmem>>, vector<1x1x32xf32>
    %398 = vector.shape_cast %397 : vector<1x1x32xf32> to vector<1x32xf32>
    %399 = vector.broadcast %398 : vector<1x32xf32> to vector<16x32xf32>
    %400 = arith.addf %396, %399 : vector<16x32xf32>
    %401 = arith.addf %376, %400 : vector<16x32xf32>
    %c1_154 = arith.constant 1 : index
    %c0_155 = arith.constant 0 : index
    %c0_156 = arith.constant 0 : index
    %402 = vector.load %arg12[%c1_154, %c0_155, %c0_156] : memref<2x1x32xf32, #tpu.memory_space<vmem>>, vector<1x1x32xf32>
    %403 = vector.shape_cast %402 : vector<1x1x32xf32> to vector<1x32xf32>
    %c1_157 = arith.constant 1 : index
    %c0_158 = arith.constant 0 : index
    %c0_159 = arith.constant 0 : index
    %404 = vector.load %arg13[%c1_157, %c0_158, %c0_159] : memref<2x1x32xf32, #tpu.memory_space<vmem>>, vector<1x1x32xf32>
    %405 = vector.shape_cast %404 : vector<1x1x32xf32> to vector<1x32xf32>
    %cst_160 = arith.constant dense<0.000000e+00> : vector<16xf32>
    %406 = vector.multi_reduction <add>, %401, %cst_160 [1] : vector<16x32xf32> to vector<16xf32>
    %407 = vector.shape_cast %406 : vector<16xf32> to vector<16x1xf32>
    %cst_161 = arith.constant 3.200000e+01 : f32
    %408 = vector.broadcast %cst_161 : f32 to vector<16x1xf32>
    %409 = arith.divf %407, %408 : vector<16x1xf32>
    %410 = vector.broadcast %409 : vector<16x1xf32> to vector<16x32xf32>
    %411 = arith.subf %401, %410 : vector<16x32xf32>
    %412 = arith.mulf %411, %411 : vector<16x32xf32>
    %cst_162 = arith.constant dense<0.000000e+00> : vector<16xf32>
    %413 = vector.multi_reduction <add>, %412, %cst_162 [1] : vector<16x32xf32> to vector<16xf32>
    %414 = vector.shape_cast %413 : vector<16xf32> to vector<16x1xf32>
    %cst_163 = arith.constant 3.200000e+01 : f32
    %415 = vector.broadcast %cst_163 : f32 to vector<16x1xf32>
    %416 = arith.divf %414, %415 : vector<16x1xf32>
    %417 = vector.broadcast %409 : vector<16x1xf32> to vector<16x32xf32>
    %418 = arith.subf %401, %417 : vector<16x32xf32>
    %cst_164 = arith.constant 9.99999974E-6 : f32
    %419 = vector.broadcast %cst_164 : f32 to vector<16x1xf32>
    %420 = arith.addf %416, %419 : vector<16x1xf32>
    %421 = math.rsqrt %420 : vector<16x1xf32>
    %422 = vector.broadcast %421 : vector<16x1xf32> to vector<16x32xf32>
    %423 = arith.mulf %418, %422 : vector<16x32xf32>
    %424 = vector.broadcast %403 : vector<1x32xf32> to vector<16x32xf32>
    %425 = arith.mulf %423, %424 : vector<16x32xf32>
    %426 = vector.broadcast %405 : vector<1x32xf32> to vector<16x32xf32>
    %427 = arith.addf %425, %426 : vector<16x32xf32>
    %428 = vector.shape_cast %427 : vector<16x32xf32> to vector<1x16x32xf32>
    %429 = vector.extract_strided_slice %428 {offsets = [0, 0, 0], sizes = [1, 1, 32], strides = [1, 1, 1]} : vector<1x16x32xf32> to vector<1x1x32xf32>
    %430 = vector.shape_cast %429 : vector<1x1x32xf32> to vector<1x32xf32>
    %c0_165 = arith.constant 0 : index
    %c0_166 = arith.constant 0 : index
    %431 = vector.load %arg14[%c0_165, %c0_166] : memref<1x32xf32, #tpu.memory_space<vmem>>, vector<1x32xf32>
    %c0_167 = arith.constant 0 : index
    %c0_168 = arith.constant 0 : index
    %432 = vector.load %arg15[%c0_167, %c0_168] : memref<1x32xf32, #tpu.memory_space<vmem>>, vector<1x32xf32>
    %cst_169 = arith.constant dense<0.000000e+00> : vector<1xf32>
    %433 = vector.multi_reduction <add>, %430, %cst_169 [1] : vector<1x32xf32> to vector<1xf32>
    %434 = vector.shape_cast %433 : vector<1xf32> to vector<1x1xf32>
    %cst_170 = arith.constant 3.200000e+01 : f32
    %435 = vector.broadcast %cst_170 : f32 to vector<1x1xf32>
    %436 = arith.divf %434, %435 : vector<1x1xf32>
    %437 = vector.broadcast %436 : vector<1x1xf32> to vector<1x32xf32>
    %438 = arith.subf %430, %437 : vector<1x32xf32>
    %439 = arith.mulf %438, %438 : vector<1x32xf32>
    %cst_171 = arith.constant dense<0.000000e+00> : vector<1xf32>
    %440 = vector.multi_reduction <add>, %439, %cst_171 [1] : vector<1x32xf32> to vector<1xf32>
    %441 = vector.shape_cast %440 : vector<1xf32> to vector<1x1xf32>
    %cst_172 = arith.constant 3.200000e+01 : f32
    %442 = vector.broadcast %cst_172 : f32 to vector<1x1xf32>
    %443 = arith.divf %441, %442 : vector<1x1xf32>
    %444 = vector.broadcast %436 : vector<1x1xf32> to vector<1x32xf32>
    %445 = arith.subf %430, %444 : vector<1x32xf32>
    %cst_173 = arith.constant 9.99999974E-6 : f32
    %446 = vector.broadcast %cst_173 : f32 to vector<1x1xf32>
    %447 = arith.addf %443, %446 : vector<1x1xf32>
    %448 = math.rsqrt %447 : vector<1x1xf32>
    %449 = vector.broadcast %448 : vector<1x1xf32> to vector<1x32xf32>
    %450 = arith.mulf %445, %449 : vector<1x32xf32>
    %451 = arith.mulf %450, %431 : vector<1x32xf32>
    %452 = arith.addf %451, %432 : vector<1x32xf32>
    %453 = arith.truncf %452 : vector<1x32xf32> to vector<1x32xbf16>
    %c0_174 = arith.constant 0 : index
    %c0_175 = arith.constant 0 : index
    %454 = vector.load %arg16[%c0_174, %c0_175] : memref<32x128xbf16, #tpu.memory_space<vmem>>, vector<32x128xbf16>
    %cst_176 = arith.constant dense<0.000000e+00> : vector<1x128xf32>
    %455 = tpu.matmul %453, %454, %cst_176 {dimension_numbers = #tpu.dot_dimension_numbers<[1], [0], [0], [1], [0, 0, 1, 1], [], []>} : vector<1x32xbf16>, vector<32x128xbf16>, vector<1x128xf32> -> vector<1x128xf32>
    %c0_177 = arith.constant 0 : index
    %c0_178 = arith.constant 0 : index
    %456 = vector.load %arg17[%c0_177, %c0_178] : memref<1x128xf32, #tpu.memory_space<vmem>>, vector<1x128xf32>
    %457 = arith.addf %455, %456 : vector<1x128xf32>
    %c0_179 = arith.constant 0 : index
    %c0_180 = arith.constant 0 : index
    %c0_181 = arith.constant 0 : index
    %458 = vector.load %arg18[%c0_179, %c0_180, %c0_181] : memref<1x1x128xf32, #tpu.memory_space<vmem>>, vector<1x1x128xf32>
    %459 = vector.shape_cast %458 : vector<1x1x128xf32> to vector<1x128xf32>
    %460 = vector.shape_cast %457 : vector<1x128xf32> to vector<1x1x128xf32>
    tpu.vector_store %arg18[%c0_179, %c0_180, %c0_181], %460 {strides = array<i32>} : memref<1x1x128xf32, #tpu.memory_space<vmem>>, vector<1x1x128xf32>,
    return
  }
  func.func @transform_0(%arg0: i32) -> (i32, i32, i32) {
    %c0_i32 = arith.constant 0 : i32
    %c0_i32_0 = arith.constant 0 : i32
    %c0_i32_1 = arith.constant 0 : i32
    return %arg0, %c0_i32, %c0_i32_0 : i32, i32, i32
  }
  func.func @transform_1(%arg0: i32) -> (i32, i32, i32) {
    %c0_i32 = arith.constant 0 : i32
    %c0_i32_0 = arith.constant 0 : i32
    %c0_i32_1 = arith.constant 0 : i32
    %c0_i32_2 = arith.constant 0 : i32
    return %c0_i32, %c0_i32_0, %c0_i32_1 : i32, i32, i32
  }
  func.func @transform_2(%arg0: i32) -> (i32, i32, i32) {
    %c0_i32 = arith.constant 0 : i32
    %c0_i32_0 = arith.constant 0 : i32
    %c0_i32_1 = arith.constant 0 : i32
    %c0_i32_2 = arith.constant 0 : i32
    return %c0_i32, %c0_i32_0, %c0_i32_1 : i32, i32, i32
  }
  func.func @transform_3(%arg0: i32) -> (i32, i32, i32) {
    %c0_i32 = arith.constant 0 : i32
    %c0_i32_0 = arith.constant 0 : i32
    %c0_i32_1 = arith.constant 0 : i32
    %c0_i32_2 = arith.constant 0 : i32
    return %c0_i32, %c0_i32_0, %c0_i32_1 : i32, i32, i32
  }
  func.func @transform_4(%arg0: i32) -> (i32, i32, i32) {
    %c0_i32 = arith.constant 0 : i32
    %c0_i32_0 = arith.constant 0 : i32
    %c0_i32_1 = arith.constant 0 : i32
    %c0_i32_2 = arith.constant 0 : i32
    return %c0_i32, %c0_i32_0, %c0_i32_1 : i32, i32, i32
  }
  func.func @transform_5(%arg0: i32) -> (i32, i32, i32) {
    %c0_i32 = arith.constant 0 : i32
    %c0_i32_0 = arith.constant 0 : i32
    %c0_i32_1 = arith.constant 0 : i32
    %c0_i32_2 = arith.constant 0 : i32
    return %c0_i32, %c0_i32_0, %c0_i32_1 : i32, i32, i32
  }
  func.func @transform_6(%arg0: i32) -> (i32, i32, i32) {
    %c0_i32 = arith.constant 0 : i32
    %c0_i32_0 = arith.constant 0 : i32
    %c0_i32_1 = arith.constant 0 : i32
    %c0_i32_2 = arith.constant 0 : i32
    return %c0_i32, %c0_i32_0, %c0_i32_1 : i32, i32, i32
  }
  func.func @transform_7(%arg0: i32) -> (i32, i32, i32) {
    %c0_i32 = arith.constant 0 : i32
    %c0_i32_0 = arith.constant 0 : i32
    %c0_i32_1 = arith.constant 0 : i32
    %c0_i32_2 = arith.constant 0 : i32
    return %c0_i32, %c0_i32_0, %c0_i32_1 : i32, i32, i32
  }
  func.func @transform_8(%arg0: i32) -> (i32, i32, i32) {
    %c0_i32 = arith.constant 0 : i32
    %c0_i32_0 = arith.constant 0 : i32
    %c0_i32_1 = arith.constant 0 : i32
    %c0_i32_2 = arith.constant 0 : i32
    return %c0_i32, %c0_i32_0, %c0_i32_1 : i32, i32, i32
  }
  func.func @transform_9(%arg0: i32) -> (i32, i32, i32) {
    %c0_i32 = arith.constant 0 : i32
    %c0_i32_0 = arith.constant 0 : i32
    %c0_i32_1 = arith.constant 0 : i32
    %c0_i32_2 = arith.constant 0 : i32
    return %c0_i32, %c0_i32_0, %c0_i32_1 : i32, i32, i32
  }
  func.func @transform_10(%arg0: i32) -> (i32, i32, i32) {
    %c0_i32 = arith.constant 0 : i32
    %c0_i32_0 = arith.constant 0 : i32
    %c0_i32_1 = arith.constant 0 : i32
    %c0_i32_2 = arith.constant 0 : i32
    return %c0_i32, %c0_i32_0, %c0_i32_1 : i32, i32, i32
  }
  func.func @transform_11(%arg0: i32) -> (i32, i32, i32) {
    %c0_i32 = arith.constant 0 : i32
    %c0_i32_0 = arith.constant 0 : i32
    %c0_i32_1 = arith.constant 0 : i32
    %c0_i32_2 = arith.constant 0 : i32
    return %c0_i32, %c0_i32_0, %c0_i32_1 : i32, i32, i32
  }
  func.func @transform_12(%arg0: i32) -> (i32, i32, i32) {
    %c0_i32 = arith.constant 0 : i32
    %c0_i32_0 = arith.constant 0 : i32
    %c0_i32_1 = arith.constant 0 : i32
    %c0_i32_2 = arith.constant 0 : i32
    return %c0_i32, %c0_i32_0, %c0_i32_1 : i32, i32, i32
  }
  func.func @transform_13(%arg0: i32) -> (i32, i32) {
    %c0_i32 = arith.constant 0 : i32
    %c0_i32_0 = arith.constant 0 : i32
    %c0_i32_1 = arith.constant 0 : i32
    return %c0_i32, %c0_i32_0 : i32, i32
  }
  func.func @transform_14(%arg0: i32) -> (i32, i32) {
    %c0_i32 = arith.constant 0 : i32
    %c0_i32_0 = arith.constant 0 : i32
    %c0_i32_1 = arith.constant 0 : i32
    return %c0_i32, %c0_i32_0 : i32, i32
  }
  func.func @transform_15(%arg0: i32) -> (i32, i32) {
    %c0_i32 = arith.constant 0 : i32
    %c0_i32_0 = arith.constant 0 : i32
    %c0_i32_1 = arith.constant 0 : i32
    return %c0_i32, %c0_i32_0 : i32, i32
  }
  func.func @transform_16(%arg0: i32) -> (i32, i32) {
    %c0_i32 = arith.constant 0 : i32
    %c0_i32_0 = arith.constant 0 : i32
    %c0_i32_1 = arith.constant 0 : i32
    return %c0_i32, %c0_i32_0 : i32, i32
  }
  func.func @transform_17(%arg0: i32) -> (i32, i32, i32) {
    %c0_i32 = arith.constant 0 : i32
    %c0_i32_0 = arith.constant 0 : i32
    %c0_i32_1 = arith.constant 0 : i32
    return %arg0, %c0_i32, %c0_i32_0 : i32, i32, i32
  }
}

module attributes {stable_mosaic.version = 11 : i64} {
  func.func @cct_kernel(%arg0: i32, %arg1: memref<1x16x32xf32, #tpu.memory_space<vmem>>, %arg2: memref<2x32x96xbf16, #tpu.memory_space<vmem>>, %arg3: memref<2x1x96xf32, #tpu.memory_space<vmem>>, %arg4: memref<2x32x32xbf16, #tpu.memory_space<vmem>>, %arg5: memref<2x1x32xf32, #tpu.memory_space<vmem>>, %arg6: memref<2x1x32xf32, #tpu.memory_space<vmem>>, %arg7: memref<2x1x32xf32, #tpu.memory_space<vmem>>, %arg8: memref<2x32x64xbf16, #tpu.memory_space<vmem>>, %arg9: memref<2x1x64xf32, #tpu.memory_space<vmem>>, %arg10: memref<2x64x32xbf16, #tpu.memory_space<vmem>>, %arg11: memref<2x1x32xf32, #tpu.memory_space<vmem>>, %arg12: memref<2x1x32xf32, #tpu.memory_space<vmem>>, %arg13: memref<2x1x32xf32, #tpu.memory_space<vmem>>, %arg14: memref<1x32xf32, #tpu.memory_space<vmem>>, %arg15: memref<1x32xf32, #tpu.memory_space<vmem>>, %arg16: memref<32x128xbf16, #tpu.memory_space<vmem>>, %arg17: memref<1x128xf32, #tpu.memory_space<vmem>>, %arg18: memref<1x1x128xf32, #tpu.memory_space<vmem>>, %arg19: memref<16x32xbf16, #tpu.memory_space<vmem>>) attributes {dimension_semantics = [#tpu.dimension_semantics<parallel>], iteration_bounds = array<i64: 2>, scalar_prefetch = 0 : i64, scratch_operands = 1 : i64, tpu.core_type = #tpu.core_type<tc>, window_params = [{transform_indices = @transform_0, window_bounds = array<i64: 1, 16, 32>}, {pipeline_mode = #tpu.pipeline_mode<synchronous>, transform_indices = @transform_1, window_bounds = array<i64: 2, 32, 96>}, {pipeline_mode = #tpu.pipeline_mode<synchronous>, transform_indices = @transform_2, window_bounds = array<i64: 2, 1, 96>}, {pipeline_mode = #tpu.pipeline_mode<synchronous>, transform_indices = @transform_3, window_bounds = array<i64: 2, 32, 32>}, {pipeline_mode = #tpu.pipeline_mode<synchronous>, transform_indices = @transform_4, window_bounds = array<i64: 2, 1, 32>}, {pipeline_mode = #tpu.pipeline_mode<synchronous>, transform_indices = @transform_5, window_bounds = array<i64: 2, 1, 32>}, {pipeline_mode = #tpu.pipeline_mode<synchronous>, transform_indices = @transform_6, window_bounds = array<i64: 2, 1, 32>}, {pipeline_mode = #tpu.pipeline_mode<synchronous>, transform_indices = @transform_7, window_bounds = array<i64: 2, 32, 64>}, {pipeline_mode = #tpu.pipeline_mode<synchronous>, transform_indices = @transform_8, window_bounds = array<i64: 2, 1, 64>}, {pipeline_mode = #tpu.pipeline_mode<synchronous>, transform_indices = @transform_9, window_bounds = array<i64: 2, 64, 32>}, {pipeline_mode = #tpu.pipeline_mode<synchronous>, transform_indices = @transform_10, window_bounds = array<i64: 2, 1, 32>}, {pipeline_mode = #tpu.pipeline_mode<synchronous>, transform_indices = @transform_11, window_bounds = array<i64: 2, 1, 32>}, {pipeline_mode = #tpu.pipeline_mode<synchronous>, transform_indices = @transform_12, window_bounds = array<i64: 2, 1, 32>}, {pipeline_mode = #tpu.pipeline_mode<synchronous>, transform_indices = @transform_13, window_bounds = array<i64: 1, 32>}, {pipeline_mode = #tpu.pipeline_mode<synchronous>, transform_indices = @transform_14, window_bounds = array<i64: 1, 32>}, {pipeline_mode = #tpu.pipeline_mode<synchronous>, transform_indices = @transform_15, window_bounds = array<i64: 32, 128>}, {pipeline_mode = #tpu.pipeline_mode<synchronous>, transform_indices = @transform_16, window_bounds = array<i64: 1, 128>}, {transform_indices = @transform_17, window_bounds = array<i64: 1, 1, 128>}]} {
    %0 = tpu.iota {dimensions = array<i32: 2>} : vector<1x1x16xi32>
    %c9_i32 = arith.constant 9 : i32
    %1 = vector.broadcast %c9_i32 : i32 to vector<1x1x16xi32>
    %2 = arith.cmpi slt, %0, %1 : vector<1x1x16xi32>
    %cst = arith.constant 0.000000e+00 : f32
    %cst_0 = arith.constant -1.000000e+30 : f32
    %3 = vector.broadcast %cst : f32 to vector<1x1x16xf32>
    %4 = vector.broadcast %cst_0 : f32 to vector<1x1x16xf32>
    %5 = arith.select %2, %3, %4 : vector<1x1x16xi1>, vector<1x1x16xf32>
    %c0 = arith.constant 0 : index
    %c0_1 = arith.constant 0 : index
    %c0_2 = arith.constant 0 : index
    %6 = vector.load %arg1[%c0, %c0_1, %c0_2] : memref<1x16x32xf32, #tpu.memory_space<vmem>>, vector<1x16x32xf32>
    %7 = vector.shape_cast %6 : vector<1x16x32xf32> to vector<16x32xf32>
    %8 = arith.truncf %7 : vector<16x32xf32> to vector<16x32xbf16>
    %c0_3 = arith.constant 0 : index
    %c0_4 = arith.constant 0 : index
    %c0_5 = arith.constant 0 : index
    %9 = vector.load %arg2[%c0_3, %c0_4, %c0_5] : memref<2x32x96xbf16, #tpu.memory_space<vmem>>, vector<1x32x96xbf16>
    %10 = vector.shape_cast %9 : vector<1x32x96xbf16> to vector<32x96xbf16>
    %cst_6 = arith.constant dense<0.000000e+00> : vector<16x96xf32>
    %11 = tpu.matmul %8, %10, %cst_6 {dimension_numbers = #tpu.dot_dimension_numbers<[1], [0], [0], [1], [0, 0, 1, 1], [], []>} : vector<16x32xbf16>, vector<32x96xbf16>, vector<16x96xf32> -> vector<16x96xf32>
    %c0_7 = arith.constant 0 : index
    %c0_8 = arith.constant 0 : index
    %c0_9 = arith.constant 0 : index
    %12 = vector.load %arg3[%c0_7, %c0_8, %c0_9] : memref<2x1x96xf32, #tpu.memory_space<vmem>>, vector<1x1x96xf32>
    %13 = vector.shape_cast %12 : vector<1x1x96xf32> to vector<1x96xf32>
    %14 = vector.broadcast %13 : vector<1x96xf32> to vector<16x96xf32>
    %15 = arith.addf %11, %14 : vector<16x96xf32>
    %16 = vector.extract_strided_slice %15 {offsets = [0, 0], sizes = [16, 8], strides = [1, 1]} : vector<16x96xf32> to vector<16x8xf32>
    %17 = vector.shape_cast %16 : vector<16x8xf32> to vector<1x16x8xf32>
    %18 = arith.truncf %17 : vector<1x16x8xf32> to vector<1x16x8xbf16>
    %19 = vector.extract_strided_slice %15 {offsets = [0, 32], sizes = [16, 8], strides = [1, 1]} : vector<16x96xf32> to vector<16x8xf32>
    %20 = vector.shape_cast %19 : vector<16x8xf32> to vector<1x16x8xf32>
    %21 = arith.truncf %20 : vector<1x16x8xf32> to vector<1x16x8xbf16>
    %22 = vector.extract_strided_slice %15 {offsets = [0, 64], sizes = [16, 8], strides = [1, 1]} : vector<16x96xf32> to vector<16x8xf32>
    %23 = vector.shape_cast %22 : vector<16x8xf32> to vector<1x16x8xf32>
    %24 = arith.truncf %23 : vector<1x16x8xf32> to vector<1x16x8xbf16>
    "tpu.trace_start"() <{level = 10 : i32, message = "bqd,bkd->bqk"}> : () -> ()
    %cst_10 = arith.constant dense<0.000000e+00> : vector<1x16x16xf32>
    %25 = tpu.matmul %18, %21, %cst_10 {dimension_numbers = #tpu.dot_dimension_numbers<[2], [2], [1], [1], [0, 0, 0, 1, 1, 1], [0], [0]>} : vector<1x16x8xbf16>, vector<1x16x8xbf16>, vector<1x16x16xf32> -> vector<1x16x16xf32>
    "tpu.trace_stop"() : () -> ()
    %cst_11 = arith.constant 0.353553385 : f32
    %26 = vector.broadcast %cst_11 : f32 to vector<1x16x16xf32>
    %27 = arith.mulf %25, %26 : vector<1x16x16xf32>
    %28 = vector.broadcast %5 : vector<1x1x16xf32> to vector<1x16x16xf32>
    %29 = arith.addf %27, %28 : vector<1x16x16xf32>
    %cst_12 = arith.constant dense<0xFF800000> : vector<1x16xf32>
    %30 = vector.multi_reduction <maximumf>, %29, %cst_12 [2] : vector<1x16x16xf32> to vector<1x16xf32>
    %31 = vector.shape_cast %30 : vector<1x16xf32> to vector<1x16x1xf32>
    %32 = vector.broadcast %31 : vector<1x16x1xf32> to vector<1x16x16xf32>
    %33 = arith.subf %29, %32 : vector<1x16x16xf32>
    %34 = math.exp %33 : vector<1x16x16xf32>
    %cst_13 = arith.constant dense<0.000000e+00> : vector<1x16xf32>
    %35 = vector.multi_reduction <add>, %34, %cst_13 [2] : vector<1x16x16xf32> to vector<1x16xf32>
    %36 = vector.shape_cast %35 : vector<1x16xf32> to vector<1x16x1xf32>
    %37 = tpu.reciprocal %36 {approx = true} : vector<1x16x1xf32> -> vector<1x16x1xf32>
    %38 = vector.broadcast %37 : vector<1x16x1xf32> to vector<1x16x16xf32>
    %39 = arith.mulf %34, %38 : vector<1x16x16xf32>
    %40 = arith.truncf %39 : vector<1x16x16xf32> to vector<1x16x16xbf16>
    "tpu.trace_start"() <{level = 10 : i32, message = "bqk,bkd->bqd"}> : () -> ()
    %cst_14 = arith.constant dense<0.000000e+00> : vector<1x16x8xf32>
    %41 = tpu.matmul %40, %24, %cst_14 {dimension_numbers = #tpu.dot_dimension_numbers<[2], [1], [1], [2], [0, 0, 0, 1, 1, 2], [0], [0]>} : vector<1x16x16xbf16>, vector<1x16x8xbf16>, vector<1x16x8xf32> -> vector<1x16x8xf32>
    "tpu.trace_stop"() : () -> ()
    %42 = vector.shape_cast %41 : vector<1x16x8xf32> to vector<16x8xf32>
    %43 = arith.truncf %42 : vector<16x8xf32> to vector<16x8xbf16>
    %c0_15 = arith.constant 0 : index
    %c0_16 = arith.constant 0 : index
    %44 = vector.load %arg19[%c0_15, %c0_16] : memref<16x32xbf16, #tpu.memory_space<vmem>>, vector<16x8xbf16>
    tpu.vector_store %arg19[%c0_15, %c0_16], %43 {strides = array<i32>} : memref<16x32xbf16, #tpu.memory_space<vmem>>, vector<16x8xbf16>,
    %45 = vector.extract_strided_slice %15 {offsets = [0, 8], sizes = [16, 8], strides = [1, 1]} : vector<16x96xf32> to vector<16x8xf32>
    %46 = vector.shape_cast %45 : vector<16x8xf32> to vector<1x16x8xf32>
    %47 = arith.truncf %46 : vector<1x16x8xf32> to vector<1x16x8xbf16>
    %48 = vector.extract_strided_slice %15 {offsets = [0, 40], sizes = [16, 8], strides = [1, 1]} : vector<16x96xf32> to vector<16x8xf32>
    %49 = vector.shape_cast %48 : vector<16x8xf32> to vector<1x16x8xf32>
    %50 = arith.truncf %49 : vector<1x16x8xf32> to vector<1x16x8xbf16>
    %51 = vector.extract_strided_slice %15 {offsets = [0, 72], sizes = [16, 8], strides = [1, 1]} : vector<16x96xf32> to vector<16x8xf32>
    %52 = vector.shape_cast %51 : vector<16x8xf32> to vector<1x16x8xf32>
    %53 = arith.truncf %52 : vector<1x16x8xf32> to vector<1x16x8xbf16>
    "tpu.trace_start"() <{level = 10 : i32, message = "bqd,bkd->bqk"}> : () -> ()
    %cst_17 = arith.constant dense<0.000000e+00> : vector<1x16x16xf32>
    %54 = tpu.matmul %47, %50, %cst_17 {dimension_numbers = #tpu.dot_dimension_numbers<[2], [2], [1], [1], [0, 0, 0, 1, 1, 1], [0], [0]>} : vector<1x16x8xbf16>, vector<1x16x8xbf16>, vector<1x16x16xf32> -> vector<1x16x16xf32>
    "tpu.trace_stop"() : () -> ()
    %cst_18 = arith.constant 0.353553385 : f32
    %55 = vector.broadcast %cst_18 : f32 to vector<1x16x16xf32>
    %56 = arith.mulf %54, %55 : vector<1x16x16xf32>
    %57 = vector.broadcast %5 : vector<1x1x16xf32> to vector<1x16x16xf32>
    %58 = arith.addf %56, %57 : vector<1x16x16xf32>
    %cst_19 = arith.constant dense<0xFF800000> : vector<1x16xf32>
    %59 = vector.multi_reduction <maximumf>, %58, %cst_19 [2] : vector<1x16x16xf32> to vector<1x16xf32>
    %60 = vector.shape_cast %59 : vector<1x16xf32> to vector<1x16x1xf32>
    %61 = vector.broadcast %60 : vector<1x16x1xf32> to vector<1x16x16xf32>
    %62 = arith.subf %58, %61 : vector<1x16x16xf32>
    %63 = math.exp %62 : vector<1x16x16xf32>
    %cst_20 = arith.constant dense<0.000000e+00> : vector<1x16xf32>
    %64 = vector.multi_reduction <add>, %63, %cst_20 [2] : vector<1x16x16xf32> to vector<1x16xf32>
    %65 = vector.shape_cast %64 : vector<1x16xf32> to vector<1x16x1xf32>
    %66 = tpu.reciprocal %65 {approx = true} : vector<1x16x1xf32> -> vector<1x16x1xf32>
    %67 = vector.broadcast %66 : vector<1x16x1xf32> to vector<1x16x16xf32>
    %68 = arith.mulf %63, %67 : vector<1x16x16xf32>
    %69 = arith.truncf %68 : vector<1x16x16xf32> to vector<1x16x16xbf16>
    "tpu.trace_start"() <{level = 10 : i32, message = "bqk,bkd->bqd"}> : () -> ()
    %cst_21 = arith.constant dense<0.000000e+00> : vector<1x16x8xf32>
    %70 = tpu.matmul %69, %53, %cst_21 {dimension_numbers = #tpu.dot_dimension_numbers<[2], [1], [1], [2], [0, 0, 0, 1, 1, 2], [0], [0]>} : vector<1x16x16xbf16>, vector<1x16x8xbf16>, vector<1x16x8xf32> -> vector<1x16x8xf32>
    "tpu.trace_stop"() : () -> ()
    %71 = vector.shape_cast %70 : vector<1x16x8xf32> to vector<16x8xf32>
    %72 = arith.truncf %71 : vector<16x8xf32> to vector<16x8xbf16>
    %c0_22 = arith.constant 0 : index
    %c8 = arith.constant 8 : index
    %73 = vector.load %arg19[%c0_22, %c8] : memref<16x32xbf16, #tpu.memory_space<vmem>>, vector<16x8xbf16>
    tpu.vector_store %arg19[%c0_22, %c8], %72 {strides = array<i32>} : memref<16x32xbf16, #tpu.memory_space<vmem>>, vector<16x8xbf16>,
    %74 = vector.extract_strided_slice %15 {offsets = [0, 16], sizes = [16, 8], strides = [1, 1]} : vector<16x96xf32> to vector<16x8xf32>
    %75 = vector.shape_cast %74 : vector<16x8xf32> to vector<1x16x8xf32>
    %76 = arith.truncf %75 : vector<1x16x8xf32> to vector<1x16x8xbf16>
    %77 = vector.extract_strided_slice %15 {offsets = [0, 48], sizes = [16, 8], strides = [1, 1]} : vector<16x96xf32> to vector<16x8xf32>
    %78 = vector.shape_cast %77 : vector<16x8xf32> to vector<1x16x8xf32>
    %79 = arith.truncf %78 : vector<1x16x8xf32> to vector<1x16x8xbf16>
    %80 = vector.extract_strided_slice %15 {offsets = [0, 80], sizes = [16, 8], strides = [1, 1]} : vector<16x96xf32> to vector<16x8xf32>
    %81 = vector.shape_cast %80 : vector<16x8xf32> to vector<1x16x8xf32>
    %82 = arith.truncf %81 : vector<1x16x8xf32> to vector<1x16x8xbf16>
    "tpu.trace_start"() <{level = 10 : i32, message = "bqd,bkd->bqk"}> : () -> ()
    %cst_23 = arith.constant dense<0.000000e+00> : vector<1x16x16xf32>
    %83 = tpu.matmul %76, %79, %cst_23 {dimension_numbers = #tpu.dot_dimension_numbers<[2], [2], [1], [1], [0, 0, 0, 1, 1, 1], [0], [0]>} : vector<1x16x8xbf16>, vector<1x16x8xbf16>, vector<1x16x16xf32> -> vector<1x16x16xf32>
    "tpu.trace_stop"() : () -> ()
    %cst_24 = arith.constant 0.353553385 : f32
    %84 = vector.broadcast %cst_24 : f32 to vector<1x16x16xf32>
    %85 = arith.mulf %83, %84 : vector<1x16x16xf32>
    %86 = vector.broadcast %5 : vector<1x1x16xf32> to vector<1x16x16xf32>
    %87 = arith.addf %85, %86 : vector<1x16x16xf32>
    %cst_25 = arith.constant dense<0xFF800000> : vector<1x16xf32>
    %88 = vector.multi_reduction <maximumf>, %87, %cst_25 [2] : vector<1x16x16xf32> to vector<1x16xf32>
    %89 = vector.shape_cast %88 : vector<1x16xf32> to vector<1x16x1xf32>
    %90 = vector.broadcast %89 : vector<1x16x1xf32> to vector<1x16x16xf32>
    %91 = arith.subf %87, %90 : vector<1x16x16xf32>
    %92 = math.exp %91 : vector<1x16x16xf32>
    %cst_26 = arith.constant dense<0.000000e+00> : vector<1x16xf32>
    %93 = vector.multi_reduction <add>, %92, %cst_26 [2] : vector<1x16x16xf32> to vector<1x16xf32>
    %94 = vector.shape_cast %93 : vector<1x16xf32> to vector<1x16x1xf32>
    %95 = tpu.reciprocal %94 {approx = true} : vector<1x16x1xf32> -> vector<1x16x1xf32>
    %96 = vector.broadcast %95 : vector<1x16x1xf32> to vector<1x16x16xf32>
    %97 = arith.mulf %92, %96 : vector<1x16x16xf32>
    %98 = arith.truncf %97 : vector<1x16x16xf32> to vector<1x16x16xbf16>
    "tpu.trace_start"() <{level = 10 : i32, message = "bqk,bkd->bqd"}> : () -> ()
    %cst_27 = arith.constant dense<0.000000e+00> : vector<1x16x8xf32>
    %99 = tpu.matmul %98, %82, %cst_27 {dimension_numbers = #tpu.dot_dimension_numbers<[2], [1], [1], [2], [0, 0, 0, 1, 1, 2], [0], [0]>} : vector<1x16x16xbf16>, vector<1x16x8xbf16>, vector<1x16x8xf32> -> vector<1x16x8xf32>
    "tpu.trace_stop"() : () -> ()
    %100 = vector.shape_cast %99 : vector<1x16x8xf32> to vector<16x8xf32>
    %101 = arith.truncf %100 : vector<16x8xf32> to vector<16x8xbf16>
    %c0_28 = arith.constant 0 : index
    %c16 = arith.constant 16 : index
    %102 = vector.load %arg19[%c0_28, %c16] : memref<16x32xbf16, #tpu.memory_space<vmem>>, vector<16x8xbf16>
    tpu.vector_store %arg19[%c0_28, %c16], %101 {strides = array<i32>} : memref<16x32xbf16, #tpu.memory_space<vmem>>, vector<16x8xbf16>,
    %103 = vector.extract_strided_slice %15 {offsets = [0, 24], sizes = [16, 8], strides = [1, 1]} : vector<16x96xf32> to vector<16x8xf32>
    %104 = vector.shape_cast %103 : vector<16x8xf32> to vector<1x16x8xf32>
    %105 = arith.truncf %104 : vector<1x16x8xf32> to vector<1x16x8xbf16>
    %106 = vector.extract_strided_slice %15 {offsets = [0, 56], sizes = [16, 8], strides = [1, 1]} : vector<16x96xf32> to vector<16x8xf32>
    %107 = vector.shape_cast %106 : vector<16x8xf32> to vector<1x16x8xf32>
    %108 = arith.truncf %107 : vector<1x16x8xf32> to vector<1x16x8xbf16>
    %109 = vector.extract_strided_slice %15 {offsets = [0, 88], sizes = [16, 8], strides = [1, 1]} : vector<16x96xf32> to vector<16x8xf32>
    %110 = vector.shape_cast %109 : vector<16x8xf32> to vector<1x16x8xf32>
    %111 = arith.truncf %110 : vector<1x16x8xf32> to vector<1x16x8xbf16>
    "tpu.trace_start"() <{level = 10 : i32, message = "bqd,bkd->bqk"}> : () -> ()
    %cst_29 = arith.constant dense<0.000000e+00> : vector<1x16x16xf32>
    %112 = tpu.matmul %105, %108, %cst_29 {dimension_numbers = #tpu.dot_dimension_numbers<[2], [2], [1], [1], [0, 0, 0, 1, 1, 1], [0], [0]>} : vector<1x16x8xbf16>, vector<1x16x8xbf16>, vector<1x16x16xf32> -> vector<1x16x16xf32>
    "tpu.trace_stop"() : () -> ()
    %cst_30 = arith.constant 0.353553385 : f32
    %113 = vector.broadcast %cst_30 : f32 to vector<1x16x16xf32>
    %114 = arith.mulf %112, %113 : vector<1x16x16xf32>
    %115 = vector.broadcast %5 : vector<1x1x16xf32> to vector<1x16x16xf32>
    %116 = arith.addf %114, %115 : vector<1x16x16xf32>
    %cst_31 = arith.constant dense<0xFF800000> : vector<1x16xf32>
    %117 = vector.multi_reduction <maximumf>, %116, %cst_31 [2] : vector<1x16x16xf32> to vector<1x16xf32>
    %118 = vector.shape_cast %117 : vector<1x16xf32> to vector<1x16x1xf32>
    %119 = vector.broadcast %118 : vector<1x16x1xf32> to vector<1x16x16xf32>
    %120 = arith.subf %116, %119 : vector<1x16x16xf32>
    %121 = math.exp %120 : vector<1x16x16xf32>
    %cst_32 = arith.constant dense<0.000000e+00> : vector<1x16xf32>
    %122 = vector.multi_reduction <add>, %121, %cst_32 [2] : vector<1x16x16xf32> to vector<1x16xf32>
    %123 = vector.shape_cast %122 : vector<1x16xf32> to vector<1x16x1xf32>
    %124 = tpu.reciprocal %123 {approx = true} : vector<1x16x1xf32> -> vector<1x16x1xf32>
    %125 = vector.broadcast %124 : vector<1x16x1xf32> to vector<1x16x16xf32>
    %126 = arith.mulf %121, %125 : vector<1x16x16xf32>
    %127 = arith.truncf %126 : vector<1x16x16xf32> to vector<1x16x16xbf16>
    "tpu.trace_start"() <{level = 10 : i32, message = "bqk,bkd->bqd"}> : () -> ()
    %cst_33 = arith.constant dense<0.000000e+00> : vector<1x16x8xf32>
    %128 = tpu.matmul %127, %111, %cst_33 {dimension_numbers = #tpu.dot_dimension_numbers<[2], [1], [1], [2], [0, 0, 0, 1, 1, 2], [0], [0]>} : vector<1x16x16xbf16>, vector<1x16x8xbf16>, vector<1x16x8xf32> -> vector<1x16x8xf32>
    "tpu.trace_stop"() : () -> ()
    %129 = vector.shape_cast %128 : vector<1x16x8xf32> to vector<16x8xf32>
    %130 = arith.truncf %129 : vector<16x8xf32> to vector<16x8xbf16>
    %c0_34 = arith.constant 0 : index
    %c24 = arith.constant 24 : index
    %131 = vector.load %arg19[%c0_34, %c24] : memref<16x32xbf16, #tpu.memory_space<vmem>>, vector<16x8xbf16>
    tpu.vector_store %arg19[%c0_34, %c24], %130 {strides = array<i32>} : memref<16x32xbf16, #tpu.memory_space<vmem>>, vector<16x8xbf16>,
    %c0_35 = arith.constant 0 : index
    %c0_36 = arith.constant 0 : index
    %132 = vector.load %arg19[%c0_35, %c0_36] : memref<16x32xbf16, #tpu.memory_space<vmem>>, vector<16x32xbf16>
    %c0_37 = arith.constant 0 : index
    %c0_38 = arith.constant 0 : index
    %c0_39 = arith.constant 0 : index
    %133 = vector.load %arg4[%c0_37, %c0_38, %c0_39] : memref<2x32x32xbf16, #tpu.memory_space<vmem>>, vector<1x32x32xbf16>
    %134 = vector.shape_cast %133 : vector<1x32x32xbf16> to vector<32x32xbf16>
    %cst_40 = arith.constant dense<0.000000e+00> : vector<16x32xf32>
    %135 = tpu.matmul %132, %134, %cst_40 {dimension_numbers = #tpu.dot_dimension_numbers<[1], [0], [0], [1], [0, 0, 1, 1], [], []>} : vector<16x32xbf16>, vector<32x32xbf16>, vector<16x32xf32> -> vector<16x32xf32>
    %c0_41 = arith.constant 0 : index
    %c0_42 = arith.constant 0 : index
    %c0_43 = arith.constant 0 : index
    %136 = vector.load %arg5[%c0_41, %c0_42, %c0_43] : memref<2x1x32xf32, #tpu.memory_space<vmem>>, vector<1x1x32xf32>
    %137 = vector.shape_cast %136 : vector<1x1x32xf32> to vector<1x32xf32>
    %138 = vector.broadcast %137 : vector<1x32xf32> to vector<16x32xf32>
    %139 = arith.addf %135, %138 : vector<16x32xf32>
    %140 = arith.addf %7, %139 : vector<16x32xf32>
    %c0_44 = arith.constant 0 : index
    %c0_45 = arith.constant 0 : index
    %c0_46 = arith.constant 0 : index
    %141 = vector.load %arg6[%c0_44, %c0_45, %c0_46] : memref<2x1x32xf32, #tpu.memory_space<vmem>>, vector<1x1x32xf32>
    %142 = vector.shape_cast %141 : vector<1x1x32xf32> to vector<1x32xf32>
    %c0_47 = arith.constant 0 : index
    %c0_48 = arith.constant 0 : index
    %c0_49 = arith.constant 0 : index
    %143 = vector.load %arg7[%c0_47, %c0_48, %c0_49] : memref<2x1x32xf32, #tpu.memory_space<vmem>>, vector<1x1x32xf32>
    %144 = vector.shape_cast %143 : vector<1x1x32xf32> to vector<1x32xf32>
    %cst_50 = arith.constant dense<0.000000e+00> : vector<16xf32>
    %145 = vector.multi_reduction <add>, %140, %cst_50 [1] : vector<16x32xf32> to vector<16xf32>
    %146 = vector.shape_cast %145 : vector<16xf32> to vector<16x1xf32>
    %cst_51 = arith.constant 3.200000e+01 : f32
    %147 = vector.broadcast %cst_51 : f32 to vector<16x1xf32>
    %148 = arith.divf %146, %147 : vector<16x1xf32>
    %149 = vector.broadcast %148 : vector<16x1xf32> to vector<16x32xf32>
    %150 = arith.subf %140, %149 : vector<16x32xf32>
    %151 = arith.mulf %150, %150 : vector<16x32xf32>
    %cst_52 = arith.constant dense<0.000000e+00> : vector<16xf32>
    %152 = vector.multi_reduction <add>, %151, %cst_52 [1] : vector<16x32xf32> to vector<16xf32>
    %153 = vector.shape_cast %152 : vector<16xf32> to vector<16x1xf32>
    %cst_53 = arith.constant 3.200000e+01 : f32
    %154 = vector.broadcast %cst_53 : f32 to vector<16x1xf32>
    %155 = arith.divf %153, %154 : vector<16x1xf32>
    %156 = vector.broadcast %148 : vector<16x1xf32> to vector<16x32xf32>
    %157 = arith.subf %140, %156 : vector<16x32xf32>
    %cst_54 = arith.constant 9.99999974E-6 : f32
    %158 = vector.broadcast %cst_54 : f32 to vector<16x1xf32>
    %159 = arith.addf %155, %158 : vector<16x1xf32>
    %160 = math.rsqrt %159 : vector<16x1xf32>
    %161 = vector.broadcast %160 : vector<16x1xf32> to vector<16x32xf32>
    %162 = arith.mulf %157, %161 : vector<16x32xf32>
    %163 = vector.broadcast %142 : vector<1x32xf32> to vector<16x32xf32>
    %164 = arith.mulf %162, %163 : vector<16x32xf32>
    %165 = vector.broadcast %144 : vector<1x32xf32> to vector<16x32xf32>
    %166 = arith.addf %164, %165 : vector<16x32xf32>
    %167 = arith.truncf %166 : vector<16x32xf32> to vector<16x32xbf16>
    %c0_55 = arith.constant 0 : index
    %c0_56 = arith.constant 0 : index
    %c0_57 = arith.constant 0 : index
    %168 = vector.load %arg8[%c0_55, %c0_56, %c0_57] : memref<2x32x64xbf16, #tpu.memory_space<vmem>>, vector<1x32x64xbf16>
    %169 = vector.shape_cast %168 : vector<1x32x64xbf16> to vector<32x64xbf16>
    %cst_58 = arith.constant dense<0.000000e+00> : vector<16x64xf32>
    %170 = tpu.matmul %167, %169, %cst_58 {dimension_numbers = #tpu.dot_dimension_numbers<[1], [0], [0], [1], [0, 0, 1, 1], [], []>} : vector<16x32xbf16>, vector<32x64xbf16>, vector<16x64xf32> -> vector<16x64xf32>
    %c0_59 = arith.constant 0 : index
    %c0_60 = arith.constant 0 : index
    %c0_61 = arith.constant 0 : index
    %171 = vector.load %arg9[%c0_59, %c0_60, %c0_61] : memref<2x1x64xf32, #tpu.memory_space<vmem>>, vector<1x1x64xf32>
    %172 = vector.shape_cast %171 : vector<1x1x64xf32> to vector<1x64xf32>
    %173 = vector.broadcast %172 : vector<1x64xf32> to vector<16x64xf32>
    %174 = arith.addf %170, %173 : vector<16x64xf32>
    %cst_62 = arith.constant 5.000000e-01 : f32
    %175 = vector.broadcast %cst_62 : f32 to vector<16x64xf32>
    %176 = arith.mulf %175, %174 : vector<16x64xf32>
    %cst_63 = arith.constant 0.707106769 : f32
    %177 = vector.broadcast %cst_63 : f32 to vector<16x64xf32>
    %178 = arith.mulf %174, %177 : vector<16x64xf32>
    %179 = math.erf %178 : vector<16x64xf32>
    %cst_64 = arith.constant 1.000000e+00 : f32
    %180 = vector.broadcast %cst_64 : f32 to vector<16x64xf32>
    %181 = arith.addf %180, %179 : vector<16x64xf32>
    %182 = arith.mulf %176, %181 : vector<16x64xf32>
    %183 = arith.truncf %182 : vector<16x64xf32> to vector<16x64xbf16>
    %c0_65 = arith.constant 0 : index
    %c0_66 = arith.constant 0 : index
    %c0_67 = arith.constant 0 : index
    %184 = vector.load %arg10[%c0_65, %c0_66, %c0_67] : memref<2x64x32xbf16, #tpu.memory_space<vmem>>, vector<1x64x32xbf16>
    %185 = vector.shape_cast %184 : vector<1x64x32xbf16> to vector<64x32xbf16>
    %cst_68 = arith.constant dense<0.000000e+00> : vector<16x32xf32>
    %186 = tpu.matmul %183, %185, %cst_68 {dimension_numbers = #tpu.dot_dimension_numbers<[1], [0], [0], [1], [0, 0, 1, 1], [], []>} : vector<16x64xbf16>, vector<64x32xbf16>, vector<16x32xf32> -> vector<16x32xf32>
    %c0_69 = arith.constant 0 : index
    %c0_70 = arith.constant 0 : index
    %c0_71 = arith.constant 0 : index
    %187 = vector.load %arg11[%c0_69, %c0_70, %c0_71] : memref<2x1x32xf32, #tpu.memory_space<vmem>>, vector<1x1x32xf32>
    %188 = vector.shape_cast %187 : vector<1x1x32xf32> to vector<1x32xf32>
    %189 = vector.broadcast %188 : vector<1x32xf32> to vector<16x32xf32>
    %190 = arith.addf %186, %189 : vector<16x32xf32>
    %191 = arith.addf %166, %190 : vector<16x32xf32>
    %c0_72 = arith.constant 0 : index
    %c0_73 = arith.constant 0 : index
    %c0_74 = arith.constant 0 : index
    %192 = vector.load %arg12[%c0_72, %c0_73, %c0_74] : memref<2x1x32xf32, #tpu.memory_space<vmem>>, vector<1x1x32xf32>
    %193 = vector.shape_cast %192 : vector<1x1x32xf32> to vector<1x32xf32>
    %c0_75 = arith.constant 0 : index
    %c0_76 = arith.constant 0 : index
    %c0_77 = arith.constant 0 : index
    %194 = vector.load %arg13[%c0_75, %c0_76, %c0_77] : memref<2x1x32xf32, #tpu.memory_space<vmem>>, vector<1x1x32xf32>
    %195 = vector.shape_cast %194 : vector<1x1x32xf32> to vector<1x32xf32>
    %cst_78 = arith.constant dense<0.000000e+00> : vector<16xf32>
    %196 = vector.multi_reduction <add>, %191, %cst_78 [1] : vector<16x32xf32> to vector<16xf32>
    %197 = vector.shape_cast %196 : vector<16xf32> to vector<16x1xf32>
    %cst_79 = arith.constant 3.200000e+01 : f32
    %198 = vector.broadcast %cst_79 : f32 to vector<16x1xf32>
    %199 = arith.divf %197, %198 : vector<16x1xf32>
    %200 = vector.broadcast %199 : vector<16x1xf32> to vector<16x32xf32>
    %201 = arith.subf %191, %200 : vector<16x32xf32>
    %202 = arith.mulf %201, %201 : vector<16x32xf32>
    %cst_80 = arith.constant dense<0.000000e+00> : vector<16xf32>
    %203 = vector.multi_reduction <add>, %202, %cst_80 [1] : vector<16x32xf32> to vector<16xf32>
    %204 = vector.shape_cast %203 : vector<16xf32> to vector<16x1xf32>
    %cst_81 = arith.constant 3.200000e+01 : f32
    %205 = vector.broadcast %cst_81 : f32 to vector<16x1xf32>
    %206 = arith.divf %204, %205 : vector<16x1xf32>
    %207 = vector.broadcast %199 : vector<16x1xf32> to vector<16x32xf32>
    %208 = arith.subf %191, %207 : vector<16x32xf32>
    %cst_82 = arith.constant 9.99999974E-6 : f32
    %209 = vector.broadcast %cst_82 : f32 to vector<16x1xf32>
    %210 = arith.addf %206, %209 : vector<16x1xf32>
    %211 = math.rsqrt %210 : vector<16x1xf32>
    %212 = vector.broadcast %211 : vector<16x1xf32> to vector<16x32xf32>
    %213 = arith.mulf %208, %212 : vector<16x32xf32>
    %214 = vector.broadcast %193 : vector<1x32xf32> to vector<16x32xf32>
    %215 = arith.mulf %213, %214 : vector<16x32xf32>
    %216 = vector.broadcast %195 : vector<1x32xf32> to vector<16x32xf32>
    %217 = arith.addf %215, %216 : vector<16x32xf32>
    %218 = arith.truncf %217 : vector<16x32xf32> to vector<16x32xbf16>
    %c1 = arith.constant 1 : index
    %c0_83 = arith.constant 0 : index
    %c0_84 = arith.constant 0 : index
    %219 = vector.load %arg2[%c1, %c0_83, %c0_84] : memref<2x32x96xbf16, #tpu.memory_space<vmem>>, vector<1x32x96xbf16>
    %220 = vector.shape_cast %219 : vector<1x32x96xbf16> to vector<32x96xbf16>
    %cst_85 = arith.constant dense<0.000000e+00> : vector<16x96xf32>
    %221 = tpu.matmul %218, %220, %cst_85 {dimension_numbers = #tpu.dot_dimension_numbers<[1], [0], [0], [1], [0, 0, 1, 1], [], []>} : vector<16x32xbf16>, vector<32x96xbf16>, vector<16x96xf32> -> vector<16x96xf32>
    %c1_86 = arith.constant 1 : index
    %c0_87 = arith.constant 0 : index
    %c0_88 = arith.constant 0 : index
    %222 = vector.load %arg3[%c1_86, %c0_87, %c0_88] : memref<2x1x96xf32, #tpu.memory_space<vmem>>, vector<1x1x96xf32>
    %223 = vector.shape_cast %222 : vector<1x1x96xf32> to vector<1x96xf32>
    %224 = vector.broadcast %223 : vector<1x96xf32> to vector<16x96xf32>
    %225 = arith.addf %221, %224 : vector<16x96xf32>
    %226 = vector.extract_strided_slice %225 {offsets = [0, 0], sizes = [16, 8], strides = [1, 1]} : vector<16x96xf32> to vector<16x8xf32>
    %227 = vector.shape_cast %226 : vector<16x8xf32> to vector<1x16x8xf32>
    %228 = arith.truncf %227 : vector<1x16x8xf32> to vector<1x16x8xbf16>
    %229 = vector.extract_strided_slice %225 {offsets = [0, 32], sizes = [16, 8], strides = [1, 1]} : vector<16x96xf32> to vector<16x8xf32>
    %230 = vector.shape_cast %229 : vector<16x8xf32> to vector<1x16x8xf32>
    %231 = arith.truncf %230 : vector<1x16x8xf32> to vector<1x16x8xbf16>
    %232 = vector.extract_strided_slice %225 {offsets = [0, 64], sizes = [16, 8], strides = [1, 1]} : vector<16x96xf32> to vector<16x8xf32>
    %233 = vector.shape_cast %232 : vector<16x8xf32> to vector<1x16x8xf32>
    %234 = arith.truncf %233 : vector<1x16x8xf32> to vector<1x16x8xbf16>
    "tpu.trace_start"() <{level = 10 : i32, message = "bqd,bkd->bqk"}> : () -> ()
    %cst_89 = arith.constant dense<0.000000e+00> : vector<1x16x16xf32>
    %235 = tpu.matmul %228, %231, %cst_89 {dimension_numbers = #tpu.dot_dimension_numbers<[2], [2], [1], [1], [0, 0, 0, 1, 1, 1], [0], [0]>} : vector<1x16x8xbf16>, vector<1x16x8xbf16>, vector<1x16x16xf32> -> vector<1x16x16xf32>
    "tpu.trace_stop"() : () -> ()
    %cst_90 = arith.constant 0.353553385 : f32
    %236 = vector.broadcast %cst_90 : f32 to vector<1x16x16xf32>
    %237 = arith.mulf %235, %236 : vector<1x16x16xf32>
    %238 = vector.broadcast %5 : vector<1x1x16xf32> to vector<1x16x16xf32>
    %239 = arith.addf %237, %238 : vector<1x16x16xf32>
    %cst_91 = arith.constant dense<0xFF800000> : vector<1x16xf32>
    %240 = vector.multi_reduction <maximumf>, %239, %cst_91 [2] : vector<1x16x16xf32> to vector<1x16xf32>
    %241 = vector.shape_cast %240 : vector<1x16xf32> to vector<1x16x1xf32>
    %242 = vector.broadcast %241 : vector<1x16x1xf32> to vector<1x16x16xf32>
    %243 = arith.subf %239, %242 : vector<1x16x16xf32>
    %244 = math.exp %243 : vector<1x16x16xf32>
    %cst_92 = arith.constant dense<0.000000e+00> : vector<1x16xf32>
    %245 = vector.multi_reduction <add>, %244, %cst_92 [2] : vector<1x16x16xf32> to vector<1x16xf32>
    %246 = vector.shape_cast %245 : vector<1x16xf32> to vector<1x16x1xf32>
    %247 = tpu.reciprocal %246 {approx = true} : vector<1x16x1xf32> -> vector<1x16x1xf32>
    %248 = vector.broadcast %247 : vector<1x16x1xf32> to vector<1x16x16xf32>
    %249 = arith.mulf %244, %248 : vector<1x16x16xf32>
    %250 = arith.truncf %249 : vector<1x16x16xf32> to vector<1x16x16xbf16>
    "tpu.trace_start"() <{level = 10 : i32, message = "bqk,bkd->bqd"}> : () -> ()
    %cst_93 = arith.constant dense<0.000000e+00> : vector<1x16x8xf32>
    %251 = tpu.matmul %250, %234, %cst_93 {dimension_numbers = #tpu.dot_dimension_numbers<[2], [1], [1], [2], [0, 0, 0, 1, 1, 2], [0], [0]>} : vector<1x16x16xbf16>, vector<1x16x8xbf16>, vector<1x16x8xf32> -> vector<1x16x8xf32>
    "tpu.trace_stop"() : () -> ()
    %252 = vector.shape_cast %251 : vector<1x16x8xf32> to vector<16x8xf32>
    %253 = arith.truncf %252 : vector<16x8xf32> to vector<16x8xbf16>
    %c0_94 = arith.constant 0 : index
    %c0_95 = arith.constant 0 : index
    %254 = vector.load %arg19[%c0_94, %c0_95] : memref<16x32xbf16, #tpu.memory_space<vmem>>, vector<16x8xbf16>
    tpu.vector_store %arg19[%c0_94, %c0_95], %253 {strides = array<i32>} : memref<16x32xbf16, #tpu.memory_space<vmem>>, vector<16x8xbf16>,
    %255 = vector.extract_strided_slice %225 {offsets = [0, 8], sizes = [16, 8], strides = [1, 1]} : vector<16x96xf32> to vector<16x8xf32>
    %256 = vector.shape_cast %255 : vector<16x8xf32> to vector<1x16x8xf32>
    %257 = arith.truncf %256 : vector<1x16x8xf32> to vector<1x16x8xbf16>
    %258 = vector.extract_strided_slice %225 {offsets = [0, 40], sizes = [16, 8], strides = [1, 1]} : vector<16x96xf32> to vector<16x8xf32>
    %259 = vector.shape_cast %258 : vector<16x8xf32> to vector<1x16x8xf32>
    %260 = arith.truncf %259 : vector<1x16x8xf32> to vector<1x16x8xbf16>
    %261 = vector.extract_strided_slice %225 {offsets = [0, 72], sizes = [16, 8], strides = [1, 1]} : vector<16x96xf32> to vector<16x8xf32>
    %262 = vector.shape_cast %261 : vector<16x8xf32> to vector<1x16x8xf32>
    %263 = arith.truncf %262 : vector<1x16x8xf32> to vector<1x16x8xbf16>
    "tpu.trace_start"() <{level = 10 : i32, message = "bqd,bkd->bqk"}> : () -> ()
    %cst_96 = arith.constant dense<0.000000e+00> : vector<1x16x16xf32>
    %264 = tpu.matmul %257, %260, %cst_96 {dimension_numbers = #tpu.dot_dimension_numbers<[2], [2], [1], [1], [0, 0, 0, 1, 1, 1], [0], [0]>} : vector<1x16x8xbf16>, vector<1x16x8xbf16>, vector<1x16x16xf32> -> vector<1x16x16xf32>
    "tpu.trace_stop"() : () -> ()
    %cst_97 = arith.constant 0.353553385 : f32
    %265 = vector.broadcast %cst_97 : f32 to vector<1x16x16xf32>
    %266 = arith.mulf %264, %265 : vector<1x16x16xf32>
    %267 = vector.broadcast %5 : vector<1x1x16xf32> to vector<1x16x16xf32>
    %268 = arith.addf %266, %267 : vector<1x16x16xf32>
    %cst_98 = arith.constant dense<0xFF800000> : vector<1x16xf32>
    %269 = vector.multi_reduction <maximumf>, %268, %cst_98 [2] : vector<1x16x16xf32> to vector<1x16xf32>
    %270 = vector.shape_cast %269 : vector<1x16xf32> to vector<1x16x1xf32>
    %271 = vector.broadcast %270 : vector<1x16x1xf32> to vector<1x16x16xf32>
    %272 = arith.subf %268, %271 : vector<1x16x16xf32>
    %273 = math.exp %272 : vector<1x16x16xf32>
    %cst_99 = arith.constant dense<0.000000e+00> : vector<1x16xf32>
    %274 = vector.multi_reduction <add>, %273, %cst_99 [2] : vector<1x16x16xf32> to vector<1x16xf32>
    %275 = vector.shape_cast %274 : vector<1x16xf32> to vector<1x16x1xf32>
    %276 = tpu.reciprocal %275 {approx = true} : vector<1x16x1xf32> -> vector<1x16x1xf32>
    %277 = vector.broadcast %276 : vector<1x16x1xf32> to vector<1x16x16xf32>
    %278 = arith.mulf %273, %277 : vector<1x16x16xf32>
    %279 = arith.truncf %278 : vector<1x16x16xf32> to vector<1x16x16xbf16>
    "tpu.trace_start"() <{level = 10 : i32, message = "bqk,bkd->bqd"}> : () -> ()
    %cst_100 = arith.constant dense<0.000000e+00> : vector<1x16x8xf32>
    %280 = tpu.matmul %279, %263, %cst_100 {dimension_numbers = #tpu.dot_dimension_numbers<[2], [1], [1], [2], [0, 0, 0, 1, 1, 2], [0], [0]>} : vector<1x16x16xbf16>, vector<1x16x8xbf16>, vector<1x16x8xf32> -> vector<1x16x8xf32>
    "tpu.trace_stop"() : () -> ()
    %281 = vector.shape_cast %280 : vector<1x16x8xf32> to vector<16x8xf32>
    %282 = arith.truncf %281 : vector<16x8xf32> to vector<16x8xbf16>
    %c0_101 = arith.constant 0 : index
    %c8_102 = arith.constant 8 : index
    %283 = vector.load %arg19[%c0_101, %c8_102] : memref<16x32xbf16, #tpu.memory_space<vmem>>, vector<16x8xbf16>
    tpu.vector_store %arg19[%c0_101, %c8_102], %282 {strides = array<i32>} : memref<16x32xbf16, #tpu.memory_space<vmem>>, vector<16x8xbf16>,
    %284 = vector.extract_strided_slice %225 {offsets = [0, 16], sizes = [16, 8], strides = [1, 1]} : vector<16x96xf32> to vector<16x8xf32>
    %285 = vector.shape_cast %284 : vector<16x8xf32> to vector<1x16x8xf32>
    %286 = arith.truncf %285 : vector<1x16x8xf32> to vector<1x16x8xbf16>
    %287 = vector.extract_strided_slice %225 {offsets = [0, 48], sizes = [16, 8], strides = [1, 1]} : vector<16x96xf32> to vector<16x8xf32>
    %288 = vector.shape_cast %287 : vector<16x8xf32> to vector<1x16x8xf32>
    %289 = arith.truncf %288 : vector<1x16x8xf32> to vector<1x16x8xbf16>
    %290 = vector.extract_strided_slice %225 {offsets = [0, 80], sizes = [16, 8], strides = [1, 1]} : vector<16x96xf32> to vector<16x8xf32>
    %291 = vector.shape_cast %290 : vector<16x8xf32> to vector<1x16x8xf32>
    %292 = arith.truncf %291 : vector<1x16x8xf32> to vector<1x16x8xbf16>
    "tpu.trace_start"() <{level = 10 : i32, message = "bqd,bkd->bqk"}> : () -> ()
    %cst_103 = arith.constant dense<0.000000e+00> : vector<1x16x16xf32>
    %293 = tpu.matmul %286, %289, %cst_103 {dimension_numbers = #tpu.dot_dimension_numbers<[2], [2], [1], [1], [0, 0, 0, 1, 1, 1], [0], [0]>} : vector<1x16x8xbf16>, vector<1x16x8xbf16>, vector<1x16x16xf32> -> vector<1x16x16xf32>
    "tpu.trace_stop"() : () -> ()
    %cst_104 = arith.constant 0.353553385 : f32
    %294 = vector.broadcast %cst_104 : f32 to vector<1x16x16xf32>
    %295 = arith.mulf %293, %294 : vector<1x16x16xf32>
    %296 = vector.broadcast %5 : vector<1x1x16xf32> to vector<1x16x16xf32>
    %297 = arith.addf %295, %296 : vector<1x16x16xf32>
    %cst_105 = arith.constant dense<0xFF800000> : vector<1x16xf32>
    %298 = vector.multi_reduction <maximumf>, %297, %cst_105 [2] : vector<1x16x16xf32> to vector<1x16xf32>
    %299 = vector.shape_cast %298 : vector<1x16xf32> to vector<1x16x1xf32>
    %300 = vector.broadcast %299 : vector<1x16x1xf32> to vector<1x16x16xf32>
    %301 = arith.subf %297, %300 : vector<1x16x16xf32>
    %302 = math.exp %301 : vector<1x16x16xf32>
    %cst_106 = arith.constant dense<0.000000e+00> : vector<1x16xf32>
    %303 = vector.multi_reduction <add>, %302, %cst_106 [2] : vector<1x16x16xf32> to vector<1x16xf32>
    %304 = vector.shape_cast %303 : vector<1x16xf32> to vector<1x16x1xf32>
    %305 = tpu.reciprocal %304 {approx = true} : vector<1x16x1xf32> -> vector<1x16x1xf32>
    %306 = vector.broadcast %305 : vector<1x16x1xf32> to vector<1x16x16xf32>
    %307 = arith.mulf %302, %306 : vector<1x16x16xf32>
    %308 = arith.truncf %307 : vector<1x16x16xf32> to vector<1x16x16xbf16>
    "tpu.trace_start"() <{level = 10 : i32, message = "bqk,bkd->bqd"}> : () -> ()
    %cst_107 = arith.constant dense<0.000000e+00> : vector<1x16x8xf32>
    %309 = tpu.matmul %308, %292, %cst_107 {dimension_numbers = #tpu.dot_dimension_numbers<[2], [1], [1], [2], [0, 0, 0, 1, 1, 2], [0], [0]>} : vector<1x16x16xbf16>, vector<1x16x8xbf16>, vector<1x16x8xf32> -> vector<1x16x8xf32>
    "tpu.trace_stop"() : () -> ()
    %310 = vector.shape_cast %309 : vector<1x16x8xf32> to vector<16x8xf32>
    %311 = arith.truncf %310 : vector<16x8xf32> to vector<16x8xbf16>
    %c0_108 = arith.constant 0 : index
    %c16_109 = arith.constant 16 : index
    %312 = vector.load %arg19[%c0_108, %c16_109] : memref<16x32xbf16, #tpu.memory_space<vmem>>, vector<16x8xbf16>
    tpu.vector_store %arg19[%c0_108, %c16_109], %311 {strides = array<i32>} : memref<16x32xbf16, #tpu.memory_space<vmem>>, vector<16x8xbf16>,
    %313 = vector.extract_strided_slice %225 {offsets = [0, 24], sizes = [16, 8], strides = [1, 1]} : vector<16x96xf32> to vector<16x8xf32>
    %314 = vector.shape_cast %313 : vector<16x8xf32> to vector<1x16x8xf32>
    %315 = arith.truncf %314 : vector<1x16x8xf32> to vector<1x16x8xbf16>
    %316 = vector.extract_strided_slice %225 {offsets = [0, 56], sizes = [16, 8], strides = [1, 1]} : vector<16x96xf32> to vector<16x8xf32>
    %317 = vector.shape_cast %316 : vector<16x8xf32> to vector<1x16x8xf32>
    %318 = arith.truncf %317 : vector<1x16x8xf32> to vector<1x16x8xbf16>
    %319 = vector.extract_strided_slice %225 {offsets = [0, 88], sizes = [16, 8], strides = [1, 1]} : vector<16x96xf32> to vector<16x8xf32>
    %320 = vector.shape_cast %319 : vector<16x8xf32> to vector<1x16x8xf32>
    %321 = arith.truncf %320 : vector<1x16x8xf32> to vector<1x16x8xbf16>
    "tpu.trace_start"() <{level = 10 : i32, message = "bqd,bkd->bqk"}> : () -> ()
    %cst_110 = arith.constant dense<0.000000e+00> : vector<1x16x16xf32>
    %322 = tpu.matmul %315, %318, %cst_110 {dimension_numbers = #tpu.dot_dimension_numbers<[2], [2], [1], [1], [0, 0, 0, 1, 1, 1], [0], [0]>} : vector<1x16x8xbf16>, vector<1x16x8xbf16>, vector<1x16x16xf32> -> vector<1x16x16xf32>
    "tpu.trace_stop"() : () -> ()
    %cst_111 = arith.constant 0.353553385 : f32
    %323 = vector.broadcast %cst_111 : f32 to vector<1x16x16xf32>
    %324 = arith.mulf %322, %323 : vector<1x16x16xf32>
    %325 = vector.broadcast %5 : vector<1x1x16xf32> to vector<1x16x16xf32>
    %326 = arith.addf %324, %325 : vector<1x16x16xf32>
    %cst_112 = arith.constant dense<0xFF800000> : vector<1x16xf32>
    %327 = vector.multi_reduction <maximumf>, %326, %cst_112 [2] : vector<1x16x16xf32> to vector<1x16xf32>
    %328 = vector.shape_cast %327 : vector<1x16xf32> to vector<1x16x1xf32>
    %329 = vector.broadcast %328 : vector<1x16x1xf32> to vector<1x16x16xf32>
    %330 = arith.subf %326, %329 : vector<1x16x16xf32>
    %331 = math.exp %330 : vector<1x16x16xf32>
    %cst_113 = arith.constant dense<0.000000e+00> : vector<1x16xf32>
    %332 = vector.multi_reduction <add>, %331, %cst_113 [2] : vector<1x16x16xf32> to vector<1x16xf32>
    %333 = vector.shape_cast %332 : vector<1x16xf32> to vector<1x16x1xf32>
    %334 = tpu.reciprocal %333 {approx = true} : vector<1x16x1xf32> -> vector<1x16x1xf32>
    %335 = vector.broadcast %334 : vector<1x16x1xf32> to vector<1x16x16xf32>
    %336 = arith.mulf %331, %335 : vector<1x16x16xf32>
    %337 = arith.truncf %336 : vector<1x16x16xf32> to vector<1x16x16xbf16>
    "tpu.trace_start"() <{level = 10 : i32, message = "bqk,bkd->bqd"}> : () -> ()
    %cst_114 = arith.constant dense<0.000000e+00> : vector<1x16x8xf32>
    %338 = tpu.matmul %337, %321, %cst_114 {dimension_numbers = #tpu.dot_dimension_numbers<[2], [1], [1], [2], [0, 0, 0, 1, 1, 2], [0], [0]>} : vector<1x16x16xbf16>, vector<1x16x8xbf16>, vector<1x16x8xf32> -> vector<1x16x8xf32>
    "tpu.trace_stop"() : () -> ()
    %339 = vector.shape_cast %338 : vector<1x16x8xf32> to vector<16x8xf32>
    %340 = arith.truncf %339 : vector<16x8xf32> to vector<16x8xbf16>
    %c0_115 = arith.constant 0 : index
    %c24_116 = arith.constant 24 : index
    %341 = vector.load %arg19[%c0_115, %c24_116] : memref<16x32xbf16, #tpu.memory_space<vmem>>, vector<16x8xbf16>
    tpu.vector_store %arg19[%c0_115, %c24_116], %340 {strides = array<i32>} : memref<16x32xbf16, #tpu.memory_space<vmem>>, vector<16x8xbf16>,
    %c0_117 = arith.constant 0 : index
    %c0_118 = arith.constant 0 : index
    %342 = vector.load %arg19[%c0_117, %c0_118] : memref<16x32xbf16, #tpu.memory_space<vmem>>, vector<16x32xbf16>
    %c1_119 = arith.constant 1 : index
    %c0_120 = arith.constant 0 : index
    %c0_121 = arith.constant 0 : index
    %343 = vector.load %arg4[%c1_119, %c0_120, %c0_121] : memref<2x32x32xbf16, #tpu.memory_space<vmem>>, vector<1x32x32xbf16>
    %344 = vector.shape_cast %343 : vector<1x32x32xbf16> to vector<32x32xbf16>
    %cst_122 = arith.constant dense<0.000000e+00> : vector<16x32xf32>
    %345 = tpu.matmul %342, %344, %cst_122 {dimension_numbers = #tpu.dot_dimension_numbers<[1], [0], [0], [1], [0, 0, 1, 1], [], []>} : vector<16x32xbf16>, vector<32x32xbf16>, vector<16x32xf32> -> vector<16x32xf32>
    %c1_123 = arith.constant 1 : index
    %c0_124 = arith.constant 0 : index
    %c0_125 = arith.constant 0 : index
    %346 = vector.load %arg5[%c1_123, %c0_124, %c0_125] : memref<2x1x32xf32, #tpu.memory_space<vmem>>, vector<1x1x32xf32>
    %347 = vector.shape_cast %346 : vector<1x1x32xf32> to vector<1x32xf32>
    %348 = vector.broadcast %347 : vector<1x32xf32> to vector<16x32xf32>
    %349 = arith.addf %345, %348 : vector<16x32xf32>
    %350 = arith.addf %217, %349 : vector<16x32xf32>
    %c1_126 = arith.constant 1 : index
    %c0_127 = arith.constant 0 : index
    %c0_128 = arith.constant 0 : index
    %351 = vector.load %arg6[%c1_126, %c0_127, %c0_128] : memref<2x1x32xf32, #tpu.memory_space<vmem>>, vector<1x1x32xf32>
    %352 = vector.shape_cast %351 : vector<1x1x32xf32> to vector<1x32xf32>
    %c1_129 = arith.constant 1 : index
    %c0_130 = arith.constant 0 : index
    %c0_131 = arith.constant 0 : index
    %353 = vector.load %arg7[%c1_129, %c0_130, %c0_131] : memref<2x1x32xf32, #tpu.memory_space<vmem>>, vector<1x1x32xf32>
    %354 = vector.shape_cast %353 : vector<1x1x32xf32> to vector<1x32xf32>
    %cst_132 = arith.constant dense<0.000000e+00> : vector<16xf32>
    %355 = vector.multi_reduction <add>, %350, %cst_132 [1] : vector<16x32xf32> to vector<16xf32>
    %356 = vector.shape_cast %355 : vector<16xf32> to vector<16x1xf32>
    %cst_133 = arith.constant 3.200000e+01 : f32
    %357 = vector.broadcast %cst_133 : f32 to vector<16x1xf32>
    %358 = arith.divf %356, %357 : vector<16x1xf32>
    %359 = vector.broadcast %358 : vector<16x1xf32> to vector<16x32xf32>
    %360 = arith.subf %350, %359 : vector<16x32xf32>
    %361 = arith.mulf %360, %360 : vector<16x32xf32>
    %cst_134 = arith.constant dense<0.000000e+00> : vector<16xf32>
    %362 = vector.multi_reduction <add>, %361, %cst_134 [1] : vector<16x32xf32> to vector<16xf32>
    %363 = vector.shape_cast %362 : vector<16xf32> to vector<16x1xf32>
    %cst_135 = arith.constant 3.200000e+01 : f32
    %364 = vector.broadcast %cst_135 : f32 to vector<16x1xf32>
    %365 = arith.divf %363, %364 : vector<16x1xf32>
    %366 = vector.broadcast %358 : vector<16x1xf32> to vector<16x32xf32>
    %367 = arith.subf %350, %366 : vector<16x32xf32>
    %cst_136 = arith.constant 9.99999974E-6 : f32
    %368 = vector.broadcast %cst_136 : f32 to vector<16x1xf32>
    %369 = arith.addf %365, %368 : vector<16x1xf32>
    %370 = math.rsqrt %369 : vector<16x1xf32>
    %371 = vector.broadcast %370 : vector<16x1xf32> to vector<16x32xf32>
    %372 = arith.mulf %367, %371 : vector<16x32xf32>
    %373 = vector.broadcast %352 : vector<1x32xf32> to vector<16x32xf32>
    %374 = arith.mulf %372, %373 : vector<16x32xf32>
    %375 = vector.broadcast %354 : vector<1x32xf32> to vector<16x32xf32>
    %376 = arith.addf %374, %375 : vector<16x32xf32>
    %377 = arith.truncf %376 : vector<16x32xf32> to vector<16x32xbf16>
    %c1_137 = arith.constant 1 : index
    %c0_138 = arith.constant 0 : index
    %c0_139 = arith.constant 0 : index
    %378 = vector.load %arg8[%c1_137, %c0_138, %c0_139] : memref<2x32x64xbf16, #tpu.memory_space<vmem>>, vector<1x32x64xbf16>
    %379 = vector.shape_cast %378 : vector<1x32x64xbf16> to vector<32x64xbf16>
    %cst_140 = arith.constant dense<0.000000e+00> : vector<16x64xf32>
    %380 = tpu.matmul %377, %379, %cst_140 {dimension_numbers = #tpu.dot_dimension_numbers<[1], [0], [0], [1], [0, 0, 1, 1], [], []>} : vector<16x32xbf16>, vector<32x64xbf16>, vector<16x64xf32> -> vector<16x64xf32>
    %c1_141 = arith.constant 1 : index
    %c0_142 = arith.constant 0 : index
    %c0_143 = arith.constant 0 : index
    %381 = vector.load %arg9[%c1_141, %c0_142, %c0_143] : memref<2x1x64xf32, #tpu.memory_space<vmem>>, vector<1x1x64xf32>
    %382 = vector.shape_cast %381 : vector<1x1x64xf32> to vector<1x64xf32>
    %383 = vector.broadcast %382 : vector<1x64xf32> to vector<16x64xf32>
    %384 = arith.addf %380, %383 : vector<16x64xf32>
    %cst_144 = arith.constant 5.000000e-01 : f32
    %385 = vector.broadcast %cst_144 : f32 to vector<16x64xf32>
    %386 = arith.mulf %385, %384 : vector<16x64xf32>
    %cst_145 = arith.constant 0.707106769 : f32
    %387 = vector.broadcast %cst_145 : f32 to vector<16x64xf32>
    %388 = arith.mulf %384, %387 : vector<16x64xf32>
    %389 = math.erf %388 : vector<16x64xf32>
    %cst_146 = arith.constant 1.000000e+00 : f32
    %390 = vector.broadcast %cst_146 : f32 to vector<16x64xf32>
    %391 = arith.addf %390, %389 : vector<16x64xf32>
    %392 = arith.mulf %386, %391 : vector<16x64xf32>
    %393 = arith.truncf %392 : vector<16x64xf32> to vector<16x64xbf16>
    %c1_147 = arith.constant 1 : index
    %c0_148 = arith.constant 0 : index
    %c0_149 = arith.constant 0 : index
    %394 = vector.load %arg10[%c1_147, %c0_148, %c0_149] : memref<2x64x32xbf16, #tpu.memory_space<vmem>>, vector<1x64x32xbf16>
    %395 = vector.shape_cast %394 : vector<1x64x32xbf16> to vector<64x32xbf16>
    %cst_150 = arith.constant dense<0.000000e+00> : vector<16x32xf32>
    %396 = tpu.matmul %393, %395, %cst_150 {dimension_numbers = #tpu.dot_dimension_numbers<[1], [0], [0], [1], [0, 0, 1, 1], [], []>} : vector<16x64xbf16>, vector<64x32xbf16>, vector<16x32xf32> -> vector<16x32xf32>
    %c1_151 = arith.constant 1 : index
    %c0_152 = arith.constant 0 : index
    %c0_153 = arith.constant 0 : index
    %397 = vector.load %arg11[%c1_151, %c0_152, %c0_153] : memref<2x1x32xf32, #tpu.memory_space<vmem>>, vector<1x1x32xf32>
    %398 = vector.shape_cast %397 : vector<1x1x32xf32> to vector<1x32xf32>
    %399 = vector.broadcast %398 : vector<1x32xf32> to vector<16x32xf32>
    %400 = arith.addf %396, %399 : vector<16x32xf32>
    %401 = arith.addf %376, %400 : vector<16x32xf32>
    %c1_154 = arith.constant 1 : index
    %c0_155 = arith.constant 0 : index
    %c0_156 = arith.constant 0 : index
    %402 = vector.load %arg12[%c1_154, %c0_155, %c0_156] : memref<2x1x32xf32, #tpu.memory_space<vmem>>, vector<1x1x32xf32>
    %403 = vector.shape_cast %402 : vector<1x1x32xf32> to vector<1x32xf32>
    %c1_157 = arith.constant 1 : index
    %c0_158 = arith.constant 0 : index
    %c0_159 = arith.constant 0 : index
    %404 = vector.load %arg13[%c1_157, %c0_158, %c0_159] : memref<2x1x32xf32, #tpu.memory_space<vmem>>, vector<1x1x32xf32>
    %405 = vector.shape_cast %404 : vector<1x1x32xf32> to vector<1x32xf32>
    %cst_160 = arith.constant dense<0.000000e+00> : vector<16xf32>
    %406 = vector.multi_reduction <add>, %401, %cst_160 [1] : vector<16x32xf32> to vector<16xf32>
    %407 = vector.shape_cast %406 : vector<16xf32> to vector<16x1xf32>
    %cst_161 = arith.constant 3.200000e+01 : f32
    %408 = vector.broadcast %cst_161 : f32 to vector<16x1xf32>
    %409 = arith.divf %407, %408 : vector<16x1xf32>
    %410 = vector.broadcast %409 : vector<16x1xf32> to vector<16x32xf32>
    %411 = arith.subf %401, %410 : vector<16x32xf32>
    %412 = arith.mulf %411, %411 : vector<16x32xf32>
    %cst_162 = arith.constant dense<0.000000e+00> : vector<16xf32>
    %413 = vector.multi_reduction <add>, %412, %cst_162 [1] : vector<16x32xf32> to vector<16xf32>
    %414 = vector.shape_cast %413 : vector<16xf32> to vector<16x1xf32>
    %cst_163 = arith.constant 3.200000e+01 : f32
    %415 = vector.broadcast %cst_163 : f32 to vector<16x1xf32>
    %416 = arith.divf %414, %415 : vector<16x1xf32>
    %417 = vector.broadcast %409 : vector<16x1xf32> to vector<16x32xf32>
    %418 = arith.subf %401, %417 : vector<16x32xf32>
    %cst_164 = arith.constant 9.99999974E-6 : f32
    %419 = vector.broadcast %cst_164 : f32 to vector<16x1xf32>
    %420 = arith.addf %416, %419 : vector<16x1xf32>
    %421 = math.rsqrt %420 : vector<16x1xf32>
    %422 = vector.broadcast %421 : vector<16x1xf32> to vector<16x32xf32>
    %423 = arith.mulf %418, %422 : vector<16x32xf32>
    %424 = vector.broadcast %403 : vector<1x32xf32> to vector<16x32xf32>
    %425 = arith.mulf %423, %424 : vector<16x32xf32>
    %426 = vector.broadcast %405 : vector<1x32xf32> to vector<16x32xf32>
    %427 = arith.addf %425, %426 : vector<16x32xf32>
    %428 = vector.shape_cast %427 : vector<16x32xf32> to vector<1x16x32xf32>
    %429 = vector.extract_strided_slice %428 {offsets = [0, 0, 0], sizes = [1, 1, 32], strides = [1, 1, 1]} : vector<1x16x32xf32> to vector<1x1x32xf32>
    %430 = vector.shape_cast %429 : vector<1x1x32xf32> to vector<1x32xf32>
    %c0_165 = arith.constant 0 : index
    %c0_166 = arith.constant 0 : index
    %431 = vector.load %arg14[%c0_165, %c0_166] : memref<1x32xf32, #tpu.memory_space<vmem>>, vector<1x32xf32>
    %c0_167 = arith.constant 0 : index
    %c0_168 = arith.constant 0 : index
    %432 = vector.load %arg15[%c0_167, %c0_168] : memref<1x32xf32, #tpu.memory_space<vmem>>, vector<1x32xf32>
    %cst_169 = arith.constant dense<0.000000e+00> : vector<1xf32>
    %433 = vector.multi_reduction <add>, %430, %cst_169 [1] : vector<1x32xf32> to vector<1xf32>
    %434 = vector.shape_cast %433 : vector<1xf32> to vector<1x1xf32>
    %cst_170 = arith.constant 3.200000e+01 : f32
    %435 = vector.broadcast %cst_170 : f32 to vector<1x1xf32>
    %436 = arith.divf %434, %435 : vector<1x1xf32>
    %437 = vector.broadcast %436 : vector<1x1xf32> to vector<1x32xf32>
    %438 = arith.subf %430, %437 : vector<1x32xf32>
    %439 = arith.mulf %438, %438 : vector<1x32xf32>
    %cst_171 = arith.constant dense<0.000000e+00> : vector<1xf32>
    %440 = vector.multi_reduction <add>, %439, %cst_171 [1] : vector<1x32xf32> to vector<1xf32>
    %441 = vector.shape_cast %440 : vector<1xf32> to vector<1x1xf32>
    %cst_172 = arith.constant 3.200000e+01 : f32
    %442 = vector.broadcast %cst_172 : f32 to vector<1x1xf32>
    %443 = arith.divf %441, %442 : vector<1x1xf32>
    %444 = vector.broadcast %436 : vector<1x1xf32> to vector<1x32xf32>
    %445 = arith.subf %430, %444 : vector<1x32xf32>
    %cst_173 = arith.constant 9.99999974E-6 : f32
    %446 = vector.broadcast %cst_173 : f32 to vector<1x1xf32>
    %447 = arith.addf %443, %446 : vector<1x1xf32>
    %448 = math.rsqrt %447 : vector<1x1xf32>
    %449 = vector.broadcast %448 : vector<1x1xf32> to vector<1x32xf32>
    %450 = arith.mulf %445, %449 : vector<1x32xf32>
    %451 = arith.mulf %450, %431 : vector<1x32xf32>
    %452 = arith.addf %451, %432 : vector<1x32xf32>
    %453 = arith.truncf %452 : vector<1x32xf32> to vector<1x32xbf16>
    %c0_174 = arith.constant 0 : index
    %c0_175 = arith.constant 0 : index
    %454 = vector.load %arg16[%c0_174, %c0_175] : memref<32x128xbf16, #tpu.memory_space<vmem>>, vector<32x128xbf16>
    %cst_176 = arith.constant dense<0.000000e+00> : vector<1x128xf32>
    %455 = tpu.matmul %453, %454, %cst_176 {dimension_numbers = #tpu.dot_dimension_numbers<[1], [0], [0], [1], [0, 0, 1, 1], [], []>} : vector<1x32xbf16>, vector<32x128xbf16>, vector<1x128xf32> -> vector<1x128xf32>
    %c0_177 = arith.constant 0 : index
    %c0_178 = arith.constant 0 : index
    %456 = vector.load %arg17[%c0_177, %c0_178] : memref<1x128xf32, #tpu.memory_space<vmem>>, vector<1x128xf32>
    %457 = arith.addf %455, %456 : vector<1x128xf32>
    %c0_179 = arith.constant 0 : index
    %c0_180 = arith.constant 0 : index
    %c0_181 = arith.constant 0 : index
    %458 = vector.load %arg18[%c0_179, %c0_180, %c0_181] : memref<1x1x128xf32, #tpu.memory_space<vmem>>, vector<1x1x128xf32>
    %459 = vector.shape_cast %458 : vector<1x1x128xf32> to vector<1x128xf32>
    %460 = vector.shape_cast %457 : vector<1x128xf32> to vector<1x1x128xf32>
    tpu.vector_store %arg18[%c0_179, %c0_180, %c0_181], %460 {strides = array<i32>} : memref<1x1x128xf32, #tpu.memory_space<vmem>>, vector<1x1x128xf32>,
    return
  }
  func.func @transform_0(%arg0: i32) -> (i32, i32, i32) {
    %c0_i32 = arith.constant 0 : i32
    %c0_i32_0 = arith.constant 0 : i32
    %c0_i32_1 = arith.constant 0 : i32
    return %arg0, %c0_i32, %c0_i32_0 : i32, i32, i32
  }
  func.func @transform_1(%arg0: i32) -> (i32, i32, i32) {
    %c0_i32 = arith.constant 0 : i32
    %c0_i32_0 = arith.constant 0 : i32
    %c0_i32_1 = arith.constant 0 : i32
    %c0_i32_2 = arith.constant 0 : i32
    return %c0_i32, %c0_i32_0, %c0_i32_1 : i32, i32, i32
  }
  func.func @transform_2(%arg0: i32) -> (i32, i32, i32) {
    %c0_i32 = arith.constant 0 : i32
    %c0_i32_0 = arith.constant 0 : i32
    %c0_i32_1 = arith.constant 0 : i32
    %c0_i32_2 = arith.constant 0 : i32
    return %c0_i32, %c0_i32_0, %c0_i32_1 : i32, i32, i32
  }
  func.func @transform_3(%arg0: i32) -> (i32, i32, i32) {
    %c0_i32 = arith.constant 0 : i32
    %c0_i32_0 = arith.constant 0 : i32
    %c0_i32_1 = arith.constant 0 : i32
    %c0_i32_2 = arith.constant 0 : i32
    return %c0_i32, %c0_i32_0, %c0_i32_1 : i32, i32, i32
  }
  func.func @transform_4(%arg0: i32) -> (i32, i32, i32) {
    %c0_i32 = arith.constant 0 : i32
    %c0_i32_0 = arith.constant 0 : i32
    %c0_i32_1 = arith.constant 0 : i32
    %c0_i32_2 = arith.constant 0 : i32
    return %c0_i32, %c0_i32_0, %c0_i32_1 : i32, i32, i32
  }
  func.func @transform_5(%arg0: i32) -> (i32, i32, i32) {
    %c0_i32 = arith.constant 0 : i32
    %c0_i32_0 = arith.constant 0 : i32
    %c0_i32_1 = arith.constant 0 : i32
    %c0_i32_2 = arith.constant 0 : i32
    return %c0_i32, %c0_i32_0, %c0_i32_1 : i32, i32, i32
  }
  func.func @transform_6(%arg0: i32) -> (i32, i32, i32) {
    %c0_i32 = arith.constant 0 : i32
    %c0_i32_0 = arith.constant 0 : i32
    %c0_i32_1 = arith.constant 0 : i32
    %c0_i32_2 = arith.constant 0 : i32
    return %c0_i32, %c0_i32_0, %c0_i32_1 : i32, i32, i32
  }
  func.func @transform_7(%arg0: i32) -> (i32, i32, i32) {
    %c0_i32 = arith.constant 0 : i32
    %c0_i32_0 = arith.constant 0 : i32
    %c0_i32_1 = arith.constant 0 : i32
    %c0_i32_2 = arith.constant 0 : i32
    return %c0_i32, %c0_i32_0, %c0_i32_1 : i32, i32, i32
  }
  func.func @transform_8(%arg0: i32) -> (i32, i32, i32) {
    %c0_i32 = arith.constant 0 : i32
    %c0_i32_0 = arith.constant 0 : i32
    %c0_i32_1 = arith.constant 0 : i32
    %c0_i32_2 = arith.constant 0 : i32
    return %c0_i32, %c0_i32_0, %c0_i32_1 : i32, i32, i32
  }
  func.func @transform_9(%arg0: i32) -> (i32, i32, i32) {
    %c0_i32 = arith.constant 0 : i32
    %c0_i32_0 = arith.constant 0 : i32
    %c0_i32_1 = arith.constant 0 : i32
    %c0_i32_2 = arith.constant 0 : i32
    return %c0_i32, %c0_i32_0, %c0_i32_1 : i32, i32, i32
  }
  func.func @transform_10(%arg0: i32) -> (i32, i32, i32) {
    %c0_i32 = arith.constant 0 : i32
    %c0_i32_0 = arith.constant 0 : i32
    %c0_i32_1 = arith.constant 0 : i32
    %c0_i32_2 = arith.constant 0 : i32
    return %c0_i32, %c0_i32_0, %c0_i32_1 : i32, i32, i32
  }
  func.func @transform_11(%arg0: i32) -> (i32, i32, i32) {
    %c0_i32 = arith.constant 0 : i32
    %c0_i32_0 = arith.constant 0 : i32
    %c0_i32_1 = arith.constant 0 : i32
    %c0_i32_2 = arith.constant 0 : i32
    return %c0_i32, %c0_i32_0, %c0_i32_1 : i32, i32, i32
  }
  func.func @transform_12(%arg0: i32) -> (i32, i32, i32) {
    %c0_i32 = arith.constant 0 : i32
    %c0_i32_0 = arith.constant 0 : i32
    %c0_i32_1 = arith.constant 0 : i32
    %c0_i32_2 = arith.constant 0 : i32
    return %c0_i32, %c0_i32_0, %c0_i32_1 : i32, i32, i32
  }
  func.func @transform_13(%arg0: i32) -> (i32, i32) {
    %c0_i32 = arith.constant 0 : i32
    %c0_i32_0 = arith.constant 0 : i32
    %c0_i32_1 = arith.constant 0 : i32
    return %c0_i32, %c0_i32_0 : i32, i32
  }
  func.func @transform_14(%arg0: i32) -> (i32, i32) {
    %c0_i32 = arith.constant 0 : i32
    %c0_i32_0 = arith.constant 0 : i32
    %c0_i32_1 = arith.constant 0 : i32
    return %c0_i32, %c0_i32_0 : i32, i32
  }
  func.func @transform_15(%arg0: i32) -> (i32, i32) {
    %c0_i32 = arith.constant 0 : i32
    %c0_i32_0 = arith.constant 0 : i32
    %c0_i32_1 = arith.constant 0 : i32
    return %c0_i32, %c0_i32_0 : i32, i32
  }
  func.func @transform_16(%arg0: i32) -> (i32, i32) {
    %c0_i32 = arith.constant 0 : i32
    %c0_i32_0 = arith.constant 0 : i32
    %c0_i32_1 = arith.constant 0 : i32
    return %c0_i32, %c0_i32_0 : i32, i32
  }
  func.func @transform_17(%arg0: i32) -> (i32, i32, i32) {
    %c0_i32 = arith.constant 0 : i32
    %c0_i32_0 = arith.constant 0 : i32
    %c0_i32_1 = arith.constant 0 : i32
    return %arg0, %c0_i32, %c0_i32_0 : i32, i32, i32
  }
}

</mosaic_0001>

<llo_original>
// kernel: tpu_custom_call.1
$region0: #{tpu_custom_call.1}
  #allocation0 [shape = 'u32[]', space=smem, size = 0x4, offset = 0x4, fixed_abs, tag = 'smem constant byte address 0x4 - core index']
  #allocation1 [shape = 'u32[144,128]{1,0:T(1,128)}', space=vmem, size = 0x12000, scoped, tag = 'internal scratch']
  #allocation2 [shape = 'bf16[16,32]{1,0:T(16,128)(2,1)}', space=vmem, size = 0x1000, scoped, tag = 'scratch operand']
  %s0 = inlined_call_operand.vmem [shape: f32[2,16,32], index: 0, kind: input, shape index: {}]
  %s1 = inlined_call_operand.vmem [shape: bf16[2,32,96], index: 1, kind: input, shape index: {}]
  %s2 = inlined_call_operand.hbm [shape: f32[2,1,96], index: 2, kind: input, shape index: {}]
  %s3 = inlined_call_operand.vmem [shape: bf16[2,32,32], index: 3, kind: input, shape index: {}]
  %s4 = inlined_call_operand.hbm [shape: f32[2,1,32], index: 4, kind: input, shape index: {}]
  %s5 = inlined_call_operand.hbm [shape: f32[2,1,32], index: 5, kind: input, shape index: {}]
  %s6 = inlined_call_operand.hbm [shape: f32[2,1,32], index: 6, kind: input, shape index: {}]
  %s7 = inlined_call_operand.hbm [shape: bf16[2,32,64], index: 7, kind: input, shape index: {}]
  %s8 = inlined_call_operand.hbm [shape: f32[2,1,64], index: 8, kind: input, shape index: {}]
  %s9 = inlined_call_operand.vmem [shape: bf16[2,64,32], index: 9, kind: input, shape index: {}]
  %s10 = inlined_call_operand.hbm [shape: f32[2,1,32], index: 10, kind: input, shape index: {}]
  %s11 = inlined_call_operand.hbm [shape: f32[2,1,32], index: 11, kind: input, shape index: {}]
  %s12 = inlined_call_operand.hbm [shape: f32[2,1,32], index: 12, kind: input, shape index: {}]
  %s13 = inlined_call_operand.vmem [shape: f32[1,32], index: 13, kind: input, shape index: {}]
  %s14 = inlined_call_operand.vmem [shape: f32[1,32], index: 14, kind: input, shape index: {}]
  %s15 = inlined_call_operand.vmem [shape: bf16[32,128], index: 15, kind: input, shape index: {}]
  %s16 = inlined_call_operand.vmem [shape: f32[1,128], index: 16, kind: input, shape index: {}]
  %s17 = inlined_call_operand.hbm [shape: f32[2,1,128], index: 17, kind: output, shape index: {}]
  %s18 = sld [smem:[#allocation0]]
  $region137: #{tpu_custom_call.1} parent=0
    _
  %s20 = ssub.s32 1, %s18
  %s21 = scalar_select 0, %s20, %s18
  $region1: #{tpu_custom_call.1} parent=0
    #allocation3 [shape = 'u8[1024]{0}', space=vmem, size = 0x400, scoped, tag = 'input window, operand 2, single buffered']
    #allocation4 [shape = 's32[2]{0}', space=sflag, size = 0x8, scoped, tag = 'scoped memory for tpu_custom_call.1']
    #allocation5 [shape = 's32[2]{0}', space=sflag, size = 0x8, scoped, tag = 'scoped memory for tpu_custom_call.1']
    #allocation6 [shape = 'u8[1024]{0}', space=vmem, size = 0x400, scoped, tag = 'input window, operand 4, single buffered']
    #allocation7 [shape = 's32[1]{0}', space=sflag, size = 0x4, scoped, tag = 'scoped memory for tpu_custom_call.1']
    #allocation8 [shape = 'u8[1024]{0}', space=vmem, size = 0x400, scoped, tag = 'input window, operand 5, single buffered']
    #allocation9 [shape = 'u8[1024]{0}', space=vmem, size = 0x400, scoped, tag = 'input window, operand 6, single buffered']
    #allocation10 [shape = 's32[1]{0}', space=sflag, size = 0x4, scoped, tag = 'scoped memory for tpu_custom_call.1']
    #allocation11 [shape = 'u8[16384]{0}', space=vmem, size = 0x4000, scoped, tag = 'input window, operand 7, single buffered']
    #allocation12 [shape = 'u8[1024]{0}', space=vmem, size = 0x400, scoped, tag = 'input window, operand 8, single buffered']
    #allocation13 [shape = 's32[1]{0}', space=sflag, size = 0x4, scoped, tag = 'scoped memory for tpu_custom_call.1']
    #allocation14 [shape = 'u8[1024]{0}', space=vmem, size = 0x400, scoped, tag = 'input window, operand 10, single buffered']
    #allocation15 [shape = 'u8[1024]{0}', space=vmem, size = 0x400, scoped, tag = 'input window, operand 11, single buffered']
    #allocation16 [shape = 's32[1]{0}', space=sflag, size = 0x4, scoped, tag = 'scoped memory for tpu_custom_call.1']
    #allocation17 [shape = 'u8[1024]{0}', space=vmem, size = 0x400, scoped, tag = 'input window, operand 12, single buffered']
    #allocation18 [shape = 'u8[1024]{0}', space=vmem, size = 0x400, scoped, tag = 'output window, operand 0']
    %22 = vsyncpa [#allocation4], 0
    %23 = vsyncpa [#allocation7], 0
    %24 = vsyncpa [#allocation10], 0
    %25 = vsyncpa [#allocation13], 0
    %26 = vsyncpa [#allocation16], 0
    %27 = vsyncpa [#allocation5], 0
    %s28 = scalar_lea.sflag [#allocation5], 1
    %29 = vsyncpa %s28, 0
    loop: start=0, step=1, limit=4
    $region2: #{tpu_custom_call.1} parent=1 // loop_pre_header
      _
    $region3: #{tpu_custom_call.1} parent=1 // loop_header
      %s31 = sphi 0, %s35
      %p32 = scmp.ge.s32.totalorder %s31, 4
      %s41 = sphi 0, %s43
      %s44 = sphi 0, %s41
      %s45 = sphi 0, %s44
      %s61 = sphi 0, %s45
      %s65 = sphi 0, %s65
      %s67 = sphi 0, %s65
      %s68 = sphi 0, %s67
      %s82 = sphi 0, %s68
      %s86 = sphi 0, %s86
      %s88 = sphi 0, %s86
      %s89 = sphi 0, %s88
      %s103 = sphi 0, %s89
      %s107 = sphi 0, %s107
      %s109 = sphi 0, %s107
      %s110 = sphi 0, %s109
      %s124 = sphi 0, %s110
      %s128 = sphi 0, %s128
      %s130 = sphi 0, %s128
      %s131 = sphi 0, %s130
      %s145 = sphi 0, %s131
      %s149 = sphi 0, %s149
      %s151 = sphi 0, %s149
      %s152 = sphi 0, %s151
      %s166 = sphi 0, %s152
      %s170 = sphi 0, %s170
      %s172 = sphi 0, %s170
      %s173 = sphi 0, %s172
      %s187 = sphi 0, %s173
      %s191 = sphi 0, %s191
      %s193 = sphi 0, %s191
      %s194 = sphi 0, %s193
      %s208 = sphi 0, %s194
      %s212 = sphi 0, %s212
      %s214 = sphi 0, %s212
      %s215 = sphi 0, %s214
      %s229 = sphi 0, %s215
      %s233 = sphi 0, %s233
      %s235 = sphi 0, %s233
      %s236 = sphi 0, %s235
      %s250 = sphi 0, %s236
      %s254 = sphi 0, %s254
      %s256 = sphi 0, %s254
      %s257 = sphi 0, %s256
      %s271 = sphi 0, %s257
      %s275 = sphi 0, %s275
      %s277 = sphi 0, %s275
      %s278 = sphi 0, %s277
      %s292 = sphi 0, %s278
      %s296 = sphi 0, %s296
      %s298 = sphi 0, %s296
      %s299 = sphi 0, %s298
      %s313 = sphi 0, %s299
      %s317 = sphi 0, %s317
      %s319 = sphi 0, %s317
      %s320 = sphi 0, %s319
      %s334 = sphi 0, %s320
      %s338 = sphi 0, %s338
      %s340 = sphi 0, %s338
      %s341 = sphi 0, %s340
      %s355 = sphi 0, %s341
      %s359 = sphi 0, %s359
      %s361 = sphi 0, %s359
      %s362 = sphi 0, %s361
      %s376 = sphi 0, %s362
      %s380 = sphi 0, %s380
      %s382 = sphi 0, %s380
      %s383 = sphi 0, %s382
      %s397 = sphi 0, %s383
      %s403 = sphi 0, %s405
      %s406 = sphi 0, %s403
      %s407 = sphi 0, %s406
      %s423 = sphi 0, %s407
    $region4: #{tpu_custom_call.1} parent=1 // loop_header_branch
      %34 = sbr.rel (%p32) target = $region8
    $region5: #{tpu_custom_call.1} parent=1 // loop_body
      %s36 = ssub.s32 %s31, 1
      %s37 = ssub.s32 %s31, 2
      %s38 = sadd.s32 %s31, 1
      %s39 = ssub.s32 %s31, %s38
      %p40 = scmp.eq.s32.totalorder %s39, 0
      %s42 = sadd.s32 %s41, 1
      %s43 = scalar_select %p40, %s41, %s42
      %p46 = pneg %p40
      %p47 = scmp.eq.s32.totalorder %s31, 1
      %p48 = por %p46, %p47
      %p49 = scmp.ne.s32.totalorder %s41, %s44
      %p50 = scmp.eq.s32.totalorder %s31, 0
      %p51 = por %p49, %p50
      %p52 = scmp.ne.s32.totalorder %s41, %s44
      %p53 = scmp.eq.s32.totalorder %s36, 1
      %p54 = por %p52, %p53
      %p55 = scmp.ne.s32.totalorder %s44, %s45
      %p56 = scmp.eq.s32.totalorder %s36, 0
      %p57 = por %p55, %p56
      %p58 = scmp.ne.s32.totalorder %s44, %s45
      %p59 = scmp.eq.s32.totalorder %s37, 1
      %p60 = por %p58, %p59
      %p62 = scmp.ne.s32.totalorder %s45, %s61
      %p63 = scmp.eq.s32.totalorder %s37, 0
      %p64 = por %p62, %p63
      %s66 = sadd.s32 %s65, 1
      %p69 = scmp.eq.s32.totalorder %s31, 1
      %p70 = scmp.ne.s32.totalorder %s65, %s67
      %p71 = scmp.eq.s32.totalorder %s31, 0
      %p72 = por %p70, %p71
      %p73 = scmp.ne.s32.totalorder %s65, %s67
      %p74 = scmp.eq.s32.totalorder %s36, 1
      %p75 = por %p73, %p74
      %p76 = scmp.ne.s32.totalorder %s67, %s68
      %p77 = scmp.eq.s32.totalorder %s36, 0
      %p78 = por %p76, %p77
      %p79 = scmp.ne.s32.totalorder %s67, %s68
      %p80 = scmp.eq.s32.totalorder %s37, 1
      %p81 = por %p79, %p80
      %p83 = scmp.ne.s32.totalorder %s68, %s82
      %p84 = scmp.eq.s32.totalorder %s37, 0
      %p85 = por %p83, %p84
      %s87 = sadd.s32 %s86, 1
      %p90 = scmp.eq.s32.totalorder %s31, 1
      %p91 = scmp.ne.s32.totalorder %s86, %s88
      %p92 = scmp.eq.s32.totalorder %s31, 0
      %p93 = por %p91, %p92
      %p94 = scmp.ne.s32.totalorder %s86, %s88
      %p95 = scmp.eq.s32.totalorder %s36, 1
      %p96 = por %p94, %p95
      %p97 = scmp.ne.s32.totalorder %s88, %s89
      %p98 = scmp.eq.s32.totalorder %s36, 0
      %p99 = por %p97, %p98
      %p100 = scmp.ne.s32.totalorder %s88, %s89
      %p101 = scmp.eq.s32.totalorder %s37, 1
      %p102 = por %p100, %p101
      %p104 = scmp.ne.s32.totalorder %s89, %s103
      %p105 = scmp.eq.s32.totalorder %s37, 0
      %p106 = por %p104, %p105
      %s108 = sadd.s32 %s107, 1
      %p111 = scmp.eq.s32.totalorder %s31, 1
      %p112 = scmp.ne.s32.totalorder %s107, %s109
      %p113 = scmp.eq.s32.totalorder %s31, 0
      %p114 = por %p112, %p113
      %p115 = scmp.ne.s32.totalorder %s107, %s109
      %p116 = scmp.eq.s32.totalorder %s36, 1
      %p117 = por %p115, %p116
      %p118 = scmp.ne.s32.totalorder %s109, %s110
      %p119 = scmp.eq.s32.totalorder %s36, 0
      %p120 = por %p118, %p119
      %p121 = scmp.ne.s32.totalorder %s109, %s110
      %p122 = scmp.eq.s32.totalorder %s37, 1
      %p123 = por %p121, %p122
      %p125 = scmp.ne.s32.totalorder %s110, %s124
      %p126 = scmp.eq.s32.totalorder %s37, 0
      %p127 = por %p125, %p126
      %s129 = sadd.s32 %s128, 1
      %p132 = scmp.eq.s32.totalorder %s31, 1
      %p133 = scmp.ne.s32.totalorder %s128, %s130
      %p134 = scmp.eq.s32.totalorder %s31, 0
      %p135 = por %p133, %p134
      %p136 = scmp.ne.s32.totalorder %s128, %s130
      %p137 = scmp.eq.s32.totalorder %s36, 1
      %p138 = por %p136, %p137
      %p139 = scmp.ne.s32.totalorder %s130, %s131
      %p140 = scmp.eq.s32.totalorder %s36, 0
      %p141 = por %p139, %p140
      %p142 = scmp.ne.s32.totalorder %s130, %s131
      %p143 = scmp.eq.s32.totalorder %s37, 1
      %p144 = por %p142, %p143
      %p146 = scmp.ne.s32.totalorder %s131, %s145
      %p147 = scmp.eq.s32.totalorder %s37, 0
      %p148 = por %p146, %p147
      %s150 = sadd.s32 %s149, 1
      %p153 = scmp.eq.s32.totalorder %s31, 1
      %p154 = scmp.ne.s32.totalorder %s149, %s151
      %p155 = scmp.eq.s32.totalorder %s31, 0
      %p156 = por %p154, %p155
      %p157 = scmp.ne.s32.totalorder %s149, %s151
      %p158 = scmp.eq.s32.totalorder %s36, 1
      %p159 = por %p157, %p158
      %p160 = scmp.ne.s32.totalorder %s151, %s152
      %p161 = scmp.eq.s32.totalorder %s36, 0
      %p162 = por %p160, %p161
      %p163 = scmp.ne.s32.totalorder %s151, %s152
      %p164 = scmp.eq.s32.totalorder %s37, 1
      %p165 = por %p163, %p164
      %p167 = scmp.ne.s32.totalorder %s152, %s166
      %p168 = scmp.eq.s32.totalorder %s37, 0
      %p169 = por %p167, %p168
      %s171 = sadd.s32 %s170, 1
      %p174 = scmp.eq.s32.totalorder %s31, 1
      %p175 = scmp.ne.s32.totalorder %s170, %s172
      %p176 = scmp.eq.s32.totalorder %s31, 0
      %p177 = por %p175, %p176
      %p178 = scmp.ne.s32.totalorder %s170, %s172
      %p179 = scmp.eq.s32.totalorder %s36, 1
      %p180 = por %p178, %p179
      %p181 = scmp.ne.s32.totalorder %s172, %s173
      %p182 = scmp.eq.s32.totalorder %s36, 0
      %p183 = por %p181, %p182
      %p184 = scmp.ne.s32.totalorder %s172, %s173
      %p185 = scmp.eq.s32.totalorder %s37, 1
      %p186 = por %p184, %p185
      %p188 = scmp.ne.s32.totalorder %s173, %s187
      %p189 = scmp.eq.s32.totalorder %s37, 0
      %p190 = por %p188, %p189
      %s192 = sadd.s32 %s191, 1
      %p195 = scmp.eq.s32.totalorder %s31, 1
      %p196 = scmp.ne.s32.totalorder %s191, %s193
      %p197 = scmp.eq.s32.totalorder %s31, 0
      %p198 = por %p196, %p197
      %p199 = scmp.ne.s32.totalorder %s191, %s193
      %p200 = scmp.eq.s32.totalorder %s36, 1
      %p201 = por %p199, %p200
      %p202 = scmp.ne.s32.totalorder %s193, %s194
      %p203 = scmp.eq.s32.totalorder %s36, 0
      %p204 = por %p202, %p203
      %p205 = scmp.ne.s32.totalorder %s193, %s194
      %p206 = scmp.eq.s32.totalorder %s37, 1
      %p207 = por %p205, %p206
      %p209 = scmp.ne.s32.totalorder %s194, %s208
      %p210 = scmp.eq.s32.totalorder %s37, 0
      %p211 = por %p209, %p210
      %s213 = sadd.s32 %s212, 1
      %p216 = scmp.eq.s32.totalorder %s31, 1
      %p217 = scmp.ne.s32.totalorder %s212, %s214
      %p218 = scmp.eq.s32.totalorder %s31, 0
      %p219 = por %p217, %p218
      %p220 = scmp.ne.s32.totalorder %s212, %s214
      %p221 = scmp.eq.s32.totalorder %s36, 1
      %p222 = por %p220, %p221
      %p223 = scmp.ne.s32.totalorder %s214, %s215
      %p224 = scmp.eq.s32.totalorder %s36, 0
      %p225 = por %p223, %p224
      %p226 = scmp.ne.s32.totalorder %s214, %s215
      %p227 = scmp.eq.s32.totalorder %s37, 1
      %p228 = por %p226, %p227
      %p230 = scmp.ne.s32.totalorder %s215, %s229
      %p231 = scmp.eq.s32.totalorder %s37, 0
      %p232 = por %p230, %p231
      %s234 = sadd.s32 %s233, 1
      %p237 = scmp.eq.s32.totalorder %s31, 1
      %p238 = scmp.ne.s32.totalorder %s233, %s235
      %p239 = scmp.eq.s32.totalorder %s31, 0
      %p240 = por %p238, %p239
      %p241 = scmp.ne.s32.totalorder %s233, %s235
      %p242 = scmp.eq.s32.totalorder %s36, 1
      %p243 = por %p241, %p242
      %p244 = scmp.ne.s32.totalorder %s235, %s236
      %p245 = scmp.eq.s32.totalorder %s36, 0
      %p246 = por %p244, %p245
      %p247 = scmp.ne.s32.totalorder %s235, %s236
      %p248 = scmp.eq.s32.totalorder %s37, 1
      %p249 = por %p247, %p248
      %p251 = scmp.ne.s32.totalorder %s236, %s250
      %p252 = scmp.eq.s32.totalorder %s37, 0
      %p253 = por %p251, %p252
      %s255 = sadd.s32 %s254, 1
      %p258 = scmp.eq.s32.totalorder %s31, 1
      %p259 = scmp.ne.s32.totalorder %s254, %s256
      %p260 = scmp.eq.s32.totalorder %s31, 0
      %p261 = por %p259, %p260
      %p262 = scmp.ne.s32.totalorder %s254, %s256
      %p263 = scmp.eq.s32.totalorder %s36, 1
      %p264 = por %p262, %p263
      %p265 = scmp.ne.s32.totalorder %s256, %s257
      %p266 = scmp.eq.s32.totalorder %s36, 0
      %p267 = por %p265, %p266
      %p268 = scmp.ne.s32.totalorder %s256, %s257
      %p269 = scmp.eq.s32.totalorder %s37, 1
      %p270 = por %p268, %p269
      %p272 = scmp.ne.s32.totalorder %s257, %s271
      %p273 = scmp.eq.s32.totalorder %s37, 0
      %p274 = por %p272, %p273
      %s276 = sadd.s32 %s275, 1
      %p279 = scmp.eq.s32.totalorder %s31, 1
      %p280 = scmp.ne.s32.totalorder %s275, %s277
      %p281 = scmp.eq.s32.totalorder %s31, 0
      %p282 = por %p280, %p281
      %p283 = scmp.ne.s32.totalorder %s275, %s277
      %p284 = scmp.eq.s32.totalorder %s36, 1
      %p285 = por %p283, %p284
      %p286 = scmp.ne.s32.totalorder %s277, %s278
      %p287 = scmp.eq.s32.totalorder %s36, 0
      %p288 = por %p286, %p287
      %p289 = scmp.ne.s32.totalorder %s277, %s278
      %p290 = scmp.eq.s32.totalorder %s37, 1
      %p291 = por %p289, %p290
      %p293 = scmp.ne.s32.totalorder %s278, %s292
      %p294 = scmp.eq.s32.totalorder %s37, 0
      %p295 = por %p293, %p294
      %s297 = sadd.s32 %s296, 1
      %p300 = scmp.eq.s32.totalorder %s31, 1
      %p301 = scmp.ne.s32.totalorder %s296, %s298
      %p302 = scmp.eq.s32.totalorder %s31, 0
      %p303 = por %p301, %p302
      %p304 = scmp.ne.s32.totalorder %s296, %s298
      %p305 = scmp.eq.s32.totalorder %s36, 1
      %p306 = por %p304, %p305
      %p307 = scmp.ne.s32.totalorder %s298, %s299
      %p308 = scmp.eq.s32.totalorder %s36, 0
      %p309 = por %p307, %p308
      %p310 = scmp.ne.s32.totalorder %s298, %s299
      %p311 = scmp.eq.s32.totalorder %s37, 1
      %p312 = por %p310, %p311
      %p314 = scmp.ne.s32.totalorder %s299, %s313
      %p315 = scmp.eq.s32.totalorder %s37, 0
      %p316 = por %p314, %p315
      %s318 = sadd.s32 %s317, 1
      %p321 = scmp.eq.s32.totalorder %s31, 1
      %p322 = scmp.ne.s32.totalorder %s317, %s319
      %p323 = scmp.eq.s32.totalorder %s31, 0
      %p324 = por %p322, %p323
      %p325 = scmp.ne.s32.totalorder %s317, %s319
      %p326 = scmp.eq.s32.totalorder %s36, 1
      %p327 = por %p325, %p326
      %p328 = scmp.ne.s32.totalorder %s319, %s320
      %p329 = scmp.eq.s32.totalorder %s36, 0
      %p330 = por %p328, %p329
      %p331 = scmp.ne.s32.totalorder %s319, %s320
      %p332 = scmp.eq.s32.totalorder %s37, 1
      %p333 = por %p331, %p332
      %p335 = scmp.ne.s32.totalorder %s320, %s334
      %p336 = scmp.eq.s32.totalorder %s37, 0
      %p337 = por %p335, %p336
      %s339 = sadd.s32 %s338, 1
      %p342 = scmp.eq.s32.totalorder %s31, 1
      %p343 = scmp.ne.s32.totalorder %s338, %s340
      %p344 = scmp.eq.s32.totalorder %s31, 0
      %p345 = por %p343, %p344
      %p346 = scmp.ne.s32.totalorder %s338, %s340
      %p347 = scmp.eq.s32.totalorder %s36, 1
      %p348 = por %p346, %p347
      %p349 = scmp.ne.s32.totalorder %s340, %s341
      %p350 = scmp.eq.s32.totalorder %s36, 0
      %p351 = por %p349, %p350
      %p352 = scmp.ne.s32.totalorder %s340, %s341
      %p353 = scmp.eq.s32.totalorder %s37, 1
      %p354 = por %p352, %p353
      %p356 = scmp.ne.s32.totalorder %s341, %s355
      %p357 = scmp.eq.s32.totalorder %s37, 0
      %p358 = por %p356, %p357
      %s360 = sadd.s32 %s359, 1
      %p363 = scmp.eq.s32.totalorder %s31, 1
      %p364 = scmp.ne.s32.totalorder %s359, %s361
      %p365 = scmp.eq.s32.totalorder %s31, 0
      %p366 = por %p364, %p365
      %p367 = scmp.ne.s32.totalorder %s359, %s361
      %p368 = scmp.eq.s32.totalorder %s36, 1
      %p369 = por %p367, %p368
      %p370 = scmp.ne.s32.totalorder %s361, %s362
      %p371 = scmp.eq.s32.totalorder %s36, 0
      %p372 = por %p370, %p371
      %p373 = scmp.ne.s32.totalorder %s361, %s362
      %p374 = scmp.eq.s32.totalorder %s37, 1
      %p375 = por %p373, %p374
      %p377 = scmp.ne.s32.totalorder %s362, %s376
      %p378 = scmp.eq.s32.totalorder %s37, 0
      %p379 = por %p377, %p378
      %s381 = sadd.s32 %s380, 1
      %p384 = scmp.eq.s32.totalorder %s31, 1
      %p385 = scmp.ne.s32.totalorder %s380, %s382
      %p386 = scmp.eq.s32.totalorder %s31, 0
      %p387 = por %p385, %p386
      %p388 = scmp.ne.s32.totalorder %s380, %s382
      %p389 = scmp.eq.s32.totalorder %s36, 1
      %p390 = por %p388, %p389
      %p391 = scmp.ne.s32.totalorder %s382, %s383
      %p392 = scmp.eq.s32.totalorder %s36, 0
      %p393 = por %p391, %p392
      %p394 = scmp.ne.s32.totalorder %s382, %s383
      %p395 = scmp.eq.s32.totalorder %s37, 1
      %p396 = por %p394, %p395
      %p398 = scmp.ne.s32.totalorder %s383, %s397
      %p399 = scmp.eq.s32.totalorder %s37, 0
      %p400 = por %p398, %p399
      %s401 = ssub.s32 %s31, %s38
      %p402 = scmp.eq.s32.totalorder %s401, 0
      %s404 = sadd.s32 %s403, 1
      %s405 = scalar_select %p402, %s403, %s404
      %p408 = pneg %p402
      %p409 = scmp.eq.s32.totalorder %s31, 1
      %p410 = por %p408, %p409
      %p411 = scmp.ne.s32.totalorder %s403, %s406
      %p412 = scmp.eq.s32.totalorder %s31, 0
      %p413 = por %p411, %p412
      %p414 = scmp.ne.s32.totalorder %s403, %s406
      %p415 = scmp.eq.s32.totalorder %s36, 1
      %p416 = por %p414, %p415
      %p417 = scmp.ne.s32.totalorder %s406, %s407
      %p418 = scmp.eq.s32.totalorder %s36, 0
      %p419 = por %p417, %p418
      %p420 = scmp.ne.s32.totalorder %s406, %s407
      %p421 = scmp.eq.s32.totalorder %s37, 1
      %p422 = por %p420, %p421
      %p424 = scmp.ne.s32.totalorder %s407, %s423
      %p425 = scmp.eq.s32.totalorder %s37, 0
      %p426 = por %p424, %p425
      %p427 = scmp.le.s32.totalorder 1, %s31
      %p428 = scmp.lt.s32.totalorder %s31, 3
      %p429 = pnand %p427, %p428
      %p430 = pneg %p429
      // Predicated region
      $region9: #{tpu_custom_call.1} parent=5 // pred_check
        _
      $region10: #{tpu_custom_call.1} parent=5 // pred_check_branch
        %432 = sbr.rel (%p429) target = $region12
      $region11: #{tpu_custom_call.1} parent=5 // pred_region
        %s433 = ssub.s32 %s31, 1
        // Predicated region
        $region13: #{tpu_custom_call.1} parent=11 // pred_check
          %p434 = pneg %p78
        $region14: #{tpu_custom_call.1} parent=11 // pred_check_branch
          %436 = sbr.rel (%p434) target = $region16
        $region15: #{tpu_custom_call.1} parent=11 // pred_region
          _
        $region16: #{tpu_custom_call.1} parent=11 // pred_fallthru
          _
        // Predicated region
        $region17: #{tpu_custom_call.1} parent=11 // pred_check
          %p437 = pneg %p99
        $region18: #{tpu_custom_call.1} parent=11 // pred_check_branch
          %439 = sbr.rel (%p437) target = $region20
        $region19: #{tpu_custom_call.1} parent=11 // pred_region
          %s441 = ssub.s32 32, 32
          %442 = vsyncadd [#allocation4], %s441
          %s443 = sshll.u32 [#allocation3], 4
          %s444 = int_to_ptr.vmem [resolvable:$true] %s443
          %449 = dma.hbm_to_vmem [thread:$0]  %s2, 32, %s444, [#allocation4], 16, 16, 1
        $region20: #{tpu_custom_call.1} parent=11 // pred_fallthru
          _
        // Predicated region
        $region21: #{tpu_custom_call.1} parent=11 // pred_check
          %p450 = pneg %p120
        $region22: #{tpu_custom_call.1} parent=11 // pred_check_branch
          %452 = sbr.rel (%p450) target = $region24
        $region23: #{tpu_custom_call.1} parent=11 // pred_region
          _
        $region24: #{tpu_custom_call.1} parent=11 // pred_fallthru
          _
        // Predicated region
        $region25: #{tpu_custom_call.1} parent=11 // pred_check
          %p453 = pneg %p141
        $region26: #{tpu_custom_call.1} parent=11 // pred_check_branch
          %455 = sbr.rel (%p453) target = $region28
        $region27: #{tpu_custom_call.1} parent=11 // pred_region
          %s457 = ssub.s32 32, 32
          %458 = vsyncadd [#allocation7], %s457
          %s459 = sshll.u32 [#allocation6], 4
          %s460 = int_to_ptr.vmem [resolvable:$true] %s459
          %465 = dma.hbm_to_vmem [thread:$0]  %s4, 32, %s460, [#allocation7], 16, 16, 1
        $region28: #{tpu_custom_call.1} parent=11 // pred_fallthru
          _
        // Predicated region
        $region29: #{tpu_custom_call.1} parent=11 // pred_check
          %p466 = pneg %p162
        $region30: #{tpu_custom_call.1} parent=11 // pred_check_branch
          %468 = sbr.rel (%p466) target = $region32
        $region31: #{tpu_custom_call.1} parent=11 // pred_region
          %s470 = ssub.s32 32, 32
          %471 = vsyncadd [#allocation7], %s470
          %s472 = sshll.u32 [#allocation8], 4
          %s473 = int_to_ptr.vmem [resolvable:$true] %s472
          %478 = dma.hbm_to_vmem [thread:$0]  %s5, 32, %s473, [#allocation7], 16, 16, 1
        $region32: #{tpu_custom_call.1} parent=11 // pred_fallthru
          _
        // Predicated region
        $region33: #{tpu_custom_call.1} parent=11 // pred_check
          %p479 = pneg %p183
        $region34: #{tpu_custom_call.1} parent=11 // pred_check_branch
          %481 = sbr.rel (%p479) target = $region36
        $region35: #{tpu_custom_call.1} parent=11 // pred_region
          %s483 = ssub.s32 32, 32
          %484 = vsyncadd [#allocation10], %s483
          %s485 = sshll.u32 [#allocation9], 4
          %s486 = int_to_ptr.vmem [resolvable:$true] %s485
          %491 = dma.hbm_to_vmem [thread:$0]  %s6, 32, %s486, [#allocation10], 16, 16, 1
        $region36: #{tpu_custom_call.1} parent=11 // pred_fallthru
          _
        // Predicated region
        $region37: #{tpu_custom_call.1} parent=11 // pred_check
          %p492 = pneg %p204
        $region38: #{tpu_custom_call.1} parent=11 // pred_check_branch
          %494 = sbr.rel (%p492) target = $region40
        $region39: #{tpu_custom_call.1} parent=11 // pred_region
          %s496 = ssub.s32 512, 512
          %497 = vsyncadd [#allocation10], %s496
          %s498 = sshll.u32 [#allocation11], 4
          %s499 = int_to_ptr.vmem [resolvable:$true] %s498
          %504 = dma.hbm_to_vmem [thread:$0]  %s7, 512, %s499, [#allocation10], 64, 64, 4
        $region40: #{tpu_custom_call.1} parent=11 // pred_fallthru
          _
        // Predicated region
        $region41: #{tpu_custom_call.1} parent=11 // pred_check
          %p505 = pneg %p225
        $region42: #{tpu_custom_call.1} parent=11 // pred_check_branch
          %507 = sbr.rel (%p505) target = $region44
        $region43: #{tpu_custom_call.1} parent=11 // pred_region
          %s509 = ssub.s32 32, 32
          %510 = vsyncadd [#allocation13], %s509
          %s511 = sshll.u32 [#allocation12], 4
          %s512 = int_to_ptr.vmem [resolvable:$true] %s511
          %517 = dma.hbm_to_vmem [thread:$0]  %s8, 32, %s512, [#allocation13], 16, 16, 1
        $region44: #{tpu_custom_call.1} parent=11 // pred_fallthru
          _
        // Predicated region
        $region45: #{tpu_custom_call.1} parent=11 // pred_check
          %p518 = pneg %p246
        $region46: #{tpu_custom_call.1} parent=11 // pred_check_branch
          %520 = sbr.rel (%p518) target = $region48
        $region47: #{tpu_custom_call.1} parent=11 // pred_region
          _
        $region48: #{tpu_custom_call.1} parent=11 // pred_fallthru
          _
        // Predicated region
        $region49: #{tpu_custom_call.1} parent=11 // pred_check
          %p521 = pneg %p267
        $region50: #{tpu_custom_call.1} parent=11 // pred_check_branch
          %523 = sbr.rel (%p521) target = $region52
        $region51: #{tpu_custom_call.1} parent=11 // pred_region
          %s525 = ssub.s32 32, 32
          %526 = vsyncadd [#allocation13], %s525
          %s527 = sshll.u32 [#allocation14], 4
          %s528 = int_to_ptr.vmem [resolvable:$true] %s527
          %533 = dma.hbm_to_vmem [thread:$0]  %s10, 32, %s528, [#allocation13], 16, 16, 1
        $region52: #{tpu_custom_call.1} parent=11 // pred_fallthru
          _
        // Predicated region
        $region53: #{tpu_custom_call.1} parent=11 // pred_check
          %p534 = pneg %p288
        $region54: #{tpu_custom_call.1} parent=11 // pred_check_branch
          %536 = sbr.rel (%p534) target = $region56
        $region55: #{tpu_custom_call.1} parent=11 // pred_region
          %s538 = ssub.s32 32, 32
          %539 = vsyncadd [#allocation16], %s538
          %s540 = sshll.u32 [#allocation15], 4
          %s541 = int_to_ptr.vmem [resolvable:$true] %s540
          %546 = dma.hbm_to_vmem [thread:$0]  %s11, 32, %s541, [#allocation16], 16, 16, 1
        $region56: #{tpu_custom_call.1} parent=11 // pred_fallthru
          _
        // Predicated region
        $region57: #{tpu_custom_call.1} parent=11 // pred_check
          %p547 = pneg %p309
        $region58: #{tpu_custom_call.1} parent=11 // pred_check_branch
          %549 = sbr.rel (%p547) target = $region60
        $region59: #{tpu_custom_call.1} parent=11 // pred_region
          %s551 = ssub.s32 32, 32
          %552 = vsyncadd [#allocation16], %s551
          %s553 = sshll.u32 [#allocation17], 4
          %s554 = int_to_ptr.vmem [resolvable:$true] %s553
          %559 = dma.hbm_to_vmem [thread:$0]  %s12, 32, %s554, [#allocation16], 16, 16, 1
        $region60: #{tpu_custom_call.1} parent=11 // pred_fallthru
          _
        // Predicated region
        $region61: #{tpu_custom_call.1} parent=11 // pred_check
          %p560 = pneg %p330
        $region62: #{tpu_custom_call.1} parent=11 // pred_check_branch
          %562 = sbr.rel (%p560) target = $region64
        $region63: #{tpu_custom_call.1} parent=11 // pred_region
          _
        $region64: #{tpu_custom_call.1} parent=11 // pred_fallthru
          _
        // Predicated region
        $region65: #{tpu_custom_call.1} parent=11 // pred_check
          %p563 = pneg %p351
        $region66: #{tpu_custom_call.1} parent=11 // pred_check_branch
          %565 = sbr.rel (%p563) target = $region68
        $region67: #{tpu_custom_call.1} parent=11 // pred_region
          _
        $region68: #{tpu_custom_call.1} parent=11 // pred_fallthru
          _
        // Predicated region
        $region69: #{tpu_custom_call.1} parent=11 // pred_check
          %p566 = pneg %p372
        $region70: #{tpu_custom_call.1} parent=11 // pred_check_branch
          %568 = sbr.rel (%p566) target = $region72
        $region71: #{tpu_custom_call.1} parent=11 // pred_region
          _
        $region72: #{tpu_custom_call.1} parent=11 // pred_fallthru
          _
        // Predicated region
        $region73: #{tpu_custom_call.1} parent=11 // pred_check
          %p569 = pneg %p393
        $region74: #{tpu_custom_call.1} parent=11 // pred_check_branch
          %571 = sbr.rel (%p569) target = $region76
        $region75: #{tpu_custom_call.1} parent=11 // pred_region
          _
        $region76: #{tpu_custom_call.1} parent=11 // pred_fallthru
          _
      $region12: #{tpu_custom_call.1} parent=5 // pred_fallthru
        _
      %p572 = scmp.lt.s32.totalorder %s31, 2
      // Predicated region
      $region77: #{tpu_custom_call.1} parent=5 // pred_check
        %p573 = pneg %p572
      $region78: #{tpu_custom_call.1} parent=5 // pred_check_branch
        %575 = sbr.rel (%p573) target = $region80
      $region79: #{tpu_custom_call.1} parent=5 // pred_region
        // Predicated region
        $region81: #{tpu_custom_call.1} parent=79 // pred_check
          %p576 = pneg %p51
        $region82: #{tpu_custom_call.1} parent=79 // pred_check_branch
          %578 = sbr.rel (%p576) target = $region84
        $region83: #{tpu_custom_call.1} parent=79 // pred_region
          %p579 = scmp.lt.s32.totalorder %s31, 1
          %s580 = scalar_select %p579, %s31, 1
          %s581 = smul.addr %s580, 2
          %s582 = smul.addr %s581, 8
          %s583 = scalar_lea.vmem %s0, %s582
        $region84: #{tpu_custom_call.1} parent=79 // pred_fallthru
          _
      $region80: #{tpu_custom_call.1} parent=5 // pred_fallthru
        _
      %p584 = scmp.le.s32.totalorder 1, %s31
      %p585 = scmp.lt.s32.totalorder %s31, 3
      %p586 = pnand %p584, %p585
      %p587 = pneg %p586
      // Predicated region
      $region85: #{tpu_custom_call.1} parent=5 // pred_check
        _
      $region86: #{tpu_custom_call.1} parent=5 // pred_check_branch
        %589 = sbr.rel (%p586) target = $region88
      $region87: #{tpu_custom_call.1} parent=5 // pred_region
        %s590 = ssub.s32 %s31, 1
        // Predicated region
        $region89: #{tpu_custom_call.1} parent=87 // pred_check
          %p591 = pneg %p99
        $region90: #{tpu_custom_call.1} parent=87 // pred_check_branch
          %593 = sbr.rel (%p591) target = $region92
        $region91: #{tpu_custom_call.1} parent=87 // pred_region
          %594 = dma.done [#allocation4], 32
        $region92: #{tpu_custom_call.1} parent=87 // pred_fallthru
          _
        // Predicated region
        $region93: #{tpu_custom_call.1} parent=87 // pred_check
          %p595 = pneg %p141
        $region94: #{tpu_custom_call.1} parent=87 // pred_check_branch
          %597 = sbr.rel (%p595) target = $region96
        $region95: #{tpu_custom_call.1} parent=87 // pred_region
          %598 = dma.done [#allocation7], 32
        $region96: #{tpu_custom_call.1} parent=87 // pred_fallthru
          _
        // Predicated region
        $region97: #{tpu_custom_call.1} parent=87 // pred_check
          %p599 = pneg %p162
        $region98: #{tpu_custom_call.1} parent=87 // pred_check_branch
          %601 = sbr.rel (%p599) target = $region100
        $region99: #{tpu_custom_call.1} parent=87 // pred_region
          %602 = dma.done [#allocation7], 32
        $region100: #{tpu_custom_call.1} parent=87 // pred_fallthru
          _
        // Predicated region
        $region101: #{tpu_custom_call.1} parent=87 // pred_check
          %p603 = pneg %p183
        $region102: #{tpu_custom_call.1} parent=87 // pred_check_branch
          %605 = sbr.rel (%p603) target = $region104
        $region103: #{tpu_custom_call.1} parent=87 // pred_region
          %606 = dma.done [#allocation10], 32
        $region104: #{tpu_custom_call.1} parent=87 // pred_fallthru
          _
        // Predicated region
        $region105: #{tpu_custom_call.1} parent=87 // pred_check
          %p607 = pneg %p204
        $region106: #{tpu_custom_call.1} parent=87 // pred_check_branch
          %609 = sbr.rel (%p607) target = $region108
        $region107: #{tpu_custom_call.1} parent=87 // pred_region
          %610 = dma.done [#allocation10], 512
        $region108: #{tpu_custom_call.1} parent=87 // pred_fallthru
          _
        // Predicated region
        $region109: #{tpu_custom_call.1} parent=87 // pred_check
          %p611 = pneg %p225
        $region110: #{tpu_custom_call.1} parent=87 // pred_check_branch
          %613 = sbr.rel (%p611) target = $region112
        $region111: #{tpu_custom_call.1} parent=87 // pred_region
          %614 = dma.done [#allocation13], 32
        $region112: #{tpu_custom_call.1} parent=87 // pred_fallthru
          _
        // Predicated region
        $region113: #{tpu_custom_call.1} parent=87 // pred_check
          %p615 = pneg %p267
        $region114: #{tpu_custom_call.1} parent=87 // pred_check_branch
          %617 = sbr.rel (%p615) target = $region116
        $region115: #{tpu_custom_call.1} parent=87 // pred_region
          %618 = dma.done [#allocation13], 32
        $region116: #{tpu_custom_call.1} parent=87 // pred_fallthru
          _
        // Predicated region
        $region117: #{tpu_custom_call.1} parent=87 // pred_check
          %p619 = pneg %p288
        $region118: #{tpu_custom_call.1} parent=87 // pred_check_branch
          %621 = sbr.rel (%p619) target = $region120
        $region119: #{tpu_custom_call.1} parent=87 // pred_region
          %622 = dma.done [#allocation16], 32
        $region120: #{tpu_custom_call.1} parent=87 // pred_fallthru
          _
        // Predicated region
        $region121: #{tpu_custom_call.1} parent=87 // pred_check
          %p623 = pneg %p309
        $region122: #{tpu_custom_call.1} parent=87 // pred_check_branch
          %625 = sbr.rel (%p623) target = $region124
        $region123: #{tpu_custom_call.1} parent=87 // pred_region
          %626 = dma.done [#allocation16], 32
        $region124: #{tpu_custom_call.1} parent=87 // pred_fallthru
          _
        %p627 = scmp.lt.s32.totalorder %s36, 1
        %s628 = scalar_select %p627, %s36, 1
        %s629 = smul.addr %s628, 2
        %s630 = smul.addr %s629, 8
        %s631 = scalar_lea.vmem %s0, %s630
        %p632 = pneg %p57
        %p633 = pneg %p54
        %p634 = pneg %p78
        %p635 = pneg %p75
        %p636 = pneg %p99
        %p637 = pneg %p96
        %p638 = pneg %p120
        %p639 = pneg %p117
        %p640 = pneg %p141
        %p641 = pneg %p138
        %p642 = pneg %p162
        %p643 = pneg %p159
        %p644 = pneg %p183
        %p645 = pneg %p180
        %p646 = pneg %p204
        %p647 = pneg %p201
        %p648 = pneg %p225
        %p649 = pneg %p222
        %p650 = pneg %p246
        %p651 = pneg %p243
        %p652 = pneg %p267
        %p653 = pneg %p264
        %p654 = pneg %p288
        %p655 = pneg %p285
        %p656 = pneg %p309
        %p657 = pneg %p306
        %p658 = pneg %p330
        %p659 = pneg %p327
        %p660 = pneg %p351
        %p661 = pneg %p348
        %p662 = pneg %p372
        %p663 = pneg %p369
        %p664 = pneg %p393
        %p665 = pneg %p390
        %p666 = pneg %p419
        %p667 = pneg %p416
        %s668 = sand.u32 %s406, 1
        %s669 = scalar_lea.sflag [#allocation5], %s668
        %s670 = sand.u32 %s406, 1
        %s671 = scalar_lea.vmem [#allocation18], %s670
        %p672 = scmp.lt.s32.totalorder %s36, 1
        %s673 = scalar_select %p672, %s36, 1
        %s674 = smul.addr %s673, 2
        %s675 = smul.addr %s674, 8
        %s676 = scalar_lea.vmem %s0, %s675
        %v678 = vlaneseq
        %v679 = vand.u32 %v678, 127
        %vm680 = vcmp.lt.s32.totalorder %v679, 9
        %v681 = vsel %vm680, 0.0, -1e+30
        %v682 = vld [vmem:[%s676] sm:$0xff]
        %v683 = vld [vmem:[%s676 + $0x8] sm:$0xff]
        %v684 = vpack.c.bf16 %v683, %v682
        %v685 = vld [vmem:[%s1] sm:$0xf]
        %v686 = vld [vmem:[%s1 + $0x4] sm:$0xf]
        %v687 = vld [vmem:[%s1 + $0x8] sm:$0xf]
        %v688 = vld [vmem:[%s1 + $0xc] sm:$0xf]
        %v689 = vld [vmem:[#allocation3] sm:$0x1]
        %v691 = vlaneseq
        %v692 = vshrl.u32 %v691, 7
        %v693 = vsub.s32 0, %v692
        %v694 = vrot.slane %v689, %v693
        %v700 = vunpack.c.l.b16 %v685
        %v701 = vunpack.c.l.b16 %v686
        %v702 = vunpack.c.l.b16 %v687
        %v703 = vunpack.c.l.b16 %v688
        %v704 = vpack.c.b16 %v701, %v700
        %v705 = vpack.c.b16 %v703, %v702
        %vm708 = vcmask 261120
        %v710 = vsel %vm708, %v684, 0
        %712 = vmatprep.subr.bf16.mxu0 0
        %713 = vmatpush1.bf16.msra.mxu0 %v704
        %714 = vmatprep.subr.bf16.mxu0 0
        %715 = vmatpush1.bf16.msra.mxu0 %v705
        %716 = vmatprep.subr.bf16.mxu0 0
        %717 = vmatpush1.bf16.msra.mxu0 0
        %718 = vmatprep.subr.bf16.mxu0 0
        %719 = vmatpush1.bf16.msra.mxu0 0
        %720 = vmatprep.subr.bf16.mxu0 0
        %721 = vmatpush1.bf16.msra.mxu0 0
        %722 = vmatprep.subr.bf16.mxu0 0
        %723 = vmatpush1.bf16.msra.mxu0 0
        %724 = vmatprep.subr.bf16.mxu0 0
        %725 = vmatpush1.bf16.msra.mxu0 0
        %726 = vmatprep.subr.bf16.mxu0 0
        %727 = vmatpush1.bf16.msra.mxu0 0
        %728 = vmatprep.subr.bf16.mxu0 0
        %729 = vmatpush1.bf16.msra.mxu0 0
        %730 = vmatprep.subr.bf16.mxu0 0
        %731 = vmatpush1.bf16.msra.mxu0 0
        %732 = vmatprep.subr.bf16.mxu0 0
        %733 = vmatpush1.bf16.msra.mxu0 0
        %734 = vmatprep.subr.bf16.mxu0 0
        %735 = vmatpush1.bf16.msra.mxu0 0
        %736 = vmatprep.subr.bf16.mxu0 0
        %737 = vmatpush1.bf16.msra.mxu0 0
        %738 = vmatprep.subr.bf16.mxu0 0
        %739 = vmatpush1.bf16.msra.mxu0 0
        %740 = vmatprep.subr.bf16.mxu0 0
        %741 = vmatpush1.bf16.msra.mxu0 0
        %742 = vmatprep.subr.bf16.mxu0 0
        %743 = vmatpush1.bf16.msra.mxu0 0
        %744 = vmatprep.mubr.bf16.mxu0 0
        %745 = vmatmul.mubr.bf16.gmra.mrb[0].mxu0 %v710
        %v746 = vpop.f32.mrb[0].mxu0
        %v747 = vadd.f32 %v694, %v746
        %v748 = vpop.f32.mrb[0].mxu0
        %v749 = vpop.f32.mrb[0].mxu0
        %v750 = vadd.f32 %v694, %v749
        %v751 = vpop.f32.mrb[0].mxu0
        %752 = vdwg.mxu0
        %v753 = vpack.c.bf16 %v750, %v747
        %755 = vrot.lane.b32.xlu0 %v753, 96
        %v756 = vpop.permute.xlu0 %755
        %vm757 = vcmask 64512
        %v759 = vsel %vm757, %v753, 0
        %v762 = vsel %vm757, %v756, 0
        %764 = vmatprep.subr.bf16.mxu0 0
        %765 = vmatpush1.bf16.xpose.msra.mxu0 %v762
        %766 = vmatprep.subr.bf16.mxu0 0
        %767 = vmatpush1.bf16.xpose.msra.mxu0 0
        %768 = vmatprep.subr.bf16.mxu0 0
        %769 = vmatpush1.bf16.xpose.msra.mxu0 0
        %770 = vmatprep.subr.bf16.mxu0 0
        %771 = vmatpush1.bf16.xpose.msra.mxu0 0
        %772 = vmatprep.subr.bf16.mxu0 0
        %773 = vmatpush1.bf16.xpose.msra.mxu0 0
        %774 = vmatprep.subr.bf16.mxu0 0
        %775 = vmatpush1.bf16.xpose.msra.mxu0 0
        %776 = vmatprep.subr.bf16.mxu0 0
        %777 = vmatpush1.bf16.xpose.msra.mxu0 0
        %778 = vmatprep.subr.bf16.mxu0 0
        %779 = vmatpush1.bf16.xpose.msra.mxu0 0
        %780 = vmatprep.subr.bf16.mxu0 0
        %781 = vmatpush1.bf16.xpose.msra.mxu0 0
        %782 = vmatprep.subr.bf16.mxu0 0
        %783 = vmatpush1.bf16.xpose.msra.mxu0 0
        %784 = vmatprep.subr.bf16.mxu0 0
        %785 = vmatpush1.bf16.xpose.msra.mxu0 0
        %786 = vmatprep.subr.bf16.mxu0 0
        %787 = vmatpush1.bf16.xpose.msra.mxu0 0
        %788 = vmatprep.subr.bf16.mxu0 0
        %789 = vmatpush1.bf16.xpose.msra.mxu0 0
        %790 = vmatprep.subr.bf16.mxu0 0
        %791 = vmatpush1.bf16.xpose.msra.mxu0 0
        %792 = vmatprep.subr.bf16.mxu0 0
        %793 = vmatpush1.bf16.xpose.msra.mxu0 0
        %794 = vmatprep.subr.bf16.mxu0 0
        %795 = vmatpush1.bf16.xpose.msra.mxu0 0
        %796 = vmatprep.mubr.bf16.mxu0 0
        %797 = vmatmul.mubr.bf16.gmra.mrb[0].mxu0 %v759
        %v798 = vpop.f32.mrb[0].mxu0
        %v799 = vadd.f32 0.0, %v798
        %v800 = vpop.f32.mrb[0].mxu0
        %v801 = vpop.f32.mrb[0].mxu0
        %v802 = vadd.f32 0.0, %v801
        %v803 = vpop.f32.mrb[0].mxu0
        %804 = vdwg.mxu0
        %v805 = vmul.f32 %v799, 0.35355338
        %v806 = vmul.f32 %v802, 0.35355338
        %v807 = vadd.f32 %v805, %v681
        %v808 = vadd.f32 %v806, %v681
        %vm809 = vcmask 130048
        %v810 = vsel %vm809, %v807, -inf
        %811 = vmax.xlane.f32.xlu0 %v810
        %v812 = vpop.xlane.xlu0 %811
        %v813 = vsel %vm809, %v808, -inf
        %814 = vmax.xlane.f32.xlu0 %v813
        %v815 = vpop.xlane.xlu0 %814
        %v816 = vsub.f32 %v807, %v812
        %v817 = vsub.f32 %v808, %v815
        %v818 = vmul.f32 %v816, 1.442695
        %v819 = vpow.pop %v818
        %v820 = vmul.f32 %v817, 1.442695
        %v821 = vpow.pop %v820
        %v822 = vsel %vm809, %v819, 0.0
        %823 = vadd.xlane.f32.xlu0 %v822
        %v824 = vpop.xlane.xlu0 %823
        %v825 = vsel %vm809, %v821, 0.0
        %826 = vadd.xlane.f32.xlu0 %v825
        %v827 = vpop.xlane.xlu0 %826
        %v828 = vrcp.pop %v824
        %v829 = vrcp.pop %v827
        %v830 = vmul.f32 %v819, %v828
        %v831 = vmul.f32 %v821, %v829
        %v832 = vpack.c.bf16 %v831, %v830
        %833 = vrot.lane.b32.xlu0 %v753, 64
        %v834 = vpop.permute.xlu0 %833
        %v837 = vsel %vm809, %v832, 0
        %839 = vmatprep.subr.bf16.mxu0 0
        %840 = vmatpush1.bf16.msra.mxu0 %v834
        %841 = vmatprep.subr.bf16.mxu0 0
        %842 = vmatpush1.bf16.msra.mxu0 0
        %843 = vmatprep.subr.bf16.mxu0 0
        %844 = vmatpush1.bf16.msra.mxu0 0
        %845 = vmatprep.subr.bf16.mxu0 0
        %846 = vmatpush1.bf16.msra.mxu0 0
        %847 = vmatprep.subr.bf16.mxu0 0
        %848 = vmatpush1.bf16.msra.mxu0 0
        %849 = vmatprep.subr.bf16.mxu0 0
        %850 = vmatpush1.bf16.msra.mxu0 0
        %851 = vmatprep.subr.bf16.mxu0 0
        %852 = vmatpush1.bf16.msra.mxu0 0
        %853 = vmatprep.subr.bf16.mxu0 0
        %854 = vmatpush1.bf16.msra.mxu0 0
        %855 = vmatprep.subr.bf16.mxu0 0
        %856 = vmatpush1.bf16.msra.mxu0 0
        %857 = vmatprep.subr.bf16.mxu0 0
        %858 = vmatpush1.bf16.msra.mxu0 0
        %859 = vmatprep.subr.bf16.mxu0 0
        %860 = vmatpush1.bf16.msra.mxu0 0
        %861 = vmatprep.subr.bf16.mxu0 0
        %862 = vmatpush1.bf16.msra.mxu0 0
        %863 = vmatprep.subr.bf16.mxu0 0
        %864 = vmatpush1.bf16.msra.mxu0 0
        %865 = vmatprep.subr.bf16.mxu0 0
        %866 = vmatpush1.bf16.msra.mxu0 0
        %867 = vmatprep.subr.bf16.mxu0 0
        %868 = vmatpush1.bf16.msra.mxu0 0
        %869 = vmatprep.subr.bf16.mxu0 0
        %870 = vmatpush1.bf16.msra.mxu0 0
        %871 = vmatprep.mubr.bf16.mxu0 0
        %872 = vmatmul.mubr.bf16.gmra.mrb[0].mxu0 %v837
        %v873 = vpop.f32.mrb[0].mxu0
        %v874 = vadd.f32 0.0, %v873
        %v875 = vpop.f32.mrb[0].mxu0
        %v876 = vpop.f32.mrb[0].mxu0
        %v877 = vadd.f32 0.0, %v876
        %v878 = vpop.f32.mrb[0].mxu0
        %879 = vdwg.mxu0
        %v880 = vpack.c.bf16 %v877, %v874
        %881 = vst.msk [vmem:[#allocation2] sm:$0xff] %vm757, %v880
        %882 = vrot.lane.b32.xlu0 %v753, 120
        %v883 = vpop.permute.xlu0 %882
        %884 = vrot.lane.b32.xlu0 %v753, 88
        %v885 = vpop.permute.xlu0 %884
        %v887 = vsel %vm757, %v883, 0
        %v890 = vsel %vm757, %v885, 0
        %892 = vmatprep.subr.bf16.mxu0 0
        %893 = vmatpush1.bf16.xpose.msra.mxu0 %v890
        %894 = vmatprep.subr.bf16.mxu0 0
        %895 = vmatpush1.bf16.xpose.msra.mxu0 0
        %896 = vmatprep.subr.bf16.mxu0 0
        %897 = vmatpush1.bf16.xpose.msra.mxu0 0
        %898 = vmatprep.subr.bf16.mxu0 0
        %899 = vmatpush1.bf16.xpose.msra.mxu0 0
        %900 = vmatprep.subr.bf16.mxu0 0
        %901 = vmatpush1.bf16.xpose.msra.mxu0 0
        %902 = vmatprep.subr.bf16.mxu0 0
        %903 = vmatpush1.bf16.xpose.msra.mxu0 0
        %904 = vmatprep.subr.bf16.mxu0 0
        %905 = vmatpush1.bf16.xpose.msra.mxu0 0
        %906 = vmatprep.subr.bf16.mxu0 0
        %907 = vmatpush1.bf16.xpose.msra.mxu0 0
        %908 = vmatprep.subr.bf16.mxu0 0
        %909 = vmatpush1.bf16.xpose.msra.mxu0 0
        %910 = vmatprep.subr.bf16.mxu0 0
        %911 = vmatpush1.bf16.xpose.msra.mxu0 0
        %912 = vmatprep.subr.bf16.mxu0 0
        %913 = vmatpush1.bf16.xpose.msra.mxu0 0
        %914 = vmatprep.subr.bf16.mxu0 0
        %915 = vmatpush1.bf16.xpose.msra.mxu0 0
        %916 = vmatprep.subr.bf16.mxu0 0
        %917 = vmatpush1.bf16.xpose.msra.mxu0 0
        %918 = vmatprep.subr.bf16.mxu0 0
        %919 = vmatpush1.bf16.xpose.msra.mxu0 0
        %920 = vmatprep.subr.bf16.mxu0 0
        %921 = vmatpush1.bf16.xpose.msra.mxu0 0
        %922 = vmatprep.subr.bf16.mxu0 0
        %923 = vmatpush1.bf16.xpose.msra.mxu0 0
        %924 = vmatprep.mubr.bf16.mxu0 0
        %925 = vmatmul.mubr.bf16.gmra.mrb[0].mxu0 %v887
        %v926 = vpop.f32.mrb[0].mxu0
        %v927 = vadd.f32 0.0, %v926
        %v928 = vpop.f32.mrb[0].mxu0
        %v929 = vpop.f32.mrb[0].mxu0
        %v930 = vadd.f32 0.0, %v929
        %v931 = vpop.f32.mrb[0].mxu0
        %932 = vdwg.mxu0
        %v933 = vmul.f32 %v927, 0.35355338
        %v934 = vmul.f32 %v930, 0.35355338
        %v935 = vadd.f32 %v933, %v681
        %v936 = vadd.f32 %v934, %v681
        %v937 = vsel %vm809, %v935, -inf
        %938 = vmax.xlane.f32.xlu0 %v937
        %v939 = vpop.xlane.xlu0 %938
        %v940 = vsel %vm809, %v936, -inf
        %941 = vmax.xlane.f32.xlu0 %v940
        %v942 = vpop.xlane.xlu0 %941
        %v943 = vsub.f32 %v935, %v939
        %v944 = vsub.f32 %v936, %v942
        %v945 = vmul.f32 %v943, 1.442695
        %v946 = vpow.pop %v945
        %v947 = vmul.f32 %v944, 1.442695
        %v948 = vpow.pop %v947
        %v949 = vsel %vm809, %v946, 0.0
        %950 = vadd.xlane.f32.xlu0 %v949
        %v951 = vpop.xlane.xlu0 %950
        %v952 = vsel %vm809, %v948, 0.0
        %953 = vadd.xlane.f32.xlu0 %v952
        %v954 = vpop.xlane.xlu0 %953
        %v955 = vrcp.pop %v951
        %v956 = vrcp.pop %v954
        %v957 = vmul.f32 %v946, %v955
        %v958 = vmul.f32 %v948, %v956
        %v959 = vpack.c.bf16 %v958, %v957
        %960 = vrot.lane.b32.xlu0 %v753, 56
        %v961 = vpop.permute.xlu0 %960
        %v964 = vsel %vm809, %v959, 0
        %966 = vmatprep.subr.bf16.mxu0 0
        %967 = vmatpush1.bf16.msra.mxu0 %v961
        %968 = vmatprep.subr.bf16.mxu0 0
        %969 = vmatpush1.bf16.msra.mxu0 0
        %970 = vmatprep.subr.bf16.mxu0 0
        %971 = vmatpush1.bf16.msra.mxu0 0
        %972 = vmatprep.subr.bf16.mxu0 0
        %973 = vmatpush1.bf16.msra.mxu0 0
        %974 = vmatprep.subr.bf16.mxu0 0
        %975 = vmatpush1.bf16.msra.mxu0 0
        %976 = vmatprep.subr.bf16.mxu0 0
        %977 = vmatpush1.bf16.msra.mxu0 0
        %978 = vmatprep.subr.bf16.mxu0 0
        %979 = vmatpush1.bf16.msra.mxu0 0
        %980 = vmatprep.subr.bf16.mxu0 0
        %981 = vmatpush1.bf16.msra.mxu0 0
        %982 = vmatprep.subr.bf16.mxu0 0
        %983 = vmatpush1.bf16.msra.mxu0 0
        %984 = vmatprep.subr.bf16.mxu0 0
        %985 = vmatpush1.bf16.msra.mxu0 0
        %986 = vmatprep.subr.bf16.mxu0 0
        %987 = vmatpush1.bf16.msra.mxu0 0
        %988 = vmatprep.subr.bf16.mxu0 0
        %989 = vmatpush1.bf16.msra.mxu0 0
        %990 = vmatprep.subr.bf16.mxu0 0
        %991 = vmatpush1.bf16.msra.mxu0 0
        %992 = vmatprep.subr.bf16.mxu0 0
        %993 = vmatpush1.bf16.msra.mxu0 0
        %994 = vmatprep.subr.bf16.mxu0 0
        %995 = vmatpush1.bf16.msra.mxu0 0
        %996 = vmatprep.subr.bf16.mxu0 0
        %997 = vmatpush1.bf16.msra.mxu0 0
        %998 = vmatprep.mubr.bf16.mxu0 0
        %999 = vmatmul.mubr.bf16.gmra.mrb[0].mxu0 %v964
        %v1000 = vpop.f32.mrb[0].mxu0
        %v1001 = vadd.f32 0.0, %v1000
        %v1002 = vpop.f32.mrb[0].mxu0
        %v1003 = vpop.f32.mrb[0].mxu0
        %v1004 = vadd.f32 0.0, %v1003
        %v1005 = vpop.f32.mrb[0].mxu0
        %1006 = vdwg.mxu0
        %v1007 = vpack.c.bf16 %v1004, %v1001
        %1009 = vrot.lane.b32.xlu0 %v1007, 8
        %v1010 = vpop.permute.xlu0 %1009
        %vm1012 = vcmask 130112
        %1013 = vst.msk [vmem:[#allocation2] sm:$0xff] %vm1012, %v1010
        %1014 = vrot.lane.b32.xlu0 %v753, 112
        %v1015 = vpop.permute.xlu0 %1014
        %1016 = vrot.lane.b32.xlu0 %v753, 80
        %v1017 = vpop.permute.xlu0 %1016
        %v1019 = vsel %vm757, %v1015, 0
        %v1022 = vsel %vm757, %v1017, 0
        %1024 = vmatprep.subr.bf16.mxu0 0
        %1025 = vmatpush1.bf16.xpose.msra.mxu0 %v1022
        %1026 = vmatprep.subr.bf16.mxu0 0
        %1027 = vmatpush1.bf16.xpose.msra.mxu0 0
        %1028 = vmatprep.subr.bf16.mxu0 0
        %1029 = vmatpush1.bf16.xpose.msra.mxu0 0
        %1030 = vmatprep.subr.bf16.mxu0 0
        %1031 = vmatpush1.bf16.xpose.msra.mxu0 0
        %1032 = vmatprep.subr.bf16.mxu0 0
        %1033 = vmatpush1.bf16.xpose.msra.mxu0 0
        %1034 = vmatprep.subr.bf16.mxu0 0
        %1035 = vmatpush1.bf16.xpose.msra.mxu0 0
        %1036 = vmatprep.subr.bf16.mxu0 0
        %1037 = vmatpush1.bf16.xpose.msra.mxu0 0
        %1038 = vmatprep.subr.bf16.mxu0 0
        %1039 = vmatpush1.bf16.xpose.msra.mxu0 0
        %1040 = vmatprep.subr.bf16.mxu0 0
        %1041 = vmatpush1.bf16.xpose.msra.mxu0 0
        %1042 = vmatprep.subr.bf16.mxu0 0
        %1043 = vmatpush1.bf16.xpose.msra.mxu0 0
        %1044 = vmatprep.subr.bf16.mxu0 0
        %1045 = vmatpush1.bf16.xpose.msra.mxu0 0
        %1046 = vmatprep.subr.bf16.mxu0 0
        %1047 = vmatpush1.bf16.xpose.msra.mxu0 0
        %1048 = vmatprep.subr.bf16.mxu0 0
        %1049 = vmatpush1.bf16.xpose.msra.mxu0 0
        %1050 = vmatprep.subr.bf16.mxu0 0
        %1051 = vmatpush1.bf16.xpose.msra.mxu0 0
        %1052 = vmatprep.subr.bf16.mxu0 0
        %1053 = vmatpush1.bf16.xpose.msra.mxu0 0
        %1054 = vmatprep.subr.bf16.mxu0 0
        %1055 = vmatpush1.bf16.xpose.msra.mxu0 0
        %1056 = vmatprep.mubr.bf16.mxu0 0
        %1057 = vmatmul.mubr.bf16.gmra.mrb[0].mxu0 %v1019
        %v1058 = vpop.f32.mrb[0].mxu0
        %v1059 = vadd.f32 0.0, %v1058
        %v1060 = vpop.f32.mrb[0].mxu0
        %v1061 = vpop.f32.mrb[0].mxu0
        %v1062 = vadd.f32 0.0, %v1061
        %v1063 = vpop.f32.mrb[0].mxu0
        %1064 = vdwg.mxu0
        %v1065 = vmul.f32 %v1059, 0.35355338
        %v1066 = vmul.f32 %v1062, 0.35355338
        %v1067 = vadd.f32 %v1065, %v681
        %v1068 = vadd.f32 %v1066, %v681
        %v1069 = vsel %vm809, %v1067, -inf
        %1070 = vmax.xlane.f32.xlu0 %v1069
        %v1071 = vpop.xlane.xlu0 %1070
        %v1072 = vsel %vm809, %v1068, -inf
        %1073 = vmax.xlane.f32.xlu0 %v1072
        %v1074 = vpop.xlane.xlu0 %1073
        %v1075 = vsub.f32 %v1067, %v1071
        %v1076 = vsub.f32 %v1068, %v1074
        %v1077 = vmul.f32 %v1075, 1.442695
        %v1078 = vpow.pop %v1077
        %v1079 = vmul.f32 %v1076, 1.442695
        %v1080 = vpow.pop %v1079
        %v1081 = vsel %vm809, %v1078, 0.0
        %1082 = vadd.xlane.f32.xlu0 %v1081
        %v1083 = vpop.xlane.xlu0 %1082
        %v1084 = vsel %vm809, %v1080, 0.0
        %1085 = vadd.xlane.f32.xlu0 %v1084
        %v1086 = vpop.xlane.xlu0 %1085
        %v1087 = vrcp.pop %v1083
        %v1088 = vrcp.pop %v1086
        %v1089 = vmul.f32 %v1078, %v1087
        %v1090 = vmul.f32 %v1080, %v1088
        %v1091 = vpack.c.bf16 %v1090, %v1089
        %1092 = vrot.lane.b32.xlu0 %v753, 48
        %v1093 = vpop.permute.xlu0 %1092
        %v1096 = vsel %vm809, %v1091, 0
        %1098 = vmatprep.subr.bf16.mxu0 0
        %1099 = vmatpush1.bf16.msra.mxu0 %v1093
        %1100 = vmatprep.subr.bf16.mxu0 0
        %1101 = vmatpush1.bf16.msra.mxu0 0
        %1102 = vmatprep.subr.bf16.mxu0 0
        %1103 = vmatpush1.bf16.msra.mxu0 0
        %1104 = vmatprep.subr.bf16.mxu0 0
        %1105 = vmatpush1.bf16.msra.mxu0 0
        %1106 = vmatprep.subr.bf16.mxu0 0
        %1107 = vmatpush1.bf16.msra.mxu0 0
        %1108 = vmatprep.subr.bf16.mxu0 0
        %1109 = vmatpush1.bf16.msra.mxu0 0
        %1110 = vmatprep.subr.bf16.mxu0 0
        %1111 = vmatpush1.bf16.msra.mxu0 0
        %1112 = vmatprep.subr.bf16.mxu0 0
        %1113 = vmatpush1.bf16.msra.mxu0 0
        %1114 = vmatprep.subr.bf16.mxu0 0
        %1115 = vmatpush1.bf16.msra.mxu0 0
        %1116 = vmatprep.subr.bf16.mxu0 0
        %1117 = vmatpush1.bf16.msra.mxu0 0
        %1118 = vmatprep.subr.bf16.mxu0 0
        %1119 = vmatpush1.bf16.msra.mxu0 0
        %1120 = vmatprep.subr.bf16.mxu0 0
        %1121 = vmatpush1.bf16.msra.mxu0 0
        %1122 = vmatprep.subr.bf16.mxu0 0
        %1123 = vmatpush1.bf16.msra.mxu0 0
        %1124 = vmatprep.subr.bf16.mxu0 0
        %1125 = vmatpush1.bf16.msra.mxu0 0
        %1126 = vmatprep.subr.bf16.mxu0 0
        %1127 = vmatpush1.bf16.msra.mxu0 0
        %1128 = vmatprep.subr.bf16.mxu0 0
        %1129 = vmatpush1.bf16.msra.mxu0 0
        %1130 = vmatprep.mubr.bf16.mxu0 0
        %1131 = vmatmul.mubr.bf16.gmra.mrb[0].mxu0 %v1096
        %v1132 = vpop.f32.mrb[0].mxu0
        %v1133 = vadd.f32 0.0, %v1132
        %v1134 = vpop.f32.mrb[0].mxu0
        %v1135 = vpop.f32.mrb[0].mxu0
        %v1136 = vadd.f32 0.0, %v1135
        %v1137 = vpop.f32.mrb[0].mxu0
        %1138 = vdwg.mxu0
        %v1139 = vpack.c.bf16 %v1136, %v1133
        %1141 = vrot.lane.b32.xlu0 %v1139, 16
        %v1142 = vpop.permute.xlu0 %1141
        %vm1144 = vcmask 195712
        %1145 = vst.msk [vmem:[#allocation2] sm:$0xff] %vm1144, %v1142
        %1146 = vrot.lane.b32.xlu0 %v753, 104
        %v1147 = vpop.permute.xlu0 %1146
        %1148 = vrot.lane.b32.xlu0 %v753, 72
        %v1149 = vpop.permute.xlu0 %1148
        %v1151 = vsel %vm757, %v1147, 0
        %v1154 = vsel %vm757, %v1149, 0
        %1156 = vmatprep.subr.bf16.mxu0 0
        %1157 = vmatpush1.bf16.xpose.msra.mxu0 %v1154
        %1158 = vmatprep.subr.bf16.mxu0 0
        %1159 = vmatpush1.bf16.xpose.msra.mxu0 0
        %1160 = vmatprep.subr.bf16.mxu0 0
        %1161 = vmatpush1.bf16.xpose.msra.mxu0 0
        %1162 = vmatprep.subr.bf16.mxu0 0
        %1163 = vmatpush1.bf16.xpose.msra.mxu0 0
        %1164 = vmatprep.subr.bf16.mxu0 0
        %1165 = vmatpush1.bf16.xpose.msra.mxu0 0
        %1166 = vmatprep.subr.bf16.mxu0 0
        %1167 = vmatpush1.bf16.xpose.msra.mxu0 0
        %1168 = vmatprep.subr.bf16.mxu0 0
        %1169 = vmatpush1.bf16.xpose.msra.mxu0 0
        %1170 = vmatprep.subr.bf16.mxu0 0
        %1171 = vmatpush1.bf16.xpose.msra.mxu0 0
        %1172 = vmatprep.subr.bf16.mxu0 0
        %1173 = vmatpush1.bf16.xpose.msra.mxu0 0
        %1174 = vmatprep.subr.bf16.mxu0 0
        %1175 = vmatpush1.bf16.xpose.msra.mxu0 0
        %1176 = vmatprep.subr.bf16.mxu0 0
        %1177 = vmatpush1.bf16.xpose.msra.mxu0 0
        %1178 = vmatprep.subr.bf16.mxu0 0
        %1179 = vmatpush1.bf16.xpose.msra.mxu0 0
        %1180 = vmatprep.subr.bf16.mxu0 0
        %1181 = vmatpush1.bf16.xpose.msra.mxu0 0
        %1182 = vmatprep.subr.bf16.mxu0 0
        %1183 = vmatpush1.bf16.xpose.msra.mxu0 0
        %1184 = vmatprep.subr.bf16.mxu0 0
        %1185 = vmatpush1.bf16.xpose.msra.mxu0 0
        %1186 = vmatprep.subr.bf16.mxu0 0
        %1187 = vmatpush1.bf16.xpose.msra.mxu0 0
        %1188 = vmatprep.mubr.bf16.mxu0 0
        %1189 = vmatmul.mubr.bf16.gmra.mrb[0].mxu0 %v1151
        %v1190 = vpop.f32.mrb[0].mxu0
        %v1191 = vadd.f32 0.0, %v1190
        %v1192 = vpop.f32.mrb[0].mxu0
        %v1193 = vpop.f32.mrb[0].mxu0
        %v1194 = vadd.f32 0.0, %v1193
        %v1195 = vpop.f32.mrb[0].mxu0
        %1196 = vdwg.mxu0
        %v1197 = vmul.f32 %v1191, 0.35355338
        %v1198 = vmul.f32 %v1194, 0.35355338
        %v1199 = vadd.f32 %v1197, %v681
        %v1200 = vadd.f32 %v1198, %v681
        %v1201 = vsel %vm809, %v1199, -inf
        %1202 = vmax.xlane.f32.xlu0 %v1201
        %v1203 = vpop.xlane.xlu0 %1202
        %v1204 = vsel %vm809, %v1200, -inf
        %1205 = vmax.xlane.f32.xlu0 %v1204
        %v1206 = vpop.xlane.xlu0 %1205
        %v1207 = vsub.f32 %v1199, %v1203
        %v1208 = vsub.f32 %v1200, %v1206
        %v1209 = vmul.f32 %v1207, 1.442695
        %v1210 = vpow.pop %v1209
        %v1211 = vmul.f32 %v1208, 1.442695
        %v1212 = vpow.pop %v1211
        %v1213 = vsel %vm809, %v1210, 0.0
        %1214 = vadd.xlane.f32.xlu0 %v1213
        %v1215 = vpop.xlane.xlu0 %1214
        %v1216 = vsel %vm809, %v1212, 0.0
        %1217 = vadd.xlane.f32.xlu0 %v1216
        %v1218 = vpop.xlane.xlu0 %1217
        %v1219 = vrcp.pop %v1215
        %v1220 = vrcp.pop %v1218
        %v1221 = vmul.f32 %v1210, %v1219
        %v1222 = vmul.f32 %v1212, %v1220
        %v1223 = vpack.c.bf16 %v1222, %v1221
        %1224 = vrot.lane.b32.xlu0 %v753, 40
        %v1225 = vpop.permute.xlu0 %1224
        %v1228 = vsel %vm809, %v1223, 0
        %1230 = vmatprep.subr.bf16.mxu0 0
        %1231 = vmatpush1.bf16.msra.mxu0 %v1225
        %1232 = vmatprep.subr.bf16.mxu0 0
        %1233 = vmatpush1.bf16.msra.mxu0 0
        %1234 = vmatprep.subr.bf16.mxu0 0
        %1235 = vmatpush1.bf16.msra.mxu0 0
        %1236 = vmatprep.subr.bf16.mxu0 0
        %1237 = vmatpush1.bf16.msra.mxu0 0
        %1238 = vmatprep.subr.bf16.mxu0 0
        %1239 = vmatpush1.bf16.msra.mxu0 0
        %1240 = vmatprep.subr.bf16.mxu0 0
        %1241 = vmatpush1.bf16.msra.mxu0 0
        %1242 = vmatprep.subr.bf16.mxu0 0
        %1243 = vmatpush1.bf16.msra.mxu0 0
        %1244 = vmatprep.subr.bf16.mxu0 0
        %1245 = vmatpush1.bf16.msra.mxu0 0
        %1246 = vmatprep.subr.bf16.mxu0 0
        %1247 = vmatpush1.bf16.msra.mxu0 0
        %1248 = vmatprep.subr.bf16.mxu0 0
        %1249 = vmatpush1.bf16.msra.mxu0 0
        %1250 = vmatprep.subr.bf16.mxu0 0
        %1251 = vmatpush1.bf16.msra.mxu0 0
        %1252 = vmatprep.subr.bf16.mxu0 0
        %1253 = vmatpush1.bf16.msra.mxu0 0
        %1254 = vmatprep.subr.bf16.mxu0 0
        %1255 = vmatpush1.bf16.msra.mxu0 0
        %1256 = vmatprep.subr.bf16.mxu0 0
        %1257 = vmatpush1.bf16.msra.mxu0 0
        %1258 = vmatprep.subr.bf16.mxu0 0
        %1259 = vmatpush1.bf16.msra.mxu0 0
        %1260 = vmatprep.subr.bf16.mxu0 0
        %1261 = vmatpush1.bf16.msra.mxu0 0
        %1262 = vmatprep.mubr.bf16.mxu0 0
        %1263 = vmatmul.mubr.bf16.gmra.mrb[0].mxu0 %v1228
        %v1264 = vpop.f32.mrb[0].mxu0
        %v1265 = vadd.f32 0.0, %v1264
        %v1266 = vpop.f32.mrb[0].mxu0
        %v1267 = vpop.f32.mrb[0].mxu0
        %v1268 = vadd.f32 0.0, %v1267
        %v1269 = vpop.f32.mrb[0].mxu0
        %1270 = vdwg.mxu0
        %v1271 = vpack.c.bf16 %v1268, %v1265
        %1273 = vrot.lane.b32.xlu0 %v1271, 24
        %v1274 = vpop.permute.xlu0 %1273
        %vm1276 = vcmask 261312
        %1277 = vst.msk [vmem:[#allocation2] sm:$0xff] %vm1276, %v1274
        %v1278 = vld [vmem:[#allocation2] sm:$0xff]
        %v1279 = vld [vmem:[%s3] sm:$0xf]
        %v1280 = vld [vmem:[%s3 + $0x4] sm:$0xf]
        %v1281 = vld [vmem:[%s3 + $0x8] sm:$0xf]
        %v1282 = vld [vmem:[%s3 + $0xc] sm:$0xf]
        %v1283 = vld [vmem:[#allocation6] sm:$0x1]
        %v1285 = vlaneseq
        %v1286 = vshrl.u32 %v1285, 7
        %v1287 = vsub.s32 0, %v1286
        %v1288 = vrot.slane %v1283, %v1287
        %v1294 = vunpack.c.l.b16 %v1279
        %v1295 = vunpack.c.l.b16 %v1280
        %v1296 = vunpack.c.l.b16 %v1281
        %v1297 = vunpack.c.l.b16 %v1282
        %v1298 = vpack.c.b16 %v1295, %v1294
        %v1299 = vpack.c.b16 %v1297, %v1296
        %v1303 = vsel %vm708, %v1278, 0
        %1305 = vmatprep.subr.bf16.mxu0 0
        %1306 = vmatpush1.bf16.msra.mxu0 %v1298
        %1307 = vmatprep.subr.bf16.mxu0 0
        %1308 = vmatpush1.bf16.msra.mxu0 %v1299
        %1309 = vmatprep.subr.bf16.mxu0 0
        %1310 = vmatpush1.bf16.msra.mxu0 0
        %1311 = vmatprep.subr.bf16.mxu0 0
        %1312 = vmatpush1.bf16.msra.mxu0 0
        %1313 = vmatprep.subr.bf16.mxu0 0
        %1314 = vmatpush1.bf16.msra.mxu0 0
        %1315 = vmatprep.subr.bf16.mxu0 0
        %1316 = vmatpush1.bf16.msra.mxu0 0
        %1317 = vmatprep.subr.bf16.mxu0 0
        %1318 = vmatpush1.bf16.msra.mxu0 0
        %1319 = vmatprep.subr.bf16.mxu0 0
        %1320 = vmatpush1.bf16.msra.mxu0 0
        %1321 = vmatprep.subr.bf16.mxu0 0
        %1322 = vmatpush1.bf16.msra.mxu0 0
        %1323 = vmatprep.subr.bf16.mxu0 0
        %1324 = vmatpush1.bf16.msra.mxu0 0
        %1325 = vmatprep.subr.bf16.mxu0 0
        %1326 = vmatpush1.bf16.msra.mxu0 0
        %1327 = vmatprep.subr.bf16.mxu0 0
        %1328 = vmatpush1.bf16.msra.mxu0 0
        %1329 = vmatprep.subr.bf16.mxu0 0
        %1330 = vmatpush1.bf16.msra.mxu0 0
        %1331 = vmatprep.subr.bf16.mxu0 0
        %1332 = vmatpush1.bf16.msra.mxu0 0
        %1333 = vmatprep.subr.bf16.mxu0 0
        %1334 = vmatpush1.bf16.msra.mxu0 0
        %1335 = vmatprep.subr.bf16.mxu0 0
        %1336 = vmatpush1.bf16.msra.mxu0 0
        %1337 = vmatprep.mubr.bf16.mxu0 0
        %1338 = vmatmul.mubr.bf16.gmra.mrb[0].mxu0 %v1303
        %v1339 = vpop.f32.mrb[0].mxu0
        %v1340 = vadd.f32 %v1288, %v1339
        %v1341 = vpop.f32.mrb[0].mxu0
        %v1342 = vpop.f32.mrb[0].mxu0
        %v1343 = vadd.f32 %v1288, %v1342
        %v1344 = vpop.f32.mrb[0].mxu0
        %1345 = vdwg.mxu0
        %v1346 = vadd.f32 %v682, %v1340
        %v1347 = vadd.f32 %v683, %v1343
        %v1348 = vld [vmem:[#allocation8] sm:$0x1]
        %v1349 = vld [vmem:[#allocation9] sm:$0x1]
        %v1350 = vsel %vm708, %v1346, 0.0
        %1351 = vadd.xlane.f32.xlu0 %v1350
        %v1352 = vpop.xlane.xlu0 %1351
        %v1353 = vsel %vm708, %v1347, 0.0
        %1354 = vadd.xlane.f32.xlu0 %v1353
        %v1355 = vpop.xlane.xlu0 %1354
        %v1356 = vrcp.pop 32.0
        %v1357 = vmul.f32 %v1352, %v1356
        %v1358 = vmul.f32 %v1355, %v1356
        %v1359 = vsub.f32 %v1346, %v1357
        %v1360 = vsub.f32 %v1347, %v1358
        %v1361 = vmul.f32 %v1359, %v1359
        %v1362 = vmul.f32 %v1360, %v1360
        %v1363 = vsel %vm708, %v1361, 0.0
        %1364 = vadd.xlane.f32.xlu0 %v1363
        %v1365 = vpop.xlane.xlu0 %1364
        %v1366 = vsel %vm708, %v1362, 0.0
        %1367 = vadd.xlane.f32.xlu0 %v1366
        %v1368 = vpop.xlane.xlu0 %1367
        %v1369 = vmul.f32 %v1365, %v1356
        %v1370 = vmul.f32 %v1368, %v1356
        %v1371 = vadd.f32 %v1369, 1e-05
        %v1372 = vadd.f32 %v1370, 1e-05
        %v1373 = vrsqrt.pop %v1371
        %v1374 = vrsqrt.pop %v1372
        %v1375 = vmul.f32 %v1359, %v1373
        %v1376 = vmul.f32 %v1360, %v1374
        %v1378 = vlaneseq
        %v1379 = vshrl.u32 %v1378, 7
        %v1380 = vsub.s32 0, %v1379
        %v1381 = vrot.slane %v1348, %v1380
        %v1383 = vmul.f32 %v1375, %v1381
        %v1384 = vmul.f32 %v1376, %v1381
        %v1386 = vlaneseq
        %v1387 = vshrl.u32 %v1386, 7
        %v1388 = vsub.s32 0, %v1387
        %v1389 = vrot.slane %v1349, %v1388
        %v1391 = vadd.f32 %v1383, %v1389
        %v1392 = vadd.f32 %v1384, %v1389
        %v1393 = vpack.c.bf16 %v1392, %v1391
        %v1394 = vld [vmem:[#allocation11] sm:$0xf]
        %v1395 = vld [vmem:[#allocation11 + $0x4] sm:$0xf]
        %v1396 = vld [vmem:[#allocation11 + $0x8] sm:$0xf]
        %v1397 = vld [vmem:[#allocation11 + $0xc] sm:$0xf]
        %v1398 = vld [vmem:[#allocation12] sm:$0x1]
        %v1400 = vlaneseq
        %v1401 = vshrl.u32 %v1400, 7
        %v1402 = vsub.s32 0, %v1401
        %v1403 = vrot.slane %v1398, %v1402
        %v1409 = vunpack.c.l.b16 %v1394
        %v1410 = vunpack.c.l.b16 %v1395
        %v1411 = vunpack.c.l.b16 %v1396
        %v1412 = vunpack.c.l.b16 %v1397
        %v1413 = vpack.c.b16 %v1410, %v1409
        %v1414 = vpack.c.b16 %v1412, %v1411
        %v1418 = vsel %vm708, %v1393, 0
        %1420 = vmatprep.subr.bf16.mxu0 0
        %1421 = vmatpush1.bf16.msra.mxu0 %v1413
        %1422 = vmatprep.subr.bf16.mxu0 0
        %1423 = vmatpush1.bf16.msra.mxu0 %v1414
        %1424 = vmatprep.subr.bf16.mxu0 0
        %1425 = vmatpush1.bf16.msra.mxu0 0
        %1426 = vmatprep.subr.bf16.mxu0 0
        %1427 = vmatpush1.bf16.msra.mxu0 0
        %1428 = vmatprep.subr.bf16.mxu0 0
        %1429 = vmatpush1.bf16.msra.mxu0 0
        %1430 = vmatprep.subr.bf16.mxu0 0
        %1431 = vmatpush1.bf16.msra.mxu0 0
        %1432 = vmatprep.subr.bf16.mxu0 0
        %1433 = vmatpush1.bf16.msra.mxu0 0
        %1434 = vmatprep.subr.bf16.mxu0 0
        %1435 = vmatpush1.bf16.msra.mxu0 0
        %1436 = vmatprep.subr.bf16.mxu0 0
        %1437 = vmatpush1.bf16.msra.mxu0 0
        %1438 = vmatprep.subr.bf16.mxu0 0
        %1439 = vmatpush1.bf16.msra.mxu0 0
        %1440 = vmatprep.subr.bf16.mxu0 0
        %1441 = vmatpush1.bf16.msra.mxu0 0
        %1442 = vmatprep.subr.bf16.mxu0 0
        %1443 = vmatpush1.bf16.msra.mxu0 0
        %1444 = vmatprep.subr.bf16.mxu0 0
        %1445 = vmatpush1.bf16.msra.mxu0 0
        %1446 = vmatprep.subr.bf16.mxu0 0
        %1447 = vmatpush1.bf16.msra.mxu0 0
        %1448 = vmatprep.subr.bf16.mxu0 0
        %1449 = vmatpush1.bf16.msra.mxu0 0
        %1450 = vmatprep.subr.bf16.mxu0 0
        %1451 = vmatpush1.bf16.msra.mxu0 0
        %1452 = vmatprep.mubr.bf16.mxu0 0
        %1453 = vmatmul.mubr.bf16.gmra.mrb[0].mxu0 %v1418
        %v1454 = vpop.f32.mrb[0].mxu0
        %v1455 = vadd.f32 %v1403, %v1454
        %v1456 = vpop.f32.mrb[0].mxu0
        %v1457 = vpop.f32.mrb[0].mxu0
        %v1458 = vadd.f32 %v1403, %v1457
        %v1459 = vpop.f32.mrb[0].mxu0
        %1460 = vdwg.mxu0
        %v1461 = vmul.f32 %v1455, 0.5
        %v1462 = vmul.f32 %v1458, 0.5
        %v1463 = vmul.f32 %v1455, 0.70710677
        %v1464 = vmul.f32 %v1458, 0.70710677
        %v1465 = verf.f32.pop %v1463
        %v1466 = verf.f32.pop %v1464
        %v1467 = vadd.f32 %v1465, 1.0
        %v1468 = vadd.f32 %v1466, 1.0
        %v1469 = vmul.f32 %v1461, %v1467
        %v1470 = vmul.f32 %v1462, %v1468
        %v1471 = vpack.c.bf16 %v1470, %v1469
        %v1472 = vld [vmem:[%s9] sm:$0xf]
        %v1473 = vld [vmem:[%s9 + $0x4] sm:$0xf]
        %v1474 = vld [vmem:[%s9 + $0x8] sm:$0xf]
        %v1475 = vld [vmem:[%s9 + $0xc] sm:$0xf]
        %v1476 = vld [vmem:[%s9 + $0x10] sm:$0xf]
        %v1477 = vld [vmem:[%s9 + $0x14] sm:$0xf]
        %v1478 = vld [vmem:[%s9 + $0x18] sm:$0xf]
        %v1479 = vld [vmem:[%s9 + $0x1c] sm:$0xf]
        %v1480 = vld [vmem:[#allocation14] sm:$0x1]
        %v1482 = vlaneseq
        %v1483 = vshrl.u32 %v1482, 7
        %v1484 = vsub.s32 0, %v1483
        %v1485 = vrot.slane %v1480, %v1484
        %v1495 = vunpack.c.l.b16 %v1472
        %v1496 = vunpack.c.l.b16 %v1473
        %v1497 = vunpack.c.l.b16 %v1474
        %v1498 = vunpack.c.l.b16 %v1475
        %v1499 = vunpack.c.l.b16 %v1476
        %v1500 = vunpack.c.l.b16 %v1477
        %v1501 = vunpack.c.l.b16 %v1478
        %v1502 = vunpack.c.l.b16 %v1479
        %v1503 = vpack.c.b16 %v1496, %v1495
        %v1504 = vpack.c.b16 %v1498, %v1497
        %v1505 = vpack.c.b16 %v1500, %v1499
        %v1506 = vpack.c.b16 %v1502, %v1501
        %vm1511 = vcmask 523264
        %v1513 = vsel %vm1511, %v1471, 0
        %1515 = vmatprep.subr.bf16.mxu0 0
        %1516 = vmatpush1.bf16.msra.mxu0 %v1503
        %1517 = vmatprep.subr.bf16.mxu0 0
        %1518 = vmatpush1.bf16.msra.mxu0 %v1504
        %1519 = vmatprep.subr.bf16.mxu0 0
        %1520 = vmatpush1.bf16.msra.mxu0 %v1505
        %1521 = vmatprep.subr.bf16.mxu0 0
        %1522 = vmatpush1.bf16.msra.mxu0 %v1506
        %1523 = vmatprep.subr.bf16.mxu0 0
        %1524 = vmatpush1.bf16.msra.mxu0 0
        %1525 = vmatprep.subr.bf16.mxu0 0
        %1526 = vmatpush1.bf16.msra.mxu0 0
        %1527 = vmatprep.subr.bf16.mxu0 0
        %1528 = vmatpush1.bf16.msra.mxu0 0
        %1529 = vmatprep.subr.bf16.mxu0 0
        %1530 = vmatpush1.bf16.msra.mxu0 0
        %1531 = vmatprep.subr.bf16.mxu0 0
        %1532 = vmatpush1.bf16.msra.mxu0 0
        %1533 = vmatprep.subr.bf16.mxu0 0
        %1534 = vmatpush1.bf16.msra.mxu0 0
        %1535 = vmatprep.subr.bf16.mxu0 0
        %1536 = vmatpush1.bf16.msra.mxu0 0
        %1537 = vmatprep.subr.bf16.mxu0 0
        %1538 = vmatpush1.bf16.msra.mxu0 0
        %1539 = vmatprep.subr.bf16.mxu0 0
        %1540 = vmatpush1.bf16.msra.mxu0 0
        %1541 = vmatprep.subr.bf16.mxu0 0
        %1542 = vmatpush1.bf16.msra.mxu0 0
        %1543 = vmatprep.subr.bf16.mxu0 0
        %1544 = vmatpush1.bf16.msra.mxu0 0
        %1545 = vmatprep.subr.bf16.mxu0 0
        %1546 = vmatpush1.bf16.msra.mxu0 0
        %1547 = vmatprep.mubr.bf16.mxu0 0
        %1548 = vmatmul.mubr.bf16.gmra.mrb[0].mxu0 %v1513
        %v1549 = vpop.f32.mrb[0].mxu0
        %v1550 = vadd.f32 %v1485, %v1549
        %v1551 = vpop.f32.mrb[0].mxu0
        %v1552 = vpop.f32.mrb[0].mxu0
        %v1553 = vadd.f32 %v1485, %v1552
        %v1554 = vpop.f32.mrb[0].mxu0
        %1555 = vdwg.mxu0
        %v1556 = vadd.f32 %v1391, %v1550
        %v1557 = vadd.f32 %v1392, %v1553
        %v1558 = vld [vmem:[#allocation15] sm:$0x1]
        %v1559 = vld [vmem:[#allocation17] sm:$0x1]
        %v1560 = vsel %vm708, %v1556, 0.0
        %1561 = vadd.xlane.f32.xlu0 %v1560
        %v1562 = vpop.xlane.xlu0 %1561
        %v1563 = vsel %vm708, %v1557, 0.0
        %1564 = vadd.xlane.f32.xlu0 %v1563
        %v1565 = vpop.xlane.xlu0 %1564
        %v1566 = vmul.f32 %v1562, %v1356
        %v1567 = vmul.f32 %v1565, %v1356
        %v1568 = vsub.f32 %v1556, %v1566
        %v1569 = vsub.f32 %v1557, %v1567
        %v1570 = vmul.f32 %v1568, %v1568
        %v1571 = vmul.f32 %v1569, %v1569
        %v1572 = vsel %vm708, %v1570, 0.0
        %1573 = vadd.xlane.f32.xlu0 %v1572
        %v1574 = vpop.xlane.xlu0 %1573
        %v1575 = vsel %vm708, %v1571, 0.0
        %1576 = vadd.xlane.f32.xlu0 %v1575
        %v1577 = vpop.xlane.xlu0 %1576
        %v1578 = vmul.f32 %v1574, %v1356
        %v1579 = vmul.f32 %v1577, %v1356
        %v1580 = vadd.f32 %v1578, 1e-05
        %v1581 = vadd.f32 %v1579, 1e-05
        %v1582 = vrsqrt.pop %v1580
        %v1583 = vrsqrt.pop %v1581
        %v1584 = vmul.f32 %v1568, %v1582
        %v1585 = vmul.f32 %v1569, %v1583
        %v1587 = vlaneseq
        %v1588 = vshrl.u32 %v1587, 7
        %v1589 = vsub.s32 0, %v1588
        %v1590 = vrot.slane %v1558, %v1589
        %v1592 = vmul.f32 %v1584, %v1590
        %v1593 = vmul.f32 %v1585, %v1590
        %v1595 = vlaneseq
        %v1596 = vshrl.u32 %v1595, 7
        %v1597 = vsub.s32 0, %v1596
        %v1598 = vrot.slane %v1559, %v1597
        %v1600 = vadd.f32 %v1592, %v1598
        %v1601 = vadd.f32 %v1593, %v1598
        %v1602 = vpack.c.bf16 %v1601, %v1600
        %s1603 = scalar_lea.vmem %s1, 16
        %v1604 = vld [vmem:[%s1603] sm:$0xf]
        %v1605 = vld [vmem:[%s1603 + $0x4] sm:$0xf]
        %v1606 = vld [vmem:[%s1603 + $0x8] sm:$0xf]
        %v1607 = vld [vmem:[%s1603 + $0xc] sm:$0xf]
        %s1608 = scalar_lea.vmem [#allocation3], 1
        %v1609 = vld [vmem:[%s1608] sm:$0x1]
        %v1611 = vlaneseq
        %v1612 = vshrl.u32 %v1611, 7
        %v1613 = vsub.s32 0, %v1612
        %v1614 = vrot.slane %v1609, %v1613
        %v1620 = vunpack.c.l.b16 %v1604
        %v1621 = vunpack.c.l.b16 %v1605
        %v1622 = vunpack.c.l.b16 %v1606
        %v1623 = vunpack.c.l.b16 %v1607
        %v1624 = vpack.c.b16 %v1621, %v1620
        %v1625 = vpack.c.b16 %v1623, %v1622
        %v1629 = vsel %vm708, %v1602, 0
        %1631 = vmatprep.subr.bf16.mxu0 0
        %1632 = vmatpush1.bf16.msra.mxu0 %v1624
        %1633 = vmatprep.subr.bf16.mxu0 0
        %1634 = vmatpush1.bf16.msra.mxu0 %v1625
        %1635 = vmatprep.subr.bf16.mxu0 0
        %1636 = vmatpush1.bf16.msra.mxu0 0
        %1637 = vmatprep.subr.bf16.mxu0 0
        %1638 = vmatpush1.bf16.msra.mxu0 0
        %1639 = vmatprep.subr.bf16.mxu0 0
        %1640 = vmatpush1.bf16.msra.mxu0 0
        %1641 = vmatprep.subr.bf16.mxu0 0
        %1642 = vmatpush1.bf16.msra.mxu0 0
        %1643 = vmatprep.subr.bf16.mxu0 0
        %1644 = vmatpush1.bf16.msra.mxu0 0
        %1645 = vmatprep.subr.bf16.mxu0 0
        %1646 = vmatpush1.bf16.msra.mxu0 0
        %1647 = vmatprep.subr.bf16.mxu0 0
        %1648 = vmatpush1.bf16.msra.mxu0 0
        %1649 = vmatprep.subr.bf16.mxu0 0
        %1650 = vmatpush1.bf16.msra.mxu0 0
        %1651 = vmatprep.subr.bf16.mxu0 0
        %1652 = vmatpush1.bf16.msra.mxu0 0
        %1653 = vmatprep.subr.bf16.mxu0 0
        %1654 = vmatpush1.bf16.msra.mxu0 0
        %1655 = vmatprep.subr.bf16.mxu0 0
        %1656 = vmatpush1.bf16.msra.mxu0 0
        %1657 = vmatprep.subr.bf16.mxu0 0
        %1658 = vmatpush1.bf16.msra.mxu0 0
        %1659 = vmatprep.subr.bf16.mxu0 0
        %1660 = vmatpush1.bf16.msra.mxu0 0
        %1661 = vmatprep.subr.bf16.mxu0 0
        %1662 = vmatpush1.bf16.msra.mxu0 0
        %1663 = vmatprep.mubr.bf16.mxu0 0
        %1664 = vmatmul.mubr.bf16.gmra.mrb[0].mxu0 %v1629
        %v1665 = vpop.f32.mrb[0].mxu0
        %v1666 = vadd.f32 %v1614, %v1665
        %v1667 = vpop.f32.mrb[0].mxu0
        %v1668 = vpop.f32.mrb[0].mxu0
        %v1669 = vadd.f32 %v1614, %v1668
        %v1670 = vpop.f32.mrb[0].mxu0
        %1671 = vdwg.mxu0
        %v1672 = vpack.c.bf16 %v1669, %v1666
        %1674 = vrot.lane.b32.xlu0 %v1672, 96
        %v1675 = vpop.permute.xlu0 %1674
        %v1677 = vsel %vm757, %v1672, 0
        %v1680 = vsel %vm757, %v1675, 0
        %1682 = vmatprep.subr.bf16.mxu0 0
        %1683 = vmatpush1.bf16.xpose.msra.mxu0 %v1680
        %1684 = vmatprep.subr.bf16.mxu0 0
        %1685 = vmatpush1.bf16.xpose.msra.mxu0 0
        %1686 = vmatprep.subr.bf16.mxu0 0
        %1687 = vmatpush1.bf16.xpose.msra.mxu0 0
        %1688 = vmatprep.subr.bf16.mxu0 0
        %1689 = vmatpush1.bf16.xpose.msra.mxu0 0
        %1690 = vmatprep.subr.bf16.mxu0 0
        %1691 = vmatpush1.bf16.xpose.msra.mxu0 0
        %1692 = vmatprep.subr.bf16.mxu0 0
        %1693 = vmatpush1.bf16.xpose.msra.mxu0 0
        %1694 = vmatprep.subr.bf16.mxu0 0
        %1695 = vmatpush1.bf16.xpose.msra.mxu0 0
        %1696 = vmatprep.subr.bf16.mxu0 0
        %1697 = vmatpush1.bf16.xpose.msra.mxu0 0
        %1698 = vmatprep.subr.bf16.mxu0 0
        %1699 = vmatpush1.bf16.xpose.msra.mxu0 0
        %1700 = vmatprep.subr.bf16.mxu0 0
        %1701 = vmatpush1.bf16.xpose.msra.mxu0 0
        %1702 = vmatprep.subr.bf16.mxu0 0
        %1703 = vmatpush1.bf16.xpose.msra.mxu0 0
        %1704 = vmatprep.subr.bf16.mxu0 0
        %1705 = vmatpush1.bf16.xpose.msra.mxu0 0
        %1706 = vmatprep.subr.bf16.mxu0 0
        %1707 = vmatpush1.bf16.xpose.msra.mxu0 0
        %1708 = vmatprep.subr.bf16.mxu0 0
        %1709 = vmatpush1.bf16.xpose.msra.mxu0 0
        %1710 = vmatprep.subr.bf16.mxu0 0
        %1711 = vmatpush1.bf16.xpose.msra.mxu0 0
        %1712 = vmatprep.subr.bf16.mxu0 0
        %1713 = vmatpush1.bf16.xpose.msra.mxu0 0
        %1714 = vmatprep.mubr.bf16.mxu0 0
        %1715 = vmatmul.mubr.bf16.gmra.mrb[0].mxu0 %v1677
        %v1716 = vpop.f32.mrb[0].mxu0
        %v1717 = vadd.f32 0.0, %v1716
        %v1718 = vpop.f32.mrb[0].mxu0
        %v1719 = vpop.f32.mrb[0].mxu0
        %v1720 = vadd.f32 0.0, %v1719
        %v1721 = vpop.f32.mrb[0].mxu0
        %1722 = vdwg.mxu0
        %v1723 = vmul.f32 %v1717, 0.35355338
        %v1724 = vmul.f32 %v1720, 0.35355338
        %v1725 = vadd.f32 %v1723, %v681
        %v1726 = vadd.f32 %v1724, %v681
        %v1727 = vsel %vm809, %v1725, -inf
        %1728 = vmax.xlane.f32.xlu0 %v1727
        %v1729 = vpop.xlane.xlu0 %1728
        %v1730 = vsel %vm809, %v1726, -inf
        %1731 = vmax.xlane.f32.xlu0 %v1730
        %v1732 = vpop.xlane.xlu0 %1731
        %v1733 = vsub.f32 %v1725, %v1729
        %v1734 = vsub.f32 %v1726, %v1732
        %v1735 = vmul.f32 %v1733, 1.442695
        %v1736 = vpow.pop %v1735
        %v1737 = vmul.f32 %v1734, 1.442695
        %v1738 = vpow.pop %v1737
        %v1739 = vsel %vm809, %v1736, 0.0
        %1740 = vadd.xlane.f32.xlu0 %v1739
        %v1741 = vpop.xlane.xlu0 %1740
        %v1742 = vsel %vm809, %v1738, 0.0
        %1743 = vadd.xlane.f32.xlu0 %v1742
        %v1744 = vpop.xlane.xlu0 %1743
        %v1745 = vrcp.pop %v1741
        %v1746 = vrcp.pop %v1744
        %v1747 = vmul.f32 %v1736, %v1745
        %v1748 = vmul.f32 %v1738, %v1746
        %v1749 = vpack.c.bf16 %v1748, %v1747
        %1750 = vrot.lane.b32.xlu0 %v1672, 64
        %v1751 = vpop.permute.xlu0 %1750
        %v1754 = vsel %vm809, %v1749, 0
        %1756 = vmatprep.subr.bf16.mxu0 0
        %1757 = vmatpush1.bf16.msra.mxu0 %v1751
        %1758 = vmatprep.subr.bf16.mxu0 0
        %1759 = vmatpush1.bf16.msra.mxu0 0
        %1760 = vmatprep.subr.bf16.mxu0 0
        %1761 = vmatpush1.bf16.msra.mxu0 0
        %1762 = vmatprep.subr.bf16.mxu0 0
        %1763 = vmatpush1.bf16.msra.mxu0 0
        %1764 = vmatprep.subr.bf16.mxu0 0
        %1765 = vmatpush1.bf16.msra.mxu0 0
        %1766 = vmatprep.subr.bf16.mxu0 0
        %1767 = vmatpush1.bf16.msra.mxu0 0
        %1768 = vmatprep.subr.bf16.mxu0 0
        %1769 = vmatpush1.bf16.msra.mxu0 0
        %1770 = vmatprep.subr.bf16.mxu0 0
        %1771 = vmatpush1.bf16.msra.mxu0 0
        %1772 = vmatprep.subr.bf16.mxu0 0
        %1773 = vmatpush1.bf16.msra.mxu0 0
        %1774 = vmatprep.subr.bf16.mxu0 0
        %1775 = vmatpush1.bf16.msra.mxu0 0
        %1776 = vmatprep.subr.bf16.mxu0 0
        %1777 = vmatpush1.bf16.msra.mxu0 0
        %1778 = vmatprep.subr.bf16.mxu0 0
        %1779 = vmatpush1.bf16.msra.mxu0 0
        %1780 = vmatprep.subr.bf16.mxu0 0
        %1781 = vmatpush1.bf16.msra.mxu0 0
        %1782 = vmatprep.subr.bf16.mxu0 0
        %1783 = vmatpush1.bf16.msra.mxu0 0
        %1784 = vmatprep.subr.bf16.mxu0 0
        %1785 = vmatpush1.bf16.msra.mxu0 0
        %1786 = vmatprep.subr.bf16.mxu0 0
        %1787 = vmatpush1.bf16.msra.mxu0 0
        %1788 = vmatprep.mubr.bf16.mxu0 0
        %1789 = vmatmul.mubr.bf16.gmra.mrb[0].mxu0 %v1754
        %v1790 = vpop.f32.mrb[0].mxu0
        %v1791 = vadd.f32 0.0, %v1790
        %v1792 = vpop.f32.mrb[0].mxu0
        %v1793 = vpop.f32.mrb[0].mxu0
        %v1794 = vadd.f32 0.0, %v1793
        %v1795 = vpop.f32.mrb[0].mxu0
        %1796 = vdwg.mxu0
        %v1797 = vpack.c.bf16 %v1794, %v1791
        %1798 = vst.msk [vmem:[#allocation2] sm:$0xff] %vm757, %v1797
        %1799 = vrot.lane.b32.xlu0 %v1672, 120
        %v1800 = vpop.permute.xlu0 %1799
        %1801 = vrot.lane.b32.xlu0 %v1672, 88
        %v1802 = vpop.permute.xlu0 %1801
        %v1804 = vsel %vm757, %v1800, 0
        %v1807 = vsel %vm757, %v1802, 0
        %1809 = vmatprep.subr.bf16.mxu0 0
        %1810 = vmatpush1.bf16.xpose.msra.mxu0 %v1807
        %1811 = vmatprep.subr.bf16.mxu0 0
        %1812 = vmatpush1.bf16.xpose.msra.mxu0 0
        %1813 = vmatprep.subr.bf16.mxu0 0
        %1814 = vmatpush1.bf16.xpose.msra.mxu0 0
        %1815 = vmatprep.subr.bf16.mxu0 0
        %1816 = vmatpush1.bf16.xpose.msra.mxu0 0
        %1817 = vmatprep.subr.bf16.mxu0 0
        %1818 = vmatpush1.bf16.xpose.msra.mxu0 0
        %1819 = vmatprep.subr.bf16.mxu0 0
        %1820 = vmatpush1.bf16.xpose.msra.mxu0 0
        %1821 = vmatprep.subr.bf16.mxu0 0
        %1822 = vmatpush1.bf16.xpose.msra.mxu0 0
        %1823 = vmatprep.subr.bf16.mxu0 0
        %1824 = vmatpush1.bf16.xpose.msra.mxu0 0
        %1825 = vmatprep.subr.bf16.mxu0 0
        %1826 = vmatpush1.bf16.xpose.msra.mxu0 0
        %1827 = vmatprep.subr.bf16.mxu0 0
        %1828 = vmatpush1.bf16.xpose.msra.mxu0 0
        %1829 = vmatprep.subr.bf16.mxu0 0
        %1830 = vmatpush1.bf16.xpose.msra.mxu0 0
        %1831 = vmatprep.subr.bf16.mxu0 0
        %1832 = vmatpush1.bf16.xpose.msra.mxu0 0
        %1833 = vmatprep.subr.bf16.mxu0 0
        %1834 = vmatpush1.bf16.xpose.msra.mxu0 0
        %1835 = vmatprep.subr.bf16.mxu0 0
        %1836 = vmatpush1.bf16.xpose.msra.mxu0 0
        %1837 = vmatprep.subr.bf16.mxu0 0
        %1838 = vmatpush1.bf16.xpose.msra.mxu0 0
        %1839 = vmatprep.subr.bf16.mxu0 0
        %1840 = vmatpush1.bf16.xpose.msra.mxu0 0
        %1841 = vmatprep.mubr.bf16.mxu0 0
        %1842 = vmatmul.mubr.bf16.gmra.mrb[0].mxu0 %v1804
        %v1843 = vpop.f32.mrb[0].mxu0
        %v1844 = vadd.f32 0.0, %v1843
        %v1845 = vpop.f32.mrb[0].mxu0
        %v1846 = vpop.f32.mrb[0].mxu0
        %v1847 = vadd.f32 0.0, %v1846
        %v1848 = vpop.f32.mrb[0].mxu0
        %1849 = vdwg.mxu0
        %v1850 = vmul.f32 %v1844, 0.35355338
        %v1851 = vmul.f32 %v1847, 0.35355338
        %v1852 = vadd.f32 %v1850, %v681
        %v1853 = vadd.f32 %v1851, %v681
        %v1854 = vsel %vm809, %v1852, -inf
        %1855 = vmax.xlane.f32.xlu0 %v1854
        %v1856 = vpop.xlane.xlu0 %1855
        %v1857 = vsel %vm809, %v1853, -inf
        %1858 = vmax.xlane.f32.xlu0 %v1857
        %v1859 = vpop.xlane.xlu0 %1858
        %v1860 = vsub.f32 %v1852, %v1856
        %v1861 = vsub.f32 %v1853, %v1859
        %v1862 = vmul.f32 %v1860, 1.442695
        %v1863 = vpow.pop %v1862
        %v1864 = vmul.f32 %v1861, 1.442695
        %v1865 = vpow.pop %v1864
        %v1866 = vsel %vm809, %v1863, 0.0
        %1867 = vadd.xlane.f32.xlu0 %v1866
        %v1868 = vpop.xlane.xlu0 %1867
        %v1869 = vsel %vm809, %v1865, 0.0
        %1870 = vadd.xlane.f32.xlu0 %v1869
        %v1871 = vpop.xlane.xlu0 %1870
        %v1872 = vrcp.pop %v1868
        %v1873 = vrcp.pop %v1871
        %v1874 = vmul.f32 %v1863, %v1872
        %v1875 = vmul.f32 %v1865, %v1873
        %v1876 = vpack.c.bf16 %v1875, %v1874
        %1877 = vrot.lane.b32.xlu0 %v1672, 56
        %v1878 = vpop.permute.xlu0 %1877
        %v1881 = vsel %vm809, %v1876, 0
        %1883 = vmatprep.subr.bf16.mxu0 0
        %1884 = vmatpush1.bf16.msra.mxu0 %v1878
        %1885 = vmatprep.subr.bf16.mxu0 0
        %1886 = vmatpush1.bf16.msra.mxu0 0
        %1887 = vmatprep.subr.bf16.mxu0 0
        %1888 = vmatpush1.bf16.msra.mxu0 0
        %1889 = vmatprep.subr.bf16.mxu0 0
        %1890 = vmatpush1.bf16.msra.mxu0 0
        %1891 = vmatprep.subr.bf16.mxu0 0
        %1892 = vmatpush1.bf16.msra.mxu0 0
        %1893 = vmatprep.subr.bf16.mxu0 0
        %1894 = vmatpush1.bf16.msra.mxu0 0
        %1895 = vmatprep.subr.bf16.mxu0 0
        %1896 = vmatpush1.bf16.msra.mxu0 0
        %1897 = vmatprep.subr.bf16.mxu0 0
        %1898 = vmatpush1.bf16.msra.mxu0 0
        %1899 = vmatprep.subr.bf16.mxu0 0
        %1900 = vmatpush1.bf16.msra.mxu0 0
        %1901 = vmatprep.subr.bf16.mxu0 0
        %1902 = vmatpush1.bf16.msra.mxu0 0
        %1903 = vmatprep.subr.bf16.mxu0 0
        %1904 = vmatpush1.bf16.msra.mxu0 0
        %1905 = vmatprep.subr.bf16.mxu0 0
        %1906 = vmatpush1.bf16.msra.mxu0 0
        %1907 = vmatprep.subr.bf16.mxu0 0
        %1908 = vmatpush1.bf16.msra.mxu0 0
        %1909 = vmatprep.subr.bf16.mxu0 0
        %1910 = vmatpush1.bf16.msra.mxu0 0
        %1911 = vmatprep.subr.bf16.mxu0 0
        %1912 = vmatpush1.bf16.msra.mxu0 0
        %1913 = vmatprep.subr.bf16.mxu0 0
        %1914 = vmatpush1.bf16.msra.mxu0 0
        %1915 = vmatprep.mubr.bf16.mxu0 0
        %1916 = vmatmul.mubr.bf16.gmra.mrb[0].mxu0 %v1881
        %v1917 = vpop.f32.mrb[0].mxu0
        %v1918 = vadd.f32 0.0, %v1917
        %v1919 = vpop.f32.mrb[0].mxu0
        %v1920 = vpop.f32.mrb[0].mxu0
        %v1921 = vadd.f32 0.0, %v1920
        %v1922 = vpop.f32.mrb[0].mxu0
        %1923 = vdwg.mxu0
        %v1924 = vpack.c.bf16 %v1921, %v1918
        %1926 = vrot.lane.b32.xlu0 %v1924, 8
        %v1927 = vpop.permute.xlu0 %1926
        %1929 = vst.msk [vmem:[#allocation2] sm:$0xff] %vm1012, %v1927
        %1930 = vrot.lane.b32.xlu0 %v1672, 112
        %v1931 = vpop.permute.xlu0 %1930
        %1932 = vrot.lane.b32.xlu0 %v1672, 80
        %v1933 = vpop.permute.xlu0 %1932
        %v1935 = vsel %vm757, %v1931, 0
        %v1938 = vsel %vm757, %v1933, 0
        %1940 = vmatprep.subr.bf16.mxu0 0
        %1941 = vmatpush1.bf16.xpose.msra.mxu0 %v1938
        %1942 = vmatprep.subr.bf16.mxu0 0
        %1943 = vmatpush1.bf16.xpose.msra.mxu0 0
        %1944 = vmatprep.subr.bf16.mxu0 0
        %1945 = vmatpush1.bf16.xpose.msra.mxu0 0
        %1946 = vmatprep.subr.bf16.mxu0 0
        %1947 = vmatpush1.bf16.xpose.msra.mxu0 0
        %1948 = vmatprep.subr.bf16.mxu0 0
        %1949 = vmatpush1.bf16.xpose.msra.mxu0 0
        %1950 = vmatprep.subr.bf16.mxu0 0
        %1951 = vmatpush1.bf16.xpose.msra.mxu0 0
        %1952 = vmatprep.subr.bf16.mxu0 0
        %1953 = vmatpush1.bf16.xpose.msra.mxu0 0
        %1954 = vmatprep.subr.bf16.mxu0 0
        %1955 = vmatpush1.bf16.xpose.msra.mxu0 0
        %1956 = vmatprep.subr.bf16.mxu0 0
        %1957 = vmatpush1.bf16.xpose.msra.mxu0 0
        %1958 = vmatprep.subr.bf16.mxu0 0
        %1959 = vmatpush1.bf16.xpose.msra.mxu0 0
        %1960 = vmatprep.subr.bf16.mxu0 0
        %1961 = vmatpush1.bf16.xpose.msra.mxu0 0
        %1962 = vmatprep.subr.bf16.mxu0 0
        %1963 = vmatpush1.bf16.xpose.msra.mxu0 0
        %1964 = vmatprep.subr.bf16.mxu0 0
        %1965 = vmatpush1.bf16.xpose.msra.mxu0 0
        %1966 = vmatprep.subr.bf16.mxu0 0
        %1967 = vmatpush1.bf16.xpose.msra.mxu0 0
        %1968 = vmatprep.subr.bf16.mxu0 0
        %1969 = vmatpush1.bf16.xpose.msra.mxu0 0
        %1970 = vmatprep.subr.bf16.mxu0 0
        %1971 = vmatpush1.bf16.xpose.msra.mxu0 0
        %1972 = vmatprep.mubr.bf16.mxu0 0
        %1973 = vmatmul.mubr.bf16.gmra.mrb[0].mxu0 %v1935
        %v1974 = vpop.f32.mrb[0].mxu0
        %v1975 = vadd.f32 0.0, %v1974
        %v1976 = vpop.f32.mrb[0].mxu0
        %v1977 = vpop.f32.mrb[0].mxu0
        %v1978 = vadd.f32 0.0, %v1977
        %v1979 = vpop.f32.mrb[0].mxu0
        %1980 = vdwg.mxu0
        %v1981 = vmul.f32 %v1975, 0.35355338
        %v1982 = vmul.f32 %v1978, 0.35355338
        %v1983 = vadd.f32 %v1981, %v681
        %v1984 = vadd.f32 %v1982, %v681
        %v1985 = vsel %vm809, %v1983, -inf
        %1986 = vmax.xlane.f32.xlu0 %v1985
        %v1987 = vpop.xlane.xlu0 %1986
        %v1988 = vsel %vm809, %v1984, -inf
        %1989 = vmax.xlane.f32.xlu0 %v1988
        %v1990 = vpop.xlane.xlu0 %1989
        %v1991 = vsub.f32 %v1983, %v1987
        %v1992 = vsub.f32 %v1984, %v1990
        %v1993 = vmul.f32 %v1991, 1.442695
        %v1994 = vpow.pop %v1993
        %v1995 = vmul.f32 %v1992, 1.442695
        %v1996 = vpow.pop %v1995
        %v1997 = vsel %vm809, %v1994, 0.0
        %1998 = vadd.xlane.f32.xlu0 %v1997
        %v1999 = vpop.xlane.xlu0 %1998
        %v2000 = vsel %vm809, %v1996, 0.0
        %2001 = vadd.xlane.f32.xlu0 %v2000
        %v2002 = vpop.xlane.xlu0 %2001
        %v2003 = vrcp.pop %v1999
        %v2004 = vrcp.pop %v2002
        %v2005 = vmul.f32 %v1994, %v2003
        %v2006 = vmul.f32 %v1996, %v2004
        %v2007 = vpack.c.bf16 %v2006, %v2005
        %2008 = vrot.lane.b32.xlu0 %v1672, 48
        %v2009 = vpop.permute.xlu0 %2008
        %v2012 = vsel %vm809, %v2007, 0
        %2014 = vmatprep.subr.bf16.mxu0 0
        %2015 = vmatpush1.bf16.msra.mxu0 %v2009
        %2016 = vmatprep.subr.bf16.mxu0 0
        %2017 = vmatpush1.bf16.msra.mxu0 0
        %2018 = vmatprep.subr.bf16.mxu0 0
        %2019 = vmatpush1.bf16.msra.mxu0 0
        %2020 = vmatprep.subr.bf16.mxu0 0
        %2021 = vmatpush1.bf16.msra.mxu0 0
        %2022 = vmatprep.subr.bf16.mxu0 0
        %2023 = vmatpush1.bf16.msra.mxu0 0
        %2024 = vmatprep.subr.bf16.mxu0 0
        %2025 = vmatpush1.bf16.msra.mxu0 0
        %2026 = vmatprep.subr.bf16.mxu0 0
        %2027 = vmatpush1.bf16.msra.mxu0 0
        %2028 = vmatprep.subr.bf16.mxu0 0
        %2029 = vmatpush1.bf16.msra.mxu0 0
        %2030 = vmatprep.subr.bf16.mxu0 0
        %2031 = vmatpush1.bf16.msra.mxu0 0
        %2032 = vmatprep.subr.bf16.mxu0 0
        %2033 = vmatpush1.bf16.msra.mxu0 0
        %2034 = vmatprep.subr.bf16.mxu0 0
        %2035 = vmatpush1.bf16.msra.mxu0 0
        %2036 = vmatprep.subr.bf16.mxu0 0
        %2037 = vmatpush1.bf16.msra.mxu0 0
        %2038 = vmatprep.subr.bf16.mxu0 0
        %2039 = vmatpush1.bf16.msra.mxu0 0
        %2040 = vmatprep.subr.bf16.mxu0 0
        %2041 = vmatpush1.bf16.msra.mxu0 0
        %2042 = vmatprep.subr.bf16.mxu0 0
        %2043 = vmatpush1.bf16.msra.mxu0 0
        %2044 = vmatprep.subr.bf16.mxu0 0
        %2045 = vmatpush1.bf16.msra.mxu0 0
        %2046 = vmatprep.mubr.bf16.mxu0 0
        %2047 = vmatmul.mubr.bf16.gmra.mrb[0].mxu0 %v2012
        %v2048 = vpop.f32.mrb[0].mxu0
        %v2049 = vadd.f32 0.0, %v2048
        %v2050 = vpop.f32.mrb[0].mxu0
        %v2051 = vpop.f32.mrb[0].mxu0
        %v2052 = vadd.f32 0.0, %v2051
        %v2053 = vpop.f32.mrb[0].mxu0
        %2054 = vdwg.mxu0
        %v2055 = vpack.c.bf16 %v2052, %v2049
        %2057 = vrot.lane.b32.xlu0 %v2055, 16
        %v2058 = vpop.permute.xlu0 %2057
        %2060 = vst.msk [vmem:[#allocation2] sm:$0xff] %vm1144, %v2058
        %2061 = vrot.lane.b32.xlu0 %v1672, 104
        %v2062 = vpop.permute.xlu0 %2061
        %2063 = vrot.lane.b32.xlu0 %v1672, 72
        %v2064 = vpop.permute.xlu0 %2063
        %v2066 = vsel %vm757, %v2062, 0
        %v2069 = vsel %vm757, %v2064, 0
        %2071 = vmatprep.subr.bf16.mxu0 0
        %2072 = vmatpush1.bf16.xpose.msra.mxu0 %v2069
        %2073 = vmatprep.subr.bf16.mxu0 0
        %2074 = vmatpush1.bf16.xpose.msra.mxu0 0
        %2075 = vmatprep.subr.bf16.mxu0 0
        %2076 = vmatpush1.bf16.xpose.msra.mxu0 0
        %2077 = vmatprep.subr.bf16.mxu0 0
        %2078 = vmatpush1.bf16.xpose.msra.mxu0 0
        %2079 = vmatprep.subr.bf16.mxu0 0
        %2080 = vmatpush1.bf16.xpose.msra.mxu0 0
        %2081 = vmatprep.subr.bf16.mxu0 0
        %2082 = vmatpush1.bf16.xpose.msra.mxu0 0
        %2083 = vmatprep.subr.bf16.mxu0 0
        %2084 = vmatpush1.bf16.xpose.msra.mxu0 0
        %2085 = vmatprep.subr.bf16.mxu0 0
        %2086 = vmatpush1.bf16.xpose.msra.mxu0 0
        %2087 = vmatprep.subr.bf16.mxu0 0
        %2088 = vmatpush1.bf16.xpose.msra.mxu0 0
        %2089 = vmatprep.subr.bf16.mxu0 0
        %2090 = vmatpush1.bf16.xpose.msra.mxu0 0
        %2091 = vmatprep.subr.bf16.mxu0 0
        %2092 = vmatpush1.bf16.xpose.msra.mxu0 0
        %2093 = vmatprep.subr.bf16.mxu0 0
        %2094 = vmatpush1.bf16.xpose.msra.mxu0 0
        %2095 = vmatprep.subr.bf16.mxu0 0
        %2096 = vmatpush1.bf16.xpose.msra.mxu0 0
        %2097 = vmatprep.subr.bf16.mxu0 0
        %2098 = vmatpush1.bf16.xpose.msra.mxu0 0
        %2099 = vmatprep.subr.bf16.mxu0 0
        %2100 = vmatpush1.bf16.xpose.msra.mxu0 0
        %2101 = vmatprep.subr.bf16.mxu0 0
        %2102 = vmatpush1.bf16.xpose.msra.mxu0 0
        %2103 = vmatprep.mubr.bf16.mxu0 0
        %2104 = vmatmul.mubr.bf16.gmra.mrb[0].mxu0 %v2066
        %v2105 = vpop.f32.mrb[0].mxu0
        %v2106 = vadd.f32 0.0, %v2105
        %v2107 = vpop.f32.mrb[0].mxu0
        %v2108 = vpop.f32.mrb[0].mxu0
        %v2109 = vadd.f32 0.0, %v2108
        %v2110 = vpop.f32.mrb[0].mxu0
        %2111 = vdwg.mxu0
        %v2112 = vmul.f32 %v2106, 0.35355338
        %v2113 = vmul.f32 %v2109, 0.35355338
        %v2114 = vadd.f32 %v2112, %v681
        %v2115 = vadd.f32 %v2113, %v681
        %v2116 = vsel %vm809, %v2114, -inf
        %2117 = vmax.xlane.f32.xlu0 %v2116
        %v2118 = vpop.xlane.xlu0 %2117
        %v2119 = vsel %vm809, %v2115, -inf
        %2120 = vmax.xlane.f32.xlu0 %v2119
        %v2121 = vpop.xlane.xlu0 %2120
        %v2122 = vsub.f32 %v2114, %v2118
        %v2123 = vsub.f32 %v2115, %v2121
        %v2124 = vmul.f32 %v2122, 1.442695
        %v2125 = vpow.pop %v2124
        %v2126 = vmul.f32 %v2123, 1.442695
        %v2127 = vpow.pop %v2126
        %v2128 = vsel %vm809, %v2125, 0.0
        %2129 = vadd.xlane.f32.xlu0 %v2128
        %v2130 = vpop.xlane.xlu0 %2129
        %v2131 = vsel %vm809, %v2127, 0.0
        %2132 = vadd.xlane.f32.xlu0 %v2131
        %v2133 = vpop.xlane.xlu0 %2132
        %v2134 = vrcp.pop %v2130
        %v2135 = vrcp.pop %v2133
        %v2136 = vmul.f32 %v2125, %v2134
        %v2137 = vmul.f32 %v2127, %v2135
        %v2138 = vpack.c.bf16 %v2137, %v2136
        %2139 = vrot.lane.b32.xlu0 %v1672, 40
        %v2140 = vpop.permute.xlu0 %2139
        %v2143 = vsel %vm809, %v2138, 0
        %2145 = vmatprep.subr.bf16.mxu0 0
        %2146 = vmatpush1.bf16.msra.mxu0 %v2140
        %2147 = vmatprep.subr.bf16.mxu0 0
        %2148 = vmatpush1.bf16.msra.mxu0 0
        %2149 = vmatprep.subr.bf16.mxu0 0
        %2150 = vmatpush1.bf16.msra.mxu0 0
        %2151 = vmatprep.subr.bf16.mxu0 0
        %2152 = vmatpush1.bf16.msra.mxu0 0
        %2153 = vmatprep.subr.bf16.mxu0 0
        %2154 = vmatpush1.bf16.msra.mxu0 0
        %2155 = vmatprep.subr.bf16.mxu0 0
        %2156 = vmatpush1.bf16.msra.mxu0 0
        %2157 = vmatprep.subr.bf16.mxu0 0
        %2158 = vmatpush1.bf16.msra.mxu0 0
        %2159 = vmatprep.subr.bf16.mxu0 0
        %2160 = vmatpush1.bf16.msra.mxu0 0
        %2161 = vmatprep.subr.bf16.mxu0 0
        %2162 = vmatpush1.bf16.msra.mxu0 0
        %2163 = vmatprep.subr.bf16.mxu0 0
        %2164 = vmatpush1.bf16.msra.mxu0 0
        %2165 = vmatprep.subr.bf16.mxu0 0
        %2166 = vmatpush1.bf16.msra.mxu0 0
        %2167 = vmatprep.subr.bf16.mxu0 0
        %2168 = vmatpush1.bf16.msra.mxu0 0
        %2169 = vmatprep.subr.bf16.mxu0 0
        %2170 = vmatpush1.bf16.msra.mxu0 0
        %2171 = vmatprep.subr.bf16.mxu0 0
        %2172 = vmatpush1.bf16.msra.mxu0 0
        %2173 = vmatprep.subr.bf16.mxu0 0
        %2174 = vmatpush1.bf16.msra.mxu0 0
        %2175 = vmatprep.subr.bf16.mxu0 0
        %2176 = vmatpush1.bf16.msra.mxu0 0
        %2177 = vmatprep.mubr.bf16.mxu0 0
        %2178 = vmatmul.mubr.bf16.gmra.mrb[0].mxu0 %v2143
        %v2179 = vpop.f32.mrb[0].mxu0
        %v2180 = vadd.f32 0.0, %v2179
        %v2181 = vpop.f32.mrb[0].mxu0
        %v2182 = vpop.f32.mrb[0].mxu0
        %v2183 = vadd.f32 0.0, %v2182
        %v2184 = vpop.f32.mrb[0].mxu0
        %2185 = vdwg.mxu0
        %v2186 = vpack.c.bf16 %v2183, %v2180
        %2188 = vrot.lane.b32.xlu0 %v2186, 24
        %v2189 = vpop.permute.xlu0 %2188
        %2191 = vst.msk [vmem:[#allocation2] sm:$0xff] %vm1276, %v2189
        %v2192 = vld [vmem:[#allocation2] sm:$0xff]
        %s2193 = scalar_lea.vmem %s3, 16
        %v2194 = vld [vmem:[%s2193] sm:$0xf]
        %v2195 = vld [vmem:[%s2193 + $0x4] sm:$0xf]
        %v2196 = vld [vmem:[%s2193 + $0x8] sm:$0xf]
        %v2197 = vld [vmem:[%s2193 + $0xc] sm:$0xf]
        %s2198 = scalar_lea.vmem [#allocation6], 1
        %v2199 = vld [vmem:[%s2198] sm:$0x1]
        %v2201 = vlaneseq
        %v2202 = vshrl.u32 %v2201, 7
        %v2203 = vsub.s32 0, %v2202
        %v2204 = vrot.slane %v2199, %v2203
        %v2210 = vunpack.c.l.b16 %v2194
        %v2211 = vunpack.c.l.b16 %v2195
        %v2212 = vunpack.c.l.b16 %v2196
        %v2213 = vunpack.c.l.b16 %v2197
        %v2214 = vpack.c.b16 %v2211, %v2210
        %v2215 = vpack.c.b16 %v2213, %v2212
        %v2219 = vsel %vm708, %v2192, 0
        %2221 = vmatprep.subr.bf16.mxu0 0
        %2222 = vmatpush1.bf16.msra.mxu0 %v2214
        %2223 = vmatprep.subr.bf16.mxu0 0
        %2224 = vmatpush1.bf16.msra.mxu0 %v2215
        %2225 = vmatprep.subr.bf16.mxu0 0
        %2226 = vmatpush1.bf16.msra.mxu0 0
        %2227 = vmatprep.subr.bf16.mxu0 0
        %2228 = vmatpush1.bf16.msra.mxu0 0
        %2229 = vmatprep.subr.bf16.mxu0 0
        %2230 = vmatpush1.bf16.msra.mxu0 0
        %2231 = vmatprep.subr.bf16.mxu0 0
        %2232 = vmatpush1.bf16.msra.mxu0 0
        %2233 = vmatprep.subr.bf16.mxu0 0
        %2234 = vmatpush1.bf16.msra.mxu0 0
        %2235 = vmatprep.subr.bf16.mxu0 0
        %2236 = vmatpush1.bf16.msra.mxu0 0
        %2237 = vmatprep.subr.bf16.mxu0 0
        %2238 = vmatpush1.bf16.msra.mxu0 0
        %2239 = vmatprep.subr.bf16.mxu0 0
        %2240 = vmatpush1.bf16.msra.mxu0 0
        %2241 = vmatprep.subr.bf16.mxu0 0
        %2242 = vmatpush1.bf16.msra.mxu0 0
        %2243 = vmatprep.subr.bf16.mxu0 0
        %2244 = vmatpush1.bf16.msra.mxu0 0
        %2245 = vmatprep.subr.bf16.mxu0 0
        %2246 = vmatpush1.bf16.msra.mxu0 0
        %2247 = vmatprep.subr.bf16.mxu0 0
        %2248 = vmatpush1.bf16.msra.mxu0 0
        %2249 = vmatprep.subr.bf16.mxu0 0
        %2250 = vmatpush1.bf16.msra.mxu0 0
        %2251 = vmatprep.subr.bf16.mxu0 0
        %2252 = vmatpush1.bf16.msra.mxu0 0
        %2253 = vmatprep.mubr.bf16.mxu0 0
        %2254 = vmatmul.mubr.bf16.gmra.mrb[0].mxu0 %v2219
        %v2255 = vpop.f32.mrb[0].mxu0
        %v2256 = vadd.f32 %v2204, %v2255
        %v2257 = vpop.f32.mrb[0].mxu0
        %v2258 = vpop.f32.mrb[0].mxu0
        %v2259 = vadd.f32 %v2204, %v2258
        %v2260 = vpop.f32.mrb[0].mxu0
        %2261 = vdwg.mxu0
        %v2262 = vadd.f32 %v1600, %v2256
        %v2263 = vadd.f32 %v1601, %v2259
        %s2264 = scalar_lea.vmem [#allocation8], 1
        %v2265 = vld [vmem:[%s2264] sm:$0x1]
        %s2266 = scalar_lea.vmem [#allocation9], 1
        %v2267 = vld [vmem:[%s2266] sm:$0x1]
        %v2268 = vsel %vm708, %v2262, 0.0
        %2269 = vadd.xlane.f32.xlu0 %v2268
        %v2270 = vpop.xlane.xlu0 %2269
        %v2271 = vsel %vm708, %v2263, 0.0
        %2272 = vadd.xlane.f32.xlu0 %v2271
        %v2273 = vpop.xlane.xlu0 %2272
        %v2274 = vmul.f32 %v2270, %v1356
        %v2275 = vmul.f32 %v2273, %v1356
        %v2276 = vsub.f32 %v2262, %v2274
        %v2277 = vsub.f32 %v2263, %v2275
        %v2278 = vmul.f32 %v2276, %v2276
        %v2279 = vmul.f32 %v2277, %v2277
        %v2280 = vsel %vm708, %v2278, 0.0
        %2281 = vadd.xlane.f32.xlu0 %v2280
        %v2282 = vpop.xlane.xlu0 %2281
        %v2283 = vsel %vm708, %v2279, 0.0
        %2284 = vadd.xlane.f32.xlu0 %v2283
        %v2285 = vpop.xlane.xlu0 %2284
        %v2286 = vmul.f32 %v2282, %v1356
        %v2287 = vmul.f32 %v2285, %v1356
        %v2288 = vadd.f32 %v2286, 1e-05
        %v2289 = vadd.f32 %v2287, 1e-05
        %v2290 = vrsqrt.pop %v2288
        %v2291 = vrsqrt.pop %v2289
        %v2292 = vmul.f32 %v2276, %v2290
        %v2293 = vmul.f32 %v2277, %v2291
        %v2295 = vlaneseq
        %v2296 = vshrl.u32 %v2295, 7
        %v2297 = vsub.s32 0, %v2296
        %v2298 = vrot.slane %v2265, %v2297
        %v2300 = vmul.f32 %v2292, %v2298
        %v2301 = vmul.f32 %v2293, %v2298
        %v2303 = vlaneseq
        %v2304 = vshrl.u32 %v2303, 7
        %v2305 = vsub.s32 0, %v2304
        %v2306 = vrot.slane %v2267, %v2305
        %v2308 = vadd.f32 %v2300, %v2306
        %v2309 = vadd.f32 %v2301, %v2306
        %v2310 = vpack.c.bf16 %v2309, %v2308
        %s2311 = scalar_lea.vmem [#allocation11], 16
        %v2312 = vld [vmem:[%s2311] sm:$0xf]
        %v2313 = vld [vmem:[%s2311 + $0x4] sm:$0xf]
        %v2314 = vld [vmem:[%s2311 + $0x8] sm:$0xf]
        %v2315 = vld [vmem:[%s2311 + $0xc] sm:$0xf]
        %s2316 = scalar_lea.vmem [#allocation12], 1
        %v2317 = vld [vmem:[%s2316] sm:$0x1]
        %v2319 = vlaneseq
        %v2320 = vshrl.u32 %v2319, 7
        %v2321 = vsub.s32 0, %v2320
        %v2322 = vrot.slane %v2317, %v2321
        %v2328 = vunpack.c.l.b16 %v2312
        %v2329 = vunpack.c.l.b16 %v2313
        %v2330 = vunpack.c.l.b16 %v2314
        %v2331 = vunpack.c.l.b16 %v2315
        %v2332 = vpack.c.b16 %v2329, %v2328
        %v2333 = vpack.c.b16 %v2331, %v2330
        %v2337 = vsel %vm708, %v2310, 0
        %2339 = vmatprep.subr.bf16.mxu0 0
        %2340 = vmatpush1.bf16.msra.mxu0 %v2332
        %2341 = vmatprep.subr.bf16.mxu0 0
        %2342 = vmatpush1.bf16.msra.mxu0 %v2333
        %2343 = vmatprep.subr.bf16.mxu0 0
        %2344 = vmatpush1.bf16.msra.mxu0 0
        %2345 = vmatprep.subr.bf16.mxu0 0
        %2346 = vmatpush1.bf16.msra.mxu0 0
        %2347 = vmatprep.subr.bf16.mxu0 0
        %2348 = vmatpush1.bf16.msra.mxu0 0
        %2349 = vmatprep.subr.bf16.mxu0 0
        %2350 = vmatpush1.bf16.msra.mxu0 0
        %2351 = vmatprep.subr.bf16.mxu0 0
        %2352 = vmatpush1.bf16.msra.mxu0 0
        %2353 = vmatprep.subr.bf16.mxu0 0
        %2354 = vmatpush1.bf16.msra.mxu0 0
        %2355 = vmatprep.subr.bf16.mxu0 0
        %2356 = vmatpush1.bf16.msra.mxu0 0
        %2357 = vmatprep.subr.bf16.mxu0 0
        %2358 = vmatpush1.bf16.msra.mxu0 0
        %2359 = vmatprep.subr.bf16.mxu0 0
        %2360 = vmatpush1.bf16.msra.mxu0 0
        %2361 = vmatprep.subr.bf16.mxu0 0
        %2362 = vmatpush1.bf16.msra.mxu0 0
        %2363 = vmatprep.subr.bf16.mxu0 0
        %2364 = vmatpush1.bf16.msra.mxu0 0
        %2365 = vmatprep.subr.bf16.mxu0 0
        %2366 = vmatpush1.bf16.msra.mxu0 0
        %2367 = vmatprep.subr.bf16.mxu0 0
        %2368 = vmatpush1.bf16.msra.mxu0 0
        %2369 = vmatprep.subr.bf16.mxu0 0
        %2370 = vmatpush1.bf16.msra.mxu0 0
        %2371 = vmatprep.mubr.bf16.mxu0 0
        %2372 = vmatmul.mubr.bf16.gmra.mrb[0].mxu0 %v2337
        %v2373 = vpop.f32.mrb[0].mxu0
        %v2374 = vadd.f32 %v2322, %v2373
        %v2375 = vpop.f32.mrb[0].mxu0
        %v2376 = vpop.f32.mrb[0].mxu0
        %v2377 = vadd.f32 %v2322, %v2376
        %v2378 = vpop.f32.mrb[0].mxu0
        %2379 = vdwg.mxu0
        %v2380 = vmul.f32 %v2374, 0.5
        %v2381 = vmul.f32 %v2377, 0.5
        %v2382 = vmul.f32 %v2374, 0.70710677
        %v2383 = vmul.f32 %v2377, 0.70710677
        %v2384 = verf.f32.pop %v2382
        %v2385 = verf.f32.pop %v2383
        %v2386 = vadd.f32 %v2384, 1.0
        %v2387 = vadd.f32 %v2385, 1.0
        %v2388 = vmul.f32 %v2380, %v2386
        %v2389 = vmul.f32 %v2381, %v2387
        %v2390 = vpack.c.bf16 %v2389, %v2388
        %s2391 = scalar_lea.vmem %s9, 32
        %v2392 = vld [vmem:[%s2391] sm:$0xf]
        %v2393 = vld [vmem:[%s2391 + $0x4] sm:$0xf]
        %v2394 = vld [vmem:[%s2391 + $0x8] sm:$0xf]
        %v2395 = vld [vmem:[%s2391 + $0xc] sm:$0xf]
        %v2396 = vld [vmem:[%s2391 + $0x10] sm:$0xf]
        %v2397 = vld [vmem:[%s2391 + $0x14] sm:$0xf]
        %v2398 = vld [vmem:[%s2391 + $0x18] sm:$0xf]
        %v2399 = vld [vmem:[%s2391 + $0x1c] sm:$0xf]
        %s2400 = scalar_lea.vmem [#allocation14], 1
        %v2401 = vld [vmem:[%s2400] sm:$0x1]
        %v2403 = vlaneseq
        %v2404 = vshrl.u32 %v2403, 7
        %v2405 = vsub.s32 0, %v2404
        %v2406 = vrot.slane %v2401, %v2405
        %v2416 = vunpack.c.l.b16 %v2392
        %v2417 = vunpack.c.l.b16 %v2393
        %v2418 = vunpack.c.l.b16 %v2394
        %v2419 = vunpack.c.l.b16 %v2395
        %v2420 = vunpack.c.l.b16 %v2396
        %v2421 = vunpack.c.l.b16 %v2397
        %v2422 = vunpack.c.l.b16 %v2398
        %v2423 = vunpack.c.l.b16 %v2399
        %v2424 = vpack.c.b16 %v2417, %v2416
        %v2425 = vpack.c.b16 %v2419, %v2418
        %v2426 = vpack.c.b16 %v2421, %v2420
        %v2427 = vpack.c.b16 %v2423, %v2422
        %v2433 = vsel %vm1511, %v2390, 0
        %2435 = vmatprep.subr.bf16.mxu0 0
        %2436 = vmatpush1.bf16.msra.mxu0 %v2424
        %2437 = vmatprep.subr.bf16.mxu0 0
        %2438 = vmatpush1.bf16.msra.mxu0 %v2425
        %2439 = vmatprep.subr.bf16.mxu0 0
        %2440 = vmatpush1.bf16.msra.mxu0 %v2426
        %2441 = vmatprep.subr.bf16.mxu0 0
        %2442 = vmatpush1.bf16.msra.mxu0 %v2427
        %2443 = vmatprep.subr.bf16.mxu0 0
        %2444 = vmatpush1.bf16.msra.mxu0 0
        %2445 = vmatprep.subr.bf16.mxu0 0
        %2446 = vmatpush1.bf16.msra.mxu0 0
        %2447 = vmatprep.subr.bf16.mxu0 0
        %2448 = vmatpush1.bf16.msra.mxu0 0
        %2449 = vmatprep.subr.bf16.mxu0 0
        %2450 = vmatpush1.bf16.msra.mxu0 0
        %2451 = vmatprep.subr.bf16.mxu0 0
        %2452 = vmatpush1.bf16.msra.mxu0 0
        %2453 = vmatprep.subr.bf16.mxu0 0
        %2454 = vmatpush1.bf16.msra.mxu0 0
        %2455 = vmatprep.subr.bf16.mxu0 0
        %2456 = vmatpush1.bf16.msra.mxu0 0
        %2457 = vmatprep.subr.bf16.mxu0 0
        %2458 = vmatpush1.bf16.msra.mxu0 0
        %2459 = vmatprep.subr.bf16.mxu0 0
        %2460 = vmatpush1.bf16.msra.mxu0 0
        %2461 = vmatprep.subr.bf16.mxu0 0
        %2462 = vmatpush1.bf16.msra.mxu0 0
        %2463 = vmatprep.subr.bf16.mxu0 0
        %2464 = vmatpush1.bf16.msra.mxu0 0
        %2465 = vmatprep.subr.bf16.mxu0 0
        %2466 = vmatpush1.bf16.msra.mxu0 0
        %2467 = vmatprep.mubr.bf16.mxu0 0
        %2468 = vmatmul.mubr.bf16.gmra.mrb[0].mxu0 %v2433
        %v2469 = vpop.f32.mrb[0].mxu0
        %v2470 = vadd.f32 %v2406, %v2469
        %v2471 = vpop.f32.mrb[0].mxu0
        %v2472 = vpop.f32.mrb[0].mxu0
        %v2473 = vpop.f32.mrb[0].mxu0
        %2474 = vdwg.mxu0
        %v2475 = vadd.f32 %v2308, %v2470
        %s2476 = scalar_lea.vmem [#allocation15], 1
        %v2477 = vld [vmem:[%s2476] sm:$0x1]
        %s2478 = scalar_lea.vmem [#allocation17], 1
        %v2479 = vld [vmem:[%s2478] sm:$0x1]
        %v2480 = vsel %vm708, %v2475, 0.0
        %2481 = vadd.xlane.f32.xlu0 %v2480
        %v2482 = vpop.xlane.xlu0 %2481
        %v2483 = vmul.f32 %v2482, %v1356
        %v2484 = vsub.f32 %v2475, %v2483
        %v2485 = vmul.f32 %v2484, %v2484
        %v2486 = vsel %vm708, %v2485, 0.0
        %2487 = vadd.xlane.f32.xlu0 %v2486
        %v2488 = vpop.xlane.xlu0 %2487
        %v2489 = vmul.f32 %v2488, %v1356
        %v2490 = vadd.f32 %v2489, 1e-05
        %v2491 = vrsqrt.pop %v2490
        %v2492 = vmul.f32 %v2484, %v2491
        %v2494 = vlaneseq
        %v2495 = vshrl.u32 %v2494, 7
        %v2496 = vsub.s32 0, %v2495
        %v2497 = vrot.slane %v2477, %v2496
        %v2499 = vmul.f32 %v2492, %v2497
        %v2501 = vlaneseq
        %v2502 = vshrl.u32 %v2501, 7
        %v2503 = vsub.s32 0, %v2502
        %v2504 = vrot.slane %v2479, %v2503
        %v2506 = vadd.f32 %v2499, %v2504
        %v2507 = vld [vmem:[%s13] sm:$0x1]
        %v2508 = vld [vmem:[%s14] sm:$0x1]
        %vm2509 = vcmask 253952
        %v2510 = vsel %vm2509, %v2506, 0.0
        %2511 = vadd.xlane.f32.xlu0 %v2510
        %v2512 = vpop.xlane.xlu0 %2511
        %v2513 = vmul.f32 %v2512, %v1356
        %v2514 = vsub.f32 %v2506, %v2513
        %v2515 = vmul.f32 %v2514, %v2514
        %v2516 = vsel %vm2509, %v2515, 0.0
        %2517 = vadd.xlane.f32.xlu0 %v2516
        %v2518 = vpop.xlane.xlu0 %2517
        %v2519 = vmul.f32 %v2518, %v1356
        %v2520 = vadd.f32 %v2519, 1e-05
        %v2521 = vrsqrt.pop %v2520
        %v2522 = vmul.f32 %v2514, %v2521
        %v2523 = vmul.f32 %v2522, %v2507
        %v2524 = vadd.f32 %v2523, %v2508
        %v2525 = vpack.c.bf16 %v2524, %v2524
        %v2526 = vld [vmem:[%s15] sm:$0xf]
        %v2527 = vld [vmem:[%s15 + $0x4] sm:$0xf]
        %v2528 = vld [vmem:[%s15 + $0x8] sm:$0xf]
        %v2529 = vld [vmem:[%s15 + $0xc] sm:$0xf]
        %v2530 = vld [vmem:[%s16] sm:$0x1]
        %v2535 = vunpack.c.l.b16 %v2526
        %v2536 = vunpack.c.l.b16 %v2527
        %v2537 = vunpack.c.l.b16 %v2528
        %v2538 = vunpack.c.l.b16 %v2529
        %v2539 = vpack.c.b16 %v2536, %v2535
        %v2540 = vpack.c.b16 %v2538, %v2537
        %v2544 = vsel %vm708, %v2525, 0
        %2546 = vmatprep.subr.bf16.mxu0 0
        %2547 = vmatpush1.bf16.msra.mxu0 %v2539
        %2548 = vmatprep.subr.bf16.mxu0 0
        %2549 = vmatpush1.bf16.msra.mxu0 %v2540
        %2550 = vmatprep.subr.bf16.mxu0 0
        %2551 = vmatpush1.bf16.msra.mxu0 0
        %2552 = vmatprep.subr.bf16.mxu0 0
        %2553 = vmatpush1.bf16.msra.mxu0 0
        %2554 = vmatprep.subr.bf16.mxu0 0
        %2555 = vmatpush1.bf16.msra.mxu0 0
        %2556 = vmatprep.subr.bf16.mxu0 0
        %2557 = vmatpush1.bf16.msra.mxu0 0
        %2558 = vmatprep.subr.bf16.mxu0 0
        %2559 = vmatpush1.bf16.msra.mxu0 0
        %2560 = vmatprep.subr.bf16.mxu0 0
        %2561 = vmatpush1.bf16.msra.mxu0 0
        %2562 = vmatprep.subr.bf16.mxu0 0
        %2563 = vmatpush1.bf16.msra.mxu0 0
        %2564 = vmatprep.subr.bf16.mxu0 0
        %2565 = vmatpush1.bf16.msra.mxu0 0
        %2566 = vmatprep.subr.bf16.mxu0 0
        %2567 = vmatpush1.bf16.msra.mxu0 0
        %2568 = vmatprep.subr.bf16.mxu0 0
        %2569 = vmatpush1.bf16.msra.mxu0 0
        %2570 = vmatprep.subr.bf16.mxu0 0
        %2571 = vmatpush1.bf16.msra.mxu0 0
        %2572 = vmatprep.subr.bf16.mxu0 0
        %2573 = vmatpush1.bf16.msra.mxu0 0
        %2574 = vmatprep.subr.bf16.mxu0 0
        %2575 = vmatpush1.bf16.msra.mxu0 0
        %2576 = vmatprep.subr.bf16.mxu0 0
        %2577 = vmatpush1.bf16.msra.mxu0 0
        %2578 = vmatprep.mubr.bf16.mxu0 0
        %2579 = vmatmul.mubr.bf16.gmra.mrb[0].mxu0 %v2544
        %v2580 = vpop.f32.mrb[0].mxu0
        %v2581 = vadd.f32 %v2530, %v2580
        %v2582 = vpop.f32.mrb[0].mxu0
        %v2583 = vpop.f32.mrb[0].mxu0
        %v2584 = vpop.f32.mrb[0].mxu0
        %2585 = vdwg.mxu0
        %2586 = vst [vmem:[%s671] sm:$0x1] %v2581
        %s2587 = sand.u32 %s406, 1
        %s2588 = scalar_lea.sflag [#allocation5], %s2587
        %s2589 = sand.u32 %s406, 1
        %s2590 = scalar_lea.vmem [#allocation18], %s2589
        // Predicated region
        $region125: #{tpu_custom_call.1} parent=87 // pred_check
          %p2591 = pneg %p416
        $region126: #{tpu_custom_call.1} parent=87 // pred_check_branch
          %2593 = sbr.rel (%p2591) target = $region128
        $region127: #{tpu_custom_call.1} parent=87 // pred_region
          %s2595 = ssub.s32 16, 16
          %2596 = vsyncadd %s2588, %s2595
          %s2597 = smul.addr %s36, 16
          %s2598 = scalar_lea.hbm %s17, %s2597
          %s2600 = sshll.u32 %s2590, 4
          %s2601 = int_to_ptr.vmem [resolvable:$true] %s2600
          %2603 = dma.vmem_to_hbm [thread:$0]  %s2601, 16, %s2598, %s2588
        $region128: #{tpu_custom_call.1} parent=87 // pred_fallthru
          _
      $region88: #{tpu_custom_call.1} parent=5 // pred_fallthru
        _
      %p2604 = scmp.le.s32.totalorder 2, %s31
      // Predicated region
      $region129: #{tpu_custom_call.1} parent=5 // pred_check
        %p2605 = pneg %p2604
      $region130: #{tpu_custom_call.1} parent=5 // pred_check_branch
        %2607 = sbr.rel (%p2605) target = $region132
      $region131: #{tpu_custom_call.1} parent=5 // pred_region
        %s2608 = ssub.s32 %s31, 2
        // Predicated region
        $region133: #{tpu_custom_call.1} parent=131 // pred_check
          %p2609 = pneg %p422
        $region134: #{tpu_custom_call.1} parent=131 // pred_check_branch
          %2611 = sbr.rel (%p2609) target = $region136
        $region135: #{tpu_custom_call.1} parent=131 // pred_region
          %s2612 = sand.u32 %s407, 1
          %s2613 = scalar_lea.sflag [#allocation5], %s2612
          %s2614 = sand.u32 %s407, 1
          %s2615 = scalar_lea.vmem [#allocation18], %s2614
          %2616 = dma.done %s2613, 16
        $region136: #{tpu_custom_call.1} parent=131 // pred_fallthru
          _
      $region132: #{tpu_custom_call.1} parent=5 // pred_fallthru
        _
    $region6: #{tpu_custom_call.1} parent=1 // loop_footer
      %s35 = sadd.s32 1, %s31
    $region7: #{tpu_custom_call.1} parent=1 // loop_footer_branch
      %30 = sbr.rel target = $region3
    $region8: #{tpu_custom_call.1} parent=1 // loop_exit
      _
    %2617 = vsyncpa [#allocation4], 1
    %s2618 = scalar_lea.sflag [#allocation4], 1
    %2619 = vsyncpa %s2618, 1
    %2620 = vsyncpa [#allocation7], 1
    %2621 = vsyncpa [#allocation10], 1
    %2622 = vsyncpa [#allocation13], 1
    %2623 = vsyncpa [#allocation16], 1
    %2624 = vsyncpa [#allocation5], 1
    %s2625 = scalar_lea.sflag [#allocation5], 1
    %2626 = vsyncpa %s2625, 1

// kernel: tpu_custom_call.1
$region0: #{tpu_custom_call.1}
  #allocation0 [shape = 'u32[]', space=smem, size = 0x4, offset = 0x4, fixed_abs, tag = 'smem constant byte address 0x4 - core index']
  #allocation1 [shape = 'u32[144,128]{1,0:T(1,128)}', space=vmem, size = 0x12000, scoped, tag = 'internal scratch']
  #allocation2 [shape = 'bf16[16,32]{1,0:T(16,128)(2,1)}', space=vmem, size = 0x1000, scoped, tag = 'scratch operand']
  %s0 = inlined_call_operand.vmem [shape: f32[2,16,32], index: 0, kind: input, shape index: {}]
  %s1 = inlined_call_operand.vmem [shape: bf16[2,32,96], index: 1, kind: input, shape index: {}]
  %s2 = inlined_call_operand.hbm [shape: f32[2,1,96], index: 2, kind: input, shape index: {}]
  %s3 = inlined_call_operand.vmem [shape: bf16[2,32,32], index: 3, kind: input, shape index: {}]
  %s4 = inlined_call_operand.hbm [shape: f32[2,1,32], index: 4, kind: input, shape index: {}]
  %s5 = inlined_call_operand.hbm [shape: f32[2,1,32], index: 5, kind: input, shape index: {}]
  %s6 = inlined_call_operand.hbm [shape: f32[2,1,32], index: 6, kind: input, shape index: {}]
  %s7 = inlined_call_operand.hbm [shape: bf16[2,32,64], index: 7, kind: input, shape index: {}]
  %s8 = inlined_call_operand.hbm [shape: f32[2,1,64], index: 8, kind: input, shape index: {}]
  %s9 = inlined_call_operand.vmem [shape: bf16[2,64,32], index: 9, kind: input, shape index: {}]
  %s10 = inlined_call_operand.hbm [shape: f32[2,1,32], index: 10, kind: input, shape index: {}]
  %s11 = inlined_call_operand.hbm [shape: f32[2,1,32], index: 11, kind: input, shape index: {}]
  %s12 = inlined_call_operand.hbm [shape: f32[2,1,32], index: 12, kind: input, shape index: {}]
  %s13 = inlined_call_operand.vmem [shape: f32[1,32], index: 13, kind: input, shape index: {}]
  %s14 = inlined_call_operand.vmem [shape: f32[1,32], index: 14, kind: input, shape index: {}]
  %s15 = inlined_call_operand.vmem [shape: bf16[32,128], index: 15, kind: input, shape index: {}]
  %s16 = inlined_call_operand.vmem [shape: f32[1,128], index: 16, kind: input, shape index: {}]
  %s17 = inlined_call_operand.hbm [shape: f32[2,1,128], index: 17, kind: output, shape index: {}]
  %s18 = sld [smem:[#allocation0]]
  $region137: #{tpu_custom_call.1} parent=0
    _
  %s20 = ssub.s32 1, %s18
  %s21 = scalar_select 0, %s20, %s18
  $region1: #{tpu_custom_call.1} parent=0
    #allocation3 [shape = 'u8[1024]{0}', space=vmem, size = 0x400, scoped, tag = 'input window, operand 2, single buffered']
    #allocation4 [shape = 's32[2]{0}', space=sflag, size = 0x8, scoped, tag = 'scoped memory for tpu_custom_call.1']
    #allocation5 [shape = 's32[2]{0}', space=sflag, size = 0x8, scoped, tag = 'scoped memory for tpu_custom_call.1']
    #allocation6 [shape = 'u8[1024]{0}', space=vmem, size = 0x400, scoped, tag = 'input window, operand 4, single buffered']
    #allocation7 [shape = 's32[1]{0}', space=sflag, size = 0x4, scoped, tag = 'scoped memory for tpu_custom_call.1']
    #allocation8 [shape = 'u8[1024]{0}', space=vmem, size = 0x400, scoped, tag = 'input window, operand 5, single buffered']
    #allocation9 [shape = 'u8[1024]{0}', space=vmem, size = 0x400, scoped, tag = 'input window, operand 6, single buffered']
    #allocation10 [shape = 's32[1]{0}', space=sflag, size = 0x4, scoped, tag = 'scoped memory for tpu_custom_call.1']
    #allocation11 [shape = 'u8[16384]{0}', space=vmem, size = 0x4000, scoped, tag = 'input window, operand 7, single buffered']
    #allocation12 [shape = 'u8[1024]{0}', space=vmem, size = 0x400, scoped, tag = 'input window, operand 8, single buffered']
    #allocation13 [shape = 's32[1]{0}', space=sflag, size = 0x4, scoped, tag = 'scoped memory for tpu_custom_call.1']
    #allocation14 [shape = 'u8[1024]{0}', space=vmem, size = 0x400, scoped, tag = 'input window, operand 10, single buffered']
    #allocation15 [shape = 'u8[1024]{0}', space=vmem, size = 0x400, scoped, tag = 'input window, operand 11, single buffered']
    #allocation16 [shape = 's32[1]{0}', space=sflag, size = 0x4, scoped, tag = 'scoped memory for tpu_custom_call.1']
    #allocation17 [shape = 'u8[1024]{0}', space=vmem, size = 0x400, scoped, tag = 'input window, operand 12, single buffered']
    #allocation18 [shape = 'u8[1024]{0}', space=vmem, size = 0x400, scoped, tag = 'output window, operand 0']
    %22 = vsyncpa [#allocation4], 0
    %23 = vsyncpa [#allocation7], 0
    %24 = vsyncpa [#allocation10], 0
    %25 = vsyncpa [#allocation13], 0
    %26 = vsyncpa [#allocation16], 0
    %27 = vsyncpa [#allocation5], 0
    %s28 = scalar_lea.sflag [#allocation5], 1
    %29 = vsyncpa %s28, 0
    loop: start=0, step=1, limit=4
    $region2: #{tpu_custom_call.1} parent=1 // loop_pre_header
      _
    $region3: #{tpu_custom_call.1} parent=1 // loop_header
      %s31 = sphi 0, %s35
      %p32 = scmp.ge.s32.totalorder %s31, 4
      %s41 = sphi 0, %s43
      %s44 = sphi 0, %s41
      %s45 = sphi 0, %s44
      %s61 = sphi 0, %s45
      %s65 = sphi 0, %s65
      %s67 = sphi 0, %s65
      %s68 = sphi 0, %s67
      %s82 = sphi 0, %s68
      %s86 = sphi 0, %s86
      %s88 = sphi 0, %s86
      %s89 = sphi 0, %s88
      %s103 = sphi 0, %s89
      %s107 = sphi 0, %s107
      %s109 = sphi 0, %s107
      %s110 = sphi 0, %s109
      %s124 = sphi 0, %s110
      %s128 = sphi 0, %s128
      %s130 = sphi 0, %s128
      %s131 = sphi 0, %s130
      %s145 = sphi 0, %s131
      %s149 = sphi 0, %s149
      %s151 = sphi 0, %s149
      %s152 = sphi 0, %s151
      %s166 = sphi 0, %s152
      %s170 = sphi 0, %s170
      %s172 = sphi 0, %s170
      %s173 = sphi 0, %s172
      %s187 = sphi 0, %s173
      %s191 = sphi 0, %s191
      %s193 = sphi 0, %s191
      %s194 = sphi 0, %s193
      %s208 = sphi 0, %s194
      %s212 = sphi 0, %s212
      %s214 = sphi 0, %s212
      %s215 = sphi 0, %s214
      %s229 = sphi 0, %s215
      %s233 = sphi 0, %s233
      %s235 = sphi 0, %s233
      %s236 = sphi 0, %s235
      %s250 = sphi 0, %s236
      %s254 = sphi 0, %s254
      %s256 = sphi 0, %s254
      %s257 = sphi 0, %s256
      %s271 = sphi 0, %s257
      %s275 = sphi 0, %s275
      %s277 = sphi 0, %s275
      %s278 = sphi 0, %s277
      %s292 = sphi 0, %s278
      %s296 = sphi 0, %s296
      %s298 = sphi 0, %s296
      %s299 = sphi 0, %s298
      %s313 = sphi 0, %s299
      %s317 = sphi 0, %s317
      %s319 = sphi 0, %s317
      %s320 = sphi 0, %s319
      %s334 = sphi 0, %s320
      %s338 = sphi 0, %s338
      %s340 = sphi 0, %s338
      %s341 = sphi 0, %s340
      %s355 = sphi 0, %s341
      %s359 = sphi 0, %s359
      %s361 = sphi 0, %s359
      %s362 = sphi 0, %s361
      %s376 = sphi 0, %s362
      %s380 = sphi 0, %s380
      %s382 = sphi 0, %s380
      %s383 = sphi 0, %s382
      %s397 = sphi 0, %s383
      %s403 = sphi 0, %s405
      %s406 = sphi 0, %s403
      %s407 = sphi 0, %s406
      %s423 = sphi 0, %s407
    $region4: #{tpu_custom_call.1} parent=1 // loop_header_branch
      %34 = sbr.rel (%p32) target = $region8
    $region5: #{tpu_custom_call.1} parent=1 // loop_body
      %s36 = ssub.s32 %s31, 1
      %s37 = ssub.s32 %s31, 2
      %s38 = sadd.s32 %s31, 1
      %s39 = ssub.s32 %s31, %s38
      %p40 = scmp.eq.s32.totalorder %s39, 0
      %s42 = sadd.s32 %s41, 1
      %s43 = scalar_select %p40, %s41, %s42
      %p46 = pneg %p40
      %p47 = scmp.eq.s32.totalorder %s31, 1
      %p48 = por %p46, %p47
      %p49 = scmp.ne.s32.totalorder %s41, %s44
      %p50 = scmp.eq.s32.totalorder %s31, 0
      %p51 = por %p49, %p50
      %p52 = scmp.ne.s32.totalorder %s41, %s44
      %p53 = scmp.eq.s32.totalorder %s36, 1
      %p54 = por %p52, %p53
      %p55 = scmp.ne.s32.totalorder %s44, %s45
      %p56 = scmp.eq.s32.totalorder %s36, 0
      %p57 = por %p55, %p56
      %p58 = scmp.ne.s32.totalorder %s44, %s45
      %p59 = scmp.eq.s32.totalorder %s37, 1
      %p60 = por %p58, %p59
      %p62 = scmp.ne.s32.totalorder %s45, %s61
      %p63 = scmp.eq.s32.totalorder %s37, 0
      %p64 = por %p62, %p63
      %s66 = sadd.s32 %s65, 1
      %p69 = scmp.eq.s32.totalorder %s31, 1
      %p70 = scmp.ne.s32.totalorder %s65, %s67
      %p71 = scmp.eq.s32.totalorder %s31, 0
      %p72 = por %p70, %p71
      %p73 = scmp.ne.s32.totalorder %s65, %s67
      %p74 = scmp.eq.s32.totalorder %s36, 1
      %p75 = por %p73, %p74
      %p76 = scmp.ne.s32.totalorder %s67, %s68
      %p77 = scmp.eq.s32.totalorder %s36, 0
      %p78 = por %p76, %p77
      %p79 = scmp.ne.s32.totalorder %s67, %s68
      %p80 = scmp.eq.s32.totalorder %s37, 1
      %p81 = por %p79, %p80
      %p83 = scmp.ne.s32.totalorder %s68, %s82
      %p84 = scmp.eq.s32.totalorder %s37, 0
      %p85 = por %p83, %p84
      %s87 = sadd.s32 %s86, 1
      %p90 = scmp.eq.s32.totalorder %s31, 1
      %p91 = scmp.ne.s32.totalorder %s86, %s88
      %p92 = scmp.eq.s32.totalorder %s31, 0
      %p93 = por %p91, %p92
      %p94 = scmp.ne.s32.totalorder %s86, %s88
      %p95 = scmp.eq.s32.totalorder %s36, 1
      %p96 = por %p94, %p95
      %p97 = scmp.ne.s32.totalorder %s88, %s89
      %p98 = scmp.eq.s32.totalorder %s36, 0
      %p99 = por %p97, %p98
      %p100 = scmp.ne.s32.totalorder %s88, %s89
      %p101 = scmp.eq.s32.totalorder %s37, 1
      %p102 = por %p100, %p101
      %p104 = scmp.ne.s32.totalorder %s89, %s103
      %p105 = scmp.eq.s32.totalorder %s37, 0
      %p106 = por %p104, %p105
      %s108 = sadd.s32 %s107, 1
      %p111 = scmp.eq.s32.totalorder %s31, 1
      %p112 = scmp.ne.s32.totalorder %s107, %s109
      %p113 = scmp.eq.s32.totalorder %s31, 0
      %p114 = por %p112, %p113
      %p115 = scmp.ne.s32.totalorder %s107, %s109
      %p116 = scmp.eq.s32.totalorder %s36, 1
      %p117 = por %p115, %p116
      %p118 = scmp.ne.s32.totalorder %s109, %s110
      %p119 = scmp.eq.s32.totalorder %s36, 0
      %p120 = por %p118, %p119
      %p121 = scmp.ne.s32.totalorder %s109, %s110
      %p122 = scmp.eq.s32.totalorder %s37, 1
      %p123 = por %p121, %p122
      %p125 = scmp.ne.s32.totalorder %s110, %s124
      %p126 = scmp.eq.s32.totalorder %s37, 0
      %p127 = por %p125, %p126
      %s129 = sadd.s32 %s128, 1
      %p132 = scmp.eq.s32.totalorder %s31, 1
      %p133 = scmp.ne.s32.totalorder %s128, %s130
      %p134 = scmp.eq.s32.totalorder %s31, 0
      %p135 = por %p133, %p134
      %p136 = scmp.ne.s32.totalorder %s128, %s130
      %p137 = scmp.eq.s32.totalorder %s36, 1
      %p138 = por %p136, %p137
      %p139 = scmp.ne.s32.totalorder %s130, %s131
      %p140 = scmp.eq.s32.totalorder %s36, 0
      %p141 = por %p139, %p140
      %p142 = scmp.ne.s32.totalorder %s130, %s131
      %p143 = scmp.eq.s32.totalorder %s37, 1
      %p144 = por %p142, %p143
      %p146 = scmp.ne.s32.totalorder %s131, %s145
      %p147 = scmp.eq.s32.totalorder %s37, 0
      %p148 = por %p146, %p147
      %s150 = sadd.s32 %s149, 1
      %p153 = scmp.eq.s32.totalorder %s31, 1
      %p154 = scmp.ne.s32.totalorder %s149, %s151
      %p155 = scmp.eq.s32.totalorder %s31, 0
      %p156 = por %p154, %p155
      %p157 = scmp.ne.s32.totalorder %s149, %s151
      %p158 = scmp.eq.s32.totalorder %s36, 1
      %p159 = por %p157, %p158
      %p160 = scmp.ne.s32.totalorder %s151, %s152
      %p161 = scmp.eq.s32.totalorder %s36, 0
      %p162 = por %p160, %p161
      %p163 = scmp.ne.s32.totalorder %s151, %s152
      %p164 = scmp.eq.s32.totalorder %s37, 1
      %p165 = por %p163, %p164
      %p167 = scmp.ne.s32.totalorder %s152, %s166
      %p168 = scmp.eq.s32.totalorder %s37, 0
      %p169 = por %p167, %p168
      %s171 = sadd.s32 %s170, 1
      %p174 = scmp.eq.s32.totalorder %s31, 1
      %p175 = scmp.ne.s32.totalorder %s170, %s172
      %p176 = scmp.eq.s32.totalorder %s31, 0
      %p177 = por %p175, %p176
      %p178 = scmp.ne.s32.totalorder %s170, %s172
      %p179 = scmp.eq.s32.totalorder %s36, 1
      %p180 = por %p178, %p179
      %p181 = scmp.ne.s32.totalorder %s172, %s173
      %p182 = scmp.eq.s32.totalorder %s36, 0
      %p183 = por %p181, %p182
      %p184 = scmp.ne.s32.totalorder %s172, %s173
      %p185 = scmp.eq.s32.totalorder %s37, 1
      %p186 = por %p184, %p185
      %p188 = scmp.ne.s32.totalorder %s173, %s187
      %p189 = scmp.eq.s32.totalorder %s37, 0
      %p190 = por %p188, %p189
      %s192 = sadd.s32 %s191, 1
      %p195 = scmp.eq.s32.totalorder %s31, 1
      %p196 = scmp.ne.s32.totalorder %s191, %s193
      %p197 = scmp.eq.s32.totalorder %s31, 0
      %p198 = por %p196, %p197
      %p199 = scmp.ne.s32.totalorder %s191, %s193
      %p200 = scmp.eq.s32.totalorder %s36, 1
      %p201 = por %p199, %p200
      %p202 = scmp.ne.s32.totalorder %s193, %s194
      %p203 = scmp.eq.s32.totalorder %s36, 0
      %p204 = por %p202, %p203
      %p205 = scmp.ne.s32.totalorder %s193, %s194
      %p206 = scmp.eq.s32.totalorder %s37, 1
      %p207 = por %p205, %p206
      %p209 = scmp.ne.s32.totalorder %s194, %s208
      %p210 = scmp.eq.s32.totalorder %s37, 0
      %p211 = por %p209, %p210
      %s213 = sadd.s32 %s212, 1
      %p216 = scmp.eq.s32.totalorder %s31, 1
      %p217 = scmp.ne.s32.totalorder %s212, %s214
      %p218 = scmp.eq.s32.totalorder %s31, 0
      %p219 = por %p217, %p218
      %p220 = scmp.ne.s32.totalorder %s212, %s214
      %p221 = scmp.eq.s32.totalorder %s36, 1
      %p222 = por %p220, %p221
      %p223 = scmp.ne.s32.totalorder %s214, %s215
      %p224 = scmp.eq.s32.totalorder %s36, 0
      %p225 = por %p223, %p224
      %p226 = scmp.ne.s32.totalorder %s214, %s215
      %p227 = scmp.eq.s32.totalorder %s37, 1
      %p228 = por %p226, %p227
      %p230 = scmp.ne.s32.totalorder %s215, %s229
      %p231 = scmp.eq.s32.totalorder %s37, 0
      %p232 = por %p230, %p231
      %s234 = sadd.s32 %s233, 1
      %p237 = scmp.eq.s32.totalorder %s31, 1
      %p238 = scmp.ne.s32.totalorder %s233, %s235
      %p239 = scmp.eq.s32.totalorder %s31, 0
      %p240 = por %p238, %p239
      %p241 = scmp.ne.s32.totalorder %s233, %s235
      %p242 = scmp.eq.s32.totalorder %s36, 1
      %p243 = por %p241, %p242
      %p244 = scmp.ne.s32.totalorder %s235, %s236
      %p245 = scmp.eq.s32.totalorder %s36, 0
      %p246 = por %p244, %p245
      %p247 = scmp.ne.s32.totalorder %s235, %s236
      %p248 = scmp.eq.s32.totalorder %s37, 1
      %p249 = por %p247, %p248
      %p251 = scmp.ne.s32.totalorder %s236, %s250
      %p252 = scmp.eq.s32.totalorder %s37, 0
      %p253 = por %p251, %p252
      %s255 = sadd.s32 %s254, 1
      %p258 = scmp.eq.s32.totalorder %s31, 1
      %p259 = scmp.ne.s32.totalorder %s254, %s256
      %p260 = scmp.eq.s32.totalorder %s31, 0
      %p261 = por %p259, %p260
      %p262 = scmp.ne.s32.totalorder %s254, %s256
      %p263 = scmp.eq.s32.totalorder %s36, 1
      %p264 = por %p262, %p263
      %p265 = scmp.ne.s32.totalorder %s256, %s257
      %p266 = scmp.eq.s32.totalorder %s36, 0
      %p267 = por %p265, %p266
      %p268 = scmp.ne.s32.totalorder %s256, %s257
      %p269 = scmp.eq.s32.totalorder %s37, 1
      %p270 = por %p268, %p269
      %p272 = scmp.ne.s32.totalorder %s257, %s271
      %p273 = scmp.eq.s32.totalorder %s37, 0
      %p274 = por %p272, %p273
      %s276 = sadd.s32 %s275, 1
      %p279 = scmp.eq.s32.totalorder %s31, 1
      %p280 = scmp.ne.s32.totalorder %s275, %s277
      %p281 = scmp.eq.s32.totalorder %s31, 0
      %p282 = por %p280, %p281
      %p283 = scmp.ne.s32.totalorder %s275, %s277
      %p284 = scmp.eq.s32.totalorder %s36, 1
      %p285 = por %p283, %p284
      %p286 = scmp.ne.s32.totalorder %s277, %s278
      %p287 = scmp.eq.s32.totalorder %s36, 0
      %p288 = por %p286, %p287
      %p289 = scmp.ne.s32.totalorder %s277, %s278
      %p290 = scmp.eq.s32.totalorder %s37, 1
      %p291 = por %p289, %p290
      %p293 = scmp.ne.s32.totalorder %s278, %s292
      %p294 = scmp.eq.s32.totalorder %s37, 0
      %p295 = por %p293, %p294
      %s297 = sadd.s32 %s296, 1
      %p300 = scmp.eq.s32.totalorder %s31, 1
      %p301 = scmp.ne.s32.totalorder %s296, %s298
      %p302 = scmp.eq.s32.totalorder %s31, 0
      %p303 = por %p301, %p302
      %p304 = scmp.ne.s32.totalorder %s296, %s298
      %p305 = scmp.eq.s32.totalorder %s36, 1
      %p306 = por %p304, %p305
      %p307 = scmp.ne.s32.totalorder %s298, %s299
      %p308 = scmp.eq.s32.totalorder %s36, 0
      %p309 = por %p307, %p308
      %p310 = scmp.ne.s32.totalorder %s298, %s299
      %p311 = scmp.eq.s32.totalorder %s37, 1
      %p312 = por %p310, %p311
      %p314 = scmp.ne.s32.totalorder %s299, %s313
      %p315 = scmp.eq.s32.totalorder %s37, 0
      %p316 = por %p314, %p315
      %s318 = sadd.s32 %s317, 1
      %p321 = scmp.eq.s32.totalorder %s31, 1
      %p322 = scmp.ne.s32.totalorder %s317, %s319
      %p323 = scmp.eq.s32.totalorder %s31, 0
      %p324 = por %p322, %p323
      %p325 = scmp.ne.s32.totalorder %s317, %s319
      %p326 = scmp.eq.s32.totalorder %s36, 1
      %p327 = por %p325, %p326
      %p328 = scmp.ne.s32.totalorder %s319, %s320
      %p329 = scmp.eq.s32.totalorder %s36, 0
      %p330 = por %p328, %p329
      %p331 = scmp.ne.s32.totalorder %s319, %s320
      %p332 = scmp.eq.s32.totalorder %s37, 1
      %p333 = por %p331, %p332
      %p335 = scmp.ne.s32.totalorder %s320, %s334
      %p336 = scmp.eq.s32.totalorder %s37, 0
      %p337 = por %p335, %p336
      %s339 = sadd.s32 %s338, 1
      %p342 = scmp.eq.s32.totalorder %s31, 1
      %p343 = scmp.ne.s32.totalorder %s338, %s340
      %p344 = scmp.eq.s32.totalorder %s31, 0
      %p345 = por %p343, %p344
      %p346 = scmp.ne.s32.totalorder %s338, %s340
      %p347 = scmp.eq.s32.totalorder %s36, 1
      %p348 = por %p346, %p347
      %p349 = scmp.ne.s32.totalorder %s340, %s341
      %p350 = scmp.eq.s32.totalorder %s36, 0
      %p351 = por %p349, %p350
      %p352 = scmp.ne.s32.totalorder %s340, %s341
      %p353 = scmp.eq.s32.totalorder %s37, 1
      %p354 = por %p352, %p353
      %p356 = scmp.ne.s32.totalorder %s341, %s355
      %p357 = scmp.eq.s32.totalorder %s37, 0
      %p358 = por %p356, %p357
      %s360 = sadd.s32 %s359, 1
      %p363 = scmp.eq.s32.totalorder %s31, 1
      %p364 = scmp.ne.s32.totalorder %s359, %s361
      %p365 = scmp.eq.s32.totalorder %s31, 0
      %p366 = por %p364, %p365
      %p367 = scmp.ne.s32.totalorder %s359, %s361
      %p368 = scmp.eq.s32.totalorder %s36, 1
      %p369 = por %p367, %p368
      %p370 = scmp.ne.s32.totalorder %s361, %s362
      %p371 = scmp.eq.s32.totalorder %s36, 0
      %p372 = por %p370, %p371
      %p373 = scmp.ne.s32.totalorder %s361, %s362
      %p374 = scmp.eq.s32.totalorder %s37, 1
      %p375 = por %p373, %p374
      %p377 = scmp.ne.s32.totalorder %s362, %s376
      %p378 = scmp.eq.s32.totalorder %s37, 0
      %p379 = por %p377, %p378
      %s381 = sadd.s32 %s380, 1
      %p384 = scmp.eq.s32.totalorder %s31, 1
      %p385 = scmp.ne.s32.totalorder %s380, %s382
      %p386 = scmp.eq.s32.totalorder %s31, 0
      %p387 = por %p385, %p386
      %p388 = scmp.ne.s32.totalorder %s380, %s382
      %p389 = scmp.eq.s32.totalorder %s36, 1
      %p390 = por %p388, %p389
      %p391 = scmp.ne.s32.totalorder %s382, %s383
      %p392 = scmp.eq.s32.totalorder %s36, 0
      %p393 = por %p391, %p392
      %p394 = scmp.ne.s32.totalorder %s382, %s383
      %p395 = scmp.eq.s32.totalorder %s37, 1
      %p396 = por %p394, %p395
      %p398 = scmp.ne.s32.totalorder %s383, %s397
      %p399 = scmp.eq.s32.totalorder %s37, 0
      %p400 = por %p398, %p399
      %s401 = ssub.s32 %s31, %s38
      %p402 = scmp.eq.s32.totalorder %s401, 0
      %s404 = sadd.s32 %s403, 1
      %s405 = scalar_select %p402, %s403, %s404
      %p408 = pneg %p402
      %p409 = scmp.eq.s32.totalorder %s31, 1
      %p410 = por %p408, %p409
      %p411 = scmp.ne.s32.totalorder %s403, %s406
      %p412 = scmp.eq.s32.totalorder %s31, 0
      %p413 = por %p411, %p412
      %p414 = scmp.ne.s32.totalorder %s403, %s406
      %p415 = scmp.eq.s32.totalorder %s36, 1
      %p416 = por %p414, %p415
      %p417 = scmp.ne.s32.totalorder %s406, %s407
      %p418 = scmp.eq.s32.totalorder %s36, 0
      %p419 = por %p417, %p418
      %p420 = scmp.ne.s32.totalorder %s406, %s407
      %p421 = scmp.eq.s32.totalorder %s37, 1
      %p422 = por %p420, %p421
      %p424 = scmp.ne.s32.totalorder %s407, %s423
      %p425 = scmp.eq.s32.totalorder %s37, 0
      %p426 = por %p424, %p425
      %p427 = scmp.le.s32.totalorder 1, %s31
      %p428 = scmp.lt.s32.totalorder %s31, 3
      %p429 = pnand %p427, %p428
      %p430 = pneg %p429
      // Predicated region
      $region9: #{tpu_custom_call.1} parent=5 // pred_check
        _
      $region10: #{tpu_custom_call.1} parent=5 // pred_check_branch
        %432 = sbr.rel (%p429) target = $region12
      $region11: #{tpu_custom_call.1} parent=5 // pred_region
        %s433 = ssub.s32 %s31, 1
        // Predicated region
        $region13: #{tpu_custom_call.1} parent=11 // pred_check
          %p434 = pneg %p78
        $region14: #{tpu_custom_call.1} parent=11 // pred_check_branch
          %436 = sbr.rel (%p434) target = $region16
        $region15: #{tpu_custom_call.1} parent=11 // pred_region
          _
        $region16: #{tpu_custom_call.1} parent=11 // pred_fallthru
          _
        // Predicated region
        $region17: #{tpu_custom_call.1} parent=11 // pred_check
          %p437 = pneg %p99
        $region18: #{tpu_custom_call.1} parent=11 // pred_check_branch
          %439 = sbr.rel (%p437) target = $region20
        $region19: #{tpu_custom_call.1} parent=11 // pred_region
          %s441 = ssub.s32 32, 32
          %442 = vsyncadd [#allocation4], %s441
          %s443 = sshll.u32 [#allocation3], 4
          %s444 = int_to_ptr.vmem [resolvable:$true] %s443
          %449 = dma.hbm_to_vmem [thread:$0]  %s2, 32, %s444, [#allocation4], 16, 16, 1
        $region20: #{tpu_custom_call.1} parent=11 // pred_fallthru
          _
        // Predicated region
        $region21: #{tpu_custom_call.1} parent=11 // pred_check
          %p450 = pneg %p120
        $region22: #{tpu_custom_call.1} parent=11 // pred_check_branch
          %452 = sbr.rel (%p450) target = $region24
        $region23: #{tpu_custom_call.1} parent=11 // pred_region
          _
        $region24: #{tpu_custom_call.1} parent=11 // pred_fallthru
          _
        // Predicated region
        $region25: #{tpu_custom_call.1} parent=11 // pred_check
          %p453 = pneg %p141
        $region26: #{tpu_custom_call.1} parent=11 // pred_check_branch
          %455 = sbr.rel (%p453) target = $region28
        $region27: #{tpu_custom_call.1} parent=11 // pred_region
          %s457 = ssub.s32 32, 32
          %458 = vsyncadd [#allocation7], %s457
          %s459 = sshll.u32 [#allocation6], 4
          %s460 = int_to_ptr.vmem [resolvable:$true] %s459
          %465 = dma.hbm_to_vmem [thread:$0]  %s4, 32, %s460, [#allocation7], 16, 16, 1
        $region28: #{tpu_custom_call.1} parent=11 // pred_fallthru
          _
        // Predicated region
        $region29: #{tpu_custom_call.1} parent=11 // pred_check
          %p466 = pneg %p162
        $region30: #{tpu_custom_call.1} parent=11 // pred_check_branch
          %468 = sbr.rel (%p466) target = $region32
        $region31: #{tpu_custom_call.1} parent=11 // pred_region
          %s470 = ssub.s32 32, 32
          %471 = vsyncadd [#allocation7], %s470
          %s472 = sshll.u32 [#allocation8], 4
          %s473 = int_to_ptr.vmem [resolvable:$true] %s472
          %478 = dma.hbm_to_vmem [thread:$0]  %s5, 32, %s473, [#allocation7], 16, 16, 1
        $region32: #{tpu_custom_call.1} parent=11 // pred_fallthru
          _
        // Predicated region
        $region33: #{tpu_custom_call.1} parent=11 // pred_check
          %p479 = pneg %p183
        $region34: #{tpu_custom_call.1} parent=11 // pred_check_branch
          %481 = sbr.rel (%p479) target = $region36
        $region35: #{tpu_custom_call.1} parent=11 // pred_region
          %s483 = ssub.s32 32, 32
          %484 = vsyncadd [#allocation10], %s483
          %s485 = sshll.u32 [#allocation9], 4
          %s486 = int_to_ptr.vmem [resolvable:$true] %s485
          %491 = dma.hbm_to_vmem [thread:$0]  %s6, 32, %s486, [#allocation10], 16, 16, 1
        $region36: #{tpu_custom_call.1} parent=11 // pred_fallthru
          _
        // Predicated region
        $region37: #{tpu_custom_call.1} parent=11 // pred_check
          %p492 = pneg %p204
        $region38: #{tpu_custom_call.1} parent=11 // pred_check_branch
          %494 = sbr.rel (%p492) target = $region40
        $region39: #{tpu_custom_call.1} parent=11 // pred_region
          %s496 = ssub.s32 512, 512
          %497 = vsyncadd [#allocation10], %s496
          %s498 = sshll.u32 [#allocation11], 4
          %s499 = int_to_ptr.vmem [resolvable:$true] %s498
          %504 = dma.hbm_to_vmem [thread:$0]  %s7, 512, %s499, [#allocation10], 64, 64, 4
        $region40: #{tpu_custom_call.1} parent=11 // pred_fallthru
          _
        // Predicated region
        $region41: #{tpu_custom_call.1} parent=11 // pred_check
          %p505 = pneg %p225
        $region42: #{tpu_custom_call.1} parent=11 // pred_check_branch
          %507 = sbr.rel (%p505) target = $region44
        $region43: #{tpu_custom_call.1} parent=11 // pred_region
          %s509 = ssub.s32 32, 32
          %510 = vsyncadd [#allocation13], %s509
          %s511 = sshll.u32 [#allocation12], 4
          %s512 = int_to_ptr.vmem [resolvable:$true] %s511
          %517 = dma.hbm_to_vmem [thread:$0]  %s8, 32, %s512, [#allocation13], 16, 16, 1
        $region44: #{tpu_custom_call.1} parent=11 // pred_fallthru
          _
        // Predicated region
        $region45: #{tpu_custom_call.1} parent=11 // pred_check
          %p518 = pneg %p246
        $region46: #{tpu_custom_call.1} parent=11 // pred_check_branch
          %520 = sbr.rel (%p518) target = $region48
        $region47: #{tpu_custom_call.1} parent=11 // pred_region
          _
        $region48: #{tpu_custom_call.1} parent=11 // pred_fallthru
          _
        // Predicated region
        $region49: #{tpu_custom_call.1} parent=11 // pred_check
          %p521 = pneg %p267
        $region50: #{tpu_custom_call.1} parent=11 // pred_check_branch
          %523 = sbr.rel (%p521) target = $region52
        $region51: #{tpu_custom_call.1} parent=11 // pred_region
          %s525 = ssub.s32 32, 32
          %526 = vsyncadd [#allocation13], %s525
          %s527 = sshll.u32 [#allocation14], 4
          %s528 = int_to_ptr.vmem [resolvable:$true] %s527
          %533 = dma.hbm_to_vmem [thread:$0]  %s10, 32, %s528, [#allocation13], 16, 16, 1
        $region52: #{tpu_custom_call.1} parent=11 // pred_fallthru
          _
        // Predicated region
        $region53: #{tpu_custom_call.1} parent=11 // pred_check
          %p534 = pneg %p288
        $region54: #{tpu_custom_call.1} parent=11 // pred_check_branch
          %536 = sbr.rel (%p534) target = $region56
        $region55: #{tpu_custom_call.1} parent=11 // pred_region
          %s538 = ssub.s32 32, 32
          %539 = vsyncadd [#allocation16], %s538
          %s540 = sshll.u32 [#allocation15], 4
          %s541 = int_to_ptr.vmem [resolvable:$true] %s540
          %546 = dma.hbm_to_vmem [thread:$0]  %s11, 32, %s541, [#allocation16], 16, 16, 1
        $region56: #{tpu_custom_call.1} parent=11 // pred_fallthru
          _
        // Predicated region
        $region57: #{tpu_custom_call.1} parent=11 // pred_check
          %p547 = pneg %p309
        $region58: #{tpu_custom_call.1} parent=11 // pred_check_branch
          %549 = sbr.rel (%p547) target = $region60
        $region59: #{tpu_custom_call.1} parent=11 // pred_region
          %s551 = ssub.s32 32, 32
          %552 = vsyncadd [#allocation16], %s551
          %s553 = sshll.u32 [#allocation17], 4
          %s554 = int_to_ptr.vmem [resolvable:$true] %s553
          %559 = dma.hbm_to_vmem [thread:$0]  %s12, 32, %s554, [#allocation16], 16, 16, 1
        $region60: #{tpu_custom_call.1} parent=11 // pred_fallthru
          _
        // Predicated region
        $region61: #{tpu_custom_call.1} parent=11 // pred_check
          %p560 = pneg %p330
        $region62: #{tpu_custom_call.1} parent=11 // pred_check_branch
          %562 = sbr.rel (%p560) target = $region64
        $region63: #{tpu_custom_call.1} parent=11 // pred_region
          _
        $region64: #{tpu_custom_call.1} parent=11 // pred_fallthru
          _
        // Predicated region
        $region65: #{tpu_custom_call.1} parent=11 // pred_check
          %p563 = pneg %p351
        $region66: #{tpu_custom_call.1} parent=11 // pred_check_branch
          %565 = sbr.rel (%p563) target = $region68
        $region67: #{tpu_custom_call.1} parent=11 // pred_region
          _
        $region68: #{tpu_custom_call.1} parent=11 // pred_fallthru
          _
        // Predicated region
        $region69: #{tpu_custom_call.1} parent=11 // pred_check
          %p566 = pneg %p372
        $region70: #{tpu_custom_call.1} parent=11 // pred_check_branch
          %568 = sbr.rel (%p566) target = $region72
        $region71: #{tpu_custom_call.1} parent=11 // pred_region
          _
        $region72: #{tpu_custom_call.1} parent=11 // pred_fallthru
          _
        // Predicated region
        $region73: #{tpu_custom_call.1} parent=11 // pred_check
          %p569 = pneg %p393
        $region74: #{tpu_custom_call.1} parent=11 // pred_check_branch
          %571 = sbr.rel (%p569) target = $region76
        $region75: #{tpu_custom_call.1} parent=11 // pred_region
          _
        $region76: #{tpu_custom_call.1} parent=11 // pred_fallthru
          _
      $region12: #{tpu_custom_call.1} parent=5 // pred_fallthru
        _
      %p572 = scmp.lt.s32.totalorder %s31, 2
      // Predicated region
      $region77: #{tpu_custom_call.1} parent=5 // pred_check
        %p573 = pneg %p572
      $region78: #{tpu_custom_call.1} parent=5 // pred_check_branch
        %575 = sbr.rel (%p573) target = $region80
      $region79: #{tpu_custom_call.1} parent=5 // pred_region
        // Predicated region
        $region81: #{tpu_custom_call.1} parent=79 // pred_check
          %p576 = pneg %p51
        $region82: #{tpu_custom_call.1} parent=79 // pred_check_branch
          %578 = sbr.rel (%p576) target = $region84
        $region83: #{tpu_custom_call.1} parent=79 // pred_region
          %p579 = scmp.lt.s32.totalorder %s31, 1
          %s580 = scalar_select %p579, %s31, 1
          %s581 = smul.addr %s580, 2
          %s582 = smul.addr %s581, 8
          %s583 = scalar_lea.vmem %s0, %s582
        $region84: #{tpu_custom_call.1} parent=79 // pred_fallthru
          _
      $region80: #{tpu_custom_call.1} parent=5 // pred_fallthru
        _
      %p584 = scmp.le.s32.totalorder 1, %s31
      %p585 = scmp.lt.s32.totalorder %s31, 3
      %p586 = pnand %p584, %p585
      %p587 = pneg %p586
      // Predicated region
      $region85: #{tpu_custom_call.1} parent=5 // pred_check
        _
      $region86: #{tpu_custom_call.1} parent=5 // pred_check_branch
        %589 = sbr.rel (%p586) target = $region88
      $region87: #{tpu_custom_call.1} parent=5 // pred_region
        %s590 = ssub.s32 %s31, 1
        // Predicated region
        $region89: #{tpu_custom_call.1} parent=87 // pred_check
          %p591 = pneg %p99
        $region90: #{tpu_custom_call.1} parent=87 // pred_check_branch
          %593 = sbr.rel (%p591) target = $region92
        $region91: #{tpu_custom_call.1} parent=87 // pred_region
          %594 = dma.done [#allocation4], 32
        $region92: #{tpu_custom_call.1} parent=87 // pred_fallthru
          _
        // Predicated region
        $region93: #{tpu_custom_call.1} parent=87 // pred_check
          %p595 = pneg %p141
        $region94: #{tpu_custom_call.1} parent=87 // pred_check_branch
          %597 = sbr.rel (%p595) target = $region96
        $region95: #{tpu_custom_call.1} parent=87 // pred_region
          %598 = dma.done [#allocation7], 32
        $region96: #{tpu_custom_call.1} parent=87 // pred_fallthru
          _
        // Predicated region
        $region97: #{tpu_custom_call.1} parent=87 // pred_check
          %p599 = pneg %p162
        $region98: #{tpu_custom_call.1} parent=87 // pred_check_branch
          %601 = sbr.rel (%p599) target = $region100
        $region99: #{tpu_custom_call.1} parent=87 // pred_region
          %602 = dma.done [#allocation7], 32
        $region100: #{tpu_custom_call.1} parent=87 // pred_fallthru
          _
        // Predicated region
        $region101: #{tpu_custom_call.1} parent=87 // pred_check
          %p603 = pneg %p183
        $region102: #{tpu_custom_call.1} parent=87 // pred_check_branch
          %605 = sbr.rel (%p603) target = $region104
        $region103: #{tpu_custom_call.1} parent=87 // pred_region
          %606 = dma.done [#allocation10], 32
        $region104: #{tpu_custom_call.1} parent=87 // pred_fallthru
          _
        // Predicated region
        $region105: #{tpu_custom_call.1} parent=87 // pred_check
          %p607 = pneg %p204
        $region106: #{tpu_custom_call.1} parent=87 // pred_check_branch
          %609 = sbr.rel (%p607) target = $region108
        $region107: #{tpu_custom_call.1} parent=87 // pred_region
          %610 = dma.done [#allocation10], 512
        $region108: #{tpu_custom_call.1} parent=87 // pred_fallthru
          _
        // Predicated region
        $region109: #{tpu_custom_call.1} parent=87 // pred_check
          %p611 = pneg %p225
        $region110: #{tpu_custom_call.1} parent=87 // pred_check_branch
          %613 = sbr.rel (%p611) target = $region112
        $region111: #{tpu_custom_call.1} parent=87 // pred_region
          %614 = dma.done [#allocation13], 32
        $region112: #{tpu_custom_call.1} parent=87 // pred_fallthru
          _
        // Predicated region
        $region113: #{tpu_custom_call.1} parent=87 // pred_check
          %p615 = pneg %p267
        $region114: #{tpu_custom_call.1} parent=87 // pred_check_branch
          %617 = sbr.rel (%p615) target = $region116
        $region115: #{tpu_custom_call.1} parent=87 // pred_region
          %618 = dma.done [#allocation13], 32
        $region116: #{tpu_custom_call.1} parent=87 // pred_fallthru
          _
        // Predicated region
        $region117: #{tpu_custom_call.1} parent=87 // pred_check
          %p619 = pneg %p288
        $region118: #{tpu_custom_call.1} parent=87 // pred_check_branch
          %621 = sbr.rel (%p619) target = $region120
        $region119: #{tpu_custom_call.1} parent=87 // pred_region
          %622 = dma.done [#allocation16], 32
        $region120: #{tpu_custom_call.1} parent=87 // pred_fallthru
          _
        // Predicated region
        $region121: #{tpu_custom_call.1} parent=87 // pred_check
          %p623 = pneg %p309
        $region122: #{tpu_custom_call.1} parent=87 // pred_check_branch
          %625 = sbr.rel (%p623) target = $region124
        $region123: #{tpu_custom_call.1} parent=87 // pred_region
          %626 = dma.done [#allocation16], 32
        $region124: #{tpu_custom_call.1} parent=87 // pred_fallthru
          _
        %p627 = scmp.lt.s32.totalorder %s36, 1
        %s628 = scalar_select %p627, %s36, 1
        %s629 = smul.addr %s628, 2
        %s630 = smul.addr %s629, 8
        %s631 = scalar_lea.vmem %s0, %s630
        %p632 = pneg %p57
        %p633 = pneg %p54
        %p634 = pneg %p78
        %p635 = pneg %p75
        %p636 = pneg %p99
        %p637 = pneg %p96
        %p638 = pneg %p120
        %p639 = pneg %p117
        %p640 = pneg %p141
        %p641 = pneg %p138
        %p642 = pneg %p162
        %p643 = pneg %p159
        %p644 = pneg %p183
        %p645 = pneg %p180
        %p646 = pneg %p204
        %p647 = pneg %p201
        %p648 = pneg %p225
        %p649 = pneg %p222
        %p650 = pneg %p246
        %p651 = pneg %p243
        %p652 = pneg %p267
        %p653 = pneg %p264
        %p654 = pneg %p288
        %p655 = pneg %p285
        %p656 = pneg %p309
        %p657 = pneg %p306
        %p658 = pneg %p330
        %p659 = pneg %p327
        %p660 = pneg %p351
        %p661 = pneg %p348
        %p662 = pneg %p372
        %p663 = pneg %p369
        %p664 = pneg %p393
        %p665 = pneg %p390
        %p666 = pneg %p419
        %p667 = pneg %p416
        %s668 = sand.u32 %s406, 1
        %s669 = scalar_lea.sflag [#allocation5], %s668
        %s670 = sand.u32 %s406, 1
        %s671 = scalar_lea.vmem [#allocation18], %s670
        %p672 = scmp.lt.s32.totalorder %s36, 1
        %s673 = scalar_select %p672, %s36, 1
        %s674 = smul.addr %s673, 2
        %s675 = smul.addr %s674, 8
        %s676 = scalar_lea.vmem %s0, %s675
        %v678 = vlaneseq
        %v679 = vand.u32 %v678, 127
        %vm680 = vcmp.lt.s32.totalorder %v679, 9
        %v681 = vsel %vm680, 0.0, -1e+30
        %v682 = vld [vmem:[%s676] sm:$0xff]
        %v683 = vld [vmem:[%s676 + $0x8] sm:$0xff]
        %v684 = vpack.c.bf16 %v683, %v682
        %v685 = vld [vmem:[%s1] sm:$0xf]
        %v686 = vld [vmem:[%s1 + $0x4] sm:$0xf]
        %v687 = vld [vmem:[%s1 + $0x8] sm:$0xf]
        %v688 = vld [vmem:[%s1 + $0xc] sm:$0xf]
        %v689 = vld [vmem:[#allocation3] sm:$0x1]
        %v691 = vlaneseq
        %v692 = vshrl.u32 %v691, 7
        %v693 = vsub.s32 0, %v692
        %v694 = vrot.slane %v689, %v693
        %v700 = vunpack.c.l.b16 %v685
        %v701 = vunpack.c.l.b16 %v686
        %v702 = vunpack.c.l.b16 %v687
        %v703 = vunpack.c.l.b16 %v688
        %v704 = vpack.c.b16 %v701, %v700
        %v705 = vpack.c.b16 %v703, %v702
        %vm708 = vcmask 261120
        %v710 = vsel %vm708, %v684, 0
        %712 = vmatprep.subr.bf16.mxu0 0
        %713 = vmatpush1.bf16.msra.mxu0 %v704
        %714 = vmatprep.subr.bf16.mxu0 0
        %715 = vmatpush1.bf16.msra.mxu0 %v705
        %716 = vmatprep.subr.bf16.mxu0 0
        %717 = vmatpush1.bf16.msra.mxu0 0
        %718 = vmatprep.subr.bf16.mxu0 0
        %719 = vmatpush1.bf16.msra.mxu0 0
        %720 = vmatprep.subr.bf16.mxu0 0
        %721 = vmatpush1.bf16.msra.mxu0 0
        %722 = vmatprep.subr.bf16.mxu0 0
        %723 = vmatpush1.bf16.msra.mxu0 0
        %724 = vmatprep.subr.bf16.mxu0 0
        %725 = vmatpush1.bf16.msra.mxu0 0
        %726 = vmatprep.subr.bf16.mxu0 0
        %727 = vmatpush1.bf16.msra.mxu0 0
        %728 = vmatprep.subr.bf16.mxu0 0
        %729 = vmatpush1.bf16.msra.mxu0 0
        %730 = vmatprep.subr.bf16.mxu0 0
        %731 = vmatpush1.bf16.msra.mxu0 0
        %732 = vmatprep.subr.bf16.mxu0 0
        %733 = vmatpush1.bf16.msra.mxu0 0
        %734 = vmatprep.subr.bf16.mxu0 0
        %735 = vmatpush1.bf16.msra.mxu0 0
        %736 = vmatprep.subr.bf16.mxu0 0
        %737 = vmatpush1.bf16.msra.mxu0 0
        %738 = vmatprep.subr.bf16.mxu0 0
        %739 = vmatpush1.bf16.msra.mxu0 0
        %740 = vmatprep.subr.bf16.mxu0 0
        %741 = vmatpush1.bf16.msra.mxu0 0
        %742 = vmatprep.subr.bf16.mxu0 0
        %743 = vmatpush1.bf16.msra.mxu0 0
        %744 = vmatprep.mubr.bf16.mxu0 0
        %745 = vmatmul.mubr.bf16.gmra.mrb[0].mxu0 %v710
        %v746 = vpop.f32.mrb[0].mxu0
        %v747 = vadd.f32 %v694, %v746
        %v748 = vpop.f32.mrb[0].mxu0
        %v749 = vpop.f32.mrb[0].mxu0
        %v750 = vadd.f32 %v694, %v749
        %v751 = vpop.f32.mrb[0].mxu0
        %752 = vdwg.mxu0
        %v753 = vpack.c.bf16 %v750, %v747
        %755 = vrot.lane.b32.xlu0 %v753, 96
        %v756 = vpop.permute.xlu0 %755
        %vm757 = vcmask 64512
        %v759 = vsel %vm757, %v753, 0
        %v762 = vsel %vm757, %v756, 0
        %764 = vmatprep.subr.bf16.mxu0 0
        %765 = vmatpush1.bf16.xpose.msra.mxu0 %v762
        %766 = vmatprep.subr.bf16.mxu0 0
        %767 = vmatpush1.bf16.xpose.msra.mxu0 0
        %768 = vmatprep.subr.bf16.mxu0 0
        %769 = vmatpush1.bf16.xpose.msra.mxu0 0
        %770 = vmatprep.subr.bf16.mxu0 0
        %771 = vmatpush1.bf16.xpose.msra.mxu0 0
        %772 = vmatprep.subr.bf16.mxu0 0
        %773 = vmatpush1.bf16.xpose.msra.mxu0 0
        %774 = vmatprep.subr.bf16.mxu0 0
        %775 = vmatpush1.bf16.xpose.msra.mxu0 0
        %776 = vmatprep.subr.bf16.mxu0 0
        %777 = vmatpush1.bf16.xpose.msra.mxu0 0
        %778 = vmatprep.subr.bf16.mxu0 0
        %779 = vmatpush1.bf16.xpose.msra.mxu0 0
        %780 = vmatprep.subr.bf16.mxu0 0
        %781 = vmatpush1.bf16.xpose.msra.mxu0 0
        %782 = vmatprep.subr.bf16.mxu0 0
        %783 = vmatpush1.bf16.xpose.msra.mxu0 0
        %784 = vmatprep.subr.bf16.mxu0 0
        %785 = vmatpush1.bf16.xpose.msra.mxu0 0
        %786 = vmatprep.subr.bf16.mxu0 0
        %787 = vmatpush1.bf16.xpose.msra.mxu0 0
        %788 = vmatprep.subr.bf16.mxu0 0
        %789 = vmatpush1.bf16.xpose.msra.mxu0 0
        %790 = vmatprep.subr.bf16.mxu0 0
        %791 = vmatpush1.bf16.xpose.msra.mxu0 0
        %792 = vmatprep.subr.bf16.mxu0 0
        %793 = vmatpush1.bf16.xpose.msra.mxu0 0
        %794 = vmatprep.subr.bf16.mxu0 0
        %795 = vmatpush1.bf16.xpose.msra.mxu0 0
        %796 = vmatprep.mubr.bf16.mxu0 0
        %797 = vmatmul.mubr.bf16.gmra.mrb[0].mxu0 %v759
        %v798 = vpop.f32.mrb[0].mxu0
        %v799 = vadd.f32 0.0, %v798
        %v800 = vpop.f32.mrb[0].mxu0
        %v801 = vpop.f32.mrb[0].mxu0
        %v802 = vadd.f32 0.0, %v801
        %v803 = vpop.f32.mrb[0].mxu0
        %804 = vdwg.mxu0
        %v805 = vmul.f32 %v799, 0.35355338
        %v806 = vmul.f32 %v802, 0.35355338
        %v807 = vadd.f32 %v805, %v681
        %v808 = vadd.f32 %v806, %v681
        %vm809 = vcmask 130048
        %v810 = vsel %vm809, %v807, -inf
        %811 = vmax.xlane.f32.xlu0 %v810
        %v812 = vpop.xlane.xlu0 %811
        %v813 = vsel %vm809, %v808, -inf
        %814 = vmax.xlane.f32.xlu0 %v813
        %v815 = vpop.xlane.xlu0 %814
        %v816 = vsub.f32 %v807, %v812
        %v817 = vsub.f32 %v808, %v815
        %v818 = vmul.f32 %v816, 1.442695
        %v819 = vpow.pop %v818
        %v820 = vmul.f32 %v817, 1.442695
        %v821 = vpow.pop %v820
        %v822 = vsel %vm809, %v819, 0.0
        %823 = vadd.xlane.f32.xlu0 %v822
        %v824 = vpop.xlane.xlu0 %823
        %v825 = vsel %vm809, %v821, 0.0
        %826 = vadd.xlane.f32.xlu0 %v825
        %v827 = vpop.xlane.xlu0 %826
        %v828 = vrcp.pop %v824
        %v829 = vrcp.pop %v827
        %v830 = vmul.f32 %v819, %v828
        %v831 = vmul.f32 %v821, %v829
        %v832 = vpack.c.bf16 %v831, %v830
        %833 = vrot.lane.b32.xlu0 %v753, 64
        %v834 = vpop.permute.xlu0 %833
        %v837 = vsel %vm809, %v832, 0
        %839 = vmatprep.subr.bf16.mxu0 0
        %840 = vmatpush1.bf16.msra.mxu0 %v834
        %841 = vmatprep.subr.bf16.mxu0 0
        %842 = vmatpush1.bf16.msra.mxu0 0
        %843 = vmatprep.subr.bf16.mxu0 0
        %844 = vmatpush1.bf16.msra.mxu0 0
        %845 = vmatprep.subr.bf16.mxu0 0
        %846 = vmatpush1.bf16.msra.mxu0 0
        %847 = vmatprep.subr.bf16.mxu0 0
        %848 = vmatpush1.bf16.msra.mxu0 0
        %849 = vmatprep.subr.bf16.mxu0 0
        %850 = vmatpush1.bf16.msra.mxu0 0
        %851 = vmatprep.subr.bf16.mxu0 0
        %852 = vmatpush1.bf16.msra.mxu0 0
        %853 = vmatprep.subr.bf16.mxu0 0
        %854 = vmatpush1.bf16.msra.mxu0 0
        %855 = vmatprep.subr.bf16.mxu0 0
        %856 = vmatpush1.bf16.msra.mxu0 0
        %857 = vmatprep.subr.bf16.mxu0 0
        %858 = vmatpush1.bf16.msra.mxu0 0
        %859 = vmatprep.subr.bf16.mxu0 0
        %860 = vmatpush1.bf16.msra.mxu0 0
        %861 = vmatprep.subr.bf16.mxu0 0
        %862 = vmatpush1.bf16.msra.mxu0 0
        %863 = vmatprep.subr.bf16.mxu0 0
        %864 = vmatpush1.bf16.msra.mxu0 0
        %865 = vmatprep.subr.bf16.mxu0 0
        %866 = vmatpush1.bf16.msra.mxu0 0
        %867 = vmatprep.subr.bf16.mxu0 0
        %868 = vmatpush1.bf16.msra.mxu0 0
        %869 = vmatprep.subr.bf16.mxu0 0
        %870 = vmatpush1.bf16.msra.mxu0 0
        %871 = vmatprep.mubr.bf16.mxu0 0
        %872 = vmatmul.mubr.bf16.gmra.mrb[0].mxu0 %v837
        %v873 = vpop.f32.mrb[0].mxu0
        %v874 = vadd.f32 0.0, %v873
        %v875 = vpop.f32.mrb[0].mxu0
        %v876 = vpop.f32.mrb[0].mxu0
        %v877 = vadd.f32 0.0, %v876
        %v878 = vpop.f32.mrb[0].mxu0
        %879 = vdwg.mxu0
        %v880 = vpack.c.bf16 %v877, %v874
        %881 = vst.msk [vmem:[#allocation2] sm:$0xff] %vm757, %v880
        %882 = vrot.lane.b32.xlu0 %v753, 120
        %v883 = vpop.permute.xlu0 %882
        %884 = vrot.lane.b32.xlu0 %v753, 88
        %v885 = vpop.permute.xlu0 %884
        %v887 = vsel %vm757, %v883, 0
        %v890 = vsel %vm757, %v885, 0
        %892 = vmatprep.subr.bf16.mxu0 0
        %893 = vmatpush1.bf16.xpose.msra.mxu0 %v890
        %894 = vmatprep.subr.bf16.mxu0 0
        %895 = vmatpush1.bf16.xpose.msra.mxu0 0
        %896 = vmatprep.subr.bf16.mxu0 0
        %897 = vmatpush1.bf16.xpose.msra.mxu0 0
        %898 = vmatprep.subr.bf16.mxu0 0
        %899 = vmatpush1.bf16.xpose.msra.mxu0 0
        %900 = vmatprep.subr.bf16.mxu0 0
        %901 = vmatpush1.bf16.xpose.msra.mxu0 0
        %902 = vmatprep.subr.bf16.mxu0 0
        %903 = vmatpush1.bf16.xpose.msra.mxu0 0
        %904 = vmatprep.subr.bf16.mxu0 0
        %905 = vmatpush1.bf16.xpose.msra.mxu0 0
        %906 = vmatprep.subr.bf16.mxu0 0
        %907 = vmatpush1.bf16.xpose.msra.mxu0 0
        %908 = vmatprep.subr.bf16.mxu0 0
        %909 = vmatpush1.bf16.xpose.msra.mxu0 0
        %910 = vmatprep.subr.bf16.mxu0 0
        %911 = vmatpush1.bf16.xpose.msra.mxu0 0
        %912 = vmatprep.subr.bf16.mxu0 0
        %913 = vmatpush1.bf16.xpose.msra.mxu0 0
        %914 = vmatprep.subr.bf16.mxu0 0
        %915 = vmatpush1.bf16.xpose.msra.mxu0 0
        %916 = vmatprep.subr.bf16.mxu0 0
        %917 = vmatpush1.bf16.xpose.msra.mxu0 0
        %918 = vmatprep.subr.bf16.mxu0 0
        %919 = vmatpush1.bf16.xpose.msra.mxu0 0
        %920 = vmatprep.subr.bf16.mxu0 0
        %921 = vmatpush1.bf16.xpose.msra.mxu0 0
        %922 = vmatprep.subr.bf16.mxu0 0
        %923 = vmatpush1.bf16.xpose.msra.mxu0 0
        %924 = vmatprep.mubr.bf16.mxu0 0
        %925 = vmatmul.mubr.bf16.gmra.mrb[0].mxu0 %v887
        %v926 = vpop.f32.mrb[0].mxu0
        %v927 = vadd.f32 0.0, %v926
        %v928 = vpop.f32.mrb[0].mxu0
        %v929 = vpop.f32.mrb[0].mxu0
        %v930 = vadd.f32 0.0, %v929
        %v931 = vpop.f32.mrb[0].mxu0
        %932 = vdwg.mxu0
        %v933 = vmul.f32 %v927, 0.35355338
        %v934 = vmul.f32 %v930, 0.35355338
        %v935 = vadd.f32 %v933, %v681
        %v936 = vadd.f32 %v934, %v681
        %v937 = vsel %vm809, %v935, -inf
        %938 = vmax.xlane.f32.xlu0 %v937
        %v939 = vpop.xlane.xlu0 %938
        %v940 = vsel %vm809, %v936, -inf
        %941 = vmax.xlane.f32.xlu0 %v940
        %v942 = vpop.xlane.xlu0 %941
        %v943 = vsub.f32 %v935, %v939
        %v944 = vsub.f32 %v936, %v942
        %v945 = vmul.f32 %v943, 1.442695
        %v946 = vpow.pop %v945
        %v947 = vmul.f32 %v944, 1.442695
        %v948 = vpow.pop %v947
        %v949 = vsel %vm809, %v946, 0.0
        %950 = vadd.xlane.f32.xlu0 %v949
        %v951 = vpop.xlane.xlu0 %950
        %v952 = vsel %vm809, %v948, 0.0
        %953 = vadd.xlane.f32.xlu0 %v952
        %v954 = vpop.xlane.xlu0 %953
        %v955 = vrcp.pop %v951
        %v956 = vrcp.pop %v954
        %v957 = vmul.f32 %v946, %v955
        %v958 = vmul.f32 %v948, %v956
        %v959 = vpack.c.bf16 %v958, %v957
        %960 = vrot.lane.b32.xlu0 %v753, 56
        %v961 = vpop.permute.xlu0 %960
        %v964 = vsel %vm809, %v959, 0
        %966 = vmatprep.subr.bf16.mxu0 0
        %967 = vmatpush1.bf16.msra.mxu0 %v961
        %968 = vmatprep.subr.bf16.mxu0 0
        %969 = vmatpush1.bf16.msra.mxu0 0
        %970 = vmatprep.subr.bf16.mxu0 0
        %971 = vmatpush1.bf16.msra.mxu0 0
        %972 = vmatprep.subr.bf16.mxu0 0
        %973 = vmatpush1.bf16.msra.mxu0 0
        %974 = vmatprep.subr.bf16.mxu0 0
        %975 = vmatpush1.bf16.msra.mxu0 0
        %976 = vmatprep.subr.bf16.mxu0 0
        %977 = vmatpush1.bf16.msra.mxu0 0
        %978 = vmatprep.subr.bf16.mxu0 0
        %979 = vmatpush1.bf16.msra.mxu0 0
        %980 = vmatprep.subr.bf16.mxu0 0
        %981 = vmatpush1.bf16.msra.mxu0 0
        %982 = vmatprep.subr.bf16.mxu0 0
        %983 = vmatpush1.bf16.msra.mxu0 0
        %984 = vmatprep.subr.bf16.mxu0 0
        %985 = vmatpush1.bf16.msra.mxu0 0
        %986 = vmatprep.subr.bf16.mxu0 0
        %987 = vmatpush1.bf16.msra.mxu0 0
        %988 = vmatprep.subr.bf16.mxu0 0
        %989 = vmatpush1.bf16.msra.mxu0 0
        %990 = vmatprep.subr.bf16.mxu0 0
        %991 = vmatpush1.bf16.msra.mxu0 0
        %992 = vmatprep.subr.bf16.mxu0 0
        %993 = vmatpush1.bf16.msra.mxu0 0
        %994 = vmatprep.subr.bf16.mxu0 0
        %995 = vmatpush1.bf16.msra.mxu0 0
        %996 = vmatprep.subr.bf16.mxu0 0
        %997 = vmatpush1.bf16.msra.mxu0 0
        %998 = vmatprep.mubr.bf16.mxu0 0
        %999 = vmatmul.mubr.bf16.gmra.mrb[0].mxu0 %v964
        %v1000 = vpop.f32.mrb[0].mxu0
        %v1001 = vadd.f32 0.0, %v1000
        %v1002 = vpop.f32.mrb[0].mxu0
        %v1003 = vpop.f32.mrb[0].mxu0
        %v1004 = vadd.f32 0.0, %v1003
        %v1005 = vpop.f32.mrb[0].mxu0
        %1006 = vdwg.mxu0
        %v1007 = vpack.c.bf16 %v1004, %v1001
        %1009 = vrot.lane.b32.xlu0 %v1007, 8
        %v1010 = vpop.permute.xlu0 %1009
        %vm1012 = vcmask 130112
        %1013 = vst.msk [vmem:[#allocation2] sm:$0xff] %vm1012, %v1010
        %1014 = vrot.lane.b32.xlu0 %v753, 112
        %v1015 = vpop.permute.xlu0 %1014
        %1016 = vrot.lane.b32.xlu0 %v753, 80
        %v1017 = vpop.permute.xlu0 %1016
        %v1019 = vsel %vm757, %v1015, 0
        %v1022 = vsel %vm757, %v1017, 0
        %1024 = vmatprep.subr.bf16.mxu0 0
        %1025 = vmatpush1.bf16.xpose.msra.mxu0 %v1022
        %1026 = vmatprep.subr.bf16.mxu0 0
        %1027 = vmatpush1.bf16.xpose.msra.mxu0 0
        %1028 = vmatprep.subr.bf16.mxu0 0
        %1029 = vmatpush1.bf16.xpose.msra.mxu0 0
        %1030 = vmatprep.subr.bf16.mxu0 0
        %1031 = vmatpush1.bf16.xpose.msra.mxu0 0
        %1032 = vmatprep.subr.bf16.mxu0 0
        %1033 = vmatpush1.bf16.xpose.msra.mxu0 0
        %1034 = vmatprep.subr.bf16.mxu0 0
        %1035 = vmatpush1.bf16.xpose.msra.mxu0 0
        %1036 = vmatprep.subr.bf16.mxu0 0
        %1037 = vmatpush1.bf16.xpose.msra.mxu0 0
        %1038 = vmatprep.subr.bf16.mxu0 0
        %1039 = vmatpush1.bf16.xpose.msra.mxu0 0
        %1040 = vmatprep.subr.bf16.mxu0 0
        %1041 = vmatpush1.bf16.xpose.msra.mxu0 0
        %1042 = vmatprep.subr.bf16.mxu0 0
        %1043 = vmatpush1.bf16.xpose.msra.mxu0 0
        %1044 = vmatprep.subr.bf16.mxu0 0
        %1045 = vmatpush1.bf16.xpose.msra.mxu0 0
        %1046 = vmatprep.subr.bf16.mxu0 0
        %1047 = vmatpush1.bf16.xpose.msra.mxu0 0
        %1048 = vmatprep.subr.bf16.mxu0 0
        %1049 = vmatpush1.bf16.xpose.msra.mxu0 0
        %1050 = vmatprep.subr.bf16.mxu0 0
        %1051 = vmatpush1.bf16.xpose.msra.mxu0 0
        %1052 = vmatprep.subr.bf16.mxu0 0
        %1053 = vmatpush1.bf16.xpose.msra.mxu0 0
        %1054 = vmatprep.subr.bf16.mxu0 0
        %1055 = vmatpush1.bf16.xpose.msra.mxu0 0
        %1056 = vmatprep.mubr.bf16.mxu0 0
        %1057 = vmatmul.mubr.bf16.gmra.mrb[0].mxu0 %v1019
        %v1058 = vpop.f32.mrb[0].mxu0
        %v1059 = vadd.f32 0.0, %v1058
        %v1060 = vpop.f32.mrb[0].mxu0
        %v1061 = vpop.f32.mrb[0].mxu0
        %v1062 = vadd.f32 0.0, %v1061
        %v1063 = vpop.f32.mrb[0].mxu0
        %1064 = vdwg.mxu0
        %v1065 = vmul.f32 %v1059, 0.35355338
        %v1066 = vmul.f32 %v1062, 0.35355338
        %v1067 = vadd.f32 %v1065, %v681
        %v1068 = vadd.f32 %v1066, %v681
        %v1069 = vsel %vm809, %v1067, -inf
        %1070 = vmax.xlane.f32.xlu0 %v1069
        %v1071 = vpop.xlane.xlu0 %1070
        %v1072 = vsel %vm809, %v1068, -inf
        %1073 = vmax.xlane.f32.xlu0 %v1072
        %v1074 = vpop.xlane.xlu0 %1073
        %v1075 = vsub.f32 %v1067, %v1071
        %v1076 = vsub.f32 %v1068, %v1074
        %v1077 = vmul.f32 %v1075, 1.442695
        %v1078 = vpow.pop %v1077
        %v1079 = vmul.f32 %v1076, 1.442695
        %v1080 = vpow.pop %v1079
        %v1081 = vsel %vm809, %v1078, 0.0
        %1082 = vadd.xlane.f32.xlu0 %v1081
        %v1083 = vpop.xlane.xlu0 %1082
        %v1084 = vsel %vm809, %v1080, 0.0
        %1085 = vadd.xlane.f32.xlu0 %v1084
        %v1086 = vpop.xlane.xlu0 %1085
        %v1087 = vrcp.pop %v1083
        %v1088 = vrcp.pop %v1086
        %v1089 = vmul.f32 %v1078, %v1087
        %v1090 = vmul.f32 %v1080, %v1088
        %v1091 = vpack.c.bf16 %v1090, %v1089
        %1092 = vrot.lane.b32.xlu0 %v753, 48
        %v1093 = vpop.permute.xlu0 %1092
        %v1096 = vsel %vm809, %v1091, 0
        %1098 = vmatprep.subr.bf16.mxu0 0
        %1099 = vmatpush1.bf16.msra.mxu0 %v1093
        %1100 = vmatprep.subr.bf16.mxu0 0
        %1101 = vmatpush1.bf16.msra.mxu0 0
        %1102 = vmatprep.subr.bf16.mxu0 0
        %1103 = vmatpush1.bf16.msra.mxu0 0
        %1104 = vmatprep.subr.bf16.mxu0 0
        %1105 = vmatpush1.bf16.msra.mxu0 0
        %1106 = vmatprep.subr.bf16.mxu0 0
        %1107 = vmatpush1.bf16.msra.mxu0 0
        %1108 = vmatprep.subr.bf16.mxu0 0
        %1109 = vmatpush1.bf16.msra.mxu0 0
        %1110 = vmatprep.subr.bf16.mxu0 0
        %1111 = vmatpush1.bf16.msra.mxu0 0
        %1112 = vmatprep.subr.bf16.mxu0 0
        %1113 = vmatpush1.bf16.msra.mxu0 0
        %1114 = vmatprep.subr.bf16.mxu0 0
        %1115 = vmatpush1.bf16.msra.mxu0 0
        %1116 = vmatprep.subr.bf16.mxu0 0
        %1117 = vmatpush1.bf16.msra.mxu0 0
        %1118 = vmatprep.subr.bf16.mxu0 0
        %1119 = vmatpush1.bf16.msra.mxu0 0
        %1120 = vmatprep.subr.bf16.mxu0 0
        %1121 = vmatpush1.bf16.msra.mxu0 0
        %1122 = vmatprep.subr.bf16.mxu0 0
        %1123 = vmatpush1.bf16.msra.mxu0 0
        %1124 = vmatprep.subr.bf16.mxu0 0
        %1125 = vmatpush1.bf16.msra.mxu0 0
        %1126 = vmatprep.subr.bf16.mxu0 0
        %1127 = vmatpush1.bf16.msra.mxu0 0
        %1128 = vmatprep.subr.bf16.mxu0 0
        %1129 = vmatpush1.bf16.msra.mxu0 0
        %1130 = vmatprep.mubr.bf16.mxu0 0
        %1131 = vmatmul.mubr.bf16.gmra.mrb[0].mxu0 %v1096
        %v1132 = vpop.f32.mrb[0].mxu0
        %v1133 = vadd.f32 0.0, %v1132
        %v1134 = vpop.f32.mrb[0].mxu0
        %v1135 = vpop.f32.mrb[0].mxu0
        %v1136 = vadd.f32 0.0, %v1135
        %v1137 = vpop.f32.mrb[0].mxu0
        %1138 = vdwg.mxu0
        %v1139 = vpack.c.bf16 %v1136, %v1133
        %1141 = vrot.lane.b32.xlu0 %v1139, 16
        %v1142 = vpop.permute.xlu0 %1141
        %vm1144 = vcmask 195712
        %1145 = vst.msk [vmem:[#allocation2] sm:$0xff] %vm1144, %v1142
        %1146 = vrot.lane.b32.xlu0 %v753, 104
        %v1147 = vpop.permute.xlu0 %1146
        %1148 = vrot.lane.b32.xlu0 %v753, 72
        %v1149 = vpop.permute.xlu0 %1148
        %v1151 = vsel %vm757, %v1147, 0
        %v1154 = vsel %vm757, %v1149, 0
        %1156 = vmatprep.subr.bf16.mxu0 0
        %1157 = vmatpush1.bf16.xpose.msra.mxu0 %v1154
        %1158 = vmatprep.subr.bf16.mxu0 0
        %1159 = vmatpush1.bf16.xpose.msra.mxu0 0
        %1160 = vmatprep.subr.bf16.mxu0 0
        %1161 = vmatpush1.bf16.xpose.msra.mxu0 0
        %1162 = vmatprep.subr.bf16.mxu0 0
        %1163 = vmatpush1.bf16.xpose.msra.mxu0 0
        %1164 = vmatprep.subr.bf16.mxu0 0
        %1165 = vmatpush1.bf16.xpose.msra.mxu0 0
        %1166 = vmatprep.subr.bf16.mxu0 0
        %1167 = vmatpush1.bf16.xpose.msra.mxu0 0
        %1168 = vmatprep.subr.bf16.mxu0 0
        %1169 = vmatpush1.bf16.xpose.msra.mxu0 0
        %1170 = vmatprep.subr.bf16.mxu0 0
        %1171 = vmatpush1.bf16.xpose.msra.mxu0 0
        %1172 = vmatprep.subr.bf16.mxu0 0
        %1173 = vmatpush1.bf16.xpose.msra.mxu0 0
        %1174 = vmatprep.subr.bf16.mxu0 0
        %1175 = vmatpush1.bf16.xpose.msra.mxu0 0
        %1176 = vmatprep.subr.bf16.mxu0 0
        %1177 = vmatpush1.bf16.xpose.msra.mxu0 0
        %1178 = vmatprep.subr.bf16.mxu0 0
        %1179 = vmatpush1.bf16.xpose.msra.mxu0 0
        %1180 = vmatprep.subr.bf16.mxu0 0
        %1181 = vmatpush1.bf16.xpose.msra.mxu0 0
        %1182 = vmatprep.subr.bf16.mxu0 0
        %1183 = vmatpush1.bf16.xpose.msra.mxu0 0
        %1184 = vmatprep.subr.bf16.mxu0 0
        %1185 = vmatpush1.bf16.xpose.msra.mxu0 0
        %1186 = vmatprep.subr.bf16.mxu0 0
        %1187 = vmatpush1.bf16.xpose.msra.mxu0 0
        %1188 = vmatprep.mubr.bf16.mxu0 0
        %1189 = vmatmul.mubr.bf16.gmra.mrb[0].mxu0 %v1151
        %v1190 = vpop.f32.mrb[0].mxu0
        %v1191 = vadd.f32 0.0, %v1190
        %v1192 = vpop.f32.mrb[0].mxu0
        %v1193 = vpop.f32.mrb[0].mxu0
        %v1194 = vadd.f32 0.0, %v1193
        %v1195 = vpop.f32.mrb[0].mxu0
        %1196 = vdwg.mxu0
        %v1197 = vmul.f32 %v1191, 0.35355338
        %v1198 = vmul.f32 %v1194, 0.35355338
        %v1199 = vadd.f32 %v1197, %v681
        %v1200 = vadd.f32 %v1198, %v681
        %v1201 = vsel %vm809, %v1199, -inf
        %1202 = vmax.xlane.f32.xlu0 %v1201
        %v1203 = vpop.xlane.xlu0 %1202
        %v1204 = vsel %vm809, %v1200, -inf
        %1205 = vmax.xlane.f32.xlu0 %v1204
        %v1206 = vpop.xlane.xlu0 %1205
        %v1207 = vsub.f32 %v1199, %v1203
        %v1208 = vsub.f32 %v1200, %v1206
        %v1209 = vmul.f32 %v1207, 1.442695
        %v1210 = vpow.pop %v1209
        %v1211 = vmul.f32 %v1208, 1.442695
        %v1212 = vpow.pop %v1211
        %v1213 = vsel %vm809, %v1210, 0.0
        %1214 = vadd.xlane.f32.xlu0 %v1213
        %v1215 = vpop.xlane.xlu0 %1214
        %v1216 = vsel %vm809, %v1212, 0.0
        %1217 = vadd.xlane.f32.xlu0 %v1216
        %v1218 = vpop.xlane.xlu0 %1217
        %v1219 = vrcp.pop %v1215
        %v1220 = vrcp.pop %v1218
        %v1221 = vmul.f32 %v1210, %v1219
        %v1222 = vmul.f32 %v1212, %v1220
        %v1223 = vpack.c.bf16 %v1222, %v1221
        %1224 = vrot.lane.b32.xlu0 %v753, 40
        %v1225 = vpop.permute.xlu0 %1224
        %v1228 = vsel %vm809, %v1223, 0
        %1230 = vmatprep.subr.bf16.mxu0 0
        %1231 = vmatpush1.bf16.msra.mxu0 %v1225
        %1232 = vmatprep.subr.bf16.mxu0 0
        %1233 = vmatpush1.bf16.msra.mxu0 0
        %1234 = vmatprep.subr.bf16.mxu0 0
        %1235 = vmatpush1.bf16.msra.mxu0 0
        %1236 = vmatprep.subr.bf16.mxu0 0
        %1237 = vmatpush1.bf16.msra.mxu0 0
        %1238 = vmatprep.subr.bf16.mxu0 0
        %1239 = vmatpush1.bf16.msra.mxu0 0
        %1240 = vmatprep.subr.bf16.mxu0 0
        %1241 = vmatpush1.bf16.msra.mxu0 0
        %1242 = vmatprep.subr.bf16.mxu0 0
        %1243 = vmatpush1.bf16.msra.mxu0 0
        %1244 = vmatprep.subr.bf16.mxu0 0
        %1245 = vmatpush1.bf16.msra.mxu0 0
        %1246 = vmatprep.subr.bf16.mxu0 0
        %1247 = vmatpush1.bf16.msra.mxu0 0
        %1248 = vmatprep.subr.bf16.mxu0 0
        %1249 = vmatpush1.bf16.msra.mxu0 0
        %1250 = vmatprep.subr.bf16.mxu0 0
        %1251 = vmatpush1.bf16.msra.mxu0 0
        %1252 = vmatprep.subr.bf16.mxu0 0
        %1253 = vmatpush1.bf16.msra.mxu0 0
        %1254 = vmatprep.subr.bf16.mxu0 0
        %1255 = vmatpush1.bf16.msra.mxu0 0
        %1256 = vmatprep.subr.bf16.mxu0 0
        %1257 = vmatpush1.bf16.msra.mxu0 0
        %1258 = vmatprep.subr.bf16.mxu0 0
        %1259 = vmatpush1.bf16.msra.mxu0 0
        %1260 = vmatprep.subr.bf16.mxu0 0
        %1261 = vmatpush1.bf16.msra.mxu0 0
        %1262 = vmatprep.mubr.bf16.mxu0 0
        %1263 = vmatmul.mubr.bf16.gmra.mrb[0].mxu0 %v1228
        %v1264 = vpop.f32.mrb[0].mxu0
        %v1265 = vadd.f32 0.0, %v1264
        %v1266 = vpop.f32.mrb[0].mxu0
        %v1267 = vpop.f32.mrb[0].mxu0
        %v1268 = vadd.f32 0.0, %v1267
        %v1269 = vpop.f32.mrb[0].mxu0
        %1270 = vdwg.mxu0
        %v1271 = vpack.c.bf16 %v1268, %v1265
        %1273 = vrot.lane.b32.xlu0 %v1271, 24
        %v1274 = vpop.permute.xlu0 %1273
        %vm1276 = vcmask 261312
        %1277 = vst.msk [vmem:[#allocation2] sm:$0xff] %vm1276, %v1274
        %v1278 = vld [vmem:[#allocation2] sm:$0xff]
        %v1279 = vld [vmem:[%s3] sm:$0xf]
        %v1280 = vld [vmem:[%s3 + $0x4] sm:$0xf]
        %v1281 = vld [vmem:[%s3 + $0x8] sm:$0xf]
        %v1282 = vld [vmem:[%s3 + $0xc] sm:$0xf]
        %v1283 = vld [vmem:[#allocation6] sm:$0x1]
        %v1285 = vlaneseq
        %v1286 = vshrl.u32 %v1285, 7
        %v1287 = vsub.s32 0, %v1286
        %v1288 = vrot.slane %v1283, %v1287
        %v1294 = vunpack.c.l.b16 %v1279
        %v1295 = vunpack.c.l.b16 %v1280
        %v1296 = vunpack.c.l.b16 %v1281
        %v1297 = vunpack.c.l.b16 %v1282
        %v1298 = vpack.c.b16 %v1295, %v1294
        %v1299 = vpack.c.b16 %v1297, %v1296
        %v1303 = vsel %vm708, %v1278, 0
        %1305 = vmatprep.subr.bf16.mxu0 0
        %1306 = vmatpush1.bf16.msra.mxu0 %v1298
        %1307 = vmatprep.subr.bf16.mxu0 0
        %1308 = vmatpush1.bf16.msra.mxu0 %v1299
        %1309 = vmatprep.subr.bf16.mxu0 0
        %1310 = vmatpush1.bf16.msra.mxu0 0
        %1311 = vmatprep.subr.bf16.mxu0 0
        %1312 = vmatpush1.bf16.msra.mxu0 0
        %1313 = vmatprep.subr.bf16.mxu0 0
        %1314 = vmatpush1.bf16.msra.mxu0 0
        %1315 = vmatprep.subr.bf16.mxu0 0
        %1316 = vmatpush1.bf16.msra.mxu0 0
        %1317 = vmatprep.subr.bf16.mxu0 0
        %1318 = vmatpush1.bf16.msra.mxu0 0
        %1319 = vmatprep.subr.bf16.mxu0 0
        %1320 = vmatpush1.bf16.msra.mxu0 0
        %1321 = vmatprep.subr.bf16.mxu0 0
        %1322 = vmatpush1.bf16.msra.mxu0 0
        %1323 = vmatprep.subr.bf16.mxu0 0
        %1324 = vmatpush1.bf16.msra.mxu0 0
        %1325 = vmatprep.subr.bf16.mxu0 0
        %1326 = vmatpush1.bf16.msra.mxu0 0
        %1327 = vmatprep.subr.bf16.mxu0 0
        %1328 = vmatpush1.bf16.msra.mxu0 0
        %1329 = vmatprep.subr.bf16.mxu0 0
        %1330 = vmatpush1.bf16.msra.mxu0 0
        %1331 = vmatprep.subr.bf16.mxu0 0
        %1332 = vmatpush1.bf16.msra.mxu0 0
        %1333 = vmatprep.subr.bf16.mxu0 0
        %1334 = vmatpush1.bf16.msra.mxu0 0
        %1335 = vmatprep.subr.bf16.mxu0 0
        %1336 = vmatpush1.bf16.msra.mxu0 0
        %1337 = vmatprep.mubr.bf16.mxu0 0
        %1338 = vmatmul.mubr.bf16.gmra.mrb[0].mxu0 %v1303
        %v1339 = vpop.f32.mrb[0].mxu0
        %v1340 = vadd.f32 %v1288, %v1339
        %v1341 = vpop.f32.mrb[0].mxu0
        %v1342 = vpop.f32.mrb[0].mxu0
        %v1343 = vadd.f32 %v1288, %v1342
        %v1344 = vpop.f32.mrb[0].mxu0
        %1345 = vdwg.mxu0
        %v1346 = vadd.f32 %v682, %v1340
        %v1347 = vadd.f32 %v683, %v1343
        %v1348 = vld [vmem:[#allocation8] sm:$0x1]
        %v1349 = vld [vmem:[#allocation9] sm:$0x1]
        %v1350 = vsel %vm708, %v1346, 0.0
        %1351 = vadd.xlane.f32.xlu0 %v1350
        %v1352 = vpop.xlane.xlu0 %1351
        %v1353 = vsel %vm708, %v1347, 0.0
        %1354 = vadd.xlane.f32.xlu0 %v1353
        %v1355 = vpop.xlane.xlu0 %1354
        %v1356 = vrcp.pop 32.0
        %v1357 = vmul.f32 %v1352, %v1356
        %v1358 = vmul.f32 %v1355, %v1356
        %v1359 = vsub.f32 %v1346, %v1357
        %v1360 = vsub.f32 %v1347, %v1358
        %v1361 = vmul.f32 %v1359, %v1359
        %v1362 = vmul.f32 %v1360, %v1360
        %v1363 = vsel %vm708, %v1361, 0.0
        %1364 = vadd.xlane.f32.xlu0 %v1363
        %v1365 = vpop.xlane.xlu0 %1364
        %v1366 = vsel %vm708, %v1362, 0.0
        %1367 = vadd.xlane.f32.xlu0 %v1366
        %v1368 = vpop.xlane.xlu0 %1367
        %v1369 = vmul.f32 %v1365, %v1356
        %v1370 = vmul.f32 %v1368, %v1356
        %v1371 = vadd.f32 %v1369, 1e-05
        %v1372 = vadd.f32 %v1370, 1e-05
        %v1373 = vrsqrt.pop %v1371
        %v1374 = vrsqrt.pop %v1372
        %v1375 = vmul.f32 %v1359, %v1373
        %v1376 = vmul.f32 %v1360, %v1374
        %v1378 = vlaneseq
        %v1379 = vshrl.u32 %v1378, 7
        %v1380 = vsub.s32 0, %v1379
        %v1381 = vrot.slane %v1348, %v1380
        %v1383 = vmul.f32 %v1375, %v1381
        %v1384 = vmul.f32 %v1376, %v1381
        %v1386 = vlaneseq
        %v1387 = vshrl.u32 %v1386, 7
        %v1388 = vsub.s32 0, %v1387
        %v1389 = vrot.slane %v1349, %v1388
        %v1391 = vadd.f32 %v1383, %v1389
        %v1392 = vadd.f32 %v1384, %v1389
        %v1393 = vpack.c.bf16 %v1392, %v1391
        %v1394 = vld [vmem:[#allocation11] sm:$0xf]
        %v1395 = vld [vmem:[#allocation11 + $0x4] sm:$0xf]
        %v1396 = vld [vmem:[#allocation11 + $0x8] sm:$0xf]
        %v1397 = vld [vmem:[#allocation11 + $0xc] sm:$0xf]
        %v1398 = vld [vmem:[#allocation12] sm:$0x1]
        %v1400 = vlaneseq
        %v1401 = vshrl.u32 %v1400, 7
        %v1402 = vsub.s32 0, %v1401
        %v1403 = vrot.slane %v1398, %v1402
        %v1409 = vunpack.c.l.b16 %v1394
        %v1410 = vunpack.c.l.b16 %v1395
        %v1411 = vunpack.c.l.b16 %v1396
        %v1412 = vunpack.c.l.b16 %v1397
        %v1413 = vpack.c.b16 %v1410, %v1409
        %v1414 = vpack.c.b16 %v1412, %v1411
        %v1418 = vsel %vm708, %v1393, 0
        %1420 = vmatprep.subr.bf16.mxu0 0
        %1421 = vmatpush1.bf16.msra.mxu0 %v1413
        %1422 = vmatprep.subr.bf16.mxu0 0
        %1423 = vmatpush1.bf16.msra.mxu0 %v1414
        %1424 = vmatprep.subr.bf16.mxu0 0
        %1425 = vmatpush1.bf16.msra.mxu0 0
        %1426 = vmatprep.subr.bf16.mxu0 0
        %1427 = vmatpush1.bf16.msra.mxu0 0
        %1428 = vmatprep.subr.bf16.mxu0 0
        %1429 = vmatpush1.bf16.msra.mxu0 0
        %1430 = vmatprep.subr.bf16.mxu0 0
        %1431 = vmatpush1.bf16.msra.mxu0 0
        %1432 = vmatprep.subr.bf16.mxu0 0
        %1433 = vmatpush1.bf16.msra.mxu0 0
        %1434 = vmatprep.subr.bf16.mxu0 0
        %1435 = vmatpush1.bf16.msra.mxu0 0
        %1436 = vmatprep.subr.bf16.mxu0 0
        %1437 = vmatpush1.bf16.msra.mxu0 0
        %1438 = vmatprep.subr.bf16.mxu0 0
        %1439 = vmatpush1.bf16.msra.mxu0 0
        %1440 = vmatprep.subr.bf16.mxu0 0
        %1441 = vmatpush1.bf16.msra.mxu0 0
        %1442 = vmatprep.subr.bf16.mxu0 0
        %1443 = vmatpush1.bf16.msra.mxu0 0
        %1444 = vmatprep.subr.bf16.mxu0 0
        %1445 = vmatpush1.bf16.msra.mxu0 0
        %1446 = vmatprep.subr.bf16.mxu0 0
        %1447 = vmatpush1.bf16.msra.mxu0 0
        %1448 = vmatprep.subr.bf16.mxu0 0
        %1449 = vmatpush1.bf16.msra.mxu0 0
        %1450 = vmatprep.subr.bf16.mxu0 0
        %1451 = vmatpush1.bf16.msra.mxu0 0
        %1452 = vmatprep.mubr.bf16.mxu0 0
        %1453 = vmatmul.mubr.bf16.gmra.mrb[0].mxu0 %v1418
        %v1454 = vpop.f32.mrb[0].mxu0
        %v1455 = vadd.f32 %v1403, %v1454
        %v1456 = vpop.f32.mrb[0].mxu0
        %v1457 = vpop.f32.mrb[0].mxu0
        %v1458 = vadd.f32 %v1403, %v1457
        %v1459 = vpop.f32.mrb[0].mxu0
        %1460 = vdwg.mxu0
        %v1461 = vmul.f32 %v1455, 0.5
        %v1462 = vmul.f32 %v1458, 0.5
        %v1463 = vmul.f32 %v1455, 0.70710677
        %v1464 = vmul.f32 %v1458, 0.70710677
        %v1465 = verf.f32.pop %v1463
        %v1466 = verf.f32.pop %v1464
        %v1467 = vadd.f32 %v1465, 1.0
        %v1468 = vadd.f32 %v1466, 1.0
        %v1469 = vmul.f32 %v1461, %v1467
        %v1470 = vmul.f32 %v1462, %v1468
        %v1471 = vpack.c.bf16 %v1470, %v1469
        %v1472 = vld [vmem:[%s9] sm:$0xf]
        %v1473 = vld [vmem:[%s9 + $0x4] sm:$0xf]
        %v1474 = vld [vmem:[%s9 + $0x8] sm:$0xf]
        %v1475 = vld [vmem:[%s9 + $0xc] sm:$0xf]
        %v1476 = vld [vmem:[%s9 + $0x10] sm:$0xf]
        %v1477 = vld [vmem:[%s9 + $0x14] sm:$0xf]
        %v1478 = vld [vmem:[%s9 + $0x18] sm:$0xf]
        %v1479 = vld [vmem:[%s9 + $0x1c] sm:$0xf]
        %v1480 = vld [vmem:[#allocation14] sm:$0x1]
        %v1482 = vlaneseq
        %v1483 = vshrl.u32 %v1482, 7
        %v1484 = vsub.s32 0, %v1483
        %v1485 = vrot.slane %v1480, %v1484
        %v1495 = vunpack.c.l.b16 %v1472
        %v1496 = vunpack.c.l.b16 %v1473
        %v1497 = vunpack.c.l.b16 %v1474
        %v1498 = vunpack.c.l.b16 %v1475
        %v1499 = vunpack.c.l.b16 %v1476
        %v1500 = vunpack.c.l.b16 %v1477
        %v1501 = vunpack.c.l.b16 %v1478
        %v1502 = vunpack.c.l.b16 %v1479
        %v1503 = vpack.c.b16 %v1496, %v1495
        %v1504 = vpack.c.b16 %v1498, %v1497
        %v1505 = vpack.c.b16 %v1500, %v1499
        %v1506 = vpack.c.b16 %v1502, %v1501
        %vm1511 = vcmask 523264
        %v1513 = vsel %vm1511, %v1471, 0
        %1515 = vmatprep.subr.bf16.mxu0 0
        %1516 = vmatpush1.bf16.msra.mxu0 %v1503
        %1517 = vmatprep.subr.bf16.mxu0 0
        %1518 = vmatpush1.bf16.msra.mxu0 %v1504
        %1519 = vmatprep.subr.bf16.mxu0 0
        %1520 = vmatpush1.bf16.msra.mxu0 %v1505
        %1521 = vmatprep.subr.bf16.mxu0 0
        %1522 = vmatpush1.bf16.msra.mxu0 %v1506
        %1523 = vmatprep.subr.bf16.mxu0 0
        %1524 = vmatpush1.bf16.msra.mxu0 0
        %1525 = vmatprep.subr.bf16.mxu0 0
        %1526 = vmatpush1.bf16.msra.mxu0 0
        %1527 = vmatprep.subr.bf16.mxu0 0
        %1528 = vmatpush1.bf16.msra.mxu0 0
        %1529 = vmatprep.subr.bf16.mxu0 0
        %1530 = vmatpush1.bf16.msra.mxu0 0
        %1531 = vmatprep.subr.bf16.mxu0 0
        %1532 = vmatpush1.bf16.msra.mxu0 0
        %1533 = vmatprep.subr.bf16.mxu0 0
        %1534 = vmatpush1.bf16.msra.mxu0 0
        %1535 = vmatprep.subr.bf16.mxu0 0
        %1536 = vmatpush1.bf16.msra.mxu0 0
        %1537 = vmatprep.subr.bf16.mxu0 0
        %1538 = vmatpush1.bf16.msra.mxu0 0
        %1539 = vmatprep.subr.bf16.mxu0 0
        %1540 = vmatpush1.bf16.msra.mxu0 0
        %1541 = vmatprep.subr.bf16.mxu0 0
        %1542 = vmatpush1.bf16.msra.mxu0 0
        %1543 = vmatprep.subr.bf16.mxu0 0
        %1544 = vmatpush1.bf16.msra.mxu0 0
        %1545 = vmatprep.subr.bf16.mxu0 0
        %1546 = vmatpush1.bf16.msra.mxu0 0
        %1547 = vmatprep.mubr.bf16.mxu0 0
        %1548 = vmatmul.mubr.bf16.gmra.mrb[0].mxu0 %v1513
        %v1549 = vpop.f32.mrb[0].mxu0
        %v1550 = vadd.f32 %v1485, %v1549
        %v1551 = vpop.f32.mrb[0].mxu0
        %v1552 = vpop.f32.mrb[0].mxu0
        %v1553 = vadd.f32 %v1485, %v1552
        %v1554 = vpop.f32.mrb[0].mxu0
        %1555 = vdwg.mxu0
        %v1556 = vadd.f32 %v1391, %v1550
        %v1557 = vadd.f32 %v1392, %v1553
        %v1558 = vld [vmem:[#allocation15] sm:$0x1]
        %v1559 = vld [vmem:[#allocation17] sm:$0x1]
        %v1560 = vsel %vm708, %v1556, 0.0
        %1561 = vadd.xlane.f32.xlu0 %v1560
        %v1562 = vpop.xlane.xlu0 %1561
        %v1563 = vsel %vm708, %v1557, 0.0
        %1564 = vadd.xlane.f32.xlu0 %v1563
        %v1565 = vpop.xlane.xlu0 %1564
        %v1566 = vmul.f32 %v1562, %v1356
        %v1567 = vmul.f32 %v1565, %v1356
        %v1568 = vsub.f32 %v1556, %v1566
        %v1569 = vsub.f32 %v1557, %v1567
        %v1570 = vmul.f32 %v1568, %v1568
        %v1571 = vmul.f32 %v1569, %v1569
        %v1572 = vsel %vm708, %v1570, 0.0
        %1573 = vadd.xlane.f32.xlu0 %v1572
        %v1574 = vpop.xlane.xlu0 %1573
        %v1575 = vsel %vm708, %v1571, 0.0
        %1576 = vadd.xlane.f32.xlu0 %v1575
        %v1577 = vpop.xlane.xlu0 %1576
        %v1578 = vmul.f32 %v1574, %v1356
        %v1579 = vmul.f32 %v1577, %v1356
        %v1580 = vadd.f32 %v1578, 1e-05
        %v1581 = vadd.f32 %v1579, 1e-05
        %v1582 = vrsqrt.pop %v1580
        %v1583 = vrsqrt.pop %v1581
        %v1584 = vmul.f32 %v1568, %v1582
        %v1585 = vmul.f32 %v1569, %v1583
        %v1587 = vlaneseq
        %v1588 = vshrl.u32 %v1587, 7
        %v1589 = vsub.s32 0, %v1588
        %v1590 = vrot.slane %v1558, %v1589
        %v1592 = vmul.f32 %v1584, %v1590
        %v1593 = vmul.f32 %v1585, %v1590
        %v1595 = vlaneseq
        %v1596 = vshrl.u32 %v1595, 7
        %v1597 = vsub.s32 0, %v1596
        %v1598 = vrot.slane %v1559, %v1597
        %v1600 = vadd.f32 %v1592, %v1598
        %v1601 = vadd.f32 %v1593, %v1598
        %v1602 = vpack.c.bf16 %v1601, %v1600
        %s1603 = scalar_lea.vmem %s1, 16
        %v1604 = vld [vmem:[%s1603] sm:$0xf]
        %v1605 = vld [vmem:[%s1603 + $0x4] sm:$0xf]
        %v1606 = vld [vmem:[%s1603 + $0x8] sm:$0xf]
        %v1607 = vld [vmem:[%s1603 + $0xc] sm:$0xf]
        %s1608 = scalar_lea.vmem [#allocation3], 1
        %v1609 = vld [vmem:[%s1608] sm:$0x1]
        %v1611 = vlaneseq
        %v1612 = vshrl.u32 %v1611, 7
        %v1613 = vsub.s32 0, %v1612
        %v1614 = vrot.slane %v1609, %v1613
        %v1620 = vunpack.c.l.b16 %v1604
        %v1621 = vunpack.c.l.b16 %v1605
        %v1622 = vunpack.c.l.b16 %v1606
        %v1623 = vunpack.c.l.b16 %v1607
        %v1624 = vpack.c.b16 %v1621, %v1620
        %v1625 = vpack.c.b16 %v1623, %v1622
        %v1629 = vsel %vm708, %v1602, 0
        %1631 = vmatprep.subr.bf16.mxu0 0
        %1632 = vmatpush1.bf16.msra.mxu0 %v1624
        %1633 = vmatprep.subr.bf16.mxu0 0
        %1634 = vmatpush1.bf16.msra.mxu0 %v1625
        %1635 = vmatprep.subr.bf16.mxu0 0
        %1636 = vmatpush1.bf16.msra.mxu0 0
        %1637 = vmatprep.subr.bf16.mxu0 0
        %1638 = vmatpush1.bf16.msra.mxu0 0
        %1639 = vmatprep.subr.bf16.mxu0 0
        %1640 = vmatpush1.bf16.msra.mxu0 0
        %1641 = vmatprep.subr.bf16.mxu0 0
        %1642 = vmatpush1.bf16.msra.mxu0 0
        %1643 = vmatprep.subr.bf16.mxu0 0
        %1644 = vmatpush1.bf16.msra.mxu0 0
        %1645 = vmatprep.subr.bf16.mxu0 0
        %1646 = vmatpush1.bf16.msra.mxu0 0
        %1647 = vmatprep.subr.bf16.mxu0 0
        %1648 = vmatpush1.bf16.msra.mxu0 0
        %1649 = vmatprep.subr.bf16.mxu0 0
        %1650 = vmatpush1.bf16.msra.mxu0 0
        %1651 = vmatprep.subr.bf16.mxu0 0
        %1652 = vmatpush1.bf16.msra.mxu0 0
        %1653 = vmatprep.subr.bf16.mxu0 0
        %1654 = vmatpush1.bf16.msra.mxu0 0
        %1655 = vmatprep.subr.bf16.mxu0 0
        %1656 = vmatpush1.bf16.msra.mxu0 0
        %1657 = vmatprep.subr.bf16.mxu0 0
        %1658 = vmatpush1.bf16.msra.mxu0 0
        %1659 = vmatprep.subr.bf16.mxu0 0
        %1660 = vmatpush1.bf16.msra.mxu0 0
        %1661 = vmatprep.subr.bf16.mxu0 0
        %1662 = vmatpush1.bf16.msra.mxu0 0
        %1663 = vmatprep.mubr.bf16.mxu0 0
        %1664 = vmatmul.mubr.bf16.gmra.mrb[0].mxu0 %v1629
        %v1665 = vpop.f32.mrb[0].mxu0
        %v1666 = vadd.f32 %v1614, %v1665
        %v1667 = vpop.f32.mrb[0].mxu0
        %v1668 = vpop.f32.mrb[0].mxu0
        %v1669 = vadd.f32 %v1614, %v1668
        %v1670 = vpop.f32.mrb[0].mxu0
        %1671 = vdwg.mxu0
        %v1672 = vpack.c.bf16 %v1669, %v1666
        %1674 = vrot.lane.b32.xlu0 %v1672, 96
        %v1675 = vpop.permute.xlu0 %1674
        %v1677 = vsel %vm757, %v1672, 0
        %v1680 = vsel %vm757, %v1675, 0
        %1682 = vmatprep.subr.bf16.mxu0 0
        %1683 = vmatpush1.bf16.xpose.msra.mxu0 %v1680
        %1684 = vmatprep.subr.bf16.mxu0 0
        %1685 = vmatpush1.bf16.xpose.msra.mxu0 0
        %1686 = vmatprep.subr.bf16.mxu0 0
        %1687 = vmatpush1.bf16.xpose.msra.mxu0 0
        %1688 = vmatprep.subr.bf16.mxu0 0
        %1689 = vmatpush1.bf16.xpose.msra.mxu0 0
        %1690 = vmatprep.subr.bf16.mxu0 0
        %1691 = vmatpush1.bf16.xpose.msra.mxu0 0
        %1692 = vmatprep.subr.bf16.mxu0 0
        %1693 = vmatpush1.bf16.xpose.msra.mxu0 0
        %1694 = vmatprep.subr.bf16.mxu0 0
        %1695 = vmatpush1.bf16.xpose.msra.mxu0 0
        %1696 = vmatprep.subr.bf16.mxu0 0
        %1697 = vmatpush1.bf16.xpose.msra.mxu0 0
        %1698 = vmatprep.subr.bf16.mxu0 0
        %1699 = vmatpush1.bf16.xpose.msra.mxu0 0
        %1700 = vmatprep.subr.bf16.mxu0 0
        %1701 = vmatpush1.bf16.xpose.msra.mxu0 0
        %1702 = vmatprep.subr.bf16.mxu0 0
        %1703 = vmatpush1.bf16.xpose.msra.mxu0 0
        %1704 = vmatprep.subr.bf16.mxu0 0
        %1705 = vmatpush1.bf16.xpose.msra.mxu0 0
        %1706 = vmatprep.subr.bf16.mxu0 0
        %1707 = vmatpush1.bf16.xpose.msra.mxu0 0
        %1708 = vmatprep.subr.bf16.mxu0 0
        %1709 = vmatpush1.bf16.xpose.msra.mxu0 0
        %1710 = vmatprep.subr.bf16.mxu0 0
        %1711 = vmatpush1.bf16.xpose.msra.mxu0 0
        %1712 = vmatprep.subr.bf16.mxu0 0
        %1713 = vmatpush1.bf16.xpose.msra.mxu0 0
        %1714 = vmatprep.mubr.bf16.mxu0 0
        %1715 = vmatmul.mubr.bf16.gmra.mrb[0].mxu0 %v1677
        %v1716 = vpop.f32.mrb[0].mxu0
        %v1717 = vadd.f32 0.0, %v1716
        %v1718 = vpop.f32.mrb[0].mxu0
        %v1719 = vpop.f32.mrb[0].mxu0
        %v1720 = vadd.f32 0.0, %v1719
        %v1721 = vpop.f32.mrb[0].mxu0
        %1722 = vdwg.mxu0
        %v1723 = vmul.f32 %v1717, 0.35355338
        %v1724 = vmul.f32 %v1720, 0.35355338
        %v1725 = vadd.f32 %v1723, %v681
        %v1726 = vadd.f32 %v1724, %v681
        %v1727 = vsel %vm809, %v1725, -inf
        %1728 = vmax.xlane.f32.xlu0 %v1727
        %v1729 = vpop.xlane.xlu0 %1728
        %v1730 = vsel %vm809, %v1726, -inf
        %1731 = vmax.xlane.f32.xlu0 %v1730
        %v1732 = vpop.xlane.xlu0 %1731
        %v1733 = vsub.f32 %v1725, %v1729
        %v1734 = vsub.f32 %v1726, %v1732
        %v1735 = vmul.f32 %v1733, 1.442695
        %v1736 = vpow.pop %v1735
        %v1737 = vmul.f32 %v1734, 1.442695
        %v1738 = vpow.pop %v1737
        %v1739 = vsel %vm809, %v1736, 0.0
        %1740 = vadd.xlane.f32.xlu0 %v1739
        %v1741 = vpop.xlane.xlu0 %1740
        %v1742 = vsel %vm809, %v1738, 0.0
        %1743 = vadd.xlane.f32.xlu0 %v1742
        %v1744 = vpop.xlane.xlu0 %1743
        %v1745 = vrcp.pop %v1741
        %v1746 = vrcp.pop %v1744
        %v1747 = vmul.f32 %v1736, %v1745
        %v1748 = vmul.f32 %v1738, %v1746
        %v1749 = vpack.c.bf16 %v1748, %v1747
        %1750 = vrot.lane.b32.xlu0 %v1672, 64
        %v1751 = vpop.permute.xlu0 %1750
        %v1754 = vsel %vm809, %v1749, 0
        %1756 = vmatprep.subr.bf16.mxu0 0
        %1757 = vmatpush1.bf16.msra.mxu0 %v1751
        %1758 = vmatprep.subr.bf16.mxu0 0
        %1759 = vmatpush1.bf16.msra.mxu0 0
        %1760 = vmatprep.subr.bf16.mxu0 0
        %1761 = vmatpush1.bf16.msra.mxu0 0
        %1762 = vmatprep.subr.bf16.mxu0 0
        %1763 = vmatpush1.bf16.msra.mxu0 0
        %1764 = vmatprep.subr.bf16.mxu0 0
        %1765 = vmatpush1.bf16.msra.mxu0 0
        %1766 = vmatprep.subr.bf16.mxu0 0
        %1767 = vmatpush1.bf16.msra.mxu0 0
        %1768 = vmatprep.subr.bf16.mxu0 0
        %1769 = vmatpush1.bf16.msra.mxu0 0
        %1770 = vmatprep.subr.bf16.mxu0 0
        %1771 = vmatpush1.bf16.msra.mxu0 0
        %1772 = vmatprep.subr.bf16.mxu0 0
        %1773 = vmatpush1.bf16.msra.mxu0 0
        %1774 = vmatprep.subr.bf16.mxu0 0
        %1775 = vmatpush1.bf16.msra.mxu0 0
        %1776 = vmatprep.subr.bf16.mxu0 0
        %1777 = vmatpush1.bf16.msra.mxu0 0
        %1778 = vmatprep.subr.bf16.mxu0 0
        %1779 = vmatpush1.bf16.msra.mxu0 0
        %1780 = vmatprep.subr.bf16.mxu0 0
        %1781 = vmatpush1.bf16.msra.mxu0 0
        %1782 = vmatprep.subr.bf16.mxu0 0
        %1783 = vmatpush1.bf16.msra.mxu0 0
        %1784 = vmatprep.subr.bf16.mxu0 0
        %1785 = vmatpush1.bf16.msra.mxu0 0
        %1786 = vmatprep.subr.bf16.mxu0 0
        %1787 = vmatpush1.bf16.msra.mxu0 0
        %1788 = vmatprep.mubr.bf16.mxu0 0
        %1789 = vmatmul.mubr.bf16.gmra.mrb[0].mxu0 %v1754
        %v1790 = vpop.f32.mrb[0].mxu0
        %v1791 = vadd.f32 0.0, %v1790
        %v1792 = vpop.f32.mrb[0].mxu0
        %v1793 = vpop.f32.mrb[0].mxu0
        %v1794 = vadd.f32 0.0, %v1793
        %v1795 = vpop.f32.mrb[0].mxu0
        %1796 = vdwg.mxu0
        %v1797 = vpack.c.bf16 %v1794, %v1791
        %1798 = vst.msk [vmem:[#allocation2] sm:$0xff] %vm757, %v1797
        %1799 = vrot.lane.b32.xlu0 %v1672, 120
        %v1800 = vpop.permute.xlu0 %1799
        %1801 = vrot.lane.b32.xlu0 %v1672, 88
        %v1802 = vpop.permute.xlu0 %1801
        %v1804 = vsel %vm757, %v1800, 0
        %v1807 = vsel %vm757, %v1802, 0
        %1809 = vmatprep.subr.bf16.mxu0 0
        %1810 = vmatpush1.bf16.xpose.msra.mxu0 %v1807
        %1811 = vmatprep.subr.bf16.mxu0 0
        %1812 = vmatpush1.bf16.xpose.msra.mxu0 0
        %1813 = vmatprep.subr.bf16.mxu0 0
        %1814 = vmatpush1.bf16.xpose.msra.mxu0 0
        %1815 = vmatprep.subr.bf16.mxu0 0
        %1816 = vmatpush1.bf16.xpose.msra.mxu0 0
        %1817 = vmatprep.subr.bf16.mxu0 0
        %1818 = vmatpush1.bf16.xpose.msra.mxu0 0
        %1819 = vmatprep.subr.bf16.mxu0 0
        %1820 = vmatpush1.bf16.xpose.msra.mxu0 0
        %1821 = vmatprep.subr.bf16.mxu0 0
        %1822 = vmatpush1.bf16.xpose.msra.mxu0 0
        %1823 = vmatprep.subr.bf16.mxu0 0
        %1824 = vmatpush1.bf16.xpose.msra.mxu0 0
        %1825 = vmatprep.subr.bf16.mxu0 0
        %1826 = vmatpush1.bf16.xpose.msra.mxu0 0
        %1827 = vmatprep.subr.bf16.mxu0 0
        %1828 = vmatpush1.bf16.xpose.msra.mxu0 0
        %1829 = vmatprep.subr.bf16.mxu0 0
        %1830 = vmatpush1.bf16.xpose.msra.mxu0 0
        %1831 = vmatprep.subr.bf16.mxu0 0
        %1832 = vmatpush1.bf16.xpose.msra.mxu0 0
        %1833 = vmatprep.subr.bf16.mxu0 0
        %1834 = vmatpush1.bf16.xpose.msra.mxu0 0
        %1835 = vmatprep.subr.bf16.mxu0 0
        %1836 = vmatpush1.bf16.xpose.msra.mxu0 0
        %1837 = vmatprep.subr.bf16.mxu0 0
        %1838 = vmatpush1.bf16.xpose.msra.mxu0 0
        %1839 = vmatprep.subr.bf16.mxu0 0
        %1840 = vmatpush1.bf16.xpose.msra.mxu0 0
        %1841 = vmatprep.mubr.bf16.mxu0 0
        %1842 = vmatmul.mubr.bf16.gmra.mrb[0].mxu0 %v1804
        %v1843 = vpop.f32.mrb[0].mxu0
        %v1844 = vadd.f32 0.0, %v1843
        %v1845 = vpop.f32.mrb[0].mxu0
        %v1846 = vpop.f32.mrb[0].mxu0
        %v1847 = vadd.f32 0.0, %v1846
        %v1848 = vpop.f32.mrb[0].mxu0
        %1849 = vdwg.mxu0
        %v1850 = vmul.f32 %v1844, 0.35355338
        %v1851 = vmul.f32 %v1847, 0.35355338
        %v1852 = vadd.f32 %v1850, %v681
        %v1853 = vadd.f32 %v1851, %v681
        %v1854 = vsel %vm809, %v1852, -inf
        %1855 = vmax.xlane.f32.xlu0 %v1854
        %v1856 = vpop.xlane.xlu0 %1855
        %v1857 = vsel %vm809, %v1853, -inf
        %1858 = vmax.xlane.f32.xlu0 %v1857
        %v1859 = vpop.xlane.xlu0 %1858
        %v1860 = vsub.f32 %v1852, %v1856
        %v1861 = vsub.f32 %v1853, %v1859
        %v1862 = vmul.f32 %v1860, 1.442695
        %v1863 = vpow.pop %v1862
        %v1864 = vmul.f32 %v1861, 1.442695
        %v1865 = vpow.pop %v1864
        %v1866 = vsel %vm809, %v1863, 0.0
        %1867 = vadd.xlane.f32.xlu0 %v1866
        %v1868 = vpop.xlane.xlu0 %1867
        %v1869 = vsel %vm809, %v1865, 0.0
        %1870 = vadd.xlane.f32.xlu0 %v1869
        %v1871 = vpop.xlane.xlu0 %1870
        %v1872 = vrcp.pop %v1868
        %v1873 = vrcp.pop %v1871
        %v1874 = vmul.f32 %v1863, %v1872
        %v1875 = vmul.f32 %v1865, %v1873
        %v1876 = vpack.c.bf16 %v1875, %v1874
        %1877 = vrot.lane.b32.xlu0 %v1672, 56
        %v1878 = vpop.permute.xlu0 %1877
        %v1881 = vsel %vm809, %v1876, 0
        %1883 = vmatprep.subr.bf16.mxu0 0
        %1884 = vmatpush1.bf16.msra.mxu0 %v1878
        %1885 = vmatprep.subr.bf16.mxu0 0
        %1886 = vmatpush1.bf16.msra.mxu0 0
        %1887 = vmatprep.subr.bf16.mxu0 0
        %1888 = vmatpush1.bf16.msra.mxu0 0
        %1889 = vmatprep.subr.bf16.mxu0 0
        %1890 = vmatpush1.bf16.msra.mxu0 0
        %1891 = vmatprep.subr.bf16.mxu0 0
        %1892 = vmatpush1.bf16.msra.mxu0 0
        %1893 = vmatprep.subr.bf16.mxu0 0
        %1894 = vmatpush1.bf16.msra.mxu0 0
        %1895 = vmatprep.subr.bf16.mxu0 0
        %1896 = vmatpush1.bf16.msra.mxu0 0
        %1897 = vmatprep.subr.bf16.mxu0 0
        %1898 = vmatpush1.bf16.msra.mxu0 0
        %1899 = vmatprep.subr.bf16.mxu0 0
        %1900 = vmatpush1.bf16.msra.mxu0 0
        %1901 = vmatprep.subr.bf16.mxu0 0
        %1902 = vmatpush1.bf16.msra.mxu0 0
        %1903 = vmatprep.subr.bf16.mxu0 0
        %1904 = vmatpush1.bf16.msra.mxu0 0
        %1905 = vmatprep.subr.bf16.mxu0 0
        %1906 = vmatpush1.bf16.msra.mxu0 0
        %1907 = vmatprep.subr.bf16.mxu0 0
        %1908 = vmatpush1.bf16.msra.mxu0 0
        %1909 = vmatprep.subr.bf16.mxu0 0
        %1910 = vmatpush1.bf16.msra.mxu0 0
        %1911 = vmatprep.subr.bf16.mxu0 0
        %1912 = vmatpush1.bf16.msra.mxu0 0
        %1913 = vmatprep.subr.bf16.mxu0 0
        %1914 = vmatpush1.bf16.msra.mxu0 0
        %1915 = vmatprep.mubr.bf16.mxu0 0
        %1916 = vmatmul.mubr.bf16.gmra.mrb[0].mxu0 %v1881
        %v1917 = vpop.f32.mrb[0].mxu0
        %v1918 = vadd.f32 0.0, %v1917
        %v1919 = vpop.f32.mrb[0].mxu0
        %v1920 = vpop.f32.mrb[0].mxu0
        %v1921 = vadd.f32 0.0, %v1920
        %v1922 = vpop.f32.mrb[0].mxu0
        %1923 = vdwg.mxu0
        %v1924 = vpack.c.bf16 %v1921, %v1918
        %1926 = vrot.lane.b32.xlu0 %v1924, 8
        %v1927 = vpop.permute.xlu0 %1926
        %1929 = vst.msk [vmem:[#allocation2] sm:$0xff] %vm1012, %v1927
        %1930 = vrot.lane.b32.xlu0 %v1672, 112
        %v1931 = vpop.permute.xlu0 %1930
        %1932 = vrot.lane.b32.xlu0 %v1672, 80
        %v1933 = vpop.permute.xlu0 %1932
        %v1935 = vsel %vm757, %v1931, 0
        %v1938 = vsel %vm757, %v1933, 0
        %1940 = vmatprep.subr.bf16.mxu0 0
        %1941 = vmatpush1.bf16.xpose.msra.mxu0 %v1938
        %1942 = vmatprep.subr.bf16.mxu0 0
        %1943 = vmatpush1.bf16.xpose.msra.mxu0 0
        %1944 = vmatprep.subr.bf16.mxu0 0
        %1945 = vmatpush1.bf16.xpose.msra.mxu0 0
        %1946 = vmatprep.subr.bf16.mxu0 0
        %1947 = vmatpush1.bf16.xpose.msra.mxu0 0
        %1948 = vmatprep.subr.bf16.mxu0 0
        %1949 = vmatpush1.bf16.xpose.msra.mxu0 0
        %1950 = vmatprep.subr.bf16.mxu0 0
        %1951 = vmatpush1.bf16.xpose.msra.mxu0 0
        %1952 = vmatprep.subr.bf16.mxu0 0
        %1953 = vmatpush1.bf16.xpose.msra.mxu0 0
        %1954 = vmatprep.subr.bf16.mxu0 0
        %1955 = vmatpush1.bf16.xpose.msra.mxu0 0
        %1956 = vmatprep.subr.bf16.mxu0 0
        %1957 = vmatpush1.bf16.xpose.msra.mxu0 0
        %1958 = vmatprep.subr.bf16.mxu0 0
        %1959 = vmatpush1.bf16.xpose.msra.mxu0 0
        %1960 = vmatprep.subr.bf16.mxu0 0
        %1961 = vmatpush1.bf16.xpose.msra.mxu0 0
        %1962 = vmatprep.subr.bf16.mxu0 0
        %1963 = vmatpush1.bf16.xpose.msra.mxu0 0
        %1964 = vmatprep.subr.bf16.mxu0 0
        %1965 = vmatpush1.bf16.xpose.msra.mxu0 0
        %1966 = vmatprep.subr.bf16.mxu0 0
        %1967 = vmatpush1.bf16.xpose.msra.mxu0 0
        %1968 = vmatprep.subr.bf16.mxu0 0
        %1969 = vmatpush1.bf16.xpose.msra.mxu0 0
        %1970 = vmatprep.subr.bf16.mxu0 0
        %1971 = vmatpush1.bf16.xpose.msra.mxu0 0
        %1972 = vmatprep.mubr.bf16.mxu0 0
        %1973 = vmatmul.mubr.bf16.gmra.mrb[0].mxu0 %v1935
        %v1974 = vpop.f32.mrb[0].mxu0
        %v1975 = vadd.f32 0.0, %v1974
        %v1976 = vpop.f32.mrb[0].mxu0
        %v1977 = vpop.f32.mrb[0].mxu0
        %v1978 = vadd.f32 0.0, %v1977
        %v1979 = vpop.f32.mrb[0].mxu0
        %1980 = vdwg.mxu0
        %v1981 = vmul.f32 %v1975, 0.35355338
        %v1982 = vmul.f32 %v1978, 0.35355338
        %v1983 = vadd.f32 %v1981, %v681
        %v1984 = vadd.f32 %v1982, %v681
        %v1985 = vsel %vm809, %v1983, -inf
        %1986 = vmax.xlane.f32.xlu0 %v1985
        %v1987 = vpop.xlane.xlu0 %1986
        %v1988 = vsel %vm809, %v1984, -inf
        %1989 = vmax.xlane.f32.xlu0 %v1988
        %v1990 = vpop.xlane.xlu0 %1989
        %v1991 = vsub.f32 %v1983, %v1987
        %v1992 = vsub.f32 %v1984, %v1990
        %v1993 = vmul.f32 %v1991, 1.442695
        %v1994 = vpow.pop %v1993
        %v1995 = vmul.f32 %v1992, 1.442695
        %v1996 = vpow.pop %v1995
        %v1997 = vsel %vm809, %v1994, 0.0
        %1998 = vadd.xlane.f32.xlu0 %v1997
        %v1999 = vpop.xlane.xlu0 %1998
        %v2000 = vsel %vm809, %v1996, 0.0
        %2001 = vadd.xlane.f32.xlu0 %v2000
        %v2002 = vpop.xlane.xlu0 %2001
        %v2003 = vrcp.pop %v1999
        %v2004 = vrcp.pop %v2002
        %v2005 = vmul.f32 %v1994, %v2003
        %v2006 = vmul.f32 %v1996, %v2004
        %v2007 = vpack.c.bf16 %v2006, %v2005
        %2008 = vrot.lane.b32.xlu0 %v1672, 48
        %v2009 = vpop.permute.xlu0 %2008
        %v2012 = vsel %vm809, %v2007, 0
        %2014 = vmatprep.subr.bf16.mxu0 0
        %2015 = vmatpush1.bf16.msra.mxu0 %v2009
        %2016 = vmatprep.subr.bf16.mxu0 0
        %2017 = vmatpush1.bf16.msra.mxu0 0
        %2018 = vmatprep.subr.bf16.mxu0 0
        %2019 = vmatpush1.bf16.msra.mxu0 0
        %2020 = vmatprep.subr.bf16.mxu0 0
        %2021 = vmatpush1.bf16.msra.mxu0 0
        %2022 = vmatprep.subr.bf16.mxu0 0
        %2023 = vmatpush1.bf16.msra.mxu0 0
        %2024 = vmatprep.subr.bf16.mxu0 0
        %2025 = vmatpush1.bf16.msra.mxu0 0
        %2026 = vmatprep.subr.bf16.mxu0 0
        %2027 = vmatpush1.bf16.msra.mxu0 0
        %2028 = vmatprep.subr.bf16.mxu0 0
        %2029 = vmatpush1.bf16.msra.mxu0 0
        %2030 = vmatprep.subr.bf16.mxu0 0
        %2031 = vmatpush1.bf16.msra.mxu0 0
        %2032 = vmatprep.subr.bf16.mxu0 0
        %2033 = vmatpush1.bf16.msra.mxu0 0
        %2034 = vmatprep.subr.bf16.mxu0 0
        %2035 = vmatpush1.bf16.msra.mxu0 0
        %2036 = vmatprep.subr.bf16.mxu0 0
        %2037 = vmatpush1.bf16.msra.mxu0 0
        %2038 = vmatprep.subr.bf16.mxu0 0
        %2039 = vmatpush1.bf16.msra.mxu0 0
        %2040 = vmatprep.subr.bf16.mxu0 0
        %2041 = vmatpush1.bf16.msra.mxu0 0
        %2042 = vmatprep.subr.bf16.mxu0 0
        %2043 = vmatpush1.bf16.msra.mxu0 0
        %2044 = vmatprep.subr.bf16.mxu0 0
        %2045 = vmatpush1.bf16.msra.mxu0 0
        %2046 = vmatprep.mubr.bf16.mxu0 0
        %2047 = vmatmul.mubr.bf16.gmra.mrb[0].mxu0 %v2012
        %v2048 = vpop.f32.mrb[0].mxu0
        %v2049 = vadd.f32 0.0, %v2048
        %v2050 = vpop.f32.mrb[0].mxu0
        %v2051 = vpop.f32.mrb[0].mxu0
        %v2052 = vadd.f32 0.0, %v2051
        %v2053 = vpop.f32.mrb[0].mxu0
        %2054 = vdwg.mxu0
        %v2055 = vpack.c.bf16 %v2052, %v2049
        %2057 = vrot.lane.b32.xlu0 %v2055, 16
        %v2058 = vpop.permute.xlu0 %2057
        %2060 = vst.msk [vmem:[#allocation2] sm:$0xff] %vm1144, %v2058
        %2061 = vrot.lane.b32.xlu0 %v1672, 104
        %v2062 = vpop.permute.xlu0 %2061
        %2063 = vrot.lane.b32.xlu0 %v1672, 72
        %v2064 = vpop.permute.xlu0 %2063
        %v2066 = vsel %vm757, %v2062, 0
        %v2069 = vsel %vm757, %v2064, 0
        %2071 = vmatprep.subr.bf16.mxu0 0
        %2072 = vmatpush1.bf16.xpose.msra.mxu0 %v2069
        %2073 = vmatprep.subr.bf16.mxu0 0
        %2074 = vmatpush1.bf16.xpose.msra.mxu0 0
        %2075 = vmatprep.subr.bf16.mxu0 0
        %2076 = vmatpush1.bf16.xpose.msra.mxu0 0
        %2077 = vmatprep.subr.bf16.mxu0 0
        %2078 = vmatpush1.bf16.xpose.msra.mxu0 0
        %2079 = vmatprep.subr.bf16.mxu0 0
        %2080 = vmatpush1.bf16.xpose.msra.mxu0 0
        %2081 = vmatprep.subr.bf16.mxu0 0
        %2082 = vmatpush1.bf16.xpose.msra.mxu0 0
        %2083 = vmatprep.subr.bf16.mxu0 0
        %2084 = vmatpush1.bf16.xpose.msra.mxu0 0
        %2085 = vmatprep.subr.bf16.mxu0 0
        %2086 = vmatpush1.bf16.xpose.msra.mxu0 0
        %2087 = vmatprep.subr.bf16.mxu0 0
        %2088 = vmatpush1.bf16.xpose.msra.mxu0 0
        %2089 = vmatprep.subr.bf16.mxu0 0
        %2090 = vmatpush1.bf16.xpose.msra.mxu0 0
        %2091 = vmatprep.subr.bf16.mxu0 0
        %2092 = vmatpush1.bf16.xpose.msra.mxu0 0
        %2093 = vmatprep.subr.bf16.mxu0 0
        %2094 = vmatpush1.bf16.xpose.msra.mxu0 0
        %2095 = vmatprep.subr.bf16.mxu0 0
        %2096 = vmatpush1.bf16.xpose.msra.mxu0 0
        %2097 = vmatprep.subr.bf16.mxu0 0
        %2098 = vmatpush1.bf16.xpose.msra.mxu0 0
        %2099 = vmatprep.subr.bf16.mxu0 0
        %2100 = vmatpush1.bf16.xpose.msra.mxu0 0
        %2101 = vmatprep.subr.bf16.mxu0 0
        %2102 = vmatpush1.bf16.xpose.msra.mxu0 0
        %2103 = vmatprep.mubr.bf16.mxu0 0
        %2104 = vmatmul.mubr.bf16.gmra.mrb[0].mxu0 %v2066
        %v2105 = vpop.f32.mrb[0].mxu0
        %v2106 = vadd.f32 0.0, %v2105
        %v2107 = vpop.f32.mrb[0].mxu0
        %v2108 = vpop.f32.mrb[0].mxu0
        %v2109 = vadd.f32 0.0, %v2108
        %v2110 = vpop.f32.mrb[0].mxu0
        %2111 = vdwg.mxu0
        %v2112 = vmul.f32 %v2106, 0.35355338
        %v2113 = vmul.f32 %v2109, 0.35355338
        %v2114 = vadd.f32 %v2112, %v681
        %v2115 = vadd.f32 %v2113, %v681
        %v2116 = vsel %vm809, %v2114, -inf
        %2117 = vmax.xlane.f32.xlu0 %v2116
        %v2118 = vpop.xlane.xlu0 %2117
        %v2119 = vsel %vm809, %v2115, -inf
        %2120 = vmax.xlane.f32.xlu0 %v2119
        %v2121 = vpop.xlane.xlu0 %2120
        %v2122 = vsub.f32 %v2114, %v2118
        %v2123 = vsub.f32 %v2115, %v2121
        %v2124 = vmul.f32 %v2122, 1.442695
        %v2125 = vpow.pop %v2124
        %v2126 = vmul.f32 %v2123, 1.442695
        %v2127 = vpow.pop %v2126
        %v2128 = vsel %vm809, %v2125, 0.0
        %2129 = vadd.xlane.f32.xlu0 %v2128
        %v2130 = vpop.xlane.xlu0 %2129
        %v2131 = vsel %vm809, %v2127, 0.0
        %2132 = vadd.xlane.f32.xlu0 %v2131
        %v2133 = vpop.xlane.xlu0 %2132
        %v2134 = vrcp.pop %v2130
        %v2135 = vrcp.pop %v2133
        %v2136 = vmul.f32 %v2125, %v2134
        %v2137 = vmul.f32 %v2127, %v2135
        %v2138 = vpack.c.bf16 %v2137, %v2136
        %2139 = vrot.lane.b32.xlu0 %v1672, 40
        %v2140 = vpop.permute.xlu0 %2139
        %v2143 = vsel %vm809, %v2138, 0
        %2145 = vmatprep.subr.bf16.mxu0 0
        %2146 = vmatpush1.bf16.msra.mxu0 %v2140
        %2147 = vmatprep.subr.bf16.mxu0 0
        %2148 = vmatpush1.bf16.msra.mxu0 0
        %2149 = vmatprep.subr.bf16.mxu0 0
        %2150 = vmatpush1.bf16.msra.mxu0 0
        %2151 = vmatprep.subr.bf16.mxu0 0
        %2152 = vmatpush1.bf16.msra.mxu0 0
        %2153 = vmatprep.subr.bf16.mxu0 0
        %2154 = vmatpush1.bf16.msra.mxu0 0
        %2155 = vmatprep.subr.bf16.mxu0 0
        %2156 = vmatpush1.bf16.msra.mxu0 0
        %2157 = vmatprep.subr.bf16.mxu0 0
        %2158 = vmatpush1.bf16.msra.mxu0 0
        %2159 = vmatprep.subr.bf16.mxu0 0
        %2160 = vmatpush1.bf16.msra.mxu0 0
        %2161 = vmatprep.subr.bf16.mxu0 0
        %2162 = vmatpush1.bf16.msra.mxu0 0
        %2163 = vmatprep.subr.bf16.mxu0 0
        %2164 = vmatpush1.bf16.msra.mxu0 0
        %2165 = vmatprep.subr.bf16.mxu0 0
        %2166 = vmatpush1.bf16.msra.mxu0 0
        %2167 = vmatprep.subr.bf16.mxu0 0
        %2168 = vmatpush1.bf16.msra.mxu0 0
        %2169 = vmatprep.subr.bf16.mxu0 0
        %2170 = vmatpush1.bf16.msra.mxu0 0
        %2171 = vmatprep.subr.bf16.mxu0 0
        %2172 = vmatpush1.bf16.msra.mxu0 0
        %2173 = vmatprep.subr.bf16.mxu0 0
        %2174 = vmatpush1.bf16.msra.mxu0 0
        %2175 = vmatprep.subr.bf16.mxu0 0
        %2176 = vmatpush1.bf16.msra.mxu0 0
        %2177 = vmatprep.mubr.bf16.mxu0 0
        %2178 = vmatmul.mubr.bf16.gmra.mrb[0].mxu0 %v2143
        %v2179 = vpop.f32.mrb[0].mxu0
        %v2180 = vadd.f32 0.0, %v2179
        %v2181 = vpop.f32.mrb[0].mxu0
        %v2182 = vpop.f32.mrb[0].mxu0
        %v2183 = vadd.f32 0.0, %v2182
        %v2184 = vpop.f32.mrb[0].mxu0
        %2185 = vdwg.mxu0
        %v2186 = vpack.c.bf16 %v2183, %v2180
        %2188 = vrot.lane.b32.xlu0 %v2186, 24
        %v2189 = vpop.permute.xlu0 %2188
        %2191 = vst.msk [vmem:[#allocation2] sm:$0xff] %vm1276, %v2189
        %v2192 = vld [vmem:[#allocation2] sm:$0xff]
        %s2193 = scalar_lea.vmem %s3, 16
        %v2194 = vld [vmem:[%s2193] sm:$0xf]
        %v2195 = vld [vmem:[%s2193 + $0x4] sm:$0xf]
        %v2196 = vld [vmem:[%s2193 + $0x8] sm:$0xf]
        %v2197 = vld [vmem:[%s2193 + $0xc] sm:$0xf]
        %s2198 = scalar_lea.vmem [#allocation6], 1
        %v2199 = vld [vmem:[%s2198] sm:$0x1]
        %v2201 = vlaneseq
        %v2202 = vshrl.u32 %v2201, 7
        %v2203 = vsub.s32 0, %v2202
        %v2204 = vrot.slane %v2199, %v2203
        %v2210 = vunpack.c.l.b16 %v2194
        %v2211 = vunpack.c.l.b16 %v2195
        %v2212 = vunpack.c.l.b16 %v2196
        %v2213 = vunpack.c.l.b16 %v2197
        %v2214 = vpack.c.b16 %v2211, %v2210
        %v2215 = vpack.c.b16 %v2213, %v2212
        %v2219 = vsel %vm708, %v2192, 0
        %2221 = vmatprep.subr.bf16.mxu0 0
        %2222 = vmatpush1.bf16.msra.mxu0 %v2214
        %2223 = vmatprep.subr.bf16.mxu0 0
        %2224 = vmatpush1.bf16.msra.mxu0 %v2215
        %2225 = vmatprep.subr.bf16.mxu0 0
        %2226 = vmatpush1.bf16.msra.mxu0 0
        %2227 = vmatprep.subr.bf16.mxu0 0
        %2228 = vmatpush1.bf16.msra.mxu0 0
        %2229 = vmatprep.subr.bf16.mxu0 0
        %2230 = vmatpush1.bf16.msra.mxu0 0
        %2231 = vmatprep.subr.bf16.mxu0 0
        %2232 = vmatpush1.bf16.msra.mxu0 0
        %2233 = vmatprep.subr.bf16.mxu0 0
        %2234 = vmatpush1.bf16.msra.mxu0 0
        %2235 = vmatprep.subr.bf16.mxu0 0
        %2236 = vmatpush1.bf16.msra.mxu0 0
        %2237 = vmatprep.subr.bf16.mxu0 0
        %2238 = vmatpush1.bf16.msra.mxu0 0
        %2239 = vmatprep.subr.bf16.mxu0 0
        %2240 = vmatpush1.bf16.msra.mxu0 0
        %2241 = vmatprep.subr.bf16.mxu0 0
        %2242 = vmatpush1.bf16.msra.mxu0 0
        %2243 = vmatprep.subr.bf16.mxu0 0
        %2244 = vmatpush1.bf16.msra.mxu0 0
        %2245 = vmatprep.subr.bf16.mxu0 0
        %2246 = vmatpush1.bf16.msra.mxu0 0
        %2247 = vmatprep.subr.bf16.mxu0 0
        %2248 = vmatpush1.bf16.msra.mxu0 0
        %2249 = vmatprep.subr.bf16.mxu0 0
        %2250 = vmatpush1.bf16.msra.mxu0 0
        %2251 = vmatprep.subr.bf16.mxu0 0
        %2252 = vmatpush1.bf16.msra.mxu0 0
        %2253 = vmatprep.mubr.bf16.mxu0 0
        %2254 = vmatmul.mubr.bf16.gmra.mrb[0].mxu0 %v2219
        %v2255 = vpop.f32.mrb[0].mxu0
        %v2256 = vadd.f32 %v2204, %v2255
        %v2257 = vpop.f32.mrb[0].mxu0
        %v2258 = vpop.f32.mrb[0].mxu0
        %v2259 = vadd.f32 %v2204, %v2258
        %v2260 = vpop.f32.mrb[0].mxu0
        %2261 = vdwg.mxu0
        %v2262 = vadd.f32 %v1600, %v2256
        %v2263 = vadd.f32 %v1601, %v2259
        %s2264 = scalar_lea.vmem [#allocation8], 1
        %v2265 = vld [vmem:[%s2264] sm:$0x1]
        %s2266 = scalar_lea.vmem [#allocation9], 1
        %v2267 = vld [vmem:[%s2266] sm:$0x1]
        %v2268 = vsel %vm708, %v2262, 0.0
        %2269 = vadd.xlane.f32.xlu0 %v2268
        %v2270 = vpop.xlane.xlu0 %2269
        %v2271 = vsel %vm708, %v2263, 0.0
        %2272 = vadd.xlane.f32.xlu0 %v2271
        %v2273 = vpop.xlane.xlu0 %2272
        %v2274 = vmul.f32 %v2270, %v1356
        %v2275 = vmul.f32 %v2273, %v1356
        %v2276 = vsub.f32 %v2262, %v2274
        %v2277 = vsub.f32 %v2263, %v2275
        %v2278 = vmul.f32 %v2276, %v2276
        %v2279 = vmul.f32 %v2277, %v2277
        %v2280 = vsel %vm708, %v2278, 0.0
        %2281 = vadd.xlane.f32.xlu0 %v2280
        %v2282 = vpop.xlane.xlu0 %2281
        %v2283 = vsel %vm708, %v2279, 0.0
        %2284 = vadd.xlane.f32.xlu0 %v2283
        %v2285 = vpop.xlane.xlu0 %2284
        %v2286 = vmul.f32 %v2282, %v1356
        %v2287 = vmul.f32 %v2285, %v1356
        %v2288 = vadd.f32 %v2286, 1e-05
        %v2289 = vadd.f32 %v2287, 1e-05
        %v2290 = vrsqrt.pop %v2288
        %v2291 = vrsqrt.pop %v2289
        %v2292 = vmul.f32 %v2276, %v2290
        %v2293 = vmul.f32 %v2277, %v2291
        %v2295 = vlaneseq
        %v2296 = vshrl.u32 %v2295, 7
        %v2297 = vsub.s32 0, %v2296
        %v2298 = vrot.slane %v2265, %v2297
        %v2300 = vmul.f32 %v2292, %v2298
        %v2301 = vmul.f32 %v2293, %v2298
        %v2303 = vlaneseq
        %v2304 = vshrl.u32 %v2303, 7
        %v2305 = vsub.s32 0, %v2304
        %v2306 = vrot.slane %v2267, %v2305
        %v2308 = vadd.f32 %v2300, %v2306
        %v2309 = vadd.f32 %v2301, %v2306
        %v2310 = vpack.c.bf16 %v2309, %v2308
        %s2311 = scalar_lea.vmem [#allocation11], 16
        %v2312 = vld [vmem:[%s2311] sm:$0xf]
        %v2313 = vld [vmem:[%s2311 + $0x4] sm:$0xf]
        %v2314 = vld [vmem:[%s2311 + $0x8] sm:$0xf]
        %v2315 = vld [vmem:[%s2311 + $0xc] sm:$0xf]
        %s2316 = scalar_lea.vmem [#allocation12], 1
        %v2317 = vld [vmem:[%s2316] sm:$0x1]
        %v2319 = vlaneseq
        %v2320 = vshrl.u32 %v2319, 7
        %v2321 = vsub.s32 0, %v2320
        %v2322 = vrot.slane %v2317, %v2321
        %v2328 = vunpack.c.l.b16 %v2312
        %v2329 = vunpack.c.l.b16 %v2313
        %v2330 = vunpack.c.l.b16 %v2314
        %v2331 = vunpack.c.l.b16 %v2315
        %v2332 = vpack.c.b16 %v2329, %v2328
        %v2333 = vpack.c.b16 %v2331, %v2330
        %v2337 = vsel %vm708, %v2310, 0
        %2339 = vmatprep.subr.bf16.mxu0 0
        %2340 = vmatpush1.bf16.msra.mxu0 %v2332
        %2341 = vmatprep.subr.bf16.mxu0 0
        %2342 = vmatpush1.bf16.msra.mxu0 %v2333
        %2343 = vmatprep.subr.bf16.mxu0 0
        %2344 = vmatpush1.bf16.msra.mxu0 0
        %2345 = vmatprep.subr.bf16.mxu0 0
        %2346 = vmatpush1.bf16.msra.mxu0 0
        %2347 = vmatprep.subr.bf16.mxu0 0
        %2348 = vmatpush1.bf16.msra.mxu0 0
        %2349 = vmatprep.subr.bf16.mxu0 0
        %2350 = vmatpush1.bf16.msra.mxu0 0
        %2351 = vmatprep.subr.bf16.mxu0 0
        %2352 = vmatpush1.bf16.msra.mxu0 0
        %2353 = vmatprep.subr.bf16.mxu0 0
        %2354 = vmatpush1.bf16.msra.mxu0 0
        %2355 = vmatprep.subr.bf16.mxu0 0
        %2356 = vmatpush1.bf16.msra.mxu0 0
        %2357 = vmatprep.subr.bf16.mxu0 0
        %2358 = vmatpush1.bf16.msra.mxu0 0
        %2359 = vmatprep.subr.bf16.mxu0 0
        %2360 = vmatpush1.bf16.msra.mxu0 0
        %2361 = vmatprep.subr.bf16.mxu0 0
        %2362 = vmatpush1.bf16.msra.mxu0 0
        %2363 = vmatprep.subr.bf16.mxu0 0
        %2364 = vmatpush1.bf16.msra.mxu0 0
        %2365 = vmatprep.subr.bf16.mxu0 0
        %2366 = vmatpush1.bf16.msra.mxu0 0
        %2367 = vmatprep.subr.bf16.mxu0 0
        %2368 = vmatpush1.bf16.msra.mxu0 0
        %2369 = vmatprep.subr.bf16.mxu0 0
        %2370 = vmatpush1.bf16.msra.mxu0 0
        %2371 = vmatprep.mubr.bf16.mxu0 0
        %2372 = vmatmul.mubr.bf16.gmra.mrb[0].mxu0 %v2337
        %v2373 = vpop.f32.mrb[0].mxu0
        %v2374 = vadd.f32 %v2322, %v2373
        %v2375 = vpop.f32.mrb[0].mxu0
        %v2376 = vpop.f32.mrb[0].mxu0
        %v2377 = vadd.f32 %v2322, %v2376
        %v2378 = vpop.f32.mrb[0].mxu0
        %2379 = vdwg.mxu0
        %v2380 = vmul.f32 %v2374, 0.5
        %v2381 = vmul.f32 %v2377, 0.5
        %v2382 = vmul.f32 %v2374, 0.70710677
        %v2383 = vmul.f32 %v2377, 0.70710677
        %v2384 = verf.f32.pop %v2382
        %v2385 = verf.f32.pop %v2383
        %v2386 = vadd.f32 %v2384, 1.0
        %v2387 = vadd.f32 %v2385, 1.0
        %v2388 = vmul.f32 %v2380, %v2386
        %v2389 = vmul.f32 %v2381, %v2387
        %v2390 = vpack.c.bf16 %v2389, %v2388
        %s2391 = scalar_lea.vmem %s9, 32
        %v2392 = vld [vmem:[%s2391] sm:$0xf]
        %v2393 = vld [vmem:[%s2391 + $0x4] sm:$0xf]
        %v2394 = vld [vmem:[%s2391 + $0x8] sm:$0xf]
        %v2395 = vld [vmem:[%s2391 + $0xc] sm:$0xf]
        %v2396 = vld [vmem:[%s2391 + $0x10] sm:$0xf]
        %v2397 = vld [vmem:[%s2391 + $0x14] sm:$0xf]
        %v2398 = vld [vmem:[%s2391 + $0x18] sm:$0xf]
        %v2399 = vld [vmem:[%s2391 + $0x1c] sm:$0xf]
        %s2400 = scalar_lea.vmem [#allocation14], 1
        %v2401 = vld [vmem:[%s2400] sm:$0x1]
        %v2403 = vlaneseq
        %v2404 = vshrl.u32 %v2403, 7
        %v2405 = vsub.s32 0, %v2404
        %v2406 = vrot.slane %v2401, %v2405
        %v2416 = vunpack.c.l.b16 %v2392
        %v2417 = vunpack.c.l.b16 %v2393
        %v2418 = vunpack.c.l.b16 %v2394
        %v2419 = vunpack.c.l.b16 %v2395
        %v2420 = vunpack.c.l.b16 %v2396
        %v2421 = vunpack.c.l.b16 %v2397
        %v2422 = vunpack.c.l.b16 %v2398
        %v2423 = vunpack.c.l.b16 %v2399
        %v2424 = vpack.c.b16 %v2417, %v2416
        %v2425 = vpack.c.b16 %v2419, %v2418
        %v2426 = vpack.c.b16 %v2421, %v2420
        %v2427 = vpack.c.b16 %v2423, %v2422
        %v2433 = vsel %vm1511, %v2390, 0
        %2435 = vmatprep.subr.bf16.mxu0 0
        %2436 = vmatpush1.bf16.msra.mxu0 %v2424
        %2437 = vmatprep.subr.bf16.mxu0 0
        %2438 = vmatpush1.bf16.msra.mxu0 %v2425
        %2439 = vmatprep.subr.bf16.mxu0 0
        %2440 = vmatpush1.bf16.msra.mxu0 %v2426
        %2441 = vmatprep.subr.bf16.mxu0 0
        %2442 = vmatpush1.bf16.msra.mxu0 %v2427
        %2443 = vmatprep.subr.bf16.mxu0 0
        %2444 = vmatpush1.bf16.msra.mxu0 0
        %2445 = vmatprep.subr.bf16.mxu0 0
        %2446 = vmatpush1.bf16.msra.mxu0 0
        %2447 = vmatprep.subr.bf16.mxu0 0
        %2448 = vmatpush1.bf16.msra.mxu0 0
        %2449 = vmatprep.subr.bf16.mxu0 0
        %2450 = vmatpush1.bf16.msra.mxu0 0
        %2451 = vmatprep.subr.bf16.mxu0 0
        %2452 = vmatpush1.bf16.msra.mxu0 0
        %2453 = vmatprep.subr.bf16.mxu0 0
        %2454 = vmatpush1.bf16.msra.mxu0 0
        %2455 = vmatprep.subr.bf16.mxu0 0
        %2456 = vmatpush1.bf16.msra.mxu0 0
        %2457 = vmatprep.subr.bf16.mxu0 0
        %2458 = vmatpush1.bf16.msra.mxu0 0
        %2459 = vmatprep.subr.bf16.mxu0 0
        %2460 = vmatpush1.bf16.msra.mxu0 0
        %2461 = vmatprep.subr.bf16.mxu0 0
        %2462 = vmatpush1.bf16.msra.mxu0 0
        %2463 = vmatprep.subr.bf16.mxu0 0
        %2464 = vmatpush1.bf16.msra.mxu0 0
        %2465 = vmatprep.subr.bf16.mxu0 0
        %2466 = vmatpush1.bf16.msra.mxu0 0
        %2467 = vmatprep.mubr.bf16.mxu0 0
        %2468 = vmatmul.mubr.bf16.gmra.mrb[0].mxu0 %v2433
        %v2469 = vpop.f32.mrb[0].mxu0
        %v2470 = vadd.f32 %v2406, %v2469
        %v2471 = vpop.f32.mrb[0].mxu0
        %v2472 = vpop.f32.mrb[0].mxu0
        %v2473 = vpop.f32.mrb[0].mxu0
        %2474 = vdwg.mxu0
        %v2475 = vadd.f32 %v2308, %v2470
        %s2476 = scalar_lea.vmem [#allocation15], 1
        %v2477 = vld [vmem:[%s2476] sm:$0x1]
        %s2478 = scalar_lea.vmem [#allocation17], 1
        %v2479 = vld [vmem:[%s2478] sm:$0x1]
        %v2480 = vsel %vm708, %v2475, 0.0
        %2481 = vadd.xlane.f32.xlu0 %v2480
        %v2482 = vpop.xlane.xlu0 %2481
        %v2483 = vmul.f32 %v2482, %v1356
        %v2484 = vsub.f32 %v2475, %v2483
        %v2485 = vmul.f32 %v2484, %v2484
        %v2486 = vsel %vm708, %v2485, 0.0
        %2487 = vadd.xlane.f32.xlu0 %v2486
        %v2488 = vpop.xlane.xlu0 %2487
        %v2489 = vmul.f32 %v2488, %v1356
        %v2490 = vadd.f32 %v2489, 1e-05
        %v2491 = vrsqrt.pop %v2490
        %v2492 = vmul.f32 %v2484, %v2491
        %v2494 = vlaneseq
        %v2495 = vshrl.u32 %v2494, 7
        %v2496 = vsub.s32 0, %v2495
        %v2497 = vrot.slane %v2477, %v2496
        %v2499 = vmul.f32 %v2492, %v2497
        %v2501 = vlaneseq
        %v2502 = vshrl.u32 %v2501, 7
        %v2503 = vsub.s32 0, %v2502
        %v2504 = vrot.slane %v2479, %v2503
        %v2506 = vadd.f32 %v2499, %v2504
        %v2507 = vld [vmem:[%s13] sm:$0x1]
        %v2508 = vld [vmem:[%s14] sm:$0x1]
        %vm2509 = vcmask 253952
        %v2510 = vsel %vm2509, %v2506, 0.0
        %2511 = vadd.xlane.f32.xlu0 %v2510
        %v2512 = vpop.xlane.xlu0 %2511
        %v2513 = vmul.f32 %v2512, %v1356
        %v2514 = vsub.f32 %v2506, %v2513
        %v2515 = vmul.f32 %v2514, %v2514
        %v2516 = vsel %vm2509, %v2515, 0.0
        %2517 = vadd.xlane.f32.xlu0 %v2516
        %v2518 = vpop.xlane.xlu0 %2517
        %v2519 = vmul.f32 %v2518, %v1356
        %v2520 = vadd.f32 %v2519, 1e-05
        %v2521 = vrsqrt.pop %v2520
        %v2522 = vmul.f32 %v2514, %v2521
        %v2523 = vmul.f32 %v2522, %v2507
        %v2524 = vadd.f32 %v2523, %v2508
        %v2525 = vpack.c.bf16 %v2524, %v2524
        %v2526 = vld [vmem:[%s15] sm:$0xf]
        %v2527 = vld [vmem:[%s15 + $0x4] sm:$0xf]
        %v2528 = vld [vmem:[%s15 + $0x8] sm:$0xf]
        %v2529 = vld [vmem:[%s15 + $0xc] sm:$0xf]
        %v2530 = vld [vmem:[%s16] sm:$0x1]
        %v2535 = vunpack.c.l.b16 %v2526
        %v2536 = vunpack.c.l.b16 %v2527
        %v2537 = vunpack.c.l.b16 %v2528
        %v2538 = vunpack.c.l.b16 %v2529
        %v2539 = vpack.c.b16 %v2536, %v2535
        %v2540 = vpack.c.b16 %v2538, %v2537
        %v2544 = vsel %vm708, %v2525, 0
        %2546 = vmatprep.subr.bf16.mxu0 0
        %2547 = vmatpush1.bf16.msra.mxu0 %v2539
        %2548 = vmatprep.subr.bf16.mxu0 0
        %2549 = vmatpush1.bf16.msra.mxu0 %v2540
        %2550 = vmatprep.subr.bf16.mxu0 0
        %2551 = vmatpush1.bf16.msra.mxu0 0
        %2552 = vmatprep.subr.bf16.mxu0 0
        %2553 = vmatpush1.bf16.msra.mxu0 0
        %2554 = vmatprep.subr.bf16.mxu0 0
        %2555 = vmatpush1.bf16.msra.mxu0 0
        %2556 = vmatprep.subr.bf16.mxu0 0
        %2557 = vmatpush1.bf16.msra.mxu0 0
        %2558 = vmatprep.subr.bf16.mxu0 0
        %2559 = vmatpush1.bf16.msra.mxu0 0
        %2560 = vmatprep.subr.bf16.mxu0 0
        %2561 = vmatpush1.bf16.msra.mxu0 0
        %2562 = vmatprep.subr.bf16.mxu0 0
        %2563 = vmatpush1.bf16.msra.mxu0 0
        %2564 = vmatprep.subr.bf16.mxu0 0
        %2565 = vmatpush1.bf16.msra.mxu0 0
        %2566 = vmatprep.subr.bf16.mxu0 0
        %2567 = vmatpush1.bf16.msra.mxu0 0
        %2568 = vmatprep.subr.bf16.mxu0 0
        %2569 = vmatpush1.bf16.msra.mxu0 0
        %2570 = vmatprep.subr.bf16.mxu0 0
        %2571 = vmatpush1.bf16.msra.mxu0 0
        %2572 = vmatprep.subr.bf16.mxu0 0
        %2573 = vmatpush1.bf16.msra.mxu0 0
        %2574 = vmatprep.subr.bf16.mxu0 0
        %2575 = vmatpush1.bf16.msra.mxu0 0
        %2576 = vmatprep.subr.bf16.mxu0 0
        %2577 = vmatpush1.bf16.msra.mxu0 0
        %2578 = vmatprep.mubr.bf16.mxu0 0
        %2579 = vmatmul.mubr.bf16.gmra.mrb[0].mxu0 %v2544
        %v2580 = vpop.f32.mrb[0].mxu0
        %v2581 = vadd.f32 %v2530, %v2580
        %v2582 = vpop.f32.mrb[0].mxu0
        %v2583 = vpop.f32.mrb[0].mxu0
        %v2584 = vpop.f32.mrb[0].mxu0
        %2585 = vdwg.mxu0
        %2586 = vst [vmem:[%s671] sm:$0x1] %v2581
        %s2587 = sand.u32 %s406, 1
        %s2588 = scalar_lea.sflag [#allocation5], %s2587
        %s2589 = sand.u32 %s406, 1
        %s2590 = scalar_lea.vmem [#allocation18], %s2589
        // Predicated region
        $region125: #{tpu_custom_call.1} parent=87 // pred_check
          %p2591 = pneg %p416
        $region126: #{tpu_custom_call.1} parent=87 // pred_check_branch
          %2593 = sbr.rel (%p2591) target = $region128
        $region127: #{tpu_custom_call.1} parent=87 // pred_region
          %s2595 = ssub.s32 16, 16
          %2596 = vsyncadd %s2588, %s2595
          %s2597 = smul.addr %s36, 16
          %s2598 = scalar_lea.hbm %s17, %s2597
          %s2600 = sshll.u32 %s2590, 4
          %s2601 = int_to_ptr.vmem [resolvable:$true] %s2600
          %2603 = dma.vmem_to_hbm [thread:$0]  %s2601, 16, %s2598, %s2588
        $region128: #{tpu_custom_call.1} parent=87 // pred_fallthru
          _
      $region88: #{tpu_custom_call.1} parent=5 // pred_fallthru
        _
      %p2604 = scmp.le.s32.totalorder 2, %s31
      // Predicated region
      $region129: #{tpu_custom_call.1} parent=5 // pred_check
        %p2605 = pneg %p2604
      $region130: #{tpu_custom_call.1} parent=5 // pred_check_branch
        %2607 = sbr.rel (%p2605) target = $region132
      $region131: #{tpu_custom_call.1} parent=5 // pred_region
        %s2608 = ssub.s32 %s31, 2
        // Predicated region
        $region133: #{tpu_custom_call.1} parent=131 // pred_check
          %p2609 = pneg %p422
        $region134: #{tpu_custom_call.1} parent=131 // pred_check_branch
          %2611 = sbr.rel (%p2609) target = $region136
        $region135: #{tpu_custom_call.1} parent=131 // pred_region
          %s2612 = sand.u32 %s407, 1
          %s2613 = scalar_lea.sflag [#allocation5], %s2612
          %s2614 = sand.u32 %s407, 1
          %s2615 = scalar_lea.vmem [#allocation18], %s2614
          %2616 = dma.done %s2613, 16
        $region136: #{tpu_custom_call.1} parent=131 // pred_fallthru
          _
      $region132: #{tpu_custom_call.1} parent=5 // pred_fallthru
        _
    $region6: #{tpu_custom_call.1} parent=1 // loop_footer
      %s35 = sadd.s32 1, %s31
    $region7: #{tpu_custom_call.1} parent=1 // loop_footer_branch
      %30 = sbr.rel target = $region3
    $region8: #{tpu_custom_call.1} parent=1 // loop_exit
      _
    %2617 = vsyncpa [#allocation4], 1
    %s2618 = scalar_lea.sflag [#allocation4], 1
    %2619 = vsyncpa %s2618, 1
    %2620 = vsyncpa [#allocation7], 1
    %2621 = vsyncpa [#allocation10], 1
    %2622 = vsyncpa [#allocation13], 1
    %2623 = vsyncpa [#allocation16], 1
    %2624 = vsyncpa [#allocation5], 1
    %s2625 = scalar_lea.sflag [#allocation5], 1
    %2626 = vsyncpa %s2625, 1

</llo_original>
